<compile_context>
chip_gen: v7x
topology: tpu7x:2x2x1
jax: 0.10.0
libtpu: 0.0.40
codegen_flags: <defaults>
</compile_context>

<pallas_src>
import functools

import jax
import jax.numpy as jnp
from jax import lax
from jax.experimental import pallas as pl
from jax.experimental.pallas import tpu as pltpu

BN_EPS = 1e-5


def _wide_basic_kernel(x_ref, s1_ref, o1_ref, w1_ref, b1_ref,
                       s2_ref, o2_ref, w2_ref, ws_ref, bsc_ref,
                       out_ref, *, H, W):
    """WideBasic forward for one image (grid over batch).

    x_ref   : (1, H*W, Cin)  f32   flattened NHWC image
    s1/o1   : (1, Cin)       f32   folded eval-mode bn1 scale / offset
    w1_ref  : (9, Cin, Cp)   bf16  conv1 taps (tap-major, lane-padded planes)
    b1_ref  : (1, Cp)        f32   conv1 bias
    s2/o2   : (1, Cp)        f32   folded eval-mode bn2 scale / offset
    w2_ref  : (9, Cp, Cp)    bf16  conv2 taps
    ws_ref  : (Cin, Cp)      bf16  1x1 shortcut conv
    bsc_ref : (1, Cp)        f32   shortcut bias + conv2 bias (folded)
    out_ref : (1, H*W, Cp)   f32
    """
    HW = H * W
    x = x_ref[0]                                              # (HW, Cin) f32

    # Border masks for the 3x3 taps (shared by conv1 and conv2).
    flat = lax.broadcasted_iota(jnp.int32, (HW, 1), 0)
    col = flat % W
    not_top = flat >= W
    not_bot = flat < (H - 1) * W
    not_left = col >= 1
    not_right = col < (W - 1)

    def conv3x3(h, w_ref, acc0):
        """3x3 same-padding conv as 9 shifted MXU matmuls.

        Row/col shifts are one pltpu.roll on the flattened (H*W, C) activation
        (XLU slot) plus a border mask (VALU) -- no pad scratch, no unaligned
        slices.  h: (HW, C) f32; w_ref: (9, C, Cp) bf16; acc0 broadcasts to
        (HW, Cp) f32.
        """
        acc = acc0
        for dy in range(3):
            for dx in range(3):
                shift = ((1 - dy) * W + (1 - dx)) % HW
                t = pltpu.roll(h, shift, 0) if shift else h
                mask = None
                if dy == 0:
                    mask = not_top
                elif dy == 2:
                    mask = not_bot
                if dx == 0:
                    mask = not_left if mask is None else jnp.logical_and(mask, not_left)
                elif dx == 2:
                    mask = not_right if mask is None else jnp.logical_and(mask, not_right)
                if mask is not None:
                    t = jnp.where(mask, t, 0.0)
                acc = acc + jnp.dot(t.astype(jnp.bfloat16), w_ref[3 * dy + dx],
                                    preferred_element_type=jnp.float32)
        return acc

    # bn1 (eval-mode affine) + relu, elementwise in f32.
    h1 = jnp.maximum(x * s1_ref[...] + o1_ref[...], 0.0)

    # 1x1 conv shortcut; seeds conv2's accumulator (includes folded conv2 bias).
    sc = jnp.dot(x.astype(jnp.bfloat16), ws_ref[...],
                 preferred_element_type=jnp.float32) + bsc_ref[...]

    # conv1 (+ bias); dropout is inference-mode identity.
    out1 = conv3x3(h1, w1_ref, b1_ref[...])

    # bn2 + relu.
    h2 = jnp.maximum(out1 * s2_ref[...] + o2_ref[...], 0.0)

    # conv2 accumulated on top of the shortcut; store (lane-dense Cp).
    out_ref[0] = conv3x3(h2, w2_ref, sc)


def wide_basic_forward(x_nchw, p):
    """Pallas-backed WideBasic forward (inference). x_nchw: (N, Cin, H, W) f32."""
    N, Cin, H, W = x_nchw.shape
    Cout = p["w1_hwio"].shape[-1]
    Cp = ((Cout + 127) // 128) * 128           # lane-pad planes -> dense stores

    x = jnp.transpose(x_nchw, (0, 2, 3, 1)).reshape(N, H * W, Cin)

    def cpad(a, axis=-1):
        pads = [(0, 0)] * a.ndim
        pads[axis] = (0, Cp - Cout)
        return jnp.pad(a, pads)

    # Fold eval-mode batchnorm into per-channel scale / offset.
    inv1 = p["g1"] / jnp.sqrt(p["v1"] + BN_EPS)
    s1 = inv1[None, :]
    o1 = (p["be1"] - p["m1"] * inv1)[None, :]
    inv2 = p["g2"] / jnp.sqrt(p["v2"] + BN_EPS)
    s2 = cpad(inv2)[None, :]
    o2 = cpad(p["be2"] - p["m2"] * inv2)[None, :]

    # Weights: HWIO -> tap-major (9, C, Cp) in bf16 for the MXU.
    w1 = cpad(p["w1_hwio"].reshape(9, Cin, Cout)).astype(jnp.bfloat16)
    w2 = cpad(cpad(p["w2_hwio"].reshape(9, Cout, Cout), axis=1)).astype(jnp.bfloat16)
    ws = cpad(p["ws"]).astype(jnp.bfloat16)                   # (Cin, Cp)
    b1 = cpad(p["b1"])[None, :]
    bsc = cpad(p["b2"] + p["bs"])[None, :]    # conv2 bias folded into shortcut bias

    kernel = functools.partial(_wide_basic_kernel, H=H, W=W)
    out = pl.pallas_call(
        kernel,
        out_shape=jax.ShapeDtypeStruct((N, H * W, Cp), jnp.float32),
        grid_spec=pltpu.PrefetchScalarGridSpec(
            num_scalar_prefetch=0,
            grid=(N,),
            in_specs=[
                pl.BlockSpec((1, H * W, Cin), lambda n: (n, 0, 0)),
                pl.BlockSpec((1, Cin), lambda n: (0, 0)),
                pl.BlockSpec((1, Cin), lambda n: (0, 0)),
                pl.BlockSpec((9, Cin, Cp), lambda n: (0, 0, 0)),
                pl.BlockSpec((1, Cp), lambda n: (0, 0)),
                pl.BlockSpec((1, Cp), lambda n: (0, 0)),
                pl.BlockSpec((1, Cp), lambda n: (0, 0)),
                pl.BlockSpec((9, Cp, Cp), lambda n: (0, 0, 0)),
                pl.BlockSpec((Cin, Cp), lambda n: (0, 0)),
                pl.BlockSpec((1, Cp), lambda n: (0, 0)),
            ],
            out_specs=pl.BlockSpec((1, H * W, Cp), lambda n: (n, 0, 0)),
        ),
        compiler_params=pltpu.CompilerParams(
            dimension_semantics=("parallel",)),
    )(x, s1, o1, w1, b1, s2, o2, w2, ws, bsc)

    out = out[:, :, :Cout].reshape(N, H, W, Cout)             # drop lane padding
    return jnp.transpose(out, (0, 3, 1, 2))                   # back to NCHW


# ---------------- pure-JAX reference (for correctness check) ----------------
def ref_forward(x, p):
    def bn(h, g, b, m, v):
        inv = g / jnp.sqrt(v + BN_EPS)
        return h * inv[None, :, None, None] + (b - m * inv)[None, :, None, None]

    def conv(h, w_oihw, b, pad):
        y = lax.conv_general_dilated(
            h, w_oihw, (1, 1), [(pad, pad), (pad, pad)],
            dimension_numbers=("NCHW", "OIHW", "NCHW"))
        return y + b[None, :, None, None]

    out = conv(jax.nn.relu(bn(x, p["g1"], p["be1"], p["m1"], p["v1"])),
               p["w1_oihw"], p["b1"], pad=1)
    out = conv(jax.nn.relu(bn(out, p["g2"], p["be2"], p["m2"], p["v2"])),
               p["w2_oihw"], p["b2"], pad=1)
    sc = conv(x, p["ws_oihw"], p["bs"], pad=0)
    return out + sc


def init_params(key, in_planes, planes):
    ks = jax.random.split(key, 12)
    w1_oihw = 0.1 * jax.random.normal(ks[0], (planes, in_planes, 3, 3), jnp.float32)
    w2_oihw = 0.1 * jax.random.normal(ks[1], (planes, planes, 3, 3), jnp.float32)
    ws_oihw = 0.1 * jax.random.normal(ks[2], (planes, in_planes, 1, 1), jnp.float32)
    p = dict(
        g1=1.0 + 0.1 * jax.random.normal(ks[3], (in_planes,), jnp.float32),
        be1=0.1 * jax.random.normal(ks[4], (in_planes,), jnp.float32),
        m1=0.1 * jax.random.normal(ks[5], (in_planes,), jnp.float32),
        v1=0.5 + jnp.abs(jax.random.normal(ks[6], (in_planes,), jnp.float32)),
        g2=1.0 + 0.1 * jax.random.normal(ks[7], (planes,), jnp.float32),
        be2=0.1 * jax.random.normal(ks[8], (planes,), jnp.float32),
        m2=0.1 * jax.random.normal(ks[9], (planes,), jnp.float32),
        v2=0.5 + jnp.abs(jax.random.normal(ks[10], (planes,), jnp.float32)),
        b1=0.1 * jax.random.normal(ks[11], (planes,), jnp.float32),
        b2=jnp.linspace(-0.1, 0.1, planes).astype(jnp.float32),
        bs=jnp.linspace(0.05, -0.05, planes).astype(jnp.float32),
        w1_oihw=w1_oihw, w2_oihw=w2_oihw, ws_oihw=ws_oihw,
        # HWIO versions for the kernel
        w1_hwio=jnp.transpose(w1_oihw, (2, 3, 1, 0)),
        w2_hwio=jnp.transpose(w2_oihw, (2, 3, 1, 0)),
        ws=jnp.transpose(ws_oihw[:, :, 0, 0], (1, 0)),        # (Cin, Cout)
    )
    return p


if __name__ == "__main__":
    N, in_planes, planes, H, W = 2, 4, 8, 16, 16   # stride = 1

    key = jax.random.PRNGKey(0)
    x = jax.random.normal(key, (N, in_planes, H, W), jnp.float32)
    params = init_params(jax.random.PRNGKey(1), in_planes, planes)

    out = wide_basic_forward(x, params)
    out = jax.block_until_ready(out)

    ref = jax.block_until_ready(ref_forward(x, params))
    assert out.shape == (N, planes, H, W)
    # bf16 MXU operands with f32 accumulation -> bf16-level tolerance vs f32 ref.
    assert jnp.allclose(out, ref, atol=5e-2, rtol=5e-2), float(jnp.max(jnp.abs(out - ref)))

    print("KERNEL_OK")
</pallas_src>

<mosaic_0001>
module attributes {stable_mosaic.version = 11 : i64} {
  func.func @_wide_basic_kernel(%arg0: i32, %arg1: memref<1x256x4xf32, #tpu.memory_space<vmem>>, %arg2: memref<1x4xf32, #tpu.memory_space<vmem>>, %arg3: memref<1x4xf32, #tpu.memory_space<vmem>>, %arg4: memref<9x4x128xbf16, #tpu.memory_space<vmem>>, %arg5: memref<1x128xf32, #tpu.memory_space<vmem>>, %arg6: memref<1x128xf32, #tpu.memory_space<vmem>>, %arg7: memref<1x128xf32, #tpu.memory_space<vmem>>, %arg8: memref<9x128x128xbf16, #tpu.memory_space<vmem>>, %arg9: memref<4x128xbf16, #tpu.memory_space<vmem>>, %arg10: memref<1x128xf32, #tpu.memory_space<vmem>>, %arg11: memref<1x256x128xf32, #tpu.memory_space<vmem>>) attributes {dimension_semantics = [#tpu.dimension_semantics<parallel>], iteration_bounds = array<i64: 2>, scalar_prefetch = 0 : i64, scratch_operands = 0 : i64, tpu.core_type = #tpu.core_type<tc>, window_params = [{transform_indices = @transform_0, window_bounds = array<i64: 1, 256, 4>}, {pipeline_mode = #tpu.pipeline_mode<synchronous>, transform_indices = @transform_1, window_bounds = array<i64: 1, 4>}, {pipeline_mode = #tpu.pipeline_mode<synchronous>, transform_indices = @transform_2, window_bounds = array<i64: 1, 4>}, {pipeline_mode = #tpu.pipeline_mode<synchronous>, transform_indices = @transform_3, window_bounds = array<i64: 9, 4, 128>}, {pipeline_mode = #tpu.pipeline_mode<synchronous>, transform_indices = @transform_4, window_bounds = array<i64: 1, 128>}, {pipeline_mode = #tpu.pipeline_mode<synchronous>, transform_indices = @transform_5, window_bounds = array<i64: 1, 128>}, {pipeline_mode = #tpu.pipeline_mode<synchronous>, transform_indices = @transform_6, window_bounds = array<i64: 1, 128>}, {pipeline_mode = #tpu.pipeline_mode<synchronous>, transform_indices = @transform_7, window_bounds = array<i64: 9, 128, 128>}, {pipeline_mode = #tpu.pipeline_mode<synchronous>, transform_indices = @transform_8, window_bounds = array<i64: 4, 128>}, {pipeline_mode = #tpu.pipeline_mode<synchronous>, transform_indices = @transform_9, window_bounds = array<i64: 1, 128>}, {transform_indices = @transform_10, window_bounds = array<i64: 1, 256, 128>}]} {
    %c0 = arith.constant 0 : index
    %c0_0 = arith.constant 0 : index
    %c0_1 = arith.constant 0 : index
    %0 = vector.load %arg1[%c0, %c0_0, %c0_1] : memref<1x256x4xf32, #tpu.memory_space<vmem>>, vector<1x256x4xf32>
    %1 = vector.shape_cast %0 : vector<1x256x4xf32> to vector<256x4xf32>
    %2 = tpu.iota {dimensions = array<i32: 0>} : vector<256x1xi32>
    %c16_i32 = arith.constant 16 : i32
    %c0_i32 = arith.constant 0 : i32
    %3 = arith.cmpi eq, %c16_i32, %c0_i32 : i32
    %c1_i32 = arith.constant 1 : i32
    %4 = arith.select %3, %c1_i32, %c16_i32 : i32
    %5 = vector.broadcast %4 : i32 to vector<256x1xi32>
    %6 = arith.remsi %2, %5 : vector<256x1xi32>
    %c0_i32_2 = arith.constant 0 : i32
    %7 = vector.broadcast %c0_i32_2 : i32 to vector<256x1xi32>
    %8 = arith.cmpi ne, %6, %7 : vector<256x1xi32>
    %c0_i32_3 = arith.constant 0 : i32
    %9 = vector.broadcast %c0_i32_3 : i32 to vector<256x1xi32>
    %10 = arith.cmpi slt, %6, %9 : vector<256x1xi32>
    %c0_i32_4 = arith.constant 0 : i32
    %11 = arith.cmpi slt, %4, %c0_i32_4 : i32
    %12 = vector.broadcast %11 : i1 to vector<256x1xi1>
    %13 = vector.broadcast %12 : vector<256x1xi1> to vector<256x1xi1>
    %14 = arith.xori %10, %13 : vector<256x1xi1>
    %15 = arith.andi %14, %8 : vector<256x1xi1>
    %16 = vector.broadcast %4 : i32 to vector<256x1xi32>
    %17 = arith.addi %6, %16 : vector<256x1xi32>
    %18 = arith.select %15, %17, %6 : vector<256x1xi1>, vector<256x1xi32>
    %c16_i32_5 = arith.constant 16 : i32
    %19 = vector.broadcast %c16_i32_5 : i32 to vector<256x1xi32>
    %20 = arith.cmpi sge, %2, %19 : vector<256x1xi32>
    %c240_i32 = arith.constant 240 : i32
    %21 = vector.broadcast %c240_i32 : i32 to vector<256x1xi32>
    %22 = arith.cmpi slt, %2, %21 : vector<256x1xi32>
    %c1_i32_6 = arith.constant 1 : i32
    %23 = vector.broadcast %c1_i32_6 : i32 to vector<256x1xi32>
    %24 = arith.cmpi sge, %18, %23 : vector<256x1xi32>
    %c15_i32 = arith.constant 15 : i32
    %25 = vector.broadcast %c15_i32 : i32 to vector<256x1xi32>
    %26 = arith.cmpi slt, %18, %25 : vector<256x1xi32>
    %c0_7 = arith.constant 0 : index
    %c0_8 = arith.constant 0 : index
    %27 = vector.load %arg2[%c0_7, %c0_8] : memref<1x4xf32, #tpu.memory_space<vmem>>, vector<1x4xf32>
    %28 = vector.broadcast %27 : vector<1x4xf32> to vector<256x4xf32>
    %29 = arith.mulf %1, %28 : vector<256x4xf32>
    %c0_9 = arith.constant 0 : index
    %c0_10 = arith.constant 0 : index
    %30 = vector.load %arg3[%c0_9, %c0_10] : memref<1x4xf32, #tpu.memory_space<vmem>>, vector<1x4xf32>
    %31 = vector.broadcast %30 : vector<1x4xf32> to vector<256x4xf32>
    %32 = arith.addf %29, %31 : vector<256x4xf32>
    %cst = arith.constant 0.000000e+00 : f32
    %33 = vector.broadcast %cst : f32 to vector<256x4xf32>
    %34 = arith.maximumf %32, %33 : vector<256x4xf32>
    %35 = arith.truncf %1 : vector<256x4xf32> to vector<256x4xbf16>
    %c0_11 = arith.constant 0 : index
    %c0_12 = arith.constant 0 : index
    %36 = vector.load %arg9[%c0_11, %c0_12] : memref<4x128xbf16, #tpu.memory_space<vmem>>, vector<4x128xbf16>
    %cst_13 = arith.constant dense<0.000000e+00> : vector<256x128xf32>
    %37 = tpu.matmul %35, %36, %cst_13 {dimension_numbers = #tpu.dot_dimension_numbers<[1], [0], [0], [1], [0, 0, 1, 1], [], []>} : vector<256x4xbf16>, vector<4x128xbf16>, vector<256x128xf32> -> vector<256x128xf32>
    %c0_14 = arith.constant 0 : index
    %c0_15 = arith.constant 0 : index
    %38 = vector.load %arg10[%c0_14, %c0_15] : memref<1x128xf32, #tpu.memory_space<vmem>>, vector<1x128xf32>
    %39 = vector.broadcast %38 : vector<1x128xf32> to vector<256x128xf32>
    %40 = arith.addf %37, %39 : vector<256x128xf32>
    %c0_16 = arith.constant 0 : index
    %c0_17 = arith.constant 0 : index
    %41 = vector.load %arg5[%c0_16, %c0_17] : memref<1x128xf32, #tpu.memory_space<vmem>>, vector<1x128xf32>
    %c17_i32 = arith.constant 17 : i32
    %42 = tpu.dynamic_rotate %34 by %c17_i32 dim 0 : vector<256x4xf32>, i32 -> vector<256x4xf32>
    %43 = arith.andi %20, %24 : vector<256x1xi1>
    %cst_18 = arith.constant 0.000000e+00 : f32
    %44 = vector.shape_cast %43 : vector<256x1xi1> to vector<256x1xi1>
    %45 = vector.broadcast %44 : vector<256x1xi1> to vector<256x4xi1>
    %46 = vector.broadcast %cst_18 : f32 to vector<256x4xf32>
    %47 = arith.select %45, %42, %46 : vector<256x4xi1>, vector<256x4xf32>
    %48 = arith.truncf %47 : vector<256x4xf32> to vector<256x4xbf16>
    %c0_19 = arith.constant 0 : index
    %c0_20 = arith.constant 0 : index
    %c0_21 = arith.constant 0 : index
    %49 = vector.load %arg4[%c0_19, %c0_20, %c0_21] : memref<9x4x128xbf16, #tpu.memory_space<vmem>>, vector<1x4x128xbf16>
    %50 = vector.shape_cast %49 : vector<1x4x128xbf16> to vector<4x128xbf16>
    %cst_22 = arith.constant dense<0.000000e+00> : vector<256x128xf32>
    %51 = tpu.matmul %48, %50, %cst_22 {dimension_numbers = #tpu.dot_dimension_numbers<[1], [0], [0], [1], [0, 0, 1, 1], [], []>} : vector<256x4xbf16>, vector<4x128xbf16>, vector<256x128xf32> -> vector<256x128xf32>
    %52 = vector.broadcast %41 : vector<1x128xf32> to vector<256x128xf32>
    %53 = arith.addf %52, %51 : vector<256x128xf32>
    %c16_i32_23 = arith.constant 16 : i32
    %54 = tpu.dynamic_rotate %34 by %c16_i32_23 dim 0 : vector<256x4xf32>, i32 -> vector<256x4xf32>
    %cst_24 = arith.constant 0.000000e+00 : f32
    %55 = vector.shape_cast %20 : vector<256x1xi1> to vector<256x1xi1>
    %56 = vector.broadcast %55 : vector<256x1xi1> to vector<256x4xi1>
    %57 = vector.broadcast %cst_24 : f32 to vector<256x4xf32>
    %58 = arith.select %56, %54, %57 : vector<256x4xi1>, vector<256x4xf32>
    %59 = arith.truncf %58 : vector<256x4xf32> to vector<256x4xbf16>
    %c1 = arith.constant 1 : index
    %c0_25 = arith.constant 0 : index
    %c0_26 = arith.constant 0 : index
    %60 = vector.load %arg4[%c1, %c0_25, %c0_26] : memref<9x4x128xbf16, #tpu.memory_space<vmem>>, vector<1x4x128xbf16>
    %61 = vector.shape_cast %60 : vector<1x4x128xbf16> to vector<4x128xbf16>
    %cst_27 = arith.constant dense<0.000000e+00> : vector<256x128xf32>
    %62 = tpu.matmul %59, %61, %cst_27 {dimension_numbers = #tpu.dot_dimension_numbers<[1], [0], [0], [1], [0, 0, 1, 1], [], []>} : vector<256x4xbf16>, vector<4x128xbf16>, vector<256x128xf32> -> vector<256x128xf32>
    %63 = arith.addf %53, %62 : vector<256x128xf32>
    %c15_i32_28 = arith.constant 15 : i32
    %64 = tpu.dynamic_rotate %34 by %c15_i32_28 dim 0 : vector<256x4xf32>, i32 -> vector<256x4xf32>
    %65 = arith.andi %20, %26 : vector<256x1xi1>
    %cst_29 = arith.constant 0.000000e+00 : f32
    %66 = vector.shape_cast %65 : vector<256x1xi1> to vector<256x1xi1>
    %67 = vector.broadcast %66 : vector<256x1xi1> to vector<256x4xi1>
    %68 = vector.broadcast %cst_29 : f32 to vector<256x4xf32>
    %69 = arith.select %67, %64, %68 : vector<256x4xi1>, vector<256x4xf32>
    %70 = arith.truncf %69 : vector<256x4xf32> to vector<256x4xbf16>
    %c2 = arith.constant 2 : index
    %c0_30 = arith.constant 0 : index
    %c0_31 = arith.constant 0 : index
    %71 = vector.load %arg4[%c2, %c0_30, %c0_31] : memref<9x4x128xbf16, #tpu.memory_space<vmem>>, vector<1x4x128xbf16>
    %72 = vector.shape_cast %71 : vector<1x4x128xbf16> to vector<4x128xbf16>
    %cst_32 = arith.constant dense<0.000000e+00> : vector<256x128xf32>
    %73 = tpu.matmul %70, %72, %cst_32 {dimension_numbers = #tpu.dot_dimension_numbers<[1], [0], [0], [1], [0, 0, 1, 1], [], []>} : vector<256x4xbf16>, vector<4x128xbf16>, vector<256x128xf32> -> vector<256x128xf32>
    %74 = arith.addf %63, %73 : vector<256x128xf32>
    %c1_i32_33 = arith.constant 1 : i32
    %75 = tpu.dynamic_rotate %34 by %c1_i32_33 dim 0 : vector<256x4xf32>, i32 -> vector<256x4xf32>
    %cst_34 = arith.constant 0.000000e+00 : f32
    %76 = vector.shape_cast %24 : vector<256x1xi1> to vector<256x1xi1>
    %77 = vector.broadcast %76 : vector<256x1xi1> to vector<256x4xi1>
    %78 = vector.broadcast %cst_34 : f32 to vector<256x4xf32>
    %79 = arith.select %77, %75, %78 : vector<256x4xi1>, vector<256x4xf32>
    %80 = arith.truncf %79 : vector<256x4xf32> to vector<256x4xbf16>
    %c3 = arith.constant 3 : index
    %c0_35 = arith.constant 0 : index
    %c0_36 = arith.constant 0 : index
    %81 = vector.load %arg4[%c3, %c0_35, %c0_36] : memref<9x4x128xbf16, #tpu.memory_space<vmem>>, vector<1x4x128xbf16>
    %82 = vector.shape_cast %81 : vector<1x4x128xbf16> to vector<4x128xbf16>
    %cst_37 = arith.constant dense<0.000000e+00> : vector<256x128xf32>
    %83 = tpu.matmul %80, %82, %cst_37 {dimension_numbers = #tpu.dot_dimension_numbers<[1], [0], [0], [1], [0, 0, 1, 1], [], []>} : vector<256x4xbf16>, vector<4x128xbf16>, vector<256x128xf32> -> vector<256x128xf32>
    %84 = arith.addf %74, %83 : vector<256x128xf32>
    %85 = arith.truncf %34 : vector<256x4xf32> to vector<256x4xbf16>
    %c4 = arith.constant 4 : index
    %c0_38 = arith.constant 0 : index
    %c0_39 = arith.constant 0 : index
    %86 = vector.load %arg4[%c4, %c0_38, %c0_39] : memref<9x4x128xbf16, #tpu.memory_space<vmem>>, vector<1x4x128xbf16>
    %87 = vector.shape_cast %86 : vector<1x4x128xbf16> to vector<4x128xbf16>
    %cst_40 = arith.constant dense<0.000000e+00> : vector<256x128xf32>
    %88 = tpu.matmul %85, %87, %cst_40 {dimension_numbers = #tpu.dot_dimension_numbers<[1], [0], [0], [1], [0, 0, 1, 1], [], []>} : vector<256x4xbf16>, vector<4x128xbf16>, vector<256x128xf32> -> vector<256x128xf32>
    %89 = arith.addf %84, %88 : vector<256x128xf32>
    %c255_i32 = arith.constant 255 : i32
    %90 = tpu.dynamic_rotate %34 by %c255_i32 dim 0 : vector<256x4xf32>, i32 -> vector<256x4xf32>
    %cst_41 = arith.constant 0.000000e+00 : f32
    %91 = vector.shape_cast %26 : vector<256x1xi1> to vector<256x1xi1>
    %92 = vector.broadcast %91 : vector<256x1xi1> to vector<256x4xi1>
    %93 = vector.broadcast %cst_41 : f32 to vector<256x4xf32>
    %94 = arith.select %92, %90, %93 : vector<256x4xi1>, vector<256x4xf32>
    %95 = arith.truncf %94 : vector<256x4xf32> to vector<256x4xbf16>
    %c5 = arith.constant 5 : index
    %c0_42 = arith.constant 0 : index
    %c0_43 = arith.constant 0 : index
    %96 = vector.load %arg4[%c5, %c0_42, %c0_43] : memref<9x4x128xbf16, #tpu.memory_space<vmem>>, vector<1x4x128xbf16>
    %97 = vector.shape_cast %96 : vector<1x4x128xbf16> to vector<4x128xbf16>
    %cst_44 = arith.constant dense<0.000000e+00> : vector<256x128xf32>
    %98 = tpu.matmul %95, %97, %cst_44 {dimension_numbers = #tpu.dot_dimension_numbers<[1], [0], [0], [1], [0, 0, 1, 1], [], []>} : vector<256x4xbf16>, vector<4x128xbf16>, vector<256x128xf32> -> vector<256x128xf32>
    %99 = arith.addf %89, %98 : vector<256x128xf32>
    %c241_i32 = arith.constant 241 : i32
    %100 = tpu.dynamic_rotate %34 by %c241_i32 dim 0 : vector<256x4xf32>, i32 -> vector<256x4xf32>
    %101 = arith.andi %22, %24 : vector<256x1xi1>
    %cst_45 = arith.constant 0.000000e+00 : f32
    %102 = vector.shape_cast %101 : vector<256x1xi1> to vector<256x1xi1>
    %103 = vector.broadcast %102 : vector<256x1xi1> to vector<256x4xi1>
    %104 = vector.broadcast %cst_45 : f32 to vector<256x4xf32>
    %105 = arith.select %103, %100, %104 : vector<256x4xi1>, vector<256x4xf32>
    %106 = arith.truncf %105 : vector<256x4xf32> to vector<256x4xbf16>
    %c6 = arith.constant 6 : index
    %c0_46 = arith.constant 0 : index
    %c0_47 = arith.constant 0 : index
    %107 = vector.load %arg4[%c6, %c0_46, %c0_47] : memref<9x4x128xbf16, #tpu.memory_space<vmem>>, vector<1x4x128xbf16>
    %108 = vector.shape_cast %107 : vector<1x4x128xbf16> to vector<4x128xbf16>
    %cst_48 = arith.constant dense<0.000000e+00> : vector<256x128xf32>
    %109 = tpu.matmul %106, %108, %cst_48 {dimension_numbers = #tpu.dot_dimension_numbers<[1], [0], [0], [1], [0, 0, 1, 1], [], []>} : vector<256x4xbf16>, vector<4x128xbf16>, vector<256x128xf32> -> vector<256x128xf32>
    %110 = arith.addf %99, %109 : vector<256x128xf32>
    %c240_i32_49 = arith.constant 240 : i32
    %111 = tpu.dynamic_rotate %34 by %c240_i32_49 dim 0 : vector<256x4xf32>, i32 -> vector<256x4xf32>
    %cst_50 = arith.constant 0.000000e+00 : f32
    %112 = vector.shape_cast %22 : vector<256x1xi1> to vector<256x1xi1>
    %113 = vector.broadcast %112 : vector<256x1xi1> to vector<256x4xi1>
    %114 = vector.broadcast %cst_50 : f32 to vector<256x4xf32>
    %115 = arith.select %113, %111, %114 : vector<256x4xi1>, vector<256x4xf32>
    %116 = arith.truncf %115 : vector<256x4xf32> to vector<256x4xbf16>
    %c7 = arith.constant 7 : index
    %c0_51 = arith.constant 0 : index
    %c0_52 = arith.constant 0 : index
    %117 = vector.load %arg4[%c7, %c0_51, %c0_52] : memref<9x4x128xbf16, #tpu.memory_space<vmem>>, vector<1x4x128xbf16>
    %118 = vector.shape_cast %117 : vector<1x4x128xbf16> to vector<4x128xbf16>
    %cst_53 = arith.constant dense<0.000000e+00> : vector<256x128xf32>
    %119 = tpu.matmul %116, %118, %cst_53 {dimension_numbers = #tpu.dot_dimension_numbers<[1], [0], [0], [1], [0, 0, 1, 1], [], []>} : vector<256x4xbf16>, vector<4x128xbf16>, vector<256x128xf32> -> vector<256x128xf32>
    %120 = arith.addf %110, %119 : vector<256x128xf32>
    %c239_i32 = arith.constant 239 : i32
    %121 = tpu.dynamic_rotate %34 by %c239_i32 dim 0 : vector<256x4xf32>, i32 -> vector<256x4xf32>
    %122 = arith.andi %22, %26 : vector<256x1xi1>
    %cst_54 = arith.constant 0.000000e+00 : f32
    %123 = vector.shape_cast %122 : vector<256x1xi1> to vector<256x1xi1>
    %124 = vector.broadcast %123 : vector<256x1xi1> to vector<256x4xi1>
    %125 = vector.broadcast %cst_54 : f32 to vector<256x4xf32>
    %126 = arith.select %124, %121, %125 : vector<256x4xi1>, vector<256x4xf32>
    %127 = arith.truncf %126 : vector<256x4xf32> to vector<256x4xbf16>
    %c8 = arith.constant 8 : index
    %c0_55 = arith.constant 0 : index
    %c0_56 = arith.constant 0 : index
    %128 = vector.load %arg4[%c8, %c0_55, %c0_56] : memref<9x4x128xbf16, #tpu.memory_space<vmem>>, vector<1x4x128xbf16>
    %129 = vector.shape_cast %128 : vector<1x4x128xbf16> to vector<4x128xbf16>
    %cst_57 = arith.constant dense<0.000000e+00> : vector<256x128xf32>
    %130 = tpu.matmul %127, %129, %cst_57 {dimension_numbers = #tpu.dot_dimension_numbers<[1], [0], [0], [1], [0, 0, 1, 1], [], []>} : vector<256x4xbf16>, vector<4x128xbf16>, vector<256x128xf32> -> vector<256x128xf32>
    %131 = arith.addf %120, %130 : vector<256x128xf32>
    %c0_58 = arith.constant 0 : index
    %c0_59 = arith.constant 0 : index
    %132 = vector.load %arg6[%c0_58, %c0_59] : memref<1x128xf32, #tpu.memory_space<vmem>>, vector<1x128xf32>
    %133 = vector.broadcast %132 : vector<1x128xf32> to vector<256x128xf32>
    %134 = arith.mulf %131, %133 : vector<256x128xf32>
    %c0_60 = arith.constant 0 : index
    %c0_61 = arith.constant 0 : index
    %135 = vector.load %arg7[%c0_60, %c0_61] : memref<1x128xf32, #tpu.memory_space<vmem>>, vector<1x128xf32>
    %136 = vector.broadcast %135 : vector<1x128xf32> to vector<256x128xf32>
    %137 = arith.addf %134, %136 : vector<256x128xf32>
    %cst_62 = arith.constant 0.000000e+00 : f32
    %138 = vector.broadcast %cst_62 : f32 to vector<256x128xf32>
    %139 = arith.maximumf %137, %138 : vector<256x128xf32>
    %c17_i32_63 = arith.constant 17 : i32
    %140 = tpu.dynamic_rotate %139 by %c17_i32_63 dim 0 : vector<256x128xf32>, i32 -> vector<256x128xf32>
    %141 = arith.andi %20, %24 : vector<256x1xi1>
    %cst_64 = arith.constant 0.000000e+00 : f32
    %142 = vector.shape_cast %141 : vector<256x1xi1> to vector<256x1xi1>
    %143 = vector.broadcast %142 : vector<256x1xi1> to vector<256x128xi1>
    %144 = vector.broadcast %cst_64 : f32 to vector<256x128xf32>
    %145 = arith.select %143, %140, %144 : vector<256x128xi1>, vector<256x128xf32>
    %146 = arith.truncf %145 : vector<256x128xf32> to vector<256x128xbf16>
    %c0_65 = arith.constant 0 : index
    %c0_66 = arith.constant 0 : index
    %c0_67 = arith.constant 0 : index
    %147 = vector.load %arg8[%c0_65, %c0_66, %c0_67] : memref<9x128x128xbf16, #tpu.memory_space<vmem>>, vector<1x128x128xbf16>
    %148 = vector.shape_cast %147 : vector<1x128x128xbf16> to vector<128x128xbf16>
    %cst_68 = arith.constant dense<0.000000e+00> : vector<256x128xf32>
    %149 = tpu.matmul %146, %148, %cst_68 {dimension_numbers = #tpu.dot_dimension_numbers<[1], [0], [0], [1], [0, 0, 1, 1], [], []>} : vector<256x128xbf16>, vector<128x128xbf16>, vector<256x128xf32> -> vector<256x128xf32>
    %150 = arith.addf %40, %149 : vector<256x128xf32>
    %c16_i32_69 = arith.constant 16 : i32
    %151 = tpu.dynamic_rotate %139 by %c16_i32_69 dim 0 : vector<256x128xf32>, i32 -> vector<256x128xf32>
    %cst_70 = arith.constant 0.000000e+00 : f32
    %152 = vector.shape_cast %20 : vector<256x1xi1> to vector<256x1xi1>
    %153 = vector.broadcast %152 : vector<256x1xi1> to vector<256x128xi1>
    %154 = vector.broadcast %cst_70 : f32 to vector<256x128xf32>
    %155 = arith.select %153, %151, %154 : vector<256x128xi1>, vector<256x128xf32>
    %156 = arith.truncf %155 : vector<256x128xf32> to vector<256x128xbf16>
    %c1_71 = arith.constant 1 : index
    %c0_72 = arith.constant 0 : index
    %c0_73 = arith.constant 0 : index
    %157 = vector.load %arg8[%c1_71, %c0_72, %c0_73] : memref<9x128x128xbf16, #tpu.memory_space<vmem>>, vector<1x128x128xbf16>
    %158 = vector.shape_cast %157 : vector<1x128x128xbf16> to vector<128x128xbf16>
    %cst_74 = arith.constant dense<0.000000e+00> : vector<256x128xf32>
    %159 = tpu.matmul %156, %158, %cst_74 {dimension_numbers = #tpu.dot_dimension_numbers<[1], [0], [0], [1], [0, 0, 1, 1], [], []>} : vector<256x128xbf16>, vector<128x128xbf16>, vector<256x128xf32> -> vector<256x128xf32>
    %160 = arith.addf %150, %159 : vector<256x128xf32>
    %c15_i32_75 = arith.constant 15 : i32
    %161 = tpu.dynamic_rotate %139 by %c15_i32_75 dim 0 : vector<256x128xf32>, i32 -> vector<256x128xf32>
    %162 = arith.andi %20, %26 : vector<256x1xi1>
    %cst_76 = arith.constant 0.000000e+00 : f32
    %163 = vector.shape_cast %162 : vector<256x1xi1> to vector<256x1xi1>
    %164 = vector.broadcast %163 : vector<256x1xi1> to vector<256x128xi1>
    %165 = vector.broadcast %cst_76 : f32 to vector<256x128xf32>
    %166 = arith.select %164, %161, %165 : vector<256x128xi1>, vector<256x128xf32>
    %167 = arith.truncf %166 : vector<256x128xf32> to vector<256x128xbf16>
    %c2_77 = arith.constant 2 : index
    %c0_78 = arith.constant 0 : index
    %c0_79 = arith.constant 0 : index
    %168 = vector.load %arg8[%c2_77, %c0_78, %c0_79] : memref<9x128x128xbf16, #tpu.memory_space<vmem>>, vector<1x128x128xbf16>
    %169 = vector.shape_cast %168 : vector<1x128x128xbf16> to vector<128x128xbf16>
    %cst_80 = arith.constant dense<0.000000e+00> : vector<256x128xf32>
    %170 = tpu.matmul %167, %169, %cst_80 {dimension_numbers = #tpu.dot_dimension_numbers<[1], [0], [0], [1], [0, 0, 1, 1], [], []>} : vector<256x128xbf16>, vector<128x128xbf16>, vector<256x128xf32> -> vector<256x128xf32>
    %171 = arith.addf %160, %170 : vector<256x128xf32>
    %c1_i32_81 = arith.constant 1 : i32
    %172 = tpu.dynamic_rotate %139 by %c1_i32_81 dim 0 : vector<256x128xf32>, i32 -> vector<256x128xf32>
    %cst_82 = arith.constant 0.000000e+00 : f32
    %173 = vector.shape_cast %24 : vector<256x1xi1> to vector<256x1xi1>
    %174 = vector.broadcast %173 : vector<256x1xi1> to vector<256x128xi1>
    %175 = vector.broadcast %cst_82 : f32 to vector<256x128xf32>
    %176 = arith.select %174, %172, %175 : vector<256x128xi1>, vector<256x128xf32>
    %177 = arith.truncf %176 : vector<256x128xf32> to vector<256x128xbf16>
    %c3_83 = arith.constant 3 : index
    %c0_84 = arith.constant 0 : index
    %c0_85 = arith.constant 0 : index
    %178 = vector.load %arg8[%c3_83, %c0_84, %c0_85] : memref<9x128x128xbf16, #tpu.memory_space<vmem>>, vector<1x128x128xbf16>
    %179 = vector.shape_cast %178 : vector<1x128x128xbf16> to vector<128x128xbf16>
    %cst_86 = arith.constant dense<0.000000e+00> : vector<256x128xf32>
    %180 = tpu.matmul %177, %179, %cst_86 {dimension_numbers = #tpu.dot_dimension_numbers<[1], [0], [0], [1], [0, 0, 1, 1], [], []>} : vector<256x128xbf16>, vector<128x128xbf16>, vector<256x128xf32> -> vector<256x128xf32>
    %181 = arith.addf %171, %180 : vector<256x128xf32>
    %182 = arith.truncf %139 : vector<256x128xf32> to vector<256x128xbf16>
    %c4_87 = arith.constant 4 : index
    %c0_88 = arith.constant 0 : index
    %c0_89 = arith.constant 0 : index
    %183 = vector.load %arg8[%c4_87, %c0_88, %c0_89] : memref<9x128x128xbf16, #tpu.memory_space<vmem>>, vector<1x128x128xbf16>
    %184 = vector.shape_cast %183 : vector<1x128x128xbf16> to vector<128x128xbf16>
    %cst_90 = arith.constant dense<0.000000e+00> : vector<256x128xf32>
    %185 = tpu.matmul %182, %184, %cst_90 {dimension_numbers = #tpu.dot_dimension_numbers<[1], [0], [0], [1], [0, 0, 1, 1], [], []>} : vector<256x128xbf16>, vector<128x128xbf16>, vector<256x128xf32> -> vector<256x128xf32>
    %186 = arith.addf %181, %185 : vector<256x128xf32>
    %c255_i32_91 = arith.constant 255 : i32
    %187 = tpu.dynamic_rotate %139 by %c255_i32_91 dim 0 : vector<256x128xf32>, i32 -> vector<256x128xf32>
    %cst_92 = arith.constant 0.000000e+00 : f32
    %188 = vector.shape_cast %26 : vector<256x1xi1> to vector<256x1xi1>
    %189 = vector.broadcast %188 : vector<256x1xi1> to vector<256x128xi1>
    %190 = vector.broadcast %cst_92 : f32 to vector<256x128xf32>
    %191 = arith.select %189, %187, %190 : vector<256x128xi1>, vector<256x128xf32>
    %192 = arith.truncf %191 : vector<256x128xf32> to vector<256x128xbf16>
    %c5_93 = arith.constant 5 : index
    %c0_94 = arith.constant 0 : index
    %c0_95 = arith.constant 0 : index
    %193 = vector.load %arg8[%c5_93, %c0_94, %c0_95] : memref<9x128x128xbf16, #tpu.memory_space<vmem>>, vector<1x128x128xbf16>
    %194 = vector.shape_cast %193 : vector<1x128x128xbf16> to vector<128x128xbf16>
    %cst_96 = arith.constant dense<0.000000e+00> : vector<256x128xf32>
    %195 = tpu.matmul %192, %194, %cst_96 {dimension_numbers = #tpu.dot_dimension_numbers<[1], [0], [0], [1], [0, 0, 1, 1], [], []>} : vector<256x128xbf16>, vector<128x128xbf16>, vector<256x128xf32> -> vector<256x128xf32>
    %196 = arith.addf %186, %195 : vector<256x128xf32>
    %c241_i32_97 = arith.constant 241 : i32
    %197 = tpu.dynamic_rotate %139 by %c241_i32_97 dim 0 : vector<256x128xf32>, i32 -> vector<256x128xf32>
    %198 = arith.andi %22, %24 : vector<256x1xi1>
    %cst_98 = arith.constant 0.000000e+00 : f32
    %199 = vector.shape_cast %198 : vector<256x1xi1> to vector<256x1xi1>
    %200 = vector.broadcast %199 : vector<256x1xi1> to vector<256x128xi1>
    %201 = vector.broadcast %cst_98 : f32 to vector<256x128xf32>
    %202 = arith.select %200, %197, %201 : vector<256x128xi1>, vector<256x128xf32>
    %203 = arith.truncf %202 : vector<256x128xf32> to vector<256x128xbf16>
    %c6_99 = arith.constant 6 : index
    %c0_100 = arith.constant 0 : index
    %c0_101 = arith.constant 0 : index
    %204 = vector.load %arg8[%c6_99, %c0_100, %c0_101] : memref<9x128x128xbf16, #tpu.memory_space<vmem>>, vector<1x128x128xbf16>
    %205 = vector.shape_cast %204 : vector<1x128x128xbf16> to vector<128x128xbf16>
    %cst_102 = arith.constant dense<0.000000e+00> : vector<256x128xf32>
    %206 = tpu.matmul %203, %205, %cst_102 {dimension_numbers = #tpu.dot_dimension_numbers<[1], [0], [0], [1], [0, 0, 1, 1], [], []>} : vector<256x128xbf16>, vector<128x128xbf16>, vector<256x128xf32> -> vector<256x128xf32>
    %207 = arith.addf %196, %206 : vector<256x128xf32>
    %c240_i32_103 = arith.constant 240 : i32
    %208 = tpu.dynamic_rotate %139 by %c240_i32_103 dim 0 : vector<256x128xf32>, i32 -> vector<256x128xf32>
    %cst_104 = arith.constant 0.000000e+00 : f32
    %209 = vector.shape_cast %22 : vector<256x1xi1> to vector<256x1xi1>
    %210 = vector.broadcast %209 : vector<256x1xi1> to vector<256x128xi1>
    %211 = vector.broadcast %cst_104 : f32 to vector<256x128xf32>
    %212 = arith.select %210, %208, %211 : vector<256x128xi1>, vector<256x128xf32>
    %213 = arith.truncf %212 : vector<256x128xf32> to vector<256x128xbf16>
    %c7_105 = arith.constant 7 : index
    %c0_106 = arith.constant 0 : index
    %c0_107 = arith.constant 0 : index
    %214 = vector.load %arg8[%c7_105, %c0_106, %c0_107] : memref<9x128x128xbf16, #tpu.memory_space<vmem>>, vector<1x128x128xbf16>
    %215 = vector.shape_cast %214 : vector<1x128x128xbf16> to vector<128x128xbf16>
    %cst_108 = arith.constant dense<0.000000e+00> : vector<256x128xf32>
    %216 = tpu.matmul %213, %215, %cst_108 {dimension_numbers = #tpu.dot_dimension_numbers<[1], [0], [0], [1], [0, 0, 1, 1], [], []>} : vector<256x128xbf16>, vector<128x128xbf16>, vector<256x128xf32> -> vector<256x128xf32>
    %217 = arith.addf %207, %216 : vector<256x128xf32>
    %c239_i32_109 = arith.constant 239 : i32
    %218 = tpu.dynamic_rotate %139 by %c239_i32_109 dim 0 : vector<256x128xf32>, i32 -> vector<256x128xf32>
    %219 = arith.andi %22, %26 : vector<256x1xi1>
    %cst_110 = arith.constant 0.000000e+00 : f32
    %220 = vector.shape_cast %219 : vector<256x1xi1> to vector<256x1xi1>
    %221 = vector.broadcast %220 : vector<256x1xi1> to vector<256x128xi1>
    %222 = vector.broadcast %cst_110 : f32 to vector<256x128xf32>
    %223 = arith.select %221, %218, %222 : vector<256x128xi1>, vector<256x128xf32>
    %224 = arith.truncf %223 : vector<256x128xf32> to vector<256x128xbf16>
    %c8_111 = arith.constant 8 : index
    %c0_112 = arith.constant 0 : index
    %c0_113 = arith.constant 0 : index
    %225 = vector.load %arg8[%c8_111, %c0_112, %c0_113] : memref<9x128x128xbf16, #tpu.memory_space<vmem>>, vector<1x128x128xbf16>
    %226 = vector.shape_cast %225 : vector<1x128x128xbf16> to vector<128x128xbf16>
    %cst_114 = arith.constant dense<0.000000e+00> : vector<256x128xf32>
    %227 = tpu.matmul %224, %226, %cst_114 {dimension_numbers = #tpu.dot_dimension_numbers<[1], [0], [0], [1], [0, 0, 1, 1], [], []>} : vector<256x128xbf16>, vector<128x128xbf16>, vector<256x128xf32> -> vector<256x128xf32>
    %228 = arith.addf %217, %227 : vector<256x128xf32>
    %c0_115 = arith.constant 0 : index
    %c0_116 = arith.constant 0 : index
    %c0_117 = arith.constant 0 : index
    %229 = vector.load %arg11[%c0_115, %c0_116, %c0_117] : memref<1x256x128xf32, #tpu.memory_space<vmem>>, vector<1x256x128xf32>
    %230 = vector.shape_cast %229 : vector<1x256x128xf32> to vector<256x128xf32>
    %231 = vector.shape_cast %228 : vector<256x128xf32> to vector<1x256x128xf32>
    tpu.vector_store %arg11[%c0_115, %c0_116, %c0_117], %231 {strides = array<i32>} : memref<1x256x128xf32, #tpu.memory_space<vmem>>, vector<1x256x128xf32>,
    return
  }
  func.func @transform_0(%arg0: i32) -> (i32, i32, i32) {
    %c0_i32 = arith.constant 0 : i32
    %c0_i32_0 = arith.constant 0 : i32
    %c0_i32_1 = arith.constant 0 : i32
    return %arg0, %c0_i32, %c0_i32_0 : i32, i32, i32
  }
  func.func @transform_1(%arg0: i32) -> (i32, i32) {
    %c0_i32 = arith.constant 0 : i32
    %c0_i32_0 = arith.constant 0 : i32
    %c0_i32_1 = arith.constant 0 : i32
    return %c0_i32, %c0_i32_0 : i32, i32
  }
  func.func @transform_2(%arg0: i32) -> (i32, i32) {
    %c0_i32 = arith.constant 0 : i32
    %c0_i32_0 = arith.constant 0 : i32
    %c0_i32_1 = arith.constant 0 : i32
    return %c0_i32, %c0_i32_0 : i32, i32
  }
  func.func @transform_3(%arg0: i32) -> (i32, i32, i32) {
    %c0_i32 = arith.constant 0 : i32
    %c0_i32_0 = arith.constant 0 : i32
    %c0_i32_1 = arith.constant 0 : i32
    %c0_i32_2 = arith.constant 0 : i32
    return %c0_i32, %c0_i32_0, %c0_i32_1 : i32, i32, i32
  }
  func.func @transform_4(%arg0: i32) -> (i32, i32) {
    %c0_i32 = arith.constant 0 : i32
    %c0_i32_0 = arith.constant 0 : i32
    %c0_i32_1 = arith.constant 0 : i32
    return %c0_i32, %c0_i32_0 : i32, i32
  }
  func.func @transform_5(%arg0: i32) -> (i32, i32) {
    %c0_i32 = arith.constant 0 : i32
    %c0_i32_0 = arith.constant 0 : i32
    %c0_i32_1 = arith.constant 0 : i32
    return %c0_i32, %c0_i32_0 : i32, i32
  }
  func.func @transform_6(%arg0: i32) -> (i32, i32) {
    %c0_i32 = arith.constant 0 : i32
    %c0_i32_0 = arith.constant 0 : i32
    %c0_i32_1 = arith.constant 0 : i32
    return %c0_i32, %c0_i32_0 : i32, i32
  }
  func.func @transform_7(%arg0: i32) -> (i32, i32, i32) {
    %c0_i32 = arith.constant 0 : i32
    %c0_i32_0 = arith.constant 0 : i32
    %c0_i32_1 = arith.constant 0 : i32
    %c0_i32_2 = arith.constant 0 : i32
    return %c0_i32, %c0_i32_0, %c0_i32_1 : i32, i32, i32
  }
  func.func @transform_8(%arg0: i32) -> (i32, i32) {
    %c0_i32 = arith.constant 0 : i32
    %c0_i32_0 = arith.constant 0 : i32
    %c0_i32_1 = arith.constant 0 : i32
    return %c0_i32, %c0_i32_0 : i32, i32
  }
  func.func @transform_9(%arg0: i32) -> (i32, i32) {
    %c0_i32 = arith.constant 0 : i32
    %c0_i32_0 = arith.constant 0 : i32
    %c0_i32_1 = arith.constant 0 : i32
    return %c0_i32, %c0_i32_0 : i32, i32
  }
  func.func @transform_10(%arg0: i32) -> (i32, i32, i32) {
    %c0_i32 = arith.constant 0 : i32
    %c0_i32_0 = arith.constant 0 : i32
    %c0_i32_1 = arith.constant 0 : i32
    return %arg0, %c0_i32, %c0_i32_0 : i32, i32, i32
  }
}

</mosaic_0001>

<llo_original>
// kernel: tpu_custom_call.1
$region0: #{tpu_custom_call.1}
  #allocation0 [shape = 'u32[]', space=smem, size = 0x4, offset = 0x4, fixed_abs, tag = 'smem constant byte address 0x4 - core index']
  #allocation1 [shape = 'u32[144,128]{1,0:T(1,128)}', space=vmem, size = 0x12000, scoped, tag = 'internal scratch']
  %s0 = inlined_call_operand.vmem [shape: f32[2,256,4], index: 0, kind: input, shape index: {}]
  %s1 = inlined_call_operand.vmem [shape: f32[1,4], index: 1, kind: input, shape index: {}]
  %s2 = inlined_call_operand.vmem [shape: f32[1,4], index: 2, kind: input, shape index: {}]
  %s3 = inlined_call_operand.vmem [shape: bf16[9,4,128], index: 3, kind: input, shape index: {}]
  %s4 = inlined_call_operand.vmem [shape: f32[1,128], index: 4, kind: input, shape index: {}]
  %s5 = inlined_call_operand.vmem [shape: f32[1,128], index: 5, kind: input, shape index: {}]
  %s6 = inlined_call_operand.vmem [shape: f32[1,128], index: 6, kind: input, shape index: {}]
  %s7 = inlined_call_operand.hbm [shape: bf16[9,128,128], index: 7, kind: input, shape index: {}]
  %s8 = inlined_call_operand.vmem [shape: bf16[4,128], index: 8, kind: input, shape index: {}]
  %s9 = inlined_call_operand.vmem [shape: f32[1,128], index: 9, kind: input, shape index: {}]
  %s10 = inlined_call_operand.hbm [shape: f32[2,256,128], index: 10, kind: output, shape index: {}]
  %s11 = sld [smem:[#allocation0]]
  $region77: #{tpu_custom_call.1} parent=0
    _
  %s13 = ssub.s32 1, %s11
  %s14 = scalar_select 0, %s13, %s11
  $region1: #{tpu_custom_call.1} parent=0
    #allocation2 [shape = 'u8[294912]{0}', space=vmem, size = 0x48000, scoped, tag = 'input window, operand 7, single buffered']
    #allocation3 [shape = 's32[2]{0}', space=sflag, size = 0x8, scoped, tag = 'scoped memory for tpu_custom_call.1']
    #allocation4 [shape = 's32[2]{0}', space=sflag, size = 0x8, scoped, tag = 'scoped memory for tpu_custom_call.1']
    #allocation5 [shape = 'u8[262144]{0}', space=vmem, size = 0x40000, scoped, tag = 'output window, operand 0']
    %15 = vsyncpa [#allocation3], 0
    %16 = vsyncpa [#allocation4], 0
    %s17 = scalar_lea.sflag [#allocation4], 1
    %18 = vsyncpa %s17, 0
    loop: start=0, step=1, limit=4
    $region2: #{tpu_custom_call.1} parent=1 // loop_pre_header
      _
    $region3: #{tpu_custom_call.1} parent=1 // loop_header
      %s20 = sphi 0, %s24
      %p21 = scmp.ge.s32.totalorder %s20, 4
      %s30 = sphi 0, %s32
      %s33 = sphi 0, %s30
      %s34 = sphi 0, %s33
      %s50 = sphi 0, %s34
      %s54 = sphi 0, %s54
      %s56 = sphi 0, %s54
      %s57 = sphi 0, %s56
      %s71 = sphi 0, %s57
      %s75 = sphi 0, %s75
      %s77 = sphi 0, %s75
      %s78 = sphi 0, %s77
      %s92 = sphi 0, %s78
      %s96 = sphi 0, %s96
      %s98 = sphi 0, %s96
      %s99 = sphi 0, %s98
      %s113 = sphi 0, %s99
      %s117 = sphi 0, %s117
      %s119 = sphi 0, %s117
      %s120 = sphi 0, %s119
      %s134 = sphi 0, %s120
      %s138 = sphi 0, %s138
      %s140 = sphi 0, %s138
      %s141 = sphi 0, %s140
      %s155 = sphi 0, %s141
      %s159 = sphi 0, %s159
      %s161 = sphi 0, %s159
      %s162 = sphi 0, %s161
      %s176 = sphi 0, %s162
      %s180 = sphi 0, %s180
      %s182 = sphi 0, %s180
      %s183 = sphi 0, %s182
      %s197 = sphi 0, %s183
      %s201 = sphi 0, %s201
      %s203 = sphi 0, %s201
      %s204 = sphi 0, %s203
      %s218 = sphi 0, %s204
      %s222 = sphi 0, %s222
      %s224 = sphi 0, %s222
      %s225 = sphi 0, %s224
      %s239 = sphi 0, %s225
      %s245 = sphi 0, %s247
      %s248 = sphi 0, %s245
      %s249 = sphi 0, %s248
      %s265 = sphi 0, %s249
    $region4: #{tpu_custom_call.1} parent=1 // loop_header_branch
      %23 = sbr.rel (%p21) target = $region8
    $region5: #{tpu_custom_call.1} parent=1 // loop_body
      %s25 = ssub.s32 %s20, 1
      %s26 = ssub.s32 %s20, 2
      %s27 = sadd.s32 %s20, 1
      %s28 = ssub.s32 %s20, %s27
      %p29 = scmp.eq.s32.totalorder %s28, 0
      %s31 = sadd.s32 %s30, 1
      %s32 = scalar_select %p29, %s30, %s31
      %p35 = pneg %p29
      %p36 = scmp.eq.s32.totalorder %s20, 1
      %p37 = por %p35, %p36
      %p38 = scmp.ne.s32.totalorder %s30, %s33
      %p39 = scmp.eq.s32.totalorder %s20, 0
      %p40 = por %p38, %p39
      %p41 = scmp.ne.s32.totalorder %s30, %s33
      %p42 = scmp.eq.s32.totalorder %s25, 1
      %p43 = por %p41, %p42
      %p44 = scmp.ne.s32.totalorder %s33, %s34
      %p45 = scmp.eq.s32.totalorder %s25, 0
      %p46 = por %p44, %p45
      %p47 = scmp.ne.s32.totalorder %s33, %s34
      %p48 = scmp.eq.s32.totalorder %s26, 1
      %p49 = por %p47, %p48
      %p51 = scmp.ne.s32.totalorder %s34, %s50
      %p52 = scmp.eq.s32.totalorder %s26, 0
      %p53 = por %p51, %p52
      %s55 = sadd.s32 %s54, 1
      %p58 = scmp.eq.s32.totalorder %s20, 1
      %p59 = scmp.ne.s32.totalorder %s54, %s56
      %p60 = scmp.eq.s32.totalorder %s20, 0
      %p61 = por %p59, %p60
      %p62 = scmp.ne.s32.totalorder %s54, %s56
      %p63 = scmp.eq.s32.totalorder %s25, 1
      %p64 = por %p62, %p63
      %p65 = scmp.ne.s32.totalorder %s56, %s57
      %p66 = scmp.eq.s32.totalorder %s25, 0
      %p67 = por %p65, %p66
      %p68 = scmp.ne.s32.totalorder %s56, %s57
      %p69 = scmp.eq.s32.totalorder %s26, 1
      %p70 = por %p68, %p69
      %p72 = scmp.ne.s32.totalorder %s57, %s71
      %p73 = scmp.eq.s32.totalorder %s26, 0
      %p74 = por %p72, %p73
      %s76 = sadd.s32 %s75, 1
      %p79 = scmp.eq.s32.totalorder %s20, 1
      %p80 = scmp.ne.s32.totalorder %s75, %s77
      %p81 = scmp.eq.s32.totalorder %s20, 0
      %p82 = por %p80, %p81
      %p83 = scmp.ne.s32.totalorder %s75, %s77
      %p84 = scmp.eq.s32.totalorder %s25, 1
      %p85 = por %p83, %p84
      %p86 = scmp.ne.s32.totalorder %s77, %s78
      %p87 = scmp.eq.s32.totalorder %s25, 0
      %p88 = por %p86, %p87
      %p89 = scmp.ne.s32.totalorder %s77, %s78
      %p90 = scmp.eq.s32.totalorder %s26, 1
      %p91 = por %p89, %p90
      %p93 = scmp.ne.s32.totalorder %s78, %s92
      %p94 = scmp.eq.s32.totalorder %s26, 0
      %p95 = por %p93, %p94
      %s97 = sadd.s32 %s96, 1
      %p100 = scmp.eq.s32.totalorder %s20, 1
      %p101 = scmp.ne.s32.totalorder %s96, %s98
      %p102 = scmp.eq.s32.totalorder %s20, 0
      %p103 = por %p101, %p102
      %p104 = scmp.ne.s32.totalorder %s96, %s98
      %p105 = scmp.eq.s32.totalorder %s25, 1
      %p106 = por %p104, %p105
      %p107 = scmp.ne.s32.totalorder %s98, %s99
      %p108 = scmp.eq.s32.totalorder %s25, 0
      %p109 = por %p107, %p108
      %p110 = scmp.ne.s32.totalorder %s98, %s99
      %p111 = scmp.eq.s32.totalorder %s26, 1
      %p112 = por %p110, %p111
      %p114 = scmp.ne.s32.totalorder %s99, %s113
      %p115 = scmp.eq.s32.totalorder %s26, 0
      %p116 = por %p114, %p115
      %s118 = sadd.s32 %s117, 1
      %p121 = scmp.eq.s32.totalorder %s20, 1
      %p122 = scmp.ne.s32.totalorder %s117, %s119
      %p123 = scmp.eq.s32.totalorder %s20, 0
      %p124 = por %p122, %p123
      %p125 = scmp.ne.s32.totalorder %s117, %s119
      %p126 = scmp.eq.s32.totalorder %s25, 1
      %p127 = por %p125, %p126
      %p128 = scmp.ne.s32.totalorder %s119, %s120
      %p129 = scmp.eq.s32.totalorder %s25, 0
      %p130 = por %p128, %p129
      %p131 = scmp.ne.s32.totalorder %s119, %s120
      %p132 = scmp.eq.s32.totalorder %s26, 1
      %p133 = por %p131, %p132
      %p135 = scmp.ne.s32.totalorder %s120, %s134
      %p136 = scmp.eq.s32.totalorder %s26, 0
      %p137 = por %p135, %p136
      %s139 = sadd.s32 %s138, 1
      %p142 = scmp.eq.s32.totalorder %s20, 1
      %p143 = scmp.ne.s32.totalorder %s138, %s140
      %p144 = scmp.eq.s32.totalorder %s20, 0
      %p145 = por %p143, %p144
      %p146 = scmp.ne.s32.totalorder %s138, %s140
      %p147 = scmp.eq.s32.totalorder %s25, 1
      %p148 = por %p146, %p147
      %p149 = scmp.ne.s32.totalorder %s140, %s141
      %p150 = scmp.eq.s32.totalorder %s25, 0
      %p151 = por %p149, %p150
      %p152 = scmp.ne.s32.totalorder %s140, %s141
      %p153 = scmp.eq.s32.totalorder %s26, 1
      %p154 = por %p152, %p153
      %p156 = scmp.ne.s32.totalorder %s141, %s155
      %p157 = scmp.eq.s32.totalorder %s26, 0
      %p158 = por %p156, %p157
      %s160 = sadd.s32 %s159, 1
      %p163 = scmp.eq.s32.totalorder %s20, 1
      %p164 = scmp.ne.s32.totalorder %s159, %s161
      %p165 = scmp.eq.s32.totalorder %s20, 0
      %p166 = por %p164, %p165
      %p167 = scmp.ne.s32.totalorder %s159, %s161
      %p168 = scmp.eq.s32.totalorder %s25, 1
      %p169 = por %p167, %p168
      %p170 = scmp.ne.s32.totalorder %s161, %s162
      %p171 = scmp.eq.s32.totalorder %s25, 0
      %p172 = por %p170, %p171
      %p173 = scmp.ne.s32.totalorder %s161, %s162
      %p174 = scmp.eq.s32.totalorder %s26, 1
      %p175 = por %p173, %p174
      %p177 = scmp.ne.s32.totalorder %s162, %s176
      %p178 = scmp.eq.s32.totalorder %s26, 0
      %p179 = por %p177, %p178
      %s181 = sadd.s32 %s180, 1
      %p184 = scmp.eq.s32.totalorder %s20, 1
      %p185 = scmp.ne.s32.totalorder %s180, %s182
      %p186 = scmp.eq.s32.totalorder %s20, 0
      %p187 = por %p185, %p186
      %p188 = scmp.ne.s32.totalorder %s180, %s182
      %p189 = scmp.eq.s32.totalorder %s25, 1
      %p190 = por %p188, %p189
      %p191 = scmp.ne.s32.totalorder %s182, %s183
      %p192 = scmp.eq.s32.totalorder %s25, 0
      %p193 = por %p191, %p192
      %p194 = scmp.ne.s32.totalorder %s182, %s183
      %p195 = scmp.eq.s32.totalorder %s26, 1
      %p196 = por %p194, %p195
      %p198 = scmp.ne.s32.totalorder %s183, %s197
      %p199 = scmp.eq.s32.totalorder %s26, 0
      %p200 = por %p198, %p199
      %s202 = sadd.s32 %s201, 1
      %p205 = scmp.eq.s32.totalorder %s20, 1
      %p206 = scmp.ne.s32.totalorder %s201, %s203
      %p207 = scmp.eq.s32.totalorder %s20, 0
      %p208 = por %p206, %p207
      %p209 = scmp.ne.s32.totalorder %s201, %s203
      %p210 = scmp.eq.s32.totalorder %s25, 1
      %p211 = por %p209, %p210
      %p212 = scmp.ne.s32.totalorder %s203, %s204
      %p213 = scmp.eq.s32.totalorder %s25, 0
      %p214 = por %p212, %p213
      %p215 = scmp.ne.s32.totalorder %s203, %s204
      %p216 = scmp.eq.s32.totalorder %s26, 1
      %p217 = por %p215, %p216
      %p219 = scmp.ne.s32.totalorder %s204, %s218
      %p220 = scmp.eq.s32.totalorder %s26, 0
      %p221 = por %p219, %p220
      %s223 = sadd.s32 %s222, 1
      %p226 = scmp.eq.s32.totalorder %s20, 1
      %p227 = scmp.ne.s32.totalorder %s222, %s224
      %p228 = scmp.eq.s32.totalorder %s20, 0
      %p229 = por %p227, %p228
      %p230 = scmp.ne.s32.totalorder %s222, %s224
      %p231 = scmp.eq.s32.totalorder %s25, 1
      %p232 = por %p230, %p231
      %p233 = scmp.ne.s32.totalorder %s224, %s225
      %p234 = scmp.eq.s32.totalorder %s25, 0
      %p235 = por %p233, %p234
      %p236 = scmp.ne.s32.totalorder %s224, %s225
      %p237 = scmp.eq.s32.totalorder %s26, 1
      %p238 = por %p236, %p237
      %p240 = scmp.ne.s32.totalorder %s225, %s239
      %p241 = scmp.eq.s32.totalorder %s26, 0
      %p242 = por %p240, %p241
      %s243 = ssub.s32 %s20, %s27
      %p244 = scmp.eq.s32.totalorder %s243, 0
      %s246 = sadd.s32 %s245, 1
      %s247 = scalar_select %p244, %s245, %s246
      %p250 = pneg %p244
      %p251 = scmp.eq.s32.totalorder %s20, 1
      %p252 = por %p250, %p251
      %p253 = scmp.ne.s32.totalorder %s245, %s248
      %p254 = scmp.eq.s32.totalorder %s20, 0
      %p255 = por %p253, %p254
      %p256 = scmp.ne.s32.totalorder %s245, %s248
      %p257 = scmp.eq.s32.totalorder %s25, 1
      %p258 = por %p256, %p257
      %p259 = scmp.ne.s32.totalorder %s248, %s249
      %p260 = scmp.eq.s32.totalorder %s25, 0
      %p261 = por %p259, %p260
      %p262 = scmp.ne.s32.totalorder %s248, %s249
      %p263 = scmp.eq.s32.totalorder %s26, 1
      %p264 = por %p262, %p263
      %p266 = scmp.ne.s32.totalorder %s249, %s265
      %p267 = scmp.eq.s32.totalorder %s26, 0
      %p268 = por %p266, %p267
      %p269 = scmp.le.s32.totalorder 1, %s20
      %p270 = scmp.lt.s32.totalorder %s20, 3
      %p271 = pnand %p269, %p270
      %p272 = pneg %p271
      // Predicated region
      $region9: #{tpu_custom_call.1} parent=5 // pred_check
        _
      $region10: #{tpu_custom_call.1} parent=5 // pred_check_branch
        %274 = sbr.rel (%p271) target = $region12
      $region11: #{tpu_custom_call.1} parent=5 // pred_region
        %s275 = ssub.s32 %s20, 1
        // Predicated region
        $region13: #{tpu_custom_call.1} parent=11 // pred_check
          %p276 = pneg %p67
        $region14: #{tpu_custom_call.1} parent=11 // pred_check_branch
          %278 = sbr.rel (%p276) target = $region16
        $region15: #{tpu_custom_call.1} parent=11 // pred_region
          _
        $region16: #{tpu_custom_call.1} parent=11 // pred_fallthru
          _
        // Predicated region
        $region17: #{tpu_custom_call.1} parent=11 // pred_check
          %p279 = pneg %p88
        $region18: #{tpu_custom_call.1} parent=11 // pred_check_branch
          %281 = sbr.rel (%p279) target = $region20
        $region19: #{tpu_custom_call.1} parent=11 // pred_region
          _
        $region20: #{tpu_custom_call.1} parent=11 // pred_fallthru
          _
        // Predicated region
        $region21: #{tpu_custom_call.1} parent=11 // pred_check
          %p282 = pneg %p109
        $region22: #{tpu_custom_call.1} parent=11 // pred_check_branch
          %284 = sbr.rel (%p282) target = $region24
        $region23: #{tpu_custom_call.1} parent=11 // pred_region
          _
        $region24: #{tpu_custom_call.1} parent=11 // pred_fallthru
          _
        // Predicated region
        $region25: #{tpu_custom_call.1} parent=11 // pred_check
          %p285 = pneg %p130
        $region26: #{tpu_custom_call.1} parent=11 // pred_check_branch
          %287 = sbr.rel (%p285) target = $region28
        $region27: #{tpu_custom_call.1} parent=11 // pred_region
          _
        $region28: #{tpu_custom_call.1} parent=11 // pred_fallthru
          _
        // Predicated region
        $region29: #{tpu_custom_call.1} parent=11 // pred_check
          %p288 = pneg %p151
        $region30: #{tpu_custom_call.1} parent=11 // pred_check_branch
          %290 = sbr.rel (%p288) target = $region32
        $region31: #{tpu_custom_call.1} parent=11 // pred_region
          _
        $region32: #{tpu_custom_call.1} parent=11 // pred_fallthru
          _
        // Predicated region
        $region33: #{tpu_custom_call.1} parent=11 // pred_check
          %p291 = pneg %p172
        $region34: #{tpu_custom_call.1} parent=11 // pred_check_branch
          %293 = sbr.rel (%p291) target = $region36
        $region35: #{tpu_custom_call.1} parent=11 // pred_region
          _
        $region36: #{tpu_custom_call.1} parent=11 // pred_fallthru
          _
        // Predicated region
        $region37: #{tpu_custom_call.1} parent=11 // pred_check
          %p294 = pneg %p193
        $region38: #{tpu_custom_call.1} parent=11 // pred_check_branch
          %296 = sbr.rel (%p294) target = $region40
        $region39: #{tpu_custom_call.1} parent=11 // pred_region
          %s298 = ssub.s32 9216, 9216
          %299 = vsyncadd [#allocation3], %s298
          %s300 = sshll.u32 [#allocation2], 4
          %s301 = int_to_ptr.vmem [resolvable:$true] %s300
          %306 = dma.hbm_to_vmem [thread:$0]  %s7, 9216, %s301, [#allocation3], 64, 64, 4
        $region40: #{tpu_custom_call.1} parent=11 // pred_fallthru
          _
        // Predicated region
        $region41: #{tpu_custom_call.1} parent=11 // pred_check
          %p307 = pneg %p214
        $region42: #{tpu_custom_call.1} parent=11 // pred_check_branch
          %309 = sbr.rel (%p307) target = $region44
        $region43: #{tpu_custom_call.1} parent=11 // pred_region
          _
        $region44: #{tpu_custom_call.1} parent=11 // pred_fallthru
          _
        // Predicated region
        $region45: #{tpu_custom_call.1} parent=11 // pred_check
          %p310 = pneg %p235
        $region46: #{tpu_custom_call.1} parent=11 // pred_check_branch
          %312 = sbr.rel (%p310) target = $region48
        $region47: #{tpu_custom_call.1} parent=11 // pred_region
          _
        $region48: #{tpu_custom_call.1} parent=11 // pred_fallthru
          _
      $region12: #{tpu_custom_call.1} parent=5 // pred_fallthru
        _
      %p313 = scmp.lt.s32.totalorder %s20, 2
      // Predicated region
      $region49: #{tpu_custom_call.1} parent=5 // pred_check
        %p314 = pneg %p313
      $region50: #{tpu_custom_call.1} parent=5 // pred_check_branch
        %316 = sbr.rel (%p314) target = $region52
      $region51: #{tpu_custom_call.1} parent=5 // pred_region
        // Predicated region
        $region53: #{tpu_custom_call.1} parent=51 // pred_check
          %p317 = pneg %p40
        $region54: #{tpu_custom_call.1} parent=51 // pred_check_branch
          %319 = sbr.rel (%p317) target = $region56
        $region55: #{tpu_custom_call.1} parent=51 // pred_region
          %p320 = scmp.lt.s32.totalorder %s20, 1
          %s321 = scalar_select %p320, %s20, 1
          %s322 = smul.addr %s321, 32
          %s323 = smul.addr %s322, 8
          %s324 = scalar_lea.vmem %s0, %s323
        $region56: #{tpu_custom_call.1} parent=51 // pred_fallthru
          _
      $region52: #{tpu_custom_call.1} parent=5 // pred_fallthru
        _
      %p325 = scmp.le.s32.totalorder 1, %s20
      %p326 = scmp.lt.s32.totalorder %s20, 3
      %p327 = pnand %p325, %p326
      %p328 = pneg %p327
      // Predicated region
      $region57: #{tpu_custom_call.1} parent=5 // pred_check
        _
      $region58: #{tpu_custom_call.1} parent=5 // pred_check_branch
        %330 = sbr.rel (%p327) target = $region60
      $region59: #{tpu_custom_call.1} parent=5 // pred_region
        %s331 = ssub.s32 %s20, 1
        // Predicated region
        $region61: #{tpu_custom_call.1} parent=59 // pred_check
          %p332 = pneg %p193
        $region62: #{tpu_custom_call.1} parent=59 // pred_check_branch
          %334 = sbr.rel (%p332) target = $region64
        $region63: #{tpu_custom_call.1} parent=59 // pred_region
          %335 = dma.done [#allocation3], 9216
        $region64: #{tpu_custom_call.1} parent=59 // pred_fallthru
          _
        %p336 = scmp.lt.s32.totalorder %s25, 1
        %s337 = scalar_select %p336, %s25, 1
        %s338 = smul.addr %s337, 32
        %s339 = smul.addr %s338, 8
        %s340 = scalar_lea.vmem %s0, %s339
        %p341 = pneg %p46
        %p342 = pneg %p43
        %p343 = pneg %p67
        %p344 = pneg %p64
        %p345 = pneg %p88
        %p346 = pneg %p85
        %p347 = pneg %p109
        %p348 = pneg %p106
        %p349 = pneg %p130
        %p350 = pneg %p127
        %p351 = pneg %p151
        %p352 = pneg %p148
        %p353 = pneg %p172
        %p354 = pneg %p169
        %p355 = pneg %p193
        %p356 = pneg %p190
        %p357 = pneg %p214
        %p358 = pneg %p211
        %p359 = pneg %p235
        %p360 = pneg %p232
        %p361 = pneg %p261
        %p362 = pneg %p258
        %s363 = sand.u32 %s248, 1
        %s364 = scalar_lea.sflag [#allocation4], %s363
        %s365 = sand.u32 %s248, 1
        %s366 = smul.addr %s365, 256
        %s367 = scalar_lea.vmem [#allocation5], %s366
        %p368 = scmp.lt.s32.totalorder %s25, 1
        %s369 = scalar_select %p368, %s25, 1
        %s370 = smul.addr %s369, 32
        %s371 = smul.addr %s370, 8
        %s372 = scalar_lea.vmem %s0, %s371
        %v374 = vld [vmem:[%s372] sm:$0xff]
        %v375 = vld [vmem:[%s372 + $0x8] sm:$0xff]
        %v376 = vld [vmem:[%s372 + $0x10] sm:$0xff]
        %v377 = vld [vmem:[%s372 + $0x18] sm:$0xff]
        %v378 = vld [vmem:[%s372 + $0x20] sm:$0xff]
        %v379 = vld [vmem:[%s372 + $0x28] sm:$0xff]
        %v380 = vld [vmem:[%s372 + $0x30] sm:$0xff]
        %v381 = vld [vmem:[%s372 + $0x38] sm:$0xff]
        %v382 = vld [vmem:[%s372 + $0x40] sm:$0xff]
        %v383 = vld [vmem:[%s372 + $0x48] sm:$0xff]
        %v384 = vld [vmem:[%s372 + $0x50] sm:$0xff]
        %v385 = vld [vmem:[%s372 + $0x58] sm:$0xff]
        %v386 = vld [vmem:[%s372 + $0x60] sm:$0xff]
        %v387 = vld [vmem:[%s372 + $0x68] sm:$0xff]
        %v388 = vld [vmem:[%s372 + $0x70] sm:$0xff]
        %v389 = vld [vmem:[%s372 + $0x78] sm:$0xff]
        %v390 = vld [vmem:[%s372 + $0x80] sm:$0xff]
        %v391 = vld [vmem:[%s372 + $0x88] sm:$0xff]
        %v392 = vld [vmem:[%s372 + $0x90] sm:$0xff]
        %v393 = vld [vmem:[%s372 + $0x98] sm:$0xff]
        %v394 = vld [vmem:[%s372 + $0xa0] sm:$0xff]
        %v395 = vld [vmem:[%s372 + $0xa8] sm:$0xff]
        %v396 = vld [vmem:[%s372 + $0xb0] sm:$0xff]
        %v397 = vld [vmem:[%s372 + $0xb8] sm:$0xff]
        %v398 = vld [vmem:[%s372 + $0xc0] sm:$0xff]
        %v399 = vld [vmem:[%s372 + $0xc8] sm:$0xff]
        %v400 = vld [vmem:[%s372 + $0xd0] sm:$0xff]
        %v401 = vld [vmem:[%s372 + $0xd8] sm:$0xff]
        %v402 = vld [vmem:[%s372 + $0xe0] sm:$0xff]
        %v403 = vld [vmem:[%s372 + $0xe8] sm:$0xff]
        %v404 = vld [vmem:[%s372 + $0xf0] sm:$0xff]
        %v405 = vld [vmem:[%s372 + $0xf8] sm:$0xff]
        %v406 = vlaneseq
        %v407 = vshrl.u32 %v406, 7
        %v408 = vadd.s32 %v407, 8
        %v409 = vadd.s32 %v407, 16
        %v410 = vadd.s32 %v407, 24
        %v411 = vadd.s32 %v407, 32
        %v412 = vadd.s32 %v407, 40
        %v413 = vadd.s32 %v407, 48
        %v414 = vadd.s32 %v407, 56
        %v415 = vadd.s32 %v407, 64
        %v416 = vadd.s32 %v407, 72
        %v417 = vadd.s32 %v407, 80
        %v418 = vadd.s32 %v407, 88
        %v419 = vadd.s32 %v407, 96
        %v420 = vadd.s32 %v407, 104
        %v421 = vadd.s32 %v407, 112
        %v422 = vadd.s32 %v407, 120
        %v423 = vadd.s32 %v407, 128
        %v424 = vadd.s32 %v407, 136
        %v425 = vadd.s32 %v407, 144
        %v426 = vadd.s32 %v407, 152
        %v427 = vadd.s32 %v407, 160
        %v428 = vadd.s32 %v407, 168
        %v429 = vadd.s32 %v407, 176
        %v430 = vadd.s32 %v407, 184
        %v431 = vadd.s32 %v407, 192
        %v432 = vadd.s32 %v407, 200
        %v433 = vadd.s32 %v407, 208
        %v434 = vadd.s32 %v407, 216
        %v435 = vadd.s32 %v407, 224
        %v436 = vadd.s32 %v407, 232
        %v437 = vadd.s32 %v407, 240
        %v438 = vadd.s32 %v407, 248
        %vm439 = vcmp.lt.s32.totalorder %v407, 0
        %v440 = vsub.s32 0, %v407
        %v441 = vsel %vm439, %v440, %v407
        %v442 = vshrl.u32 %v441, 4
        %v443 = vand.u32 %v441, 15
        %v444 = vsub.s32 0, %v443
        %v445 = vsel %vm439, %v444, %v443
        %vm446 = vcmp.lt.s32.totalorder %v408, 0
        %v447 = vsub.s32 0, %v408
        %v448 = vsel %vm446, %v447, %v408
        %v449 = vshrl.u32 %v448, 4
        %v450 = vand.u32 %v448, 15
        %v451 = vsub.s32 0, %v450
        %v452 = vsel %vm446, %v451, %v450
        %vm453 = vcmp.lt.s32.totalorder %v409, 0
        %v454 = vsub.s32 0, %v409
        %v455 = vsel %vm453, %v454, %v409
        %v456 = vshrl.u32 %v455, 4
        %v457 = vand.u32 %v455, 15
        %v458 = vsub.s32 0, %v457
        %v459 = vsel %vm453, %v458, %v457
        %vm460 = vcmp.lt.s32.totalorder %v410, 0
        %v461 = vsub.s32 0, %v410
        %v462 = vsel %vm460, %v461, %v410
        %v463 = vshrl.u32 %v462, 4
        %v464 = vand.u32 %v462, 15
        %v465 = vsub.s32 0, %v464
        %v466 = vsel %vm460, %v465, %v464
        %vm467 = vcmp.lt.s32.totalorder %v411, 0
        %v468 = vsub.s32 0, %v411
        %v469 = vsel %vm467, %v468, %v411
        %v470 = vshrl.u32 %v469, 4
        %v471 = vand.u32 %v469, 15
        %v472 = vsub.s32 0, %v471
        %v473 = vsel %vm467, %v472, %v471
        %vm474 = vcmp.lt.s32.totalorder %v412, 0
        %v475 = vsub.s32 0, %v412
        %v476 = vsel %vm474, %v475, %v412
        %v477 = vshrl.u32 %v476, 4
        %v478 = vand.u32 %v476, 15
        %v479 = vsub.s32 0, %v478
        %v480 = vsel %vm474, %v479, %v478
        %vm481 = vcmp.lt.s32.totalorder %v413, 0
        %v482 = vsub.s32 0, %v413
        %v483 = vsel %vm481, %v482, %v413
        %v484 = vshrl.u32 %v483, 4
        %v485 = vand.u32 %v483, 15
        %v486 = vsub.s32 0, %v485
        %v487 = vsel %vm481, %v486, %v485
        %vm488 = vcmp.lt.s32.totalorder %v414, 0
        %v489 = vsub.s32 0, %v414
        %v490 = vsel %vm488, %v489, %v414
        %v491 = vshrl.u32 %v490, 4
        %v492 = vand.u32 %v490, 15
        %v493 = vsub.s32 0, %v492
        %v494 = vsel %vm488, %v493, %v492
        %vm495 = vcmp.lt.s32.totalorder %v415, 0
        %v496 = vsub.s32 0, %v415
        %v497 = vsel %vm495, %v496, %v415
        %v498 = vshrl.u32 %v497, 4
        %v499 = vand.u32 %v497, 15
        %v500 = vsub.s32 0, %v499
        %v501 = vsel %vm495, %v500, %v499
        %vm502 = vcmp.lt.s32.totalorder %v416, 0
        %v503 = vsub.s32 0, %v416
        %v504 = vsel %vm502, %v503, %v416
        %v505 = vshrl.u32 %v504, 4
        %v506 = vand.u32 %v504, 15
        %v507 = vsub.s32 0, %v506
        %v508 = vsel %vm502, %v507, %v506
        %vm509 = vcmp.lt.s32.totalorder %v417, 0
        %v510 = vsub.s32 0, %v417
        %v511 = vsel %vm509, %v510, %v417
        %v512 = vshrl.u32 %v511, 4
        %v513 = vand.u32 %v511, 15
        %v514 = vsub.s32 0, %v513
        %v515 = vsel %vm509, %v514, %v513
        %vm516 = vcmp.lt.s32.totalorder %v418, 0
        %v517 = vsub.s32 0, %v418
        %v518 = vsel %vm516, %v517, %v418
        %v519 = vshrl.u32 %v518, 4
        %v520 = vand.u32 %v518, 15
        %v521 = vsub.s32 0, %v520
        %v522 = vsel %vm516, %v521, %v520
        %vm523 = vcmp.lt.s32.totalorder %v419, 0
        %v524 = vsub.s32 0, %v419
        %v525 = vsel %vm523, %v524, %v419
        %v526 = vshrl.u32 %v525, 4
        %v527 = vand.u32 %v525, 15
        %v528 = vsub.s32 0, %v527
        %v529 = vsel %vm523, %v528, %v527
        %vm530 = vcmp.lt.s32.totalorder %v420, 0
        %v531 = vsub.s32 0, %v420
        %v532 = vsel %vm530, %v531, %v420
        %v533 = vshrl.u32 %v532, 4
        %v534 = vand.u32 %v532, 15
        %v535 = vsub.s32 0, %v534
        %v536 = vsel %vm530, %v535, %v534
        %vm537 = vcmp.lt.s32.totalorder %v421, 0
        %v538 = vsub.s32 0, %v421
        %v539 = vsel %vm537, %v538, %v421
        %v540 = vshrl.u32 %v539, 4
        %v541 = vand.u32 %v539, 15
        %v542 = vsub.s32 0, %v541
        %v543 = vsel %vm537, %v542, %v541
        %vm544 = vcmp.lt.s32.totalorder %v422, 0
        %v545 = vsub.s32 0, %v422
        %v546 = vsel %vm544, %v545, %v422
        %v547 = vshrl.u32 %v546, 4
        %v548 = vand.u32 %v546, 15
        %v549 = vsub.s32 0, %v548
        %v550 = vsel %vm544, %v549, %v548
        %vm551 = vcmp.lt.s32.totalorder %v423, 0
        %v552 = vsub.s32 0, %v423
        %v553 = vsel %vm551, %v552, %v423
        %v554 = vshrl.u32 %v553, 4
        %v555 = vand.u32 %v553, 15
        %v556 = vsub.s32 0, %v555
        %v557 = vsel %vm551, %v556, %v555
        %vm558 = vcmp.lt.s32.totalorder %v424, 0
        %v559 = vsub.s32 0, %v424
        %v560 = vsel %vm558, %v559, %v424
        %v561 = vshrl.u32 %v560, 4
        %v562 = vand.u32 %v560, 15
        %v563 = vsub.s32 0, %v562
        %v564 = vsel %vm558, %v563, %v562
        %vm565 = vcmp.lt.s32.totalorder %v425, 0
        %v566 = vsub.s32 0, %v425
        %v567 = vsel %vm565, %v566, %v425
        %v568 = vshrl.u32 %v567, 4
        %v569 = vand.u32 %v567, 15
        %v570 = vsub.s32 0, %v569
        %v571 = vsel %vm565, %v570, %v569
        %vm572 = vcmp.lt.s32.totalorder %v426, 0
        %v573 = vsub.s32 0, %v426
        %v574 = vsel %vm572, %v573, %v426
        %v575 = vshrl.u32 %v574, 4
        %v576 = vand.u32 %v574, 15
        %v577 = vsub.s32 0, %v576
        %v578 = vsel %vm572, %v577, %v576
        %vm579 = vcmp.lt.s32.totalorder %v427, 0
        %v580 = vsub.s32 0, %v427
        %v581 = vsel %vm579, %v580, %v427
        %v582 = vshrl.u32 %v581, 4
        %v583 = vand.u32 %v581, 15
        %v584 = vsub.s32 0, %v583
        %v585 = vsel %vm579, %v584, %v583
        %vm586 = vcmp.lt.s32.totalorder %v428, 0
        %v587 = vsub.s32 0, %v428
        %v588 = vsel %vm586, %v587, %v428
        %v589 = vshrl.u32 %v588, 4
        %v590 = vand.u32 %v588, 15
        %v591 = vsub.s32 0, %v590
        %v592 = vsel %vm586, %v591, %v590
        %vm593 = vcmp.lt.s32.totalorder %v429, 0
        %v594 = vsub.s32 0, %v429
        %v595 = vsel %vm593, %v594, %v429
        %v596 = vshrl.u32 %v595, 4
        %v597 = vand.u32 %v595, 15
        %v598 = vsub.s32 0, %v597
        %v599 = vsel %vm593, %v598, %v597
        %vm600 = vcmp.lt.s32.totalorder %v430, 0
        %v601 = vsub.s32 0, %v430
        %v602 = vsel %vm600, %v601, %v430
        %v603 = vshrl.u32 %v602, 4
        %v604 = vand.u32 %v602, 15
        %v605 = vsub.s32 0, %v604
        %v606 = vsel %vm600, %v605, %v604
        %vm607 = vcmp.lt.s32.totalorder %v431, 0
        %v608 = vsub.s32 0, %v431
        %v609 = vsel %vm607, %v608, %v431
        %v610 = vshrl.u32 %v609, 4
        %v611 = vand.u32 %v609, 15
        %v612 = vsub.s32 0, %v611
        %v613 = vsel %vm607, %v612, %v611
        %vm614 = vcmp.lt.s32.totalorder %v432, 0
        %v615 = vsub.s32 0, %v432
        %v616 = vsel %vm614, %v615, %v432
        %v617 = vshrl.u32 %v616, 4
        %v618 = vand.u32 %v616, 15
        %v619 = vsub.s32 0, %v618
        %v620 = vsel %vm614, %v619, %v618
        %vm621 = vcmp.lt.s32.totalorder %v433, 0
        %v622 = vsub.s32 0, %v433
        %v623 = vsel %vm621, %v622, %v433
        %v624 = vshrl.u32 %v623, 4
        %v625 = vand.u32 %v623, 15
        %v626 = vsub.s32 0, %v625
        %v627 = vsel %vm621, %v626, %v625
        %vm628 = vcmp.lt.s32.totalorder %v434, 0
        %v629 = vsub.s32 0, %v434
        %v630 = vsel %vm628, %v629, %v434
        %v631 = vshrl.u32 %v630, 4
        %v632 = vand.u32 %v630, 15
        %v633 = vsub.s32 0, %v632
        %v634 = vsel %vm628, %v633, %v632
        %vm635 = vcmp.lt.s32.totalorder %v435, 0
        %v636 = vsub.s32 0, %v435
        %v637 = vsel %vm635, %v636, %v435
        %v638 = vshrl.u32 %v637, 4
        %v639 = vand.u32 %v637, 15
        %v640 = vsub.s32 0, %v639
        %v641 = vsel %vm635, %v640, %v639
        %vm642 = vcmp.lt.s32.totalorder %v436, 0
        %v643 = vsub.s32 0, %v436
        %v644 = vsel %vm642, %v643, %v436
        %v645 = vshrl.u32 %v644, 4
        %v646 = vand.u32 %v644, 15
        %v647 = vsub.s32 0, %v646
        %v648 = vsel %vm642, %v647, %v646
        %vm649 = vcmp.lt.s32.totalorder %v437, 0
        %v650 = vsub.s32 0, %v437
        %v651 = vsel %vm649, %v650, %v437
        %v652 = vshrl.u32 %v651, 4
        %v653 = vand.u32 %v651, 15
        %v654 = vsub.s32 0, %v653
        %v655 = vsel %vm649, %v654, %v653
        %vm656 = vcmp.lt.s32.totalorder %v438, 0
        %v657 = vsub.s32 0, %v438
        %v658 = vsel %vm656, %v657, %v438
        %v659 = vshrl.u32 %v658, 4
        %v660 = vand.u32 %v658, 15
        %v661 = vsub.s32 0, %v660
        %v662 = vsel %vm656, %v661, %v660
        %vm663 = vcmp.ne.s32.totalorder %v445, 0
        %vm664 = vcmp.ne.s32.totalorder %v452, 0
        %vm665 = vcmp.ne.s32.totalorder %v459, 0
        %vm666 = vcmp.ne.s32.totalorder %v466, 0
        %vm667 = vcmp.ne.s32.totalorder %v473, 0
        %vm668 = vcmp.ne.s32.totalorder %v480, 0
        %vm669 = vcmp.ne.s32.totalorder %v487, 0
        %vm670 = vcmp.ne.s32.totalorder %v494, 0
        %vm671 = vcmp.ne.s32.totalorder %v501, 0
        %vm672 = vcmp.ne.s32.totalorder %v508, 0
        %vm673 = vcmp.ne.s32.totalorder %v515, 0
        %vm674 = vcmp.ne.s32.totalorder %v522, 0
        %vm675 = vcmp.ne.s32.totalorder %v529, 0
        %vm676 = vcmp.ne.s32.totalorder %v536, 0
        %vm677 = vcmp.ne.s32.totalorder %v543, 0
        %vm678 = vcmp.ne.s32.totalorder %v550, 0
        %vm679 = vcmp.ne.s32.totalorder %v557, 0
        %vm680 = vcmp.ne.s32.totalorder %v564, 0
        %vm681 = vcmp.ne.s32.totalorder %v571, 0
        %vm682 = vcmp.ne.s32.totalorder %v578, 0
        %vm683 = vcmp.ne.s32.totalorder %v585, 0
        %vm684 = vcmp.ne.s32.totalorder %v592, 0
        %vm685 = vcmp.ne.s32.totalorder %v599, 0
        %vm686 = vcmp.ne.s32.totalorder %v606, 0
        %vm687 = vcmp.ne.s32.totalorder %v613, 0
        %vm688 = vcmp.ne.s32.totalorder %v620, 0
        %vm689 = vcmp.ne.s32.totalorder %v627, 0
        %vm690 = vcmp.ne.s32.totalorder %v634, 0
        %vm691 = vcmp.ne.s32.totalorder %v641, 0
        %vm692 = vcmp.ne.s32.totalorder %v648, 0
        %vm693 = vcmp.ne.s32.totalorder %v655, 0
        %vm694 = vcmp.ne.s32.totalorder %v662, 0
        %vm695 = vcmp.lt.s32.totalorder %v445, 0
        %vm696 = vcmp.lt.s32.totalorder %v452, 0
        %vm697 = vcmp.lt.s32.totalorder %v459, 0
        %vm698 = vcmp.lt.s32.totalorder %v466, 0
        %vm699 = vcmp.lt.s32.totalorder %v473, 0
        %vm700 = vcmp.lt.s32.totalorder %v480, 0
        %vm701 = vcmp.lt.s32.totalorder %v487, 0
        %vm702 = vcmp.lt.s32.totalorder %v494, 0
        %vm703 = vcmp.lt.s32.totalorder %v501, 0
        %vm704 = vcmp.lt.s32.totalorder %v508, 0
        %vm705 = vcmp.lt.s32.totalorder %v515, 0
        %vm706 = vcmp.lt.s32.totalorder %v522, 0
        %vm707 = vcmp.lt.s32.totalorder %v529, 0
        %vm708 = vcmp.lt.s32.totalorder %v536, 0
        %vm709 = vcmp.lt.s32.totalorder %v543, 0
        %vm710 = vcmp.lt.s32.totalorder %v550, 0
        %vm711 = vcmp.lt.s32.totalorder %v557, 0
        %vm712 = vcmp.lt.s32.totalorder %v564, 0
        %vm713 = vcmp.lt.s32.totalorder %v571, 0
        %vm714 = vcmp.lt.s32.totalorder %v578, 0
        %vm715 = vcmp.lt.s32.totalorder %v585, 0
        %vm716 = vcmp.lt.s32.totalorder %v592, 0
        %vm717 = vcmp.lt.s32.totalorder %v599, 0
        %vm718 = vcmp.lt.s32.totalorder %v606, 0
        %vm719 = vcmp.lt.s32.totalorder %v613, 0
        %vm720 = vcmp.lt.s32.totalorder %v620, 0
        %vm721 = vcmp.lt.s32.totalorder %v627, 0
        %vm722 = vcmp.lt.s32.totalorder %v634, 0
        %vm723 = vcmp.lt.s32.totalorder %v641, 0
        %vm724 = vcmp.lt.s32.totalorder %v648, 0
        %vm725 = vcmp.lt.s32.totalorder %v655, 0
        %vm726 = vcmp.lt.s32.totalorder %v662, 0
        %vm727 = vmand %vm695, %vm663
        %vm728 = vmand %vm696, %vm664
        %vm729 = vmand %vm697, %vm665
        %vm730 = vmand %vm698, %vm666
        %vm731 = vmand %vm699, %vm667
        %vm732 = vmand %vm700, %vm668
        %vm733 = vmand %vm701, %vm669
        %vm734 = vmand %vm702, %vm670
        %vm735 = vmand %vm703, %vm671
        %vm736 = vmand %vm704, %vm672
        %vm737 = vmand %vm705, %vm673
        %vm738 = vmand %vm706, %vm674
        %vm739 = vmand %vm707, %vm675
        %vm740 = vmand %vm708, %vm676
        %vm741 = vmand %vm709, %vm677
        %vm742 = vmand %vm710, %vm678
        %vm743 = vmand %vm711, %vm679
        %vm744 = vmand %vm712, %vm680
        %vm745 = vmand %vm713, %vm681
        %vm746 = vmand %vm714, %vm682
        %vm747 = vmand %vm715, %vm683
        %vm748 = vmand %vm716, %vm684
        %vm749 = vmand %vm717, %vm685
        %vm750 = vmand %vm718, %vm686
        %vm751 = vmand %vm719, %vm687
        %vm752 = vmand %vm720, %vm688
        %vm753 = vmand %vm721, %vm689
        %vm754 = vmand %vm722, %vm690
        %vm755 = vmand %vm723, %vm691
        %vm756 = vmand %vm724, %vm692
        %vm757 = vmand %vm725, %vm693
        %vm758 = vmand %vm726, %vm694
        %v759 = vadd.s32 %v445, 16
        %v760 = vadd.s32 %v452, 16
        %v761 = vadd.s32 %v459, 16
        %v762 = vadd.s32 %v466, 16
        %v763 = vadd.s32 %v473, 16
        %v764 = vadd.s32 %v480, 16
        %v765 = vadd.s32 %v487, 16
        %v766 = vadd.s32 %v494, 16
        %v767 = vadd.s32 %v501, 16
        %v768 = vadd.s32 %v508, 16
        %v769 = vadd.s32 %v515, 16
        %v770 = vadd.s32 %v522, 16
        %v771 = vadd.s32 %v529, 16
        %v772 = vadd.s32 %v536, 16
        %v773 = vadd.s32 %v543, 16
        %v774 = vadd.s32 %v550, 16
        %v775 = vadd.s32 %v557, 16
        %v776 = vadd.s32 %v564, 16
        %v777 = vadd.s32 %v571, 16
        %v778 = vadd.s32 %v578, 16
        %v779 = vadd.s32 %v585, 16
        %v780 = vadd.s32 %v592, 16
        %v781 = vadd.s32 %v599, 16
        %v782 = vadd.s32 %v606, 16
        %v783 = vadd.s32 %v613, 16
        %v784 = vadd.s32 %v620, 16
        %v785 = vadd.s32 %v627, 16
        %v786 = vadd.s32 %v634, 16
        %v787 = vadd.s32 %v641, 16
        %v788 = vadd.s32 %v648, 16
        %v789 = vadd.s32 %v655, 16
        %v790 = vadd.s32 %v662, 16
        %v791 = vsel %vm727, %v759, %v445
        %v792 = vsel %vm728, %v760, %v452
        %v793 = vsel %vm729, %v761, %v459
        %v794 = vsel %vm730, %v762, %v466
        %v795 = vsel %vm731, %v763, %v473
        %v796 = vsel %vm732, %v764, %v480
        %v797 = vsel %vm733, %v765, %v487
        %v798 = vsel %vm734, %v766, %v494
        %v799 = vsel %vm735, %v767, %v501
        %v800 = vsel %vm736, %v768, %v508
        %v801 = vsel %vm737, %v769, %v515
        %v802 = vsel %vm738, %v770, %v522
        %v803 = vsel %vm739, %v771, %v529
        %v804 = vsel %vm740, %v772, %v536
        %v805 = vsel %vm741, %v773, %v543
        %v806 = vsel %vm742, %v774, %v550
        %v807 = vsel %vm743, %v775, %v557
        %v808 = vsel %vm744, %v776, %v564
        %v809 = vsel %vm745, %v777, %v571
        %v810 = vsel %vm746, %v778, %v578
        %v811 = vsel %vm747, %v779, %v585
        %v812 = vsel %vm748, %v780, %v592
        %v813 = vsel %vm749, %v781, %v599
        %v814 = vsel %vm750, %v782, %v606
        %v815 = vsel %vm751, %v783, %v613
        %v816 = vsel %vm752, %v784, %v620
        %v817 = vsel %vm753, %v785, %v627
        %v818 = vsel %vm754, %v786, %v634
        %v819 = vsel %vm755, %v787, %v641
        %v820 = vsel %vm756, %v788, %v648
        %v821 = vsel %vm757, %v789, %v655
        %v822 = vsel %vm758, %v790, %v662
        %vm823 = vcmp.ge.s32.totalorder %v407, 16
        %vm824 = vcmp.ge.s32.totalorder %v408, 16
        %vm825 = vcmp.ge.s32.totalorder %v409, 16
        %vm826 = vcmp.ge.s32.totalorder %v410, 16
        %vm827 = vcmp.ge.s32.totalorder %v411, 16
        %vm828 = vcmp.ge.s32.totalorder %v412, 16
        %vm829 = vcmp.ge.s32.totalorder %v413, 16
        %vm830 = vcmp.ge.s32.totalorder %v414, 16
        %vm831 = vcmp.ge.s32.totalorder %v415, 16
        %vm832 = vcmp.ge.s32.totalorder %v416, 16
        %vm833 = vcmp.ge.s32.totalorder %v417, 16
        %vm834 = vcmp.ge.s32.totalorder %v418, 16
        %vm835 = vcmp.ge.s32.totalorder %v419, 16
        %vm836 = vcmp.ge.s32.totalorder %v420, 16
        %vm837 = vcmp.ge.s32.totalorder %v421, 16
        %vm838 = vcmp.ge.s32.totalorder %v422, 16
        %vm839 = vcmp.ge.s32.totalorder %v423, 16
        %vm840 = vcmp.ge.s32.totalorder %v424, 16
        %vm841 = vcmp.ge.s32.totalorder %v425, 16
        %vm842 = vcmp.ge.s32.totalorder %v426, 16
        %vm843 = vcmp.ge.s32.totalorder %v427, 16
        %vm844 = vcmp.ge.s32.totalorder %v428, 16
        %vm845 = vcmp.ge.s32.totalorder %v429, 16
        %vm846 = vcmp.ge.s32.totalorder %v430, 16
        %vm847 = vcmp.ge.s32.totalorder %v431, 16
        %vm848 = vcmp.ge.s32.totalorder %v432, 16
        %vm849 = vcmp.ge.s32.totalorder %v433, 16
        %vm850 = vcmp.ge.s32.totalorder %v434, 16
        %vm851 = vcmp.ge.s32.totalorder %v435, 16
        %vm852 = vcmp.ge.s32.totalorder %v436, 16
        %vm853 = vcmp.ge.s32.totalorder %v437, 16
        %vm854 = vcmp.ge.s32.totalorder %v438, 16
        %vm855 = vcmp.lt.s32.totalorder %v407, 240
        %vm856 = vcmp.lt.s32.totalorder %v408, 240
        %vm857 = vcmp.lt.s32.totalorder %v409, 240
        %vm858 = vcmp.lt.s32.totalorder %v410, 240
        %vm859 = vcmp.lt.s32.totalorder %v411, 240
        %vm860 = vcmp.lt.s32.totalorder %v412, 240
        %vm861 = vcmp.lt.s32.totalorder %v413, 240
        %vm862 = vcmp.lt.s32.totalorder %v414, 240
        %vm863 = vcmp.lt.s32.totalorder %v415, 240
        %vm864 = vcmp.lt.s32.totalorder %v416, 240
        %vm865 = vcmp.lt.s32.totalorder %v417, 240
        %vm866 = vcmp.lt.s32.totalorder %v418, 240
        %vm867 = vcmp.lt.s32.totalorder %v419, 240
        %vm868 = vcmp.lt.s32.totalorder %v420, 240
        %vm869 = vcmp.lt.s32.totalorder %v421, 240
        %vm870 = vcmp.lt.s32.totalorder %v422, 240
        %vm871 = vcmp.lt.s32.totalorder %v423, 240
        %vm872 = vcmp.lt.s32.totalorder %v424, 240
        %vm873 = vcmp.lt.s32.totalorder %v425, 240
        %vm874 = vcmp.lt.s32.totalorder %v426, 240
        %vm875 = vcmp.lt.s32.totalorder %v427, 240
        %vm876 = vcmp.lt.s32.totalorder %v428, 240
        %vm877 = vcmp.lt.s32.totalorder %v429, 240
        %vm878 = vcmp.lt.s32.totalorder %v430, 240
        %vm879 = vcmp.lt.s32.totalorder %v431, 240
        %vm880 = vcmp.lt.s32.totalorder %v432, 240
        %vm881 = vcmp.lt.s32.totalorder %v433, 240
        %vm882 = vcmp.lt.s32.totalorder %v434, 240
        %vm883 = vcmp.lt.s32.totalorder %v435, 240
        %vm884 = vcmp.lt.s32.totalorder %v436, 240
        %vm885 = vcmp.lt.s32.totalorder %v437, 240
        %vm886 = vcmp.lt.s32.totalorder %v438, 240
        %vm887 = vcmp.ge.s32.totalorder %v791, 1
        %vm888 = vcmp.ge.s32.totalorder %v792, 1
        %vm889 = vcmp.ge.s32.totalorder %v793, 1
        %vm890 = vcmp.ge.s32.totalorder %v794, 1
        %vm891 = vcmp.ge.s32.totalorder %v795, 1
        %vm892 = vcmp.ge.s32.totalorder %v796, 1
        %vm893 = vcmp.ge.s32.totalorder %v797, 1
        %vm894 = vcmp.ge.s32.totalorder %v798, 1
        %vm895 = vcmp.ge.s32.totalorder %v799, 1
        %vm896 = vcmp.ge.s32.totalorder %v800, 1
        %vm897 = vcmp.ge.s32.totalorder %v801, 1
        %vm898 = vcmp.ge.s32.totalorder %v802, 1
        %vm899 = vcmp.ge.s32.totalorder %v803, 1
        %vm900 = vcmp.ge.s32.totalorder %v804, 1
        %vm901 = vcmp.ge.s32.totalorder %v805, 1
        %vm902 = vcmp.ge.s32.totalorder %v806, 1
        %vm903 = vcmp.ge.s32.totalorder %v807, 1
        %vm904 = vcmp.ge.s32.totalorder %v808, 1
        %vm905 = vcmp.ge.s32.totalorder %v809, 1
        %vm906 = vcmp.ge.s32.totalorder %v810, 1
        %vm907 = vcmp.ge.s32.totalorder %v811, 1
        %vm908 = vcmp.ge.s32.totalorder %v812, 1
        %vm909 = vcmp.ge.s32.totalorder %v813, 1
        %vm910 = vcmp.ge.s32.totalorder %v814, 1
        %vm911 = vcmp.ge.s32.totalorder %v815, 1
        %vm912 = vcmp.ge.s32.totalorder %v816, 1
        %vm913 = vcmp.ge.s32.totalorder %v817, 1
        %vm914 = vcmp.ge.s32.totalorder %v818, 1
        %vm915 = vcmp.ge.s32.totalorder %v819, 1
        %vm916 = vcmp.ge.s32.totalorder %v820, 1
        %vm917 = vcmp.ge.s32.totalorder %v821, 1
        %vm918 = vcmp.ge.s32.totalorder %v822, 1
        %vm919 = vcmp.lt.s32.totalorder %v791, 15
        %vm920 = vcmp.lt.s32.totalorder %v792, 15
        %vm921 = vcmp.lt.s32.totalorder %v793, 15
        %vm922 = vcmp.lt.s32.totalorder %v794, 15
        %vm923 = vcmp.lt.s32.totalorder %v795, 15
        %vm924 = vcmp.lt.s32.totalorder %v796, 15
        %vm925 = vcmp.lt.s32.totalorder %v797, 15
        %vm926 = vcmp.lt.s32.totalorder %v798, 15
        %vm927 = vcmp.lt.s32.totalorder %v799, 15
        %vm928 = vcmp.lt.s32.totalorder %v800, 15
        %vm929 = vcmp.lt.s32.totalorder %v801, 15
        %vm930 = vcmp.lt.s32.totalorder %v802, 15
        %vm931 = vcmp.lt.s32.totalorder %v803, 15
        %vm932 = vcmp.lt.s32.totalorder %v804, 15
        %vm933 = vcmp.lt.s32.totalorder %v805, 15
        %vm934 = vcmp.lt.s32.totalorder %v806, 15
        %vm935 = vcmp.lt.s32.totalorder %v807, 15
        %vm936 = vcmp.lt.s32.totalorder %v808, 15
        %vm937 = vcmp.lt.s32.totalorder %v809, 15
        %vm938 = vcmp.lt.s32.totalorder %v810, 15
        %vm939 = vcmp.lt.s32.totalorder %v811, 15
        %vm940 = vcmp.lt.s32.totalorder %v812, 15
        %vm941 = vcmp.lt.s32.totalorder %v813, 15
        %vm942 = vcmp.lt.s32.totalorder %v814, 15
        %vm943 = vcmp.lt.s32.totalorder %v815, 15
        %vm944 = vcmp.lt.s32.totalorder %v816, 15
        %vm945 = vcmp.lt.s32.totalorder %v817, 15
        %vm946 = vcmp.lt.s32.totalorder %v818, 15
        %vm947 = vcmp.lt.s32.totalorder %v819, 15
        %vm948 = vcmp.lt.s32.totalorder %v820, 15
        %vm949 = vcmp.lt.s32.totalorder %v821, 15
        %vm950 = vcmp.lt.s32.totalorder %v822, 15
        %v951 = vld [vmem:[%s1] sm:$0x1]
        %v953 = vlaneseq
        %v954 = vshrl.u32 %v953, 7
        %v955 = vsub.s32 0, %v954
        %v956 = vrot.slane %v951, %v955
        %v958 = vmul.f32 %v374, %v956
        %v959 = vmul.f32 %v375, %v956
        %v960 = vmul.f32 %v376, %v956
        %v961 = vmul.f32 %v377, %v956
        %v962 = vmul.f32 %v378, %v956
        %v963 = vmul.f32 %v379, %v956
        %v964 = vmul.f32 %v380, %v956
        %v965 = vmul.f32 %v381, %v956
        %v966 = vmul.f32 %v382, %v956
        %v967 = vmul.f32 %v383, %v956
        %v968 = vmul.f32 %v384, %v956
        %v969 = vmul.f32 %v385, %v956
        %v970 = vmul.f32 %v386, %v956
        %v971 = vmul.f32 %v387, %v956
        %v972 = vmul.f32 %v388, %v956
        %v973 = vmul.f32 %v389, %v956
        %v974 = vmul.f32 %v390, %v956
        %v975 = vmul.f32 %v391, %v956
        %v976 = vmul.f32 %v392, %v956
        %v977 = vmul.f32 %v393, %v956
        %v978 = vmul.f32 %v394, %v956
        %v979 = vmul.f32 %v395, %v956
        %v980 = vmul.f32 %v396, %v956
        %v981 = vmul.f32 %v397, %v956
        %v982 = vmul.f32 %v398, %v956
        %v983 = vmul.f32 %v399, %v956
        %v984 = vmul.f32 %v400, %v956
        %v985 = vmul.f32 %v401, %v956
        %v986 = vmul.f32 %v402, %v956
        %v987 = vmul.f32 %v403, %v956
        %v988 = vmul.f32 %v404, %v956
        %v989 = vmul.f32 %v405, %v956
        %v990 = vld [vmem:[%s2] sm:$0x1]
        %v992 = vlaneseq
        %v993 = vshrl.u32 %v992, 7
        %v994 = vsub.s32 0, %v993
        %v995 = vrot.slane %v990, %v994
        %v997 = vadd.f32 %v958, %v995
        %v998 = vadd.f32 %v959, %v995
        %v999 = vadd.f32 %v960, %v995
        %v1000 = vadd.f32 %v961, %v995
        %v1001 = vadd.f32 %v962, %v995
        %v1002 = vadd.f32 %v963, %v995
        %v1003 = vadd.f32 %v964, %v995
        %v1004 = vadd.f32 %v965, %v995
        %v1005 = vadd.f32 %v966, %v995
        %v1006 = vadd.f32 %v967, %v995
        %v1007 = vadd.f32 %v968, %v995
        %v1008 = vadd.f32 %v969, %v995
        %v1009 = vadd.f32 %v970, %v995
        %v1010 = vadd.f32 %v971, %v995
        %v1011 = vadd.f32 %v972, %v995
        %v1012 = vadd.f32 %v973, %v995
        %v1013 = vadd.f32 %v974, %v995
        %v1014 = vadd.f32 %v975, %v995
        %v1015 = vadd.f32 %v976, %v995
        %v1016 = vadd.f32 %v977, %v995
        %v1017 = vadd.f32 %v978, %v995
        %v1018 = vadd.f32 %v979, %v995
        %v1019 = vadd.f32 %v980, %v995
        %v1020 = vadd.f32 %v981, %v995
        %v1021 = vadd.f32 %v982, %v995
        %v1022 = vadd.f32 %v983, %v995
        %v1023 = vadd.f32 %v984, %v995
        %v1024 = vadd.f32 %v985, %v995
        %v1025 = vadd.f32 %v986, %v995
        %v1026 = vadd.f32 %v987, %v995
        %v1027 = vadd.f32 %v988, %v995
        %v1028 = vadd.f32 %v989, %v995
        %v1029 = vmax.f32 %v997, 0.0
        %v1030 = vmax.f32 %v998, 0.0
        %v1031 = vmax.f32 %v999, 0.0
        %v1032 = vmax.f32 %v1000, 0.0
        %v1033 = vmax.f32 %v1001, 0.0
        %v1034 = vmax.f32 %v1002, 0.0
        %v1035 = vmax.f32 %v1003, 0.0
        %v1036 = vmax.f32 %v1004, 0.0
        %v1037 = vmax.f32 %v1005, 0.0
        %v1038 = vmax.f32 %v1006, 0.0
        %v1039 = vmax.f32 %v1007, 0.0
        %v1040 = vmax.f32 %v1008, 0.0
        %v1041 = vmax.f32 %v1009, 0.0
        %v1042 = vmax.f32 %v1010, 0.0
        %v1043 = vmax.f32 %v1011, 0.0
        %v1044 = vmax.f32 %v1012, 0.0
        %v1045 = vmax.f32 %v1013, 0.0
        %v1046 = vmax.f32 %v1014, 0.0
        %v1047 = vmax.f32 %v1015, 0.0
        %v1048 = vmax.f32 %v1016, 0.0
        %v1049 = vmax.f32 %v1017, 0.0
        %v1050 = vmax.f32 %v1018, 0.0
        %v1051 = vmax.f32 %v1019, 0.0
        %v1052 = vmax.f32 %v1020, 0.0
        %v1053 = vmax.f32 %v1021, 0.0
        %v1054 = vmax.f32 %v1022, 0.0
        %v1055 = vmax.f32 %v1023, 0.0
        %v1056 = vmax.f32 %v1024, 0.0
        %v1057 = vmax.f32 %v1025, 0.0
        %v1058 = vmax.f32 %v1026, 0.0
        %v1059 = vmax.f32 %v1027, 0.0
        %v1060 = vmax.f32 %v1028, 0.0
        %v1061 = vpack.c.bf16 %v375, %v374
        %v1062 = vpack.c.bf16 %v377, %v376
        %v1063 = vpack.c.bf16 %v379, %v378
        %v1064 = vpack.c.bf16 %v381, %v380
        %v1065 = vpack.c.bf16 %v383, %v382
        %v1066 = vpack.c.bf16 %v385, %v384
        %v1067 = vpack.c.bf16 %v387, %v386
        %v1068 = vpack.c.bf16 %v389, %v388
        %v1069 = vpack.c.bf16 %v391, %v390
        %v1070 = vpack.c.bf16 %v393, %v392
        %v1071 = vpack.c.bf16 %v395, %v394
        %v1072 = vpack.c.bf16 %v397, %v396
        %v1073 = vpack.c.bf16 %v399, %v398
        %v1074 = vpack.c.bf16 %v401, %v400
        %v1075 = vpack.c.bf16 %v403, %v402
        %v1076 = vpack.c.bf16 %v405, %v404
        %v1077 = vld [vmem:[%s8] sm:$0x3]
        %v1078 = vld [vmem:[%s9] sm:$0x1]
        %v1080 = vlaneseq
        %v1081 = vshrl.u32 %v1080, 7
        %v1082 = vsub.s32 0, %v1081
        %v1083 = vrot.slane %v1078, %v1082
        %vm1085 = vcmask 31744
        %v1087 = vsel %vm1085, %v1061, 0
        %v1090 = vsel %vm1085, %v1062, 0
        %v1093 = vsel %vm1085, %v1063, 0
        %v1096 = vsel %vm1085, %v1064, 0
        %v1099 = vsel %vm1085, %v1065, 0
        %v1102 = vsel %vm1085, %v1066, 0
        %v1105 = vsel %vm1085, %v1067, 0
        %v1108 = vsel %vm1085, %v1068, 0
        %v1111 = vsel %vm1085, %v1069, 0
        %v1114 = vsel %vm1085, %v1070, 0
        %v1117 = vsel %vm1085, %v1071, 0
        %v1120 = vsel %vm1085, %v1072, 0
        %v1123 = vsel %vm1085, %v1073, 0
        %v1126 = vsel %vm1085, %v1074, 0
        %v1129 = vsel %vm1085, %v1075, 0
        %v1132 = vsel %vm1085, %v1076, 0
        %vm1134 = vcmask 1041408
        %v1136 = vsel %vm1134, %v1077, 0
        %1138 = vmatprep.subr.bf16.mxu0 0
        %1139 = vmatpush1.bf16.msra.mxu0 %v1136
        %1140 = vmatprep.subr.bf16.mxu0 0
        %1141 = vmatpush1.bf16.msra.mxu0 0
        %1142 = vmatprep.subr.bf16.mxu0 0
        %1143 = vmatpush1.bf16.msra.mxu0 0
        %1144 = vmatprep.subr.bf16.mxu0 0
        %1145 = vmatpush1.bf16.msra.mxu0 0
        %1146 = vmatprep.subr.bf16.mxu0 0
        %1147 = vmatpush1.bf16.msra.mxu0 0
        %1148 = vmatprep.subr.bf16.mxu0 0
        %1149 = vmatpush1.bf16.msra.mxu0 0
        %1150 = vmatprep.subr.bf16.mxu0 0
        %1151 = vmatpush1.bf16.msra.mxu0 0
        %1152 = vmatprep.subr.bf16.mxu0 0
        %1153 = vmatpush1.bf16.msra.mxu0 0
        %1154 = vmatprep.subr.bf16.mxu0 0
        %1155 = vmatpush1.bf16.msra.mxu0 0
        %1156 = vmatprep.subr.bf16.mxu0 0
        %1157 = vmatpush1.bf16.msra.mxu0 0
        %1158 = vmatprep.subr.bf16.mxu0 0
        %1159 = vmatpush1.bf16.msra.mxu0 0
        %1160 = vmatprep.subr.bf16.mxu0 0
        %1161 = vmatpush1.bf16.msra.mxu0 0
        %1162 = vmatprep.subr.bf16.mxu0 0
        %1163 = vmatpush1.bf16.msra.mxu0 0
        %1164 = vmatprep.subr.bf16.mxu0 0
        %1165 = vmatpush1.bf16.msra.mxu0 0
        %1166 = vmatprep.subr.bf16.mxu0 0
        %1167 = vmatpush1.bf16.msra.mxu0 0
        %1168 = vmatprep.subr.bf16.mxu0 0
        %1169 = vmatpush1.bf16.msra.mxu0 0
        %1170 = vmatprep.mubr.bf16.mxu0 0
        %1171 = vmatmul.mubr.bf16.gmra.mrb[0].mxu0 %v1087
        %v1172 = vpop.f32.mrb[0].mxu0
        %v1173 = vadd.f32 %v1083, %v1172
        %v1174 = vpop.f32.mrb[0].mxu0
        %v1175 = vpop.f32.mrb[0].mxu0
        %v1176 = vadd.f32 %v1083, %v1175
        %v1177 = vpop.f32.mrb[0].mxu0
        %1178 = vmatprep.mubr.bf16.mxu0 0
        %1179 = vmatmul.mubr.bf16.gmra.mrb[0].mxu0 %v1090
        %v1180 = vpop.f32.mrb[0].mxu0
        %v1181 = vadd.f32 %v1083, %v1180
        %v1182 = vpop.f32.mrb[0].mxu0
        %v1183 = vpop.f32.mrb[0].mxu0
        %v1184 = vadd.f32 %v1083, %v1183
        %v1185 = vpop.f32.mrb[0].mxu0
        %1186 = vmatprep.mubr.bf16.mxu0 0
        %1187 = vmatmul.mubr.bf16.gmra.mrb[0].mxu0 %v1093
        %v1188 = vpop.f32.mrb[0].mxu0
        %v1189 = vadd.f32 %v1083, %v1188
        %v1190 = vpop.f32.mrb[0].mxu0
        %v1191 = vpop.f32.mrb[0].mxu0
        %v1192 = vadd.f32 %v1083, %v1191
        %v1193 = vpop.f32.mrb[0].mxu0
        %1194 = vmatprep.mubr.bf16.mxu0 0
        %1195 = vmatmul.mubr.bf16.gmra.mrb[0].mxu0 %v1096
        %v1196 = vpop.f32.mrb[0].mxu0
        %v1197 = vadd.f32 %v1083, %v1196
        %v1198 = vpop.f32.mrb[0].mxu0
        %v1199 = vpop.f32.mrb[0].mxu0
        %v1200 = vadd.f32 %v1083, %v1199
        %v1201 = vpop.f32.mrb[0].mxu0
        %1202 = vmatprep.mubr.bf16.mxu0 0
        %1203 = vmatmul.mubr.bf16.gmra.mrb[0].mxu0 %v1099
        %v1204 = vpop.f32.mrb[0].mxu0
        %v1205 = vadd.f32 %v1083, %v1204
        %v1206 = vpop.f32.mrb[0].mxu0
        %v1207 = vpop.f32.mrb[0].mxu0
        %v1208 = vadd.f32 %v1083, %v1207
        %v1209 = vpop.f32.mrb[0].mxu0
        %1210 = vmatprep.mubr.bf16.mxu0 0
        %1211 = vmatmul.mubr.bf16.gmra.mrb[0].mxu0 %v1102
        %v1212 = vpop.f32.mrb[0].mxu0
        %v1213 = vadd.f32 %v1083, %v1212
        %v1214 = vpop.f32.mrb[0].mxu0
        %v1215 = vpop.f32.mrb[0].mxu0
        %v1216 = vadd.f32 %v1083, %v1215
        %v1217 = vpop.f32.mrb[0].mxu0
        %1218 = vmatprep.mubr.bf16.mxu0 0
        %1219 = vmatmul.mubr.bf16.gmra.mrb[0].mxu0 %v1105
        %v1220 = vpop.f32.mrb[0].mxu0
        %v1221 = vadd.f32 %v1083, %v1220
        %v1222 = vpop.f32.mrb[0].mxu0
        %v1223 = vpop.f32.mrb[0].mxu0
        %v1224 = vadd.f32 %v1083, %v1223
        %v1225 = vpop.f32.mrb[0].mxu0
        %1226 = vmatprep.mubr.bf16.mxu0 0
        %1227 = vmatmul.mubr.bf16.gmra.mrb[0].mxu0 %v1108
        %v1228 = vpop.f32.mrb[0].mxu0
        %v1229 = vadd.f32 %v1083, %v1228
        %v1230 = vpop.f32.mrb[0].mxu0
        %v1231 = vpop.f32.mrb[0].mxu0
        %v1232 = vadd.f32 %v1083, %v1231
        %v1233 = vpop.f32.mrb[0].mxu0
        %1234 = vmatprep.mubr.bf16.mxu0 0
        %1235 = vmatmul.mubr.bf16.gmra.mrb[0].mxu0 %v1111
        %v1236 = vpop.f32.mrb[0].mxu0
        %v1237 = vadd.f32 %v1083, %v1236
        %v1238 = vpop.f32.mrb[0].mxu0
        %v1239 = vpop.f32.mrb[0].mxu0
        %v1240 = vadd.f32 %v1083, %v1239
        %v1241 = vpop.f32.mrb[0].mxu0
        %1242 = vmatprep.mubr.bf16.mxu0 0
        %1243 = vmatmul.mubr.bf16.gmra.mrb[0].mxu0 %v1114
        %v1244 = vpop.f32.mrb[0].mxu0
        %v1245 = vadd.f32 %v1083, %v1244
        %v1246 = vpop.f32.mrb[0].mxu0
        %v1247 = vpop.f32.mrb[0].mxu0
        %v1248 = vadd.f32 %v1083, %v1247
        %v1249 = vpop.f32.mrb[0].mxu0
        %1250 = vmatprep.mubr.bf16.mxu0 0
        %1251 = vmatmul.mubr.bf16.gmra.mrb[0].mxu0 %v1117
        %v1252 = vpop.f32.mrb[0].mxu0
        %v1253 = vadd.f32 %v1083, %v1252
        %v1254 = vpop.f32.mrb[0].mxu0
        %v1255 = vpop.f32.mrb[0].mxu0
        %v1256 = vadd.f32 %v1083, %v1255
        %v1257 = vpop.f32.mrb[0].mxu0
        %1258 = vmatprep.mubr.bf16.mxu0 0
        %1259 = vmatmul.mubr.bf16.gmra.mrb[0].mxu0 %v1120
        %v1260 = vpop.f32.mrb[0].mxu0
        %v1261 = vadd.f32 %v1083, %v1260
        %v1262 = vpop.f32.mrb[0].mxu0
        %v1263 = vpop.f32.mrb[0].mxu0
        %v1264 = vadd.f32 %v1083, %v1263
        %v1265 = vpop.f32.mrb[0].mxu0
        %1266 = vmatprep.mubr.bf16.mxu0 0
        %1267 = vmatmul.mubr.bf16.gmra.mrb[0].mxu0 %v1123
        %v1268 = vpop.f32.mrb[0].mxu0
        %v1269 = vadd.f32 %v1083, %v1268
        %v1270 = vpop.f32.mrb[0].mxu0
        %v1271 = vpop.f32.mrb[0].mxu0
        %v1272 = vadd.f32 %v1083, %v1271
        %v1273 = vpop.f32.mrb[0].mxu0
        %1274 = vmatprep.mubr.bf16.mxu0 0
        %1275 = vmatmul.mubr.bf16.gmra.mrb[0].mxu0 %v1126
        %v1276 = vpop.f32.mrb[0].mxu0
        %v1277 = vadd.f32 %v1083, %v1276
        %v1278 = vpop.f32.mrb[0].mxu0
        %v1279 = vpop.f32.mrb[0].mxu0
        %v1280 = vadd.f32 %v1083, %v1279
        %v1281 = vpop.f32.mrb[0].mxu0
        %1282 = vmatprep.mubr.bf16.mxu0 0
        %1283 = vmatmul.mubr.bf16.gmra.mrb[0].mxu0 %v1129
        %v1284 = vpop.f32.mrb[0].mxu0
        %v1285 = vadd.f32 %v1083, %v1284
        %v1286 = vpop.f32.mrb[0].mxu0
        %v1287 = vpop.f32.mrb[0].mxu0
        %v1288 = vadd.f32 %v1083, %v1287
        %v1289 = vpop.f32.mrb[0].mxu0
        %1290 = vmatprep.mubr.bf16.mxu0 0
        %1291 = vmatmul.mubr.bf16.gmra.mrb[0].mxu0 %v1132
        %v1292 = vpop.f32.mrb[0].mxu0
        %v1293 = vadd.f32 %v1083, %v1292
        %v1294 = vpop.f32.mrb[0].mxu0
        %v1295 = vpop.f32.mrb[0].mxu0
        %v1296 = vadd.f32 %v1083, %v1295
        %v1297 = vpop.f32.mrb[0].mxu0
        %1298 = vdwg.mxu0
        %v1299 = vld [vmem:[%s4] sm:$0x1]
        %v1300 = vrot.slane %v1029, 7
        %v1301 = vrot.slane %v1030, 7
        %v1302 = vrot.slane %v1031, 7
        %v1303 = vrot.slane %v1032, 7
        %v1304 = vrot.slane %v1033, 7
        %v1305 = vrot.slane %v1034, 7
        %v1306 = vrot.slane %v1035, 7
        %v1307 = vrot.slane %v1036, 7
        %v1308 = vrot.slane %v1037, 7
        %v1309 = vrot.slane %v1038, 7
        %v1310 = vrot.slane %v1039, 7
        %v1311 = vrot.slane %v1040, 7
        %v1312 = vrot.slane %v1041, 7
        %v1313 = vrot.slane %v1042, 7
        %v1314 = vrot.slane %v1043, 7
        %v1315 = vrot.slane %v1044, 7
        %v1316 = vrot.slane %v1045, 7
        %v1317 = vrot.slane %v1046, 7
        %v1318 = vrot.slane %v1047, 7
        %v1319 = vrot.slane %v1048, 7
        %v1320 = vrot.slane %v1049, 7
        %v1321 = vrot.slane %v1050, 7
        %v1322 = vrot.slane %v1051, 7
        %v1323 = vrot.slane %v1052, 7
        %v1324 = vrot.slane %v1053, 7
        %v1325 = vrot.slane %v1054, 7
        %v1326 = vrot.slane %v1055, 7
        %v1327 = vrot.slane %v1056, 7
        %v1328 = vrot.slane %v1057, 7
        %v1329 = vrot.slane %v1058, 7
        %v1330 = vrot.slane %v1059, 7
        %v1331 = vrot.slane %v1060, 7
        %vm1332 = vcmp.lt.s32.totalorder %v407, 1
        %v1333 = vsel %vm1332, %v1330, %v1331
        %v1334 = vsel %vm1332, %v1329, %v1330
        %v1335 = vsel %vm1332, %v1328, %v1329
        %v1336 = vsel %vm1332, %v1327, %v1328
        %v1337 = vsel %vm1332, %v1326, %v1327
        %v1338 = vsel %vm1332, %v1325, %v1326
        %v1339 = vsel %vm1332, %v1324, %v1325
        %v1340 = vsel %vm1332, %v1323, %v1324
        %v1341 = vsel %vm1332, %v1322, %v1323
        %v1342 = vsel %vm1332, %v1321, %v1322
        %v1343 = vsel %vm1332, %v1320, %v1321
        %v1344 = vsel %vm1332, %v1319, %v1320
        %v1345 = vsel %vm1332, %v1318, %v1319
        %v1346 = vsel %vm1332, %v1317, %v1318
        %v1347 = vsel %vm1332, %v1316, %v1317
        %v1348 = vsel %vm1332, %v1315, %v1316
        %v1349 = vsel %vm1332, %v1314, %v1315
        %v1350 = vsel %vm1332, %v1313, %v1314
        %v1351 = vsel %vm1332, %v1312, %v1313
        %v1352 = vsel %vm1332, %v1311, %v1312
        %v1353 = vsel %vm1332, %v1310, %v1311
        %v1354 = vsel %vm1332, %v1309, %v1310
        %v1355 = vsel %vm1332, %v1308, %v1309
        %v1356 = vsel %vm1332, %v1307, %v1308
        %v1357 = vsel %vm1332, %v1306, %v1307
        %v1358 = vsel %vm1332, %v1305, %v1306
        %v1359 = vsel %vm1332, %v1304, %v1305
        %v1360 = vsel %vm1332, %v1303, %v1304
        %v1361 = vsel %vm1332, %v1302, %v1303
        %v1362 = vsel %vm1332, %v1301, %v1302
        %v1363 = vsel %vm1332, %v1300, %v1301
        %v1364 = vsel %vm1332, %v1331, %v1300
        %vm1365 = vmand %vm823, %vm887
        %vm1366 = vmand %vm824, %vm888
        %vm1367 = vmand %vm825, %vm889
        %vm1368 = vmand %vm826, %vm890
        %vm1369 = vmand %vm827, %vm891
        %vm1370 = vmand %vm828, %vm892
        %vm1371 = vmand %vm829, %vm893
        %vm1372 = vmand %vm830, %vm894
        %vm1373 = vmand %vm831, %vm895
        %vm1374 = vmand %vm832, %vm896
        %vm1375 = vmand %vm833, %vm897
        %vm1376 = vmand %vm834, %vm898
        %vm1377 = vmand %vm835, %vm899
        %vm1378 = vmand %vm836, %vm900
        %vm1379 = vmand %vm837, %vm901
        %vm1380 = vmand %vm838, %vm902
        %vm1381 = vmand %vm839, %vm903
        %vm1382 = vmand %vm840, %vm904
        %vm1383 = vmand %vm841, %vm905
        %vm1384 = vmand %vm842, %vm906
        %vm1385 = vmand %vm843, %vm907
        %vm1386 = vmand %vm844, %vm908
        %vm1387 = vmand %vm845, %vm909
        %vm1388 = vmand %vm846, %vm910
        %vm1389 = vmand %vm847, %vm911
        %vm1390 = vmand %vm848, %vm912
        %vm1391 = vmand %vm849, %vm913
        %vm1392 = vmand %vm850, %vm914
        %vm1393 = vmand %vm851, %vm915
        %vm1394 = vmand %vm852, %vm916
        %vm1395 = vmand %vm853, %vm917
        %vm1396 = vmand %vm854, %vm918
        %v1397 = vsel %vm1365, 1, 0
        %v1398 = vsel %vm1366, 1, 0
        %v1399 = vsel %vm1367, 1, 0
        %v1400 = vsel %vm1368, 1, 0
        %v1401 = vsel %vm1369, 1, 0
        %v1402 = vsel %vm1370, 1, 0
        %v1403 = vsel %vm1371, 1, 0
        %v1404 = vsel %vm1372, 1, 0
        %v1405 = vsel %vm1373, 1, 0
        %v1406 = vsel %vm1374, 1, 0
        %v1407 = vsel %vm1375, 1, 0
        %v1408 = vsel %vm1376, 1, 0
        %v1409 = vsel %vm1377, 1, 0
        %v1410 = vsel %vm1378, 1, 0
        %v1411 = vsel %vm1379, 1, 0
        %v1412 = vsel %vm1380, 1, 0
        %v1413 = vsel %vm1381, 1, 0
        %v1414 = vsel %vm1382, 1, 0
        %v1415 = vsel %vm1383, 1, 0
        %v1416 = vsel %vm1384, 1, 0
        %v1417 = vsel %vm1385, 1, 0
        %v1418 = vsel %vm1386, 1, 0
        %v1419 = vsel %vm1387, 1, 0
        %v1420 = vsel %vm1388, 1, 0
        %v1421 = vsel %vm1389, 1, 0
        %v1422 = vsel %vm1390, 1, 0
        %v1423 = vsel %vm1391, 1, 0
        %v1424 = vsel %vm1392, 1, 0
        %v1425 = vsel %vm1393, 1, 0
        %v1426 = vsel %vm1394, 1, 0
        %v1427 = vsel %vm1395, 1, 0
        %v1428 = vsel %vm1396, 1, 0
        %vm1429 = vcmp.eq.s32.totalorder %v1397, 1
        %vm1430 = vcmp.eq.s32.totalorder %v1398, 1
        %vm1431 = vcmp.eq.s32.totalorder %v1399, 1
        %vm1432 = vcmp.eq.s32.totalorder %v1400, 1
        %vm1433 = vcmp.eq.s32.totalorder %v1401, 1
        %vm1434 = vcmp.eq.s32.totalorder %v1402, 1
        %vm1435 = vcmp.eq.s32.totalorder %v1403, 1
        %vm1436 = vcmp.eq.s32.totalorder %v1404, 1
        %vm1437 = vcmp.eq.s32.totalorder %v1405, 1
        %vm1438 = vcmp.eq.s32.totalorder %v1406, 1
        %vm1439 = vcmp.eq.s32.totalorder %v1407, 1
        %vm1440 = vcmp.eq.s32.totalorder %v1408, 1
        %vm1441 = vcmp.eq.s32.totalorder %v1409, 1
        %vm1442 = vcmp.eq.s32.totalorder %v1410, 1
        %vm1443 = vcmp.eq.s32.totalorder %v1411, 1
        %vm1444 = vcmp.eq.s32.totalorder %v1412, 1
        %vm1445 = vcmp.eq.s32.totalorder %v1413, 1
        %vm1446 = vcmp.eq.s32.totalorder %v1414, 1
        %vm1447 = vcmp.eq.s32.totalorder %v1415, 1
        %vm1448 = vcmp.eq.s32.totalorder %v1416, 1
        %vm1449 = vcmp.eq.s32.totalorder %v1417, 1
        %vm1450 = vcmp.eq.s32.totalorder %v1418, 1
        %vm1451 = vcmp.eq.s32.totalorder %v1419, 1
        %vm1452 = vcmp.eq.s32.totalorder %v1420, 1
        %vm1453 = vcmp.eq.s32.totalorder %v1421, 1
        %vm1454 = vcmp.eq.s32.totalorder %v1422, 1
        %vm1455 = vcmp.eq.s32.totalorder %v1423, 1
        %vm1456 = vcmp.eq.s32.totalorder %v1424, 1
        %vm1457 = vcmp.eq.s32.totalorder %v1425, 1
        %vm1458 = vcmp.eq.s32.totalorder %v1426, 1
        %vm1459 = vcmp.eq.s32.totalorder %v1427, 1
        %vm1460 = vcmp.eq.s32.totalorder %v1428, 1
        %v1461 = vsel %vm1429, %v1334, 0.0
        %v1462 = vsel %vm1430, %v1333, 0.0
        %v1463 = vsel %vm1431, %v1364, 0.0
        %v1464 = vsel %vm1432, %v1363, 0.0
        %v1465 = vsel %vm1433, %v1362, 0.0
        %v1466 = vsel %vm1434, %v1361, 0.0
        %v1467 = vsel %vm1435, %v1360, 0.0
        %v1468 = vsel %vm1436, %v1359, 0.0
        %v1469 = vsel %vm1437, %v1358, 0.0
        %v1470 = vsel %vm1438, %v1357, 0.0
        %v1471 = vsel %vm1439, %v1356, 0.0
        %v1472 = vsel %vm1440, %v1355, 0.0
        %v1473 = vsel %vm1441, %v1354, 0.0
        %v1474 = vsel %vm1442, %v1353, 0.0
        %v1475 = vsel %vm1443, %v1352, 0.0
        %v1476 = vsel %vm1444, %v1351, 0.0
        %v1477 = vsel %vm1445, %v1350, 0.0
        %v1478 = vsel %vm1446, %v1349, 0.0
        %v1479 = vsel %vm1447, %v1348, 0.0
        %v1480 = vsel %vm1448, %v1347, 0.0
        %v1481 = vsel %vm1449, %v1346, 0.0
        %v1482 = vsel %vm1450, %v1345, 0.0
        %v1483 = vsel %vm1451, %v1344, 0.0
        %v1484 = vsel %vm1452, %v1343, 0.0
        %v1485 = vsel %vm1453, %v1342, 0.0
        %v1486 = vsel %vm1454, %v1341, 0.0
        %v1487 = vsel %vm1455, %v1340, 0.0
        %v1488 = vsel %vm1456, %v1339, 0.0
        %v1489 = vsel %vm1457, %v1338, 0.0
        %v1490 = vsel %vm1458, %v1337, 0.0
        %v1491 = vsel %vm1459, %v1336, 0.0
        %v1492 = vsel %vm1460, %v1335, 0.0
        %v1493 = vpack.c.bf16 %v1462, %v1461
        %v1494 = vpack.c.bf16 %v1464, %v1463
        %v1495 = vpack.c.bf16 %v1466, %v1465
        %v1496 = vpack.c.bf16 %v1468, %v1467
        %v1497 = vpack.c.bf16 %v1470, %v1469
        %v1498 = vpack.c.bf16 %v1472, %v1471
        %v1499 = vpack.c.bf16 %v1474, %v1473
        %v1500 = vpack.c.bf16 %v1476, %v1475
        %v1501 = vpack.c.bf16 %v1478, %v1477
        %v1502 = vpack.c.bf16 %v1480, %v1479
        %v1503 = vpack.c.bf16 %v1482, %v1481
        %v1504 = vpack.c.bf16 %v1484, %v1483
        %v1505 = vpack.c.bf16 %v1486, %v1485
        %v1506 = vpack.c.bf16 %v1488, %v1487
        %v1507 = vpack.c.bf16 %v1490, %v1489
        %v1508 = vpack.c.bf16 %v1492, %v1491
        %v1509 = vld [vmem:[%s3] sm:$0x3]
        %v1511 = vsel %vm1085, %v1493, 0
        %v1514 = vsel %vm1085, %v1494, 0
        %v1517 = vsel %vm1085, %v1495, 0
        %v1520 = vsel %vm1085, %v1496, 0
        %v1523 = vsel %vm1085, %v1497, 0
        %v1526 = vsel %vm1085, %v1498, 0
        %v1529 = vsel %vm1085, %v1499, 0
        %v1532 = vsel %vm1085, %v1500, 0
        %v1535 = vsel %vm1085, %v1501, 0
        %v1538 = vsel %vm1085, %v1502, 0
        %v1541 = vsel %vm1085, %v1503, 0
        %v1544 = vsel %vm1085, %v1504, 0
        %v1547 = vsel %vm1085, %v1505, 0
        %v1550 = vsel %vm1085, %v1506, 0
        %v1553 = vsel %vm1085, %v1507, 0
        %v1556 = vsel %vm1085, %v1508, 0
        %v1559 = vsel %vm1134, %v1509, 0
        %1561 = vmatprep.subr.bf16.mxu0 0
        %1562 = vmatpush1.bf16.msra.mxu0 %v1559
        %1563 = vmatprep.subr.bf16.mxu0 0
        %1564 = vmatpush1.bf16.msra.mxu0 0
        %1565 = vmatprep.subr.bf16.mxu0 0
        %1566 = vmatpush1.bf16.msra.mxu0 0
        %1567 = vmatprep.subr.bf16.mxu0 0
        %1568 = vmatpush1.bf16.msra.mxu0 0
        %1569 = vmatprep.subr.bf16.mxu0 0
        %1570 = vmatpush1.bf16.msra.mxu0 0
        %1571 = vmatprep.subr.bf16.mxu0 0
        %1572 = vmatpush1.bf16.msra.mxu0 0
        %1573 = vmatprep.subr.bf16.mxu0 0
        %1574 = vmatpush1.bf16.msra.mxu0 0
        %1575 = vmatprep.subr.bf16.mxu0 0
        %1576 = vmatpush1.bf16.msra.mxu0 0
        %1577 = vmatprep.subr.bf16.mxu0 0
        %1578 = vmatpush1.bf16.msra.mxu0 0
        %1579 = vmatprep.subr.bf16.mxu0 0
        %1580 = vmatpush1.bf16.msra.mxu0 0
        %1581 = vmatprep.subr.bf16.mxu0 0
        %1582 = vmatpush1.bf16.msra.mxu0 0
        %1583 = vmatprep.subr.bf16.mxu0 0
        %1584 = vmatpush1.bf16.msra.mxu0 0
        %1585 = vmatprep.subr.bf16.mxu0 0
        %1586 = vmatpush1.bf16.msra.mxu0 0
        %1587 = vmatprep.subr.bf16.mxu0 0
        %1588 = vmatpush1.bf16.msra.mxu0 0
        %1589 = vmatprep.subr.bf16.mxu0 0
        %1590 = vmatpush1.bf16.msra.mxu0 0
        %1591 = vmatprep.subr.bf16.mxu0 0
        %1592 = vmatpush1.bf16.msra.mxu0 0
        %1593 = vmatprep.mubr.bf16.mxu0 0
        %1594 = vmatmul.mubr.bf16.gmra.mrb[0].mxu0 %v1511
        %v1595 = vpop.f32.mrb[0].mxu0
        %v1596 = vadd.f32 0.0, %v1595
        %v1597 = vpop.f32.mrb[0].mxu0
        %v1598 = vpop.f32.mrb[0].mxu0
        %v1599 = vadd.f32 0.0, %v1598
        %v1600 = vpop.f32.mrb[0].mxu0
        %1601 = vmatprep.mubr.bf16.mxu0 0
        %1602 = vmatmul.mubr.bf16.gmra.mrb[0].mxu0 %v1514
        %v1603 = vpop.f32.mrb[0].mxu0
        %v1604 = vadd.f32 0.0, %v1603
        %v1605 = vpop.f32.mrb[0].mxu0
        %v1606 = vpop.f32.mrb[0].mxu0
        %v1607 = vadd.f32 0.0, %v1606
        %v1608 = vpop.f32.mrb[0].mxu0
        %1609 = vmatprep.mubr.bf16.mxu0 0
        %1610 = vmatmul.mubr.bf16.gmra.mrb[0].mxu0 %v1517
        %v1611 = vpop.f32.mrb[0].mxu0
        %v1612 = vadd.f32 0.0, %v1611
        %v1613 = vpop.f32.mrb[0].mxu0
        %v1614 = vpop.f32.mrb[0].mxu0
        %v1615 = vadd.f32 0.0, %v1614
        %v1616 = vpop.f32.mrb[0].mxu0
        %1617 = vmatprep.mubr.bf16.mxu0 0
        %1618 = vmatmul.mubr.bf16.gmra.mrb[0].mxu0 %v1520
        %v1619 = vpop.f32.mrb[0].mxu0
        %v1620 = vadd.f32 0.0, %v1619
        %v1621 = vpop.f32.mrb[0].mxu0
        %v1622 = vpop.f32.mrb[0].mxu0
        %v1623 = vadd.f32 0.0, %v1622
        %v1624 = vpop.f32.mrb[0].mxu0
        %1625 = vmatprep.mubr.bf16.mxu0 0
        %1626 = vmatmul.mubr.bf16.gmra.mrb[0].mxu0 %v1523
        %v1627 = vpop.f32.mrb[0].mxu0
        %v1628 = vadd.f32 0.0, %v1627
        %v1629 = vpop.f32.mrb[0].mxu0
        %v1630 = vpop.f32.mrb[0].mxu0
        %v1631 = vadd.f32 0.0, %v1630
        %v1632 = vpop.f32.mrb[0].mxu0
        %1633 = vmatprep.mubr.bf16.mxu0 0
        %1634 = vmatmul.mubr.bf16.gmra.mrb[0].mxu0 %v1526
        %v1635 = vpop.f32.mrb[0].mxu0
        %v1636 = vadd.f32 0.0, %v1635
        %v1637 = vpop.f32.mrb[0].mxu0
        %v1638 = vpop.f32.mrb[0].mxu0
        %v1639 = vadd.f32 0.0, %v1638
        %v1640 = vpop.f32.mrb[0].mxu0
        %1641 = vmatprep.mubr.bf16.mxu0 0
        %1642 = vmatmul.mubr.bf16.gmra.mrb[0].mxu0 %v1529
        %v1643 = vpop.f32.mrb[0].mxu0
        %v1644 = vadd.f32 0.0, %v1643
        %v1645 = vpop.f32.mrb[0].mxu0
        %v1646 = vpop.f32.mrb[0].mxu0
        %v1647 = vadd.f32 0.0, %v1646
        %v1648 = vpop.f32.mrb[0].mxu0
        %1649 = vmatprep.mubr.bf16.mxu0 0
        %1650 = vmatmul.mubr.bf16.gmra.mrb[0].mxu0 %v1532
        %v1651 = vpop.f32.mrb[0].mxu0
        %v1652 = vadd.f32 0.0, %v1651
        %v1653 = vpop.f32.mrb[0].mxu0
        %v1654 = vpop.f32.mrb[0].mxu0
        %v1655 = vadd.f32 0.0, %v1654
        %v1656 = vpop.f32.mrb[0].mxu0
        %1657 = vmatprep.mubr.bf16.mxu0 0
        %1658 = vmatmul.mubr.bf16.gmra.mrb[0].mxu0 %v1535
        %v1659 = vpop.f32.mrb[0].mxu0
        %v1660 = vadd.f32 0.0, %v1659
        %v1661 = vpop.f32.mrb[0].mxu0
        %v1662 = vpop.f32.mrb[0].mxu0
        %v1663 = vadd.f32 0.0, %v1662
        %v1664 = vpop.f32.mrb[0].mxu0
        %1665 = vmatprep.mubr.bf16.mxu0 0
        %1666 = vmatmul.mubr.bf16.gmra.mrb[0].mxu0 %v1538
        %v1667 = vpop.f32.mrb[0].mxu0
        %v1668 = vadd.f32 0.0, %v1667
        %v1669 = vpop.f32.mrb[0].mxu0
        %v1670 = vpop.f32.mrb[0].mxu0
        %v1671 = vadd.f32 0.0, %v1670
        %v1672 = vpop.f32.mrb[0].mxu0
        %1673 = vmatprep.mubr.bf16.mxu0 0
        %1674 = vmatmul.mubr.bf16.gmra.mrb[0].mxu0 %v1541
        %v1675 = vpop.f32.mrb[0].mxu0
        %v1676 = vadd.f32 0.0, %v1675
        %v1677 = vpop.f32.mrb[0].mxu0
        %v1678 = vpop.f32.mrb[0].mxu0
        %v1679 = vadd.f32 0.0, %v1678
        %v1680 = vpop.f32.mrb[0].mxu0
        %1681 = vmatprep.mubr.bf16.mxu0 0
        %1682 = vmatmul.mubr.bf16.gmra.mrb[0].mxu0 %v1544
        %v1683 = vpop.f32.mrb[0].mxu0
        %v1684 = vadd.f32 0.0, %v1683
        %v1685 = vpop.f32.mrb[0].mxu0
        %v1686 = vpop.f32.mrb[0].mxu0
        %v1687 = vadd.f32 0.0, %v1686
        %v1688 = vpop.f32.mrb[0].mxu0
        %1689 = vmatprep.mubr.bf16.mxu0 0
        %1690 = vmatmul.mubr.bf16.gmra.mrb[0].mxu0 %v1547
        %v1691 = vpop.f32.mrb[0].mxu0
        %v1692 = vadd.f32 0.0, %v1691
        %v1693 = vpop.f32.mrb[0].mxu0
        %v1694 = vpop.f32.mrb[0].mxu0
        %v1695 = vadd.f32 0.0, %v1694
        %v1696 = vpop.f32.mrb[0].mxu0
        %1697 = vmatprep.mubr.bf16.mxu0 0
        %1698 = vmatmul.mubr.bf16.gmra.mrb[0].mxu0 %v1550
        %v1699 = vpop.f32.mrb[0].mxu0
        %v1700 = vadd.f32 0.0, %v1699
        %v1701 = vpop.f32.mrb[0].mxu0
        %v1702 = vpop.f32.mrb[0].mxu0
        %v1703 = vadd.f32 0.0, %v1702
        %v1704 = vpop.f32.mrb[0].mxu0
        %1705 = vmatprep.mubr.bf16.mxu0 0
        %1706 = vmatmul.mubr.bf16.gmra.mrb[0].mxu0 %v1553
        %v1707 = vpop.f32.mrb[0].mxu0
        %v1708 = vadd.f32 0.0, %v1707
        %v1709 = vpop.f32.mrb[0].mxu0
        %v1710 = vpop.f32.mrb[0].mxu0
        %v1711 = vadd.f32 0.0, %v1710
        %v1712 = vpop.f32.mrb[0].mxu0
        %1713 = vmatprep.mubr.bf16.mxu0 0
        %1714 = vmatmul.mubr.bf16.gmra.mrb[0].mxu0 %v1556
        %v1715 = vpop.f32.mrb[0].mxu0
        %v1716 = vadd.f32 0.0, %v1715
        %v1717 = vpop.f32.mrb[0].mxu0
        %v1718 = vpop.f32.mrb[0].mxu0
        %v1719 = vadd.f32 0.0, %v1718
        %v1720 = vpop.f32.mrb[0].mxu0
        %1721 = vdwg.mxu0
        %v1723 = vlaneseq
        %v1724 = vshrl.u32 %v1723, 7
        %v1725 = vsub.s32 0, %v1724
        %v1726 = vrot.slane %v1299, %v1725
        %v1728 = vadd.f32 %v1726, %v1596
        %v1729 = vadd.f32 %v1726, %v1599
        %v1730 = vadd.f32 %v1726, %v1604
        %v1731 = vadd.f32 %v1726, %v1607
        %v1732 = vadd.f32 %v1726, %v1612
        %v1733 = vadd.f32 %v1726, %v1615
        %v1734 = vadd.f32 %v1726, %v1620
        %v1735 = vadd.f32 %v1726, %v1623
        %v1736 = vadd.f32 %v1726, %v1628
        %v1737 = vadd.f32 %v1726, %v1631
        %v1738 = vadd.f32 %v1726, %v1636
        %v1739 = vadd.f32 %v1726, %v1639
        %v1740 = vadd.f32 %v1726, %v1644
        %v1741 = vadd.f32 %v1726, %v1647
        %v1742 = vadd.f32 %v1726, %v1652
        %v1743 = vadd.f32 %v1726, %v1655
        %v1744 = vadd.f32 %v1726, %v1660
        %v1745 = vadd.f32 %v1726, %v1663
        %v1746 = vadd.f32 %v1726, %v1668
        %v1747 = vadd.f32 %v1726, %v1671
        %v1748 = vadd.f32 %v1726, %v1676
        %v1749 = vadd.f32 %v1726, %v1679
        %v1750 = vadd.f32 %v1726, %v1684
        %v1751 = vadd.f32 %v1726, %v1687
        %v1752 = vadd.f32 %v1726, %v1692
        %v1753 = vadd.f32 %v1726, %v1695
        %v1754 = vadd.f32 %v1726, %v1700
        %v1755 = vadd.f32 %v1726, %v1703
        %v1756 = vadd.f32 %v1726, %v1708
        %v1757 = vadd.f32 %v1726, %v1711
        %v1758 = vadd.f32 %v1726, %v1716
        %v1759 = vadd.f32 %v1726, %v1719
        %v1760 = vsel %vm823, 1, 0
        %v1761 = vsel %vm824, 1, 0
        %v1762 = vsel %vm825, 1, 0
        %v1763 = vsel %vm826, 1, 0
        %v1764 = vsel %vm827, 1, 0
        %v1765 = vsel %vm828, 1, 0
        %v1766 = vsel %vm829, 1, 0
        %v1767 = vsel %vm830, 1, 0
        %v1768 = vsel %vm831, 1, 0
        %v1769 = vsel %vm832, 1, 0
        %v1770 = vsel %vm833, 1, 0
        %v1771 = vsel %vm834, 1, 0
        %v1772 = vsel %vm835, 1, 0
        %v1773 = vsel %vm836, 1, 0
        %v1774 = vsel %vm837, 1, 0
        %v1775 = vsel %vm838, 1, 0
        %v1776 = vsel %vm839, 1, 0
        %v1777 = vsel %vm840, 1, 0
        %v1778 = vsel %vm841, 1, 0
        %v1779 = vsel %vm842, 1, 0
        %v1780 = vsel %vm843, 1, 0
        %v1781 = vsel %vm844, 1, 0
        %v1782 = vsel %vm845, 1, 0
        %v1783 = vsel %vm846, 1, 0
        %v1784 = vsel %vm847, 1, 0
        %v1785 = vsel %vm848, 1, 0
        %v1786 = vsel %vm849, 1, 0
        %v1787 = vsel %vm850, 1, 0
        %v1788 = vsel %vm851, 1, 0
        %v1789 = vsel %vm852, 1, 0
        %v1790 = vsel %vm853, 1, 0
        %v1791 = vsel %vm854, 1, 0
        %vm1792 = vcmp.eq.s32.totalorder %v1760, 1
        %vm1793 = vcmp.eq.s32.totalorder %v1761, 1
        %vm1794 = vcmp.eq.s32.totalorder %v1762, 1
        %vm1795 = vcmp.eq.s32.totalorder %v1763, 1
        %vm1796 = vcmp.eq.s32.totalorder %v1764, 1
        %vm1797 = vcmp.eq.s32.totalorder %v1765, 1
        %vm1798 = vcmp.eq.s32.totalorder %v1766, 1
        %vm1799 = vcmp.eq.s32.totalorder %v1767, 1
        %vm1800 = vcmp.eq.s32.totalorder %v1768, 1
        %vm1801 = vcmp.eq.s32.totalorder %v1769, 1
        %vm1802 = vcmp.eq.s32.totalorder %v1770, 1
        %vm1803 = vcmp.eq.s32.totalorder %v1771, 1
        %vm1804 = vcmp.eq.s32.totalorder %v1772, 1
        %vm1805 = vcmp.eq.s32.totalorder %v1773, 1
        %vm1806 = vcmp.eq.s32.totalorder %v1774, 1
        %vm1807 = vcmp.eq.s32.totalorder %v1775, 1
        %vm1808 = vcmp.eq.s32.totalorder %v1776, 1
        %vm1809 = vcmp.eq.s32.totalorder %v1777, 1
        %vm1810 = vcmp.eq.s32.totalorder %v1778, 1
        %vm1811 = vcmp.eq.s32.totalorder %v1779, 1
        %vm1812 = vcmp.eq.s32.totalorder %v1780, 1
        %vm1813 = vcmp.eq.s32.totalorder %v1781, 1
        %vm1814 = vcmp.eq.s32.totalorder %v1782, 1
        %vm1815 = vcmp.eq.s32.totalorder %v1783, 1
        %vm1816 = vcmp.eq.s32.totalorder %v1784, 1
        %vm1817 = vcmp.eq.s32.totalorder %v1785, 1
        %vm1818 = vcmp.eq.s32.totalorder %v1786, 1
        %vm1819 = vcmp.eq.s32.totalorder %v1787, 1
        %vm1820 = vcmp.eq.s32.totalorder %v1788, 1
        %vm1821 = vcmp.eq.s32.totalorder %v1789, 1
        %vm1822 = vcmp.eq.s32.totalorder %v1790, 1
        %vm1823 = vcmp.eq.s32.totalorder %v1791, 1
        %v1824 = vsel %vm1792, %v1059, 0.0
        %v1825 = vsel %vm1793, %v1060, 0.0
        %v1826 = vsel %vm1794, %v1029, 0.0
        %v1827 = vsel %vm1795, %v1030, 0.0
        %v1828 = vsel %vm1796, %v1031, 0.0
        %v1829 = vsel %vm1797, %v1032, 0.0
        %v1830 = vsel %vm1798, %v1033, 0.0
        %v1831 = vsel %vm1799, %v1034, 0.0
        %v1832 = vsel %vm1800, %v1035, 0.0
        %v1833 = vsel %vm1801, %v1036, 0.0
        %v1834 = vsel %vm1802, %v1037, 0.0
        %v1835 = vsel %vm1803, %v1038, 0.0
        %v1836 = vsel %vm1804, %v1039, 0.0
        %v1837 = vsel %vm1805, %v1040, 0.0
        %v1838 = vsel %vm1806, %v1041, 0.0
        %v1839 = vsel %vm1807, %v1042, 0.0
        %v1840 = vsel %vm1808, %v1043, 0.0
        %v1841 = vsel %vm1809, %v1044, 0.0
        %v1842 = vsel %vm1810, %v1045, 0.0
        %v1843 = vsel %vm1811, %v1046, 0.0
        %v1844 = vsel %vm1812, %v1047, 0.0
        %v1845 = vsel %vm1813, %v1048, 0.0
        %v1846 = vsel %vm1814, %v1049, 0.0
        %v1847 = vsel %vm1815, %v1050, 0.0
        %v1848 = vsel %vm1816, %v1051, 0.0
        %v1849 = vsel %vm1817, %v1052, 0.0
        %v1850 = vsel %vm1818, %v1053, 0.0
        %v1851 = vsel %vm1819, %v1054, 0.0
        %v1852 = vsel %vm1820, %v1055, 0.0
        %v1853 = vsel %vm1821, %v1056, 0.0
        %v1854 = vsel %vm1822, %v1057, 0.0
        %v1855 = vsel %vm1823, %v1058, 0.0
        %v1856 = vpack.c.bf16 %v1825, %v1824
        %v1857 = vpack.c.bf16 %v1827, %v1826
        %v1858 = vpack.c.bf16 %v1829, %v1828
        %v1859 = vpack.c.bf16 %v1831, %v1830
        %v1860 = vpack.c.bf16 %v1833, %v1832
        %v1861 = vpack.c.bf16 %v1835, %v1834
        %v1862 = vpack.c.bf16 %v1837, %v1836
        %v1863 = vpack.c.bf16 %v1839, %v1838
        %v1864 = vpack.c.bf16 %v1841, %v1840
        %v1865 = vpack.c.bf16 %v1843, %v1842
        %v1866 = vpack.c.bf16 %v1845, %v1844
        %v1867 = vpack.c.bf16 %v1847, %v1846
        %v1868 = vpack.c.bf16 %v1849, %v1848
        %v1869 = vpack.c.bf16 %v1851, %v1850
        %v1870 = vpack.c.bf16 %v1853, %v1852
        %v1871 = vpack.c.bf16 %v1855, %v1854
        %s1872 = scalar_lea.vmem %s3, 2
        %v1873 = vld [vmem:[%s1872] sm:$0x3]
        %v1875 = vsel %vm1085, %v1856, 0
        %v1878 = vsel %vm1085, %v1857, 0
        %v1881 = vsel %vm1085, %v1858, 0
        %v1884 = vsel %vm1085, %v1859, 0
        %v1887 = vsel %vm1085, %v1860, 0
        %v1890 = vsel %vm1085, %v1861, 0
        %v1893 = vsel %vm1085, %v1862, 0
        %v1896 = vsel %vm1085, %v1863, 0
        %v1899 = vsel %vm1085, %v1864, 0
        %v1902 = vsel %vm1085, %v1865, 0
        %v1905 = vsel %vm1085, %v1866, 0
        %v1908 = vsel %vm1085, %v1867, 0
        %v1911 = vsel %vm1085, %v1868, 0
        %v1914 = vsel %vm1085, %v1869, 0
        %v1917 = vsel %vm1085, %v1870, 0
        %v1920 = vsel %vm1085, %v1871, 0
        %v1923 = vsel %vm1134, %v1873, 0
        %1925 = vmatprep.subr.bf16.mxu0 0
        %1926 = vmatpush1.bf16.msra.mxu0 %v1923
        %1927 = vmatprep.subr.bf16.mxu0 0
        %1928 = vmatpush1.bf16.msra.mxu0 0
        %1929 = vmatprep.subr.bf16.mxu0 0
        %1930 = vmatpush1.bf16.msra.mxu0 0
        %1931 = vmatprep.subr.bf16.mxu0 0
        %1932 = vmatpush1.bf16.msra.mxu0 0
        %1933 = vmatprep.subr.bf16.mxu0 0
        %1934 = vmatpush1.bf16.msra.mxu0 0
        %1935 = vmatprep.subr.bf16.mxu0 0
        %1936 = vmatpush1.bf16.msra.mxu0 0
        %1937 = vmatprep.subr.bf16.mxu0 0
        %1938 = vmatpush1.bf16.msra.mxu0 0
        %1939 = vmatprep.subr.bf16.mxu0 0
        %1940 = vmatpush1.bf16.msra.mxu0 0
        %1941 = vmatprep.subr.bf16.mxu0 0
        %1942 = vmatpush1.bf16.msra.mxu0 0
        %1943 = vmatprep.subr.bf16.mxu0 0
        %1944 = vmatpush1.bf16.msra.mxu0 0
        %1945 = vmatprep.subr.bf16.mxu0 0
        %1946 = vmatpush1.bf16.msra.mxu0 0
        %1947 = vmatprep.subr.bf16.mxu0 0
        %1948 = vmatpush1.bf16.msra.mxu0 0
        %1949 = vmatprep.subr.bf16.mxu0 0
        %1950 = vmatpush1.bf16.msra.mxu0 0
        %1951 = vmatprep.subr.bf16.mxu0 0
        %1952 = vmatpush1.bf16.msra.mxu0 0
        %1953 = vmatprep.subr.bf16.mxu0 0
        %1954 = vmatpush1.bf16.msra.mxu0 0
        %1955 = vmatprep.subr.bf16.mxu0 0
        %1956 = vmatpush1.bf16.msra.mxu0 0
        %1957 = vmatprep.mubr.bf16.mxu0 0
        %1958 = vmatmul.mubr.bf16.gmra.mrb[0].mxu0 %v1875
        %v1959 = vpop.f32.mrb[0].mxu0
        %v1960 = vadd.f32 0.0, %v1959
        %v1961 = vpop.f32.mrb[0].mxu0
        %v1962 = vpop.f32.mrb[0].mxu0
        %v1963 = vadd.f32 0.0, %v1962
        %v1964 = vpop.f32.mrb[0].mxu0
        %1965 = vmatprep.mubr.bf16.mxu0 0
        %1966 = vmatmul.mubr.bf16.gmra.mrb[0].mxu0 %v1878
        %v1967 = vpop.f32.mrb[0].mxu0
        %v1968 = vadd.f32 0.0, %v1967
        %v1969 = vpop.f32.mrb[0].mxu0
        %v1970 = vpop.f32.mrb[0].mxu0
        %v1971 = vadd.f32 0.0, %v1970
        %v1972 = vpop.f32.mrb[0].mxu0
        %1973 = vmatprep.mubr.bf16.mxu0 0
        %1974 = vmatmul.mubr.bf16.gmra.mrb[0].mxu0 %v1881
        %v1975 = vpop.f32.mrb[0].mxu0
        %v1976 = vadd.f32 0.0, %v1975
        %v1977 = vpop.f32.mrb[0].mxu0
        %v1978 = vpop.f32.mrb[0].mxu0
        %v1979 = vadd.f32 0.0, %v1978
        %v1980 = vpop.f32.mrb[0].mxu0
        %1981 = vmatprep.mubr.bf16.mxu0 0
        %1982 = vmatmul.mubr.bf16.gmra.mrb[0].mxu0 %v1884
        %v1983 = vpop.f32.mrb[0].mxu0
        %v1984 = vadd.f32 0.0, %v1983
        %v1985 = vpop.f32.mrb[0].mxu0
        %v1986 = vpop.f32.mrb[0].mxu0
        %v1987 = vadd.f32 0.0, %v1986
        %v1988 = vpop.f32.mrb[0].mxu0
        %1989 = vmatprep.mubr.bf16.mxu0 0
        %1990 = vmatmul.mubr.bf16.gmra.mrb[0].mxu0 %v1887
        %v1991 = vpop.f32.mrb[0].mxu0
        %v1992 = vadd.f32 0.0, %v1991
        %v1993 = vpop.f32.mrb[0].mxu0
        %v1994 = vpop.f32.mrb[0].mxu0
        %v1995 = vadd.f32 0.0, %v1994
        %v1996 = vpop.f32.mrb[0].mxu0
        %1997 = vmatprep.mubr.bf16.mxu0 0
        %1998 = vmatmul.mubr.bf16.gmra.mrb[0].mxu0 %v1890
        %v1999 = vpop.f32.mrb[0].mxu0
        %v2000 = vadd.f32 0.0, %v1999
        %v2001 = vpop.f32.mrb[0].mxu0
        %v2002 = vpop.f32.mrb[0].mxu0
        %v2003 = vadd.f32 0.0, %v2002
        %v2004 = vpop.f32.mrb[0].mxu0
        %2005 = vmatprep.mubr.bf16.mxu0 0
        %2006 = vmatmul.mubr.bf16.gmra.mrb[0].mxu0 %v1893
        %v2007 = vpop.f32.mrb[0].mxu0
        %v2008 = vadd.f32 0.0, %v2007
        %v2009 = vpop.f32.mrb[0].mxu0
        %v2010 = vpop.f32.mrb[0].mxu0
        %v2011 = vadd.f32 0.0, %v2010
        %v2012 = vpop.f32.mrb[0].mxu0
        %2013 = vmatprep.mubr.bf16.mxu0 0
        %2014 = vmatmul.mubr.bf16.gmra.mrb[0].mxu0 %v1896
        %v2015 = vpop.f32.mrb[0].mxu0
        %v2016 = vadd.f32 0.0, %v2015
        %v2017 = vpop.f32.mrb[0].mxu0
        %v2018 = vpop.f32.mrb[0].mxu0
        %v2019 = vadd.f32 0.0, %v2018
        %v2020 = vpop.f32.mrb[0].mxu0
        %2021 = vmatprep.mubr.bf16.mxu0 0
        %2022 = vmatmul.mubr.bf16.gmra.mrb[0].mxu0 %v1899
        %v2023 = vpop.f32.mrb[0].mxu0
        %v2024 = vadd.f32 0.0, %v2023
        %v2025 = vpop.f32.mrb[0].mxu0
        %v2026 = vpop.f32.mrb[0].mxu0
        %v2027 = vadd.f32 0.0, %v2026
        %v2028 = vpop.f32.mrb[0].mxu0
        %2029 = vmatprep.mubr.bf16.mxu0 0
        %2030 = vmatmul.mubr.bf16.gmra.mrb[0].mxu0 %v1902
        %v2031 = vpop.f32.mrb[0].mxu0
        %v2032 = vadd.f32 0.0, %v2031
        %v2033 = vpop.f32.mrb[0].mxu0
        %v2034 = vpop.f32.mrb[0].mxu0
        %v2035 = vadd.f32 0.0, %v2034
        %v2036 = vpop.f32.mrb[0].mxu0
        %2037 = vmatprep.mubr.bf16.mxu0 0
        %2038 = vmatmul.mubr.bf16.gmra.mrb[0].mxu0 %v1905
        %v2039 = vpop.f32.mrb[0].mxu0
        %v2040 = vadd.f32 0.0, %v2039
        %v2041 = vpop.f32.mrb[0].mxu0
        %v2042 = vpop.f32.mrb[0].mxu0
        %v2043 = vadd.f32 0.0, %v2042
        %v2044 = vpop.f32.mrb[0].mxu0
        %2045 = vmatprep.mubr.bf16.mxu0 0
        %2046 = vmatmul.mubr.bf16.gmra.mrb[0].mxu0 %v1908
        %v2047 = vpop.f32.mrb[0].mxu0
        %v2048 = vadd.f32 0.0, %v2047
        %v2049 = vpop.f32.mrb[0].mxu0
        %v2050 = vpop.f32.mrb[0].mxu0
        %v2051 = vadd.f32 0.0, %v2050
        %v2052 = vpop.f32.mrb[0].mxu0
        %2053 = vmatprep.mubr.bf16.mxu0 0
        %2054 = vmatmul.mubr.bf16.gmra.mrb[0].mxu0 %v1911
        %v2055 = vpop.f32.mrb[0].mxu0
        %v2056 = vadd.f32 0.0, %v2055
        %v2057 = vpop.f32.mrb[0].mxu0
        %v2058 = vpop.f32.mrb[0].mxu0
        %v2059 = vadd.f32 0.0, %v2058
        %v2060 = vpop.f32.mrb[0].mxu0
        %2061 = vmatprep.mubr.bf16.mxu0 0
        %2062 = vmatmul.mubr.bf16.gmra.mrb[0].mxu0 %v1914
        %v2063 = vpop.f32.mrb[0].mxu0
        %v2064 = vadd.f32 0.0, %v2063
        %v2065 = vpop.f32.mrb[0].mxu0
        %v2066 = vpop.f32.mrb[0].mxu0
        %v2067 = vadd.f32 0.0, %v2066
        %v2068 = vpop.f32.mrb[0].mxu0
        %2069 = vmatprep.mubr.bf16.mxu0 0
        %2070 = vmatmul.mubr.bf16.gmra.mrb[0].mxu0 %v1917
        %v2071 = vpop.f32.mrb[0].mxu0
        %v2072 = vadd.f32 0.0, %v2071
        %v2073 = vpop.f32.mrb[0].mxu0
        %v2074 = vpop.f32.mrb[0].mxu0
        %v2075 = vadd.f32 0.0, %v2074
        %v2076 = vpop.f32.mrb[0].mxu0
        %2077 = vmatprep.mubr.bf16.mxu0 0
        %2078 = vmatmul.mubr.bf16.gmra.mrb[0].mxu0 %v1920
        %v2079 = vpop.f32.mrb[0].mxu0
        %v2080 = vadd.f32 0.0, %v2079
        %v2081 = vpop.f32.mrb[0].mxu0
        %v2082 = vpop.f32.mrb[0].mxu0
        %v2083 = vadd.f32 0.0, %v2082
        %v2084 = vpop.f32.mrb[0].mxu0
        %2085 = vdwg.mxu0
        %v2086 = vadd.f32 %v1728, %v1960
        %v2087 = vadd.f32 %v1729, %v1963
        %v2088 = vadd.f32 %v1730, %v1968
        %v2089 = vadd.f32 %v1731, %v1971
        %v2090 = vadd.f32 %v1732, %v1976
        %v2091 = vadd.f32 %v1733, %v1979
        %v2092 = vadd.f32 %v1734, %v1984
        %v2093 = vadd.f32 %v1735, %v1987
        %v2094 = vadd.f32 %v1736, %v1992
        %v2095 = vadd.f32 %v1737, %v1995
        %v2096 = vadd.f32 %v1738, %v2000
        %v2097 = vadd.f32 %v1739, %v2003
        %v2098 = vadd.f32 %v1740, %v2008
        %v2099 = vadd.f32 %v1741, %v2011
        %v2100 = vadd.f32 %v1742, %v2016
        %v2101 = vadd.f32 %v1743, %v2019
        %v2102 = vadd.f32 %v1744, %v2024
        %v2103 = vadd.f32 %v1745, %v2027
        %v2104 = vadd.f32 %v1746, %v2032
        %v2105 = vadd.f32 %v1747, %v2035
        %v2106 = vadd.f32 %v1748, %v2040
        %v2107 = vadd.f32 %v1749, %v2043
        %v2108 = vadd.f32 %v1750, %v2048
        %v2109 = vadd.f32 %v1751, %v2051
        %v2110 = vadd.f32 %v1752, %v2056
        %v2111 = vadd.f32 %v1753, %v2059
        %v2112 = vadd.f32 %v1754, %v2064
        %v2113 = vadd.f32 %v1755, %v2067
        %v2114 = vadd.f32 %v1756, %v2072
        %v2115 = vadd.f32 %v1757, %v2075
        %v2116 = vadd.f32 %v1758, %v2080
        %v2117 = vadd.f32 %v1759, %v2083
        %v2118 = vrot.slane %v1029, 1
        %v2119 = vrot.slane %v1030, 1
        %v2120 = vrot.slane %v1031, 1
        %v2121 = vrot.slane %v1032, 1
        %v2122 = vrot.slane %v1033, 1
        %v2123 = vrot.slane %v1034, 1
        %v2124 = vrot.slane %v1035, 1
        %v2125 = vrot.slane %v1036, 1
        %v2126 = vrot.slane %v1037, 1
        %v2127 = vrot.slane %v1038, 1
        %v2128 = vrot.slane %v1039, 1
        %v2129 = vrot.slane %v1040, 1
        %v2130 = vrot.slane %v1041, 1
        %v2131 = vrot.slane %v1042, 1
        %v2132 = vrot.slane %v1043, 1
        %v2133 = vrot.slane %v1044, 1
        %v2134 = vrot.slane %v1045, 1
        %v2135 = vrot.slane %v1046, 1
        %v2136 = vrot.slane %v1047, 1
        %v2137 = vrot.slane %v1048, 1
        %v2138 = vrot.slane %v1049, 1
        %v2139 = vrot.slane %v1050, 1
        %v2140 = vrot.slane %v1051, 1
        %v2141 = vrot.slane %v1052, 1
        %v2142 = vrot.slane %v1053, 1
        %v2143 = vrot.slane %v1054, 1
        %v2144 = vrot.slane %v1055, 1
        %v2145 = vrot.slane %v1056, 1
        %v2146 = vrot.slane %v1057, 1
        %v2147 = vrot.slane %v1058, 1
        %v2148 = vrot.slane %v1059, 1
        %v2149 = vrot.slane %v1060, 1
        %vm2150 = vcmp.lt.s32.totalorder %v407, 7
        %v2151 = vsel %vm2150, %v2148, %v2149
        %v2152 = vsel %vm2150, %v2147, %v2148
        %v2153 = vsel %vm2150, %v2146, %v2147
        %v2154 = vsel %vm2150, %v2145, %v2146
        %v2155 = vsel %vm2150, %v2144, %v2145
        %v2156 = vsel %vm2150, %v2143, %v2144
        %v2157 = vsel %vm2150, %v2142, %v2143
        %v2158 = vsel %vm2150, %v2141, %v2142
        %v2159 = vsel %vm2150, %v2140, %v2141
        %v2160 = vsel %vm2150, %v2139, %v2140
        %v2161 = vsel %vm2150, %v2138, %v2139
        %v2162 = vsel %vm2150, %v2137, %v2138
        %v2163 = vsel %vm2150, %v2136, %v2137
        %v2164 = vsel %vm2150, %v2135, %v2136
        %v2165 = vsel %vm2150, %v2134, %v2135
        %v2166 = vsel %vm2150, %v2133, %v2134
        %v2167 = vsel %vm2150, %v2132, %v2133
        %v2168 = vsel %vm2150, %v2131, %v2132
        %v2169 = vsel %vm2150, %v2130, %v2131
        %v2170 = vsel %vm2150, %v2129, %v2130
        %v2171 = vsel %vm2150, %v2128, %v2129
        %v2172 = vsel %vm2150, %v2127, %v2128
        %v2173 = vsel %vm2150, %v2126, %v2127
        %v2174 = vsel %vm2150, %v2125, %v2126
        %v2175 = vsel %vm2150, %v2124, %v2125
        %v2176 = vsel %vm2150, %v2123, %v2124
        %v2177 = vsel %vm2150, %v2122, %v2123
        %v2178 = vsel %vm2150, %v2121, %v2122
        %v2179 = vsel %vm2150, %v2120, %v2121
        %v2180 = vsel %vm2150, %v2119, %v2120
        %v2181 = vsel %vm2150, %v2118, %v2119
        %v2182 = vsel %vm2150, %v2149, %v2118
        %vm2183 = vmand %vm823, %vm919
        %vm2184 = vmand %vm824, %vm920
        %vm2185 = vmand %vm825, %vm921
        %vm2186 = vmand %vm826, %vm922
        %vm2187 = vmand %vm827, %vm923
        %vm2188 = vmand %vm828, %vm924
        %vm2189 = vmand %vm829, %vm925
        %vm2190 = vmand %vm830, %vm926
        %vm2191 = vmand %vm831, %vm927
        %vm2192 = vmand %vm832, %vm928
        %vm2193 = vmand %vm833, %vm929
        %vm2194 = vmand %vm834, %vm930
        %vm2195 = vmand %vm835, %vm931
        %vm2196 = vmand %vm836, %vm932
        %vm2197 = vmand %vm837, %vm933
        %vm2198 = vmand %vm838, %vm934
        %vm2199 = vmand %vm839, %vm935
        %vm2200 = vmand %vm840, %vm936
        %vm2201 = vmand %vm841, %vm937
        %vm2202 = vmand %vm842, %vm938
        %vm2203 = vmand %vm843, %vm939
        %vm2204 = vmand %vm844, %vm940
        %vm2205 = vmand %vm845, %vm941
        %vm2206 = vmand %vm846, %vm942
        %vm2207 = vmand %vm847, %vm943
        %vm2208 = vmand %vm848, %vm944
        %vm2209 = vmand %vm849, %vm945
        %vm2210 = vmand %vm850, %vm946
        %vm2211 = vmand %vm851, %vm947
        %vm2212 = vmand %vm852, %vm948
        %vm2213 = vmand %vm853, %vm949
        %vm2214 = vmand %vm854, %vm950
        %v2215 = vsel %vm2183, 1, 0
        %v2216 = vsel %vm2184, 1, 0
        %v2217 = vsel %vm2185, 1, 0
        %v2218 = vsel %vm2186, 1, 0
        %v2219 = vsel %vm2187, 1, 0
        %v2220 = vsel %vm2188, 1, 0
        %v2221 = vsel %vm2189, 1, 0
        %v2222 = vsel %vm2190, 1, 0
        %v2223 = vsel %vm2191, 1, 0
        %v2224 = vsel %vm2192, 1, 0
        %v2225 = vsel %vm2193, 1, 0
        %v2226 = vsel %vm2194, 1, 0
        %v2227 = vsel %vm2195, 1, 0
        %v2228 = vsel %vm2196, 1, 0
        %v2229 = vsel %vm2197, 1, 0
        %v2230 = vsel %vm2198, 1, 0
        %v2231 = vsel %vm2199, 1, 0
        %v2232 = vsel %vm2200, 1, 0
        %v2233 = vsel %vm2201, 1, 0
        %v2234 = vsel %vm2202, 1, 0
        %v2235 = vsel %vm2203, 1, 0
        %v2236 = vsel %vm2204, 1, 0
        %v2237 = vsel %vm2205, 1, 0
        %v2238 = vsel %vm2206, 1, 0
        %v2239 = vsel %vm2207, 1, 0
        %v2240 = vsel %vm2208, 1, 0
        %v2241 = vsel %vm2209, 1, 0
        %v2242 = vsel %vm2210, 1, 0
        %v2243 = vsel %vm2211, 1, 0
        %v2244 = vsel %vm2212, 1, 0
        %v2245 = vsel %vm2213, 1, 0
        %v2246 = vsel %vm2214, 1, 0
        %vm2247 = vcmp.eq.s32.totalorder %v2215, 1
        %vm2248 = vcmp.eq.s32.totalorder %v2216, 1
        %vm2249 = vcmp.eq.s32.totalorder %v2217, 1
        %vm2250 = vcmp.eq.s32.totalorder %v2218, 1
        %vm2251 = vcmp.eq.s32.totalorder %v2219, 1
        %vm2252 = vcmp.eq.s32.totalorder %v2220, 1
        %vm2253 = vcmp.eq.s32.totalorder %v2221, 1
        %vm2254 = vcmp.eq.s32.totalorder %v2222, 1
        %vm2255 = vcmp.eq.s32.totalorder %v2223, 1
        %vm2256 = vcmp.eq.s32.totalorder %v2224, 1
        %vm2257 = vcmp.eq.s32.totalorder %v2225, 1
        %vm2258 = vcmp.eq.s32.totalorder %v2226, 1
        %vm2259 = vcmp.eq.s32.totalorder %v2227, 1
        %vm2260 = vcmp.eq.s32.totalorder %v2228, 1
        %vm2261 = vcmp.eq.s32.totalorder %v2229, 1
        %vm2262 = vcmp.eq.s32.totalorder %v2230, 1
        %vm2263 = vcmp.eq.s32.totalorder %v2231, 1
        %vm2264 = vcmp.eq.s32.totalorder %v2232, 1
        %vm2265 = vcmp.eq.s32.totalorder %v2233, 1
        %vm2266 = vcmp.eq.s32.totalorder %v2234, 1
        %vm2267 = vcmp.eq.s32.totalorder %v2235, 1
        %vm2268 = vcmp.eq.s32.totalorder %v2236, 1
        %vm2269 = vcmp.eq.s32.totalorder %v2237, 1
        %vm2270 = vcmp.eq.s32.totalorder %v2238, 1
        %vm2271 = vcmp.eq.s32.totalorder %v2239, 1
        %vm2272 = vcmp.eq.s32.totalorder %v2240, 1
        %vm2273 = vcmp.eq.s32.totalorder %v2241, 1
        %vm2274 = vcmp.eq.s32.totalorder %v2242, 1
        %vm2275 = vcmp.eq.s32.totalorder %v2243, 1
        %vm2276 = vcmp.eq.s32.totalorder %v2244, 1
        %vm2277 = vcmp.eq.s32.totalorder %v2245, 1
        %vm2278 = vcmp.eq.s32.totalorder %v2246, 1
        %v2279 = vsel %vm2247, %v2151, 0.0
        %v2280 = vsel %vm2248, %v2182, 0.0
        %v2281 = vsel %vm2249, %v2181, 0.0
        %v2282 = vsel %vm2250, %v2180, 0.0
        %v2283 = vsel %vm2251, %v2179, 0.0
        %v2284 = vsel %vm2252, %v2178, 0.0
        %v2285 = vsel %vm2253, %v2177, 0.0
        %v2286 = vsel %vm2254, %v2176, 0.0
        %v2287 = vsel %vm2255, %v2175, 0.0
        %v2288 = vsel %vm2256, %v2174, 0.0
        %v2289 = vsel %vm2257, %v2173, 0.0
        %v2290 = vsel %vm2258, %v2172, 0.0
        %v2291 = vsel %vm2259, %v2171, 0.0
        %v2292 = vsel %vm2260, %v2170, 0.0
        %v2293 = vsel %vm2261, %v2169, 0.0
        %v2294 = vsel %vm2262, %v2168, 0.0
        %v2295 = vsel %vm2263, %v2167, 0.0
        %v2296 = vsel %vm2264, %v2166, 0.0
        %v2297 = vsel %vm2265, %v2165, 0.0
        %v2298 = vsel %vm2266, %v2164, 0.0
        %v2299 = vsel %vm2267, %v2163, 0.0
        %v2300 = vsel %vm2268, %v2162, 0.0
        %v2301 = vsel %vm2269, %v2161, 0.0
        %v2302 = vsel %vm2270, %v2160, 0.0
        %v2303 = vsel %vm2271, %v2159, 0.0
        %v2304 = vsel %vm2272, %v2158, 0.0
        %v2305 = vsel %vm2273, %v2157, 0.0
        %v2306 = vsel %vm2274, %v2156, 0.0
        %v2307 = vsel %vm2275, %v2155, 0.0
        %v2308 = vsel %vm2276, %v2154, 0.0
        %v2309 = vsel %vm2277, %v2153, 0.0
        %v2310 = vsel %vm2278, %v2152, 0.0
        %v2311 = vpack.c.bf16 %v2280, %v2279
        %v2312 = vpack.c.bf16 %v2282, %v2281
        %v2313 = vpack.c.bf16 %v2284, %v2283
        %v2314 = vpack.c.bf16 %v2286, %v2285
        %v2315 = vpack.c.bf16 %v2288, %v2287
        %v2316 = vpack.c.bf16 %v2290, %v2289
        %v2317 = vpack.c.bf16 %v2292, %v2291
        %v2318 = vpack.c.bf16 %v2294, %v2293
        %v2319 = vpack.c.bf16 %v2296, %v2295
        %v2320 = vpack.c.bf16 %v2298, %v2297
        %v2321 = vpack.c.bf16 %v2300, %v2299
        %v2322 = vpack.c.bf16 %v2302, %v2301
        %v2323 = vpack.c.bf16 %v2304, %v2303
        %v2324 = vpack.c.bf16 %v2306, %v2305
        %v2325 = vpack.c.bf16 %v2308, %v2307
        %v2326 = vpack.c.bf16 %v2310, %v2309
        %s2327 = scalar_lea.vmem %s3, 4
        %v2328 = vld [vmem:[%s2327] sm:$0x3]
        %v2330 = vsel %vm1085, %v2311, 0
        %v2333 = vsel %vm1085, %v2312, 0
        %v2336 = vsel %vm1085, %v2313, 0
        %v2339 = vsel %vm1085, %v2314, 0
        %v2342 = vsel %vm1085, %v2315, 0
        %v2345 = vsel %vm1085, %v2316, 0
        %v2348 = vsel %vm1085, %v2317, 0
        %v2351 = vsel %vm1085, %v2318, 0
        %v2354 = vsel %vm1085, %v2319, 0
        %v2357 = vsel %vm1085, %v2320, 0
        %v2360 = vsel %vm1085, %v2321, 0
        %v2363 = vsel %vm1085, %v2322, 0
        %v2366 = vsel %vm1085, %v2323, 0
        %v2369 = vsel %vm1085, %v2324, 0
        %v2372 = vsel %vm1085, %v2325, 0
        %v2375 = vsel %vm1085, %v2326, 0
        %v2378 = vsel %vm1134, %v2328, 0
        %2380 = vmatprep.subr.bf16.mxu0 0
        %2381 = vmatpush1.bf16.msra.mxu0 %v2378
        %2382 = vmatprep.subr.bf16.mxu0 0
        %2383 = vmatpush1.bf16.msra.mxu0 0
        %2384 = vmatprep.subr.bf16.mxu0 0
        %2385 = vmatpush1.bf16.msra.mxu0 0
        %2386 = vmatprep.subr.bf16.mxu0 0
        %2387 = vmatpush1.bf16.msra.mxu0 0
        %2388 = vmatprep.subr.bf16.mxu0 0
        %2389 = vmatpush1.bf16.msra.mxu0 0
        %2390 = vmatprep.subr.bf16.mxu0 0
        %2391 = vmatpush1.bf16.msra.mxu0 0
        %2392 = vmatprep.subr.bf16.mxu0 0
        %2393 = vmatpush1.bf16.msra.mxu0 0
        %2394 = vmatprep.subr.bf16.mxu0 0
        %2395 = vmatpush1.bf16.msra.mxu0 0
        %2396 = vmatprep.subr.bf16.mxu0 0
        %2397 = vmatpush1.bf16.msra.mxu0 0
        %2398 = vmatprep.subr.bf16.mxu0 0
        %2399 = vmatpush1.bf16.msra.mxu0 0
        %2400 = vmatprep.subr.bf16.mxu0 0
        %2401 = vmatpush1.bf16.msra.mxu0 0
        %2402 = vmatprep.subr.bf16.mxu0 0
        %2403 = vmatpush1.bf16.msra.mxu0 0
        %2404 = vmatprep.subr.bf16.mxu0 0
        %2405 = vmatpush1.bf16.msra.mxu0 0
        %2406 = vmatprep.subr.bf16.mxu0 0
        %2407 = vmatpush1.bf16.msra.mxu0 0
        %2408 = vmatprep.subr.bf16.mxu0 0
        %2409 = vmatpush1.bf16.msra.mxu0 0
        %2410 = vmatprep.subr.bf16.mxu0 0
        %2411 = vmatpush1.bf16.msra.mxu0 0
        %2412 = vmatprep.mubr.bf16.mxu0 0
        %2413 = vmatmul.mubr.bf16.gmra.mrb[0].mxu0 %v2330
        %v2414 = vpop.f32.mrb[0].mxu0
        %v2415 = vadd.f32 0.0, %v2414
        %v2416 = vpop.f32.mrb[0].mxu0
        %v2417 = vpop.f32.mrb[0].mxu0
        %v2418 = vadd.f32 0.0, %v2417
        %v2419 = vpop.f32.mrb[0].mxu0
        %2420 = vmatprep.mubr.bf16.mxu0 0
        %2421 = vmatmul.mubr.bf16.gmra.mrb[0].mxu0 %v2333
        %v2422 = vpop.f32.mrb[0].mxu0
        %v2423 = vadd.f32 0.0, %v2422
        %v2424 = vpop.f32.mrb[0].mxu0
        %v2425 = vpop.f32.mrb[0].mxu0
        %v2426 = vadd.f32 0.0, %v2425
        %v2427 = vpop.f32.mrb[0].mxu0
        %2428 = vmatprep.mubr.bf16.mxu0 0
        %2429 = vmatmul.mubr.bf16.gmra.mrb[0].mxu0 %v2336
        %v2430 = vpop.f32.mrb[0].mxu0
        %v2431 = vadd.f32 0.0, %v2430
        %v2432 = vpop.f32.mrb[0].mxu0
        %v2433 = vpop.f32.mrb[0].mxu0
        %v2434 = vadd.f32 0.0, %v2433
        %v2435 = vpop.f32.mrb[0].mxu0
        %2436 = vmatprep.mubr.bf16.mxu0 0
        %2437 = vmatmul.mubr.bf16.gmra.mrb[0].mxu0 %v2339
        %v2438 = vpop.f32.mrb[0].mxu0
        %v2439 = vadd.f32 0.0, %v2438
        %v2440 = vpop.f32.mrb[0].mxu0
        %v2441 = vpop.f32.mrb[0].mxu0
        %v2442 = vadd.f32 0.0, %v2441
        %v2443 = vpop.f32.mrb[0].mxu0
        %2444 = vmatprep.mubr.bf16.mxu0 0
        %2445 = vmatmul.mubr.bf16.gmra.mrb[0].mxu0 %v2342
        %v2446 = vpop.f32.mrb[0].mxu0
        %v2447 = vadd.f32 0.0, %v2446
        %v2448 = vpop.f32.mrb[0].mxu0
        %v2449 = vpop.f32.mrb[0].mxu0
        %v2450 = vadd.f32 0.0, %v2449
        %v2451 = vpop.f32.mrb[0].mxu0
        %2452 = vmatprep.mubr.bf16.mxu0 0
        %2453 = vmatmul.mubr.bf16.gmra.mrb[0].mxu0 %v2345
        %v2454 = vpop.f32.mrb[0].mxu0
        %v2455 = vadd.f32 0.0, %v2454
        %v2456 = vpop.f32.mrb[0].mxu0
        %v2457 = vpop.f32.mrb[0].mxu0
        %v2458 = vadd.f32 0.0, %v2457
        %v2459 = vpop.f32.mrb[0].mxu0
        %2460 = vmatprep.mubr.bf16.mxu0 0
        %2461 = vmatmul.mubr.bf16.gmra.mrb[0].mxu0 %v2348
        %v2462 = vpop.f32.mrb[0].mxu0
        %v2463 = vadd.f32 0.0, %v2462
        %v2464 = vpop.f32.mrb[0].mxu0
        %v2465 = vpop.f32.mrb[0].mxu0
        %v2466 = vadd.f32 0.0, %v2465
        %v2467 = vpop.f32.mrb[0].mxu0
        %2468 = vmatprep.mubr.bf16.mxu0 0
        %2469 = vmatmul.mubr.bf16.gmra.mrb[0].mxu0 %v2351
        %v2470 = vpop.f32.mrb[0].mxu0
        %v2471 = vadd.f32 0.0, %v2470
        %v2472 = vpop.f32.mrb[0].mxu0
        %v2473 = vpop.f32.mrb[0].mxu0
        %v2474 = vadd.f32 0.0, %v2473
        %v2475 = vpop.f32.mrb[0].mxu0
        %2476 = vmatprep.mubr.bf16.mxu0 0
        %2477 = vmatmul.mubr.bf16.gmra.mrb[0].mxu0 %v2354
        %v2478 = vpop.f32.mrb[0].mxu0
        %v2479 = vadd.f32 0.0, %v2478
        %v2480 = vpop.f32.mrb[0].mxu0
        %v2481 = vpop.f32.mrb[0].mxu0
        %v2482 = vadd.f32 0.0, %v2481
        %v2483 = vpop.f32.mrb[0].mxu0
        %2484 = vmatprep.mubr.bf16.mxu0 0
        %2485 = vmatmul.mubr.bf16.gmra.mrb[0].mxu0 %v2357
        %v2486 = vpop.f32.mrb[0].mxu0
        %v2487 = vadd.f32 0.0, %v2486
        %v2488 = vpop.f32.mrb[0].mxu0
        %v2489 = vpop.f32.mrb[0].mxu0
        %v2490 = vadd.f32 0.0, %v2489
        %v2491 = vpop.f32.mrb[0].mxu0
        %2492 = vmatprep.mubr.bf16.mxu0 0
        %2493 = vmatmul.mubr.bf16.gmra.mrb[0].mxu0 %v2360
        %v2494 = vpop.f32.mrb[0].mxu0
        %v2495 = vadd.f32 0.0, %v2494
        %v2496 = vpop.f32.mrb[0].mxu0
        %v2497 = vpop.f32.mrb[0].mxu0
        %v2498 = vadd.f32 0.0, %v2497
        %v2499 = vpop.f32.mrb[0].mxu0
        %2500 = vmatprep.mubr.bf16.mxu0 0
        %2501 = vmatmul.mubr.bf16.gmra.mrb[0].mxu0 %v2363
        %v2502 = vpop.f32.mrb[0].mxu0
        %v2503 = vadd.f32 0.0, %v2502
        %v2504 = vpop.f32.mrb[0].mxu0
        %v2505 = vpop.f32.mrb[0].mxu0
        %v2506 = vadd.f32 0.0, %v2505
        %v2507 = vpop.f32.mrb[0].mxu0
        %2508 = vmatprep.mubr.bf16.mxu0 0
        %2509 = vmatmul.mubr.bf16.gmra.mrb[0].mxu0 %v2366
        %v2510 = vpop.f32.mrb[0].mxu0
        %v2511 = vadd.f32 0.0, %v2510
        %v2512 = vpop.f32.mrb[0].mxu0
        %v2513 = vpop.f32.mrb[0].mxu0
        %v2514 = vadd.f32 0.0, %v2513
        %v2515 = vpop.f32.mrb[0].mxu0
        %2516 = vmatprep.mubr.bf16.mxu0 0
        %2517 = vmatmul.mubr.bf16.gmra.mrb[0].mxu0 %v2369
        %v2518 = vpop.f32.mrb[0].mxu0
        %v2519 = vadd.f32 0.0, %v2518
        %v2520 = vpop.f32.mrb[0].mxu0
        %v2521 = vpop.f32.mrb[0].mxu0
        %v2522 = vadd.f32 0.0, %v2521
        %v2523 = vpop.f32.mrb[0].mxu0
        %2524 = vmatprep.mubr.bf16.mxu0 0
        %2525 = vmatmul.mubr.bf16.gmra.mrb[0].mxu0 %v2372
        %v2526 = vpop.f32.mrb[0].mxu0
        %v2527 = vadd.f32 0.0, %v2526
        %v2528 = vpop.f32.mrb[0].mxu0
        %v2529 = vpop.f32.mrb[0].mxu0
        %v2530 = vadd.f32 0.0, %v2529
        %v2531 = vpop.f32.mrb[0].mxu0
        %2532 = vmatprep.mubr.bf16.mxu0 0
        %2533 = vmatmul.mubr.bf16.gmra.mrb[0].mxu0 %v2375
        %v2534 = vpop.f32.mrb[0].mxu0
        %v2535 = vadd.f32 0.0, %v2534
        %v2536 = vpop.f32.mrb[0].mxu0
        %v2537 = vpop.f32.mrb[0].mxu0
        %v2538 = vadd.f32 0.0, %v2537
        %v2539 = vpop.f32.mrb[0].mxu0
        %2540 = vdwg.mxu0
        %v2541 = vadd.f32 %v2086, %v2415
        %v2542 = vadd.f32 %v2087, %v2418
        %v2543 = vadd.f32 %v2088, %v2423
        %v2544 = vadd.f32 %v2089, %v2426
        %v2545 = vadd.f32 %v2090, %v2431
        %v2546 = vadd.f32 %v2091, %v2434
        %v2547 = vadd.f32 %v2092, %v2439
        %v2548 = vadd.f32 %v2093, %v2442
        %v2549 = vadd.f32 %v2094, %v2447
        %v2550 = vadd.f32 %v2095, %v2450
        %v2551 = vadd.f32 %v2096, %v2455
        %v2552 = vadd.f32 %v2097, %v2458
        %v2553 = vadd.f32 %v2098, %v2463
        %v2554 = vadd.f32 %v2099, %v2466
        %v2555 = vadd.f32 %v2100, %v2471
        %v2556 = vadd.f32 %v2101, %v2474
        %v2557 = vadd.f32 %v2102, %v2479
        %v2558 = vadd.f32 %v2103, %v2482
        %v2559 = vadd.f32 %v2104, %v2487
        %v2560 = vadd.f32 %v2105, %v2490
        %v2561 = vadd.f32 %v2106, %v2495
        %v2562 = vadd.f32 %v2107, %v2498
        %v2563 = vadd.f32 %v2108, %v2503
        %v2564 = vadd.f32 %v2109, %v2506
        %v2565 = vadd.f32 %v2110, %v2511
        %v2566 = vadd.f32 %v2111, %v2514
        %v2567 = vadd.f32 %v2112, %v2519
        %v2568 = vadd.f32 %v2113, %v2522
        %v2569 = vadd.f32 %v2114, %v2527
        %v2570 = vadd.f32 %v2115, %v2530
        %v2571 = vadd.f32 %v2116, %v2535
        %v2572 = vadd.f32 %v2117, %v2538
        %v2573 = vsel %vm887, 1, 0
        %v2574 = vsel %vm888, 1, 0
        %v2575 = vsel %vm889, 1, 0
        %v2576 = vsel %vm890, 1, 0
        %v2577 = vsel %vm891, 1, 0
        %v2578 = vsel %vm892, 1, 0
        %v2579 = vsel %vm893, 1, 0
        %v2580 = vsel %vm894, 1, 0
        %v2581 = vsel %vm895, 1, 0
        %v2582 = vsel %vm896, 1, 0
        %v2583 = vsel %vm897, 1, 0
        %v2584 = vsel %vm898, 1, 0
        %v2585 = vsel %vm899, 1, 0
        %v2586 = vsel %vm900, 1, 0
        %v2587 = vsel %vm901, 1, 0
        %v2588 = vsel %vm902, 1, 0
        %v2589 = vsel %vm903, 1, 0
        %v2590 = vsel %vm904, 1, 0
        %v2591 = vsel %vm905, 1, 0
        %v2592 = vsel %vm906, 1, 0
        %v2593 = vsel %vm907, 1, 0
        %v2594 = vsel %vm908, 1, 0
        %v2595 = vsel %vm909, 1, 0
        %v2596 = vsel %vm910, 1, 0
        %v2597 = vsel %vm911, 1, 0
        %v2598 = vsel %vm912, 1, 0
        %v2599 = vsel %vm913, 1, 0
        %v2600 = vsel %vm914, 1, 0
        %v2601 = vsel %vm915, 1, 0
        %v2602 = vsel %vm916, 1, 0
        %v2603 = vsel %vm917, 1, 0
        %v2604 = vsel %vm918, 1, 0
        %vm2605 = vcmp.eq.s32.totalorder %v2573, 1
        %vm2606 = vcmp.eq.s32.totalorder %v2574, 1
        %vm2607 = vcmp.eq.s32.totalorder %v2575, 1
        %vm2608 = vcmp.eq.s32.totalorder %v2576, 1
        %vm2609 = vcmp.eq.s32.totalorder %v2577, 1
        %vm2610 = vcmp.eq.s32.totalorder %v2578, 1
        %vm2611 = vcmp.eq.s32.totalorder %v2579, 1
        %vm2612 = vcmp.eq.s32.totalorder %v2580, 1
        %vm2613 = vcmp.eq.s32.totalorder %v2581, 1
        %vm2614 = vcmp.eq.s32.totalorder %v2582, 1
        %vm2615 = vcmp.eq.s32.totalorder %v2583, 1
        %vm2616 = vcmp.eq.s32.totalorder %v2584, 1
        %vm2617 = vcmp.eq.s32.totalorder %v2585, 1
        %vm2618 = vcmp.eq.s32.totalorder %v2586, 1
        %vm2619 = vcmp.eq.s32.totalorder %v2587, 1
        %vm2620 = vcmp.eq.s32.totalorder %v2588, 1
        %vm2621 = vcmp.eq.s32.totalorder %v2589, 1
        %vm2622 = vcmp.eq.s32.totalorder %v2590, 1
        %vm2623 = vcmp.eq.s32.totalorder %v2591, 1
        %vm2624 = vcmp.eq.s32.totalorder %v2592, 1
        %vm2625 = vcmp.eq.s32.totalorder %v2593, 1
        %vm2626 = vcmp.eq.s32.totalorder %v2594, 1
        %vm2627 = vcmp.eq.s32.totalorder %v2595, 1
        %vm2628 = vcmp.eq.s32.totalorder %v2596, 1
        %vm2629 = vcmp.eq.s32.totalorder %v2597, 1
        %vm2630 = vcmp.eq.s32.totalorder %v2598, 1
        %vm2631 = vcmp.eq.s32.totalorder %v2599, 1
        %vm2632 = vcmp.eq.s32.totalorder %v2600, 1
        %vm2633 = vcmp.eq.s32.totalorder %v2601, 1
        %vm2634 = vcmp.eq.s32.totalorder %v2602, 1
        %vm2635 = vcmp.eq.s32.totalorder %v2603, 1
        %vm2636 = vcmp.eq.s32.totalorder %v2604, 1
        %v2637 = vsel %vm2605, %v1364, 0.0
        %v2638 = vsel %vm2606, %v1363, 0.0
        %v2639 = vsel %vm2607, %v1362, 0.0
        %v2640 = vsel %vm2608, %v1361, 0.0
        %v2641 = vsel %vm2609, %v1360, 0.0
        %v2642 = vsel %vm2610, %v1359, 0.0
        %v2643 = vsel %vm2611, %v1358, 0.0
        %v2644 = vsel %vm2612, %v1357, 0.0
        %v2645 = vsel %vm2613, %v1356, 0.0
        %v2646 = vsel %vm2614, %v1355, 0.0
        %v2647 = vsel %vm2615, %v1354, 0.0
        %v2648 = vsel %vm2616, %v1353, 0.0
        %v2649 = vsel %vm2617, %v1352, 0.0
        %v2650 = vsel %vm2618, %v1351, 0.0
        %v2651 = vsel %vm2619, %v1350, 0.0
        %v2652 = vsel %vm2620, %v1349, 0.0
        %v2653 = vsel %vm2621, %v1348, 0.0
        %v2654 = vsel %vm2622, %v1347, 0.0
        %v2655 = vsel %vm2623, %v1346, 0.0
        %v2656 = vsel %vm2624, %v1345, 0.0
        %v2657 = vsel %vm2625, %v1344, 0.0
        %v2658 = vsel %vm2626, %v1343, 0.0
        %v2659 = vsel %vm2627, %v1342, 0.0
        %v2660 = vsel %vm2628, %v1341, 0.0
        %v2661 = vsel %vm2629, %v1340, 0.0
        %v2662 = vsel %vm2630, %v1339, 0.0
        %v2663 = vsel %vm2631, %v1338, 0.0
        %v2664 = vsel %vm2632, %v1337, 0.0
        %v2665 = vsel %vm2633, %v1336, 0.0
        %v2666 = vsel %vm2634, %v1335, 0.0
        %v2667 = vsel %vm2635, %v1334, 0.0
        %v2668 = vsel %vm2636, %v1333, 0.0
        %v2669 = vpack.c.bf16 %v2638, %v2637
        %v2670 = vpack.c.bf16 %v2640, %v2639
        %v2671 = vpack.c.bf16 %v2642, %v2641
        %v2672 = vpack.c.bf16 %v2644, %v2643
        %v2673 = vpack.c.bf16 %v2646, %v2645
        %v2674 = vpack.c.bf16 %v2648, %v2647
        %v2675 = vpack.c.bf16 %v2650, %v2649
        %v2676 = vpack.c.bf16 %v2652, %v2651
        %v2677 = vpack.c.bf16 %v2654, %v2653
        %v2678 = vpack.c.bf16 %v2656, %v2655
        %v2679 = vpack.c.bf16 %v2658, %v2657
        %v2680 = vpack.c.bf16 %v2660, %v2659
        %v2681 = vpack.c.bf16 %v2662, %v2661
        %v2682 = vpack.c.bf16 %v2664, %v2663
        %v2683 = vpack.c.bf16 %v2666, %v2665
        %v2684 = vpack.c.bf16 %v2668, %v2667
        %s2685 = scalar_lea.vmem %s3, 6
        %v2686 = vld [vmem:[%s2685] sm:$0x3]
        %v2688 = vsel %vm1085, %v2669, 0
        %v2691 = vsel %vm1085, %v2670, 0
        %v2694 = vsel %vm1085, %v2671, 0
        %v2697 = vsel %vm1085, %v2672, 0
        %v2700 = vsel %vm1085, %v2673, 0
        %v2703 = vsel %vm1085, %v2674, 0
        %v2706 = vsel %vm1085, %v2675, 0
        %v2709 = vsel %vm1085, %v2676, 0
        %v2712 = vsel %vm1085, %v2677, 0
        %v2715 = vsel %vm1085, %v2678, 0
        %v2718 = vsel %vm1085, %v2679, 0
        %v2721 = vsel %vm1085, %v2680, 0
        %v2724 = vsel %vm1085, %v2681, 0
        %v2727 = vsel %vm1085, %v2682, 0
        %v2730 = vsel %vm1085, %v2683, 0
        %v2733 = vsel %vm1085, %v2684, 0
        %v2736 = vsel %vm1134, %v2686, 0
        %2738 = vmatprep.subr.bf16.mxu0 0
        %2739 = vmatpush1.bf16.msra.mxu0 %v2736
        %2740 = vmatprep.subr.bf16.mxu0 0
        %2741 = vmatpush1.bf16.msra.mxu0 0
        %2742 = vmatprep.subr.bf16.mxu0 0
        %2743 = vmatpush1.bf16.msra.mxu0 0
        %2744 = vmatprep.subr.bf16.mxu0 0
        %2745 = vmatpush1.bf16.msra.mxu0 0
        %2746 = vmatprep.subr.bf16.mxu0 0
        %2747 = vmatpush1.bf16.msra.mxu0 0
        %2748 = vmatprep.subr.bf16.mxu0 0
        %2749 = vmatpush1.bf16.msra.mxu0 0
        %2750 = vmatprep.subr.bf16.mxu0 0
        %2751 = vmatpush1.bf16.msra.mxu0 0
        %2752 = vmatprep.subr.bf16.mxu0 0
        %2753 = vmatpush1.bf16.msra.mxu0 0
        %2754 = vmatprep.subr.bf16.mxu0 0
        %2755 = vmatpush1.bf16.msra.mxu0 0
        %2756 = vmatprep.subr.bf16.mxu0 0
        %2757 = vmatpush1.bf16.msra.mxu0 0
        %2758 = vmatprep.subr.bf16.mxu0 0
        %2759 = vmatpush1.bf16.msra.mxu0 0
        %2760 = vmatprep.subr.bf16.mxu0 0
        %2761 = vmatpush1.bf16.msra.mxu0 0
        %2762 = vmatprep.subr.bf16.mxu0 0
        %2763 = vmatpush1.bf16.msra.mxu0 0
        %2764 = vmatprep.subr.bf16.mxu0 0
        %2765 = vmatpush1.bf16.msra.mxu0 0
        %2766 = vmatprep.subr.bf16.mxu0 0
        %2767 = vmatpush1.bf16.msra.mxu0 0
        %2768 = vmatprep.subr.bf16.mxu0 0
        %2769 = vmatpush1.bf16.msra.mxu0 0
        %2770 = vmatprep.mubr.bf16.mxu0 0
        %2771 = vmatmul.mubr.bf16.gmra.mrb[0].mxu0 %v2688
        %v2772 = vpop.f32.mrb[0].mxu0
        %v2773 = vadd.f32 0.0, %v2772
        %v2774 = vpop.f32.mrb[0].mxu0
        %v2775 = vpop.f32.mrb[0].mxu0
        %v2776 = vadd.f32 0.0, %v2775
        %v2777 = vpop.f32.mrb[0].mxu0
        %2778 = vmatprep.mubr.bf16.mxu0 0
        %2779 = vmatmul.mubr.bf16.gmra.mrb[0].mxu0 %v2691
        %v2780 = vpop.f32.mrb[0].mxu0
        %v2781 = vadd.f32 0.0, %v2780
        %v2782 = vpop.f32.mrb[0].mxu0
        %v2783 = vpop.f32.mrb[0].mxu0
        %v2784 = vadd.f32 0.0, %v2783
        %v2785 = vpop.f32.mrb[0].mxu0
        %2786 = vmatprep.mubr.bf16.mxu0 0
        %2787 = vmatmul.mubr.bf16.gmra.mrb[0].mxu0 %v2694
        %v2788 = vpop.f32.mrb[0].mxu0
        %v2789 = vadd.f32 0.0, %v2788
        %v2790 = vpop.f32.mrb[0].mxu0
        %v2791 = vpop.f32.mrb[0].mxu0
        %v2792 = vadd.f32 0.0, %v2791
        %v2793 = vpop.f32.mrb[0].mxu0
        %2794 = vmatprep.mubr.bf16.mxu0 0
        %2795 = vmatmul.mubr.bf16.gmra.mrb[0].mxu0 %v2697
        %v2796 = vpop.f32.mrb[0].mxu0
        %v2797 = vadd.f32 0.0, %v2796
        %v2798 = vpop.f32.mrb[0].mxu0
        %v2799 = vpop.f32.mrb[0].mxu0
        %v2800 = vadd.f32 0.0, %v2799
        %v2801 = vpop.f32.mrb[0].mxu0
        %2802 = vmatprep.mubr.bf16.mxu0 0
        %2803 = vmatmul.mubr.bf16.gmra.mrb[0].mxu0 %v2700
        %v2804 = vpop.f32.mrb[0].mxu0
        %v2805 = vadd.f32 0.0, %v2804
        %v2806 = vpop.f32.mrb[0].mxu0
        %v2807 = vpop.f32.mrb[0].mxu0
        %v2808 = vadd.f32 0.0, %v2807
        %v2809 = vpop.f32.mrb[0].mxu0
        %2810 = vmatprep.mubr.bf16.mxu0 0
        %2811 = vmatmul.mubr.bf16.gmra.mrb[0].mxu0 %v2703
        %v2812 = vpop.f32.mrb[0].mxu0
        %v2813 = vadd.f32 0.0, %v2812
        %v2814 = vpop.f32.mrb[0].mxu0
        %v2815 = vpop.f32.mrb[0].mxu0
        %v2816 = vadd.f32 0.0, %v2815
        %v2817 = vpop.f32.mrb[0].mxu0
        %2818 = vmatprep.mubr.bf16.mxu0 0
        %2819 = vmatmul.mubr.bf16.gmra.mrb[0].mxu0 %v2706
        %v2820 = vpop.f32.mrb[0].mxu0
        %v2821 = vadd.f32 0.0, %v2820
        %v2822 = vpop.f32.mrb[0].mxu0
        %v2823 = vpop.f32.mrb[0].mxu0
        %v2824 = vadd.f32 0.0, %v2823
        %v2825 = vpop.f32.mrb[0].mxu0
        %2826 = vmatprep.mubr.bf16.mxu0 0
        %2827 = vmatmul.mubr.bf16.gmra.mrb[0].mxu0 %v2709
        %v2828 = vpop.f32.mrb[0].mxu0
        %v2829 = vadd.f32 0.0, %v2828
        %v2830 = vpop.f32.mrb[0].mxu0
        %v2831 = vpop.f32.mrb[0].mxu0
        %v2832 = vadd.f32 0.0, %v2831
        %v2833 = vpop.f32.mrb[0].mxu0
        %2834 = vmatprep.mubr.bf16.mxu0 0
        %2835 = vmatmul.mubr.bf16.gmra.mrb[0].mxu0 %v2712
        %v2836 = vpop.f32.mrb[0].mxu0
        %v2837 = vadd.f32 0.0, %v2836
        %v2838 = vpop.f32.mrb[0].mxu0
        %v2839 = vpop.f32.mrb[0].mxu0
        %v2840 = vadd.f32 0.0, %v2839
        %v2841 = vpop.f32.mrb[0].mxu0
        %2842 = vmatprep.mubr.bf16.mxu0 0
        %2843 = vmatmul.mubr.bf16.gmra.mrb[0].mxu0 %v2715
        %v2844 = vpop.f32.mrb[0].mxu0
        %v2845 = vadd.f32 0.0, %v2844
        %v2846 = vpop.f32.mrb[0].mxu0
        %v2847 = vpop.f32.mrb[0].mxu0
        %v2848 = vadd.f32 0.0, %v2847
        %v2849 = vpop.f32.mrb[0].mxu0
        %2850 = vmatprep.mubr.bf16.mxu0 0
        %2851 = vmatmul.mubr.bf16.gmra.mrb[0].mxu0 %v2718
        %v2852 = vpop.f32.mrb[0].mxu0
        %v2853 = vadd.f32 0.0, %v2852
        %v2854 = vpop.f32.mrb[0].mxu0
        %v2855 = vpop.f32.mrb[0].mxu0
        %v2856 = vadd.f32 0.0, %v2855
        %v2857 = vpop.f32.mrb[0].mxu0
        %2858 = vmatprep.mubr.bf16.mxu0 0
        %2859 = vmatmul.mubr.bf16.gmra.mrb[0].mxu0 %v2721
        %v2860 = vpop.f32.mrb[0].mxu0
        %v2861 = vadd.f32 0.0, %v2860
        %v2862 = vpop.f32.mrb[0].mxu0
        %v2863 = vpop.f32.mrb[0].mxu0
        %v2864 = vadd.f32 0.0, %v2863
        %v2865 = vpop.f32.mrb[0].mxu0
        %2866 = vmatprep.mubr.bf16.mxu0 0
        %2867 = vmatmul.mubr.bf16.gmra.mrb[0].mxu0 %v2724
        %v2868 = vpop.f32.mrb[0].mxu0
        %v2869 = vadd.f32 0.0, %v2868
        %v2870 = vpop.f32.mrb[0].mxu0
        %v2871 = vpop.f32.mrb[0].mxu0
        %v2872 = vadd.f32 0.0, %v2871
        %v2873 = vpop.f32.mrb[0].mxu0
        %2874 = vmatprep.mubr.bf16.mxu0 0
        %2875 = vmatmul.mubr.bf16.gmra.mrb[0].mxu0 %v2727
        %v2876 = vpop.f32.mrb[0].mxu0
        %v2877 = vadd.f32 0.0, %v2876
        %v2878 = vpop.f32.mrb[0].mxu0
        %v2879 = vpop.f32.mrb[0].mxu0
        %v2880 = vadd.f32 0.0, %v2879
        %v2881 = vpop.f32.mrb[0].mxu0
        %2882 = vmatprep.mubr.bf16.mxu0 0
        %2883 = vmatmul.mubr.bf16.gmra.mrb[0].mxu0 %v2730
        %v2884 = vpop.f32.mrb[0].mxu0
        %v2885 = vadd.f32 0.0, %v2884
        %v2886 = vpop.f32.mrb[0].mxu0
        %v2887 = vpop.f32.mrb[0].mxu0
        %v2888 = vadd.f32 0.0, %v2887
        %v2889 = vpop.f32.mrb[0].mxu0
        %2890 = vmatprep.mubr.bf16.mxu0 0
        %2891 = vmatmul.mubr.bf16.gmra.mrb[0].mxu0 %v2733
        %v2892 = vpop.f32.mrb[0].mxu0
        %v2893 = vadd.f32 0.0, %v2892
        %v2894 = vpop.f32.mrb[0].mxu0
        %v2895 = vpop.f32.mrb[0].mxu0
        %v2896 = vadd.f32 0.0, %v2895
        %v2897 = vpop.f32.mrb[0].mxu0
        %2898 = vdwg.mxu0
        %v2899 = vadd.f32 %v2541, %v2773
        %v2900 = vadd.f32 %v2542, %v2776
        %v2901 = vadd.f32 %v2543, %v2781
        %v2902 = vadd.f32 %v2544, %v2784
        %v2903 = vadd.f32 %v2545, %v2789
        %v2904 = vadd.f32 %v2546, %v2792
        %v2905 = vadd.f32 %v2547, %v2797
        %v2906 = vadd.f32 %v2548, %v2800
        %v2907 = vadd.f32 %v2549, %v2805
        %v2908 = vadd.f32 %v2550, %v2808
        %v2909 = vadd.f32 %v2551, %v2813
        %v2910 = vadd.f32 %v2552, %v2816
        %v2911 = vadd.f32 %v2553, %v2821
        %v2912 = vadd.f32 %v2554, %v2824
        %v2913 = vadd.f32 %v2555, %v2829
        %v2914 = vadd.f32 %v2556, %v2832
        %v2915 = vadd.f32 %v2557, %v2837
        %v2916 = vadd.f32 %v2558, %v2840
        %v2917 = vadd.f32 %v2559, %v2845
        %v2918 = vadd.f32 %v2560, %v2848
        %v2919 = vadd.f32 %v2561, %v2853
        %v2920 = vadd.f32 %v2562, %v2856
        %v2921 = vadd.f32 %v2563, %v2861
        %v2922 = vadd.f32 %v2564, %v2864
        %v2923 = vadd.f32 %v2565, %v2869
        %v2924 = vadd.f32 %v2566, %v2872
        %v2925 = vadd.f32 %v2567, %v2877
        %v2926 = vadd.f32 %v2568, %v2880
        %v2927 = vadd.f32 %v2569, %v2885
        %v2928 = vadd.f32 %v2570, %v2888
        %v2929 = vadd.f32 %v2571, %v2893
        %v2930 = vadd.f32 %v2572, %v2896
        %v2931 = vpack.c.bf16 %v1030, %v1029
        %v2932 = vpack.c.bf16 %v1032, %v1031
        %v2933 = vpack.c.bf16 %v1034, %v1033
        %v2934 = vpack.c.bf16 %v1036, %v1035
        %v2935 = vpack.c.bf16 %v1038, %v1037
        %v2936 = vpack.c.bf16 %v1040, %v1039
        %v2937 = vpack.c.bf16 %v1042, %v1041
        %v2938 = vpack.c.bf16 %v1044, %v1043
        %v2939 = vpack.c.bf16 %v1046, %v1045
        %v2940 = vpack.c.bf16 %v1048, %v1047
        %v2941 = vpack.c.bf16 %v1050, %v1049
        %v2942 = vpack.c.bf16 %v1052, %v1051
        %v2943 = vpack.c.bf16 %v1054, %v1053
        %v2944 = vpack.c.bf16 %v1056, %v1055
        %v2945 = vpack.c.bf16 %v1058, %v1057
        %v2946 = vpack.c.bf16 %v1060, %v1059
        %s2947 = scalar_lea.vmem %s3, 8
        %v2948 = vld [vmem:[%s2947] sm:$0x3]
        %v2950 = vsel %vm1085, %v2931, 0
        %v2953 = vsel %vm1085, %v2932, 0
        %v2956 = vsel %vm1085, %v2933, 0
        %v2959 = vsel %vm1085, %v2934, 0
        %v2962 = vsel %vm1085, %v2935, 0
        %v2965 = vsel %vm1085, %v2936, 0
        %v2968 = vsel %vm1085, %v2937, 0
        %v2971 = vsel %vm1085, %v2938, 0
        %v2974 = vsel %vm1085, %v2939, 0
        %v2977 = vsel %vm1085, %v2940, 0
        %v2980 = vsel %vm1085, %v2941, 0
        %v2983 = vsel %vm1085, %v2942, 0
        %v2986 = vsel %vm1085, %v2943, 0
        %v2989 = vsel %vm1085, %v2944, 0
        %v2992 = vsel %vm1085, %v2945, 0
        %v2995 = vsel %vm1085, %v2946, 0
        %v2998 = vsel %vm1134, %v2948, 0
        %3000 = vmatprep.subr.bf16.mxu0 0
        %3001 = vmatpush1.bf16.msra.mxu0 %v2998
        %3002 = vmatprep.subr.bf16.mxu0 0
        %3003 = vmatpush1.bf16.msra.mxu0 0
        %3004 = vmatprep.subr.bf16.mxu0 0
        %3005 = vmatpush1.bf16.msra.mxu0 0
        %3006 = vmatprep.subr.bf16.mxu0 0
        %3007 = vmatpush1.bf16.msra.mxu0 0
        %3008 = vmatprep.subr.bf16.mxu0 0
        %3009 = vmatpush1.bf16.msra.mxu0 0
        %3010 = vmatprep.subr.bf16.mxu0 0
        %3011 = vmatpush1.bf16.msra.mxu0 0
        %3012 = vmatprep.subr.bf16.mxu0 0
        %3013 = vmatpush1.bf16.msra.mxu0 0
        %3014 = vmatprep.subr.bf16.mxu0 0
        %3015 = vmatpush1.bf16.msra.mxu0 0
        %3016 = vmatprep.subr.bf16.mxu0 0
        %3017 = vmatpush1.bf16.msra.mxu0 0
        %3018 = vmatprep.subr.bf16.mxu0 0
        %3019 = vmatpush1.bf16.msra.mxu0 0
        %3020 = vmatprep.subr.bf16.mxu0 0
        %3021 = vmatpush1.bf16.msra.mxu0 0
        %3022 = vmatprep.subr.bf16.mxu0 0
        %3023 = vmatpush1.bf16.msra.mxu0 0
        %3024 = vmatprep.subr.bf16.mxu0 0
        %3025 = vmatpush1.bf16.msra.mxu0 0
        %3026 = vmatprep.subr.bf16.mxu0 0
        %3027 = vmatpush1.bf16.msra.mxu0 0
        %3028 = vmatprep.subr.bf16.mxu0 0
        %3029 = vmatpush1.bf16.msra.mxu0 0
        %3030 = vmatprep.subr.bf16.mxu0 0
        %3031 = vmatpush1.bf16.msra.mxu0 0
        %3032 = vmatprep.mubr.bf16.mxu0 0
        %3033 = vmatmul.mubr.bf16.gmra.mrb[0].mxu0 %v2950
        %v3034 = vpop.f32.mrb[0].mxu0
        %v3035 = vadd.f32 0.0, %v3034
        %v3036 = vpop.f32.mrb[0].mxu0
        %v3037 = vpop.f32.mrb[0].mxu0
        %v3038 = vadd.f32 0.0, %v3037
        %v3039 = vpop.f32.mrb[0].mxu0
        %3040 = vmatprep.mubr.bf16.mxu0 0
        %3041 = vmatmul.mubr.bf16.gmra.mrb[0].mxu0 %v2953
        %v3042 = vpop.f32.mrb[0].mxu0
        %v3043 = vadd.f32 0.0, %v3042
        %v3044 = vpop.f32.mrb[0].mxu0
        %v3045 = vpop.f32.mrb[0].mxu0
        %v3046 = vadd.f32 0.0, %v3045
        %v3047 = vpop.f32.mrb[0].mxu0
        %3048 = vmatprep.mubr.bf16.mxu0 0
        %3049 = vmatmul.mubr.bf16.gmra.mrb[0].mxu0 %v2956
        %v3050 = vpop.f32.mrb[0].mxu0
        %v3051 = vadd.f32 0.0, %v3050
        %v3052 = vpop.f32.mrb[0].mxu0
        %v3053 = vpop.f32.mrb[0].mxu0
        %v3054 = vadd.f32 0.0, %v3053
        %v3055 = vpop.f32.mrb[0].mxu0
        %3056 = vmatprep.mubr.bf16.mxu0 0
        %3057 = vmatmul.mubr.bf16.gmra.mrb[0].mxu0 %v2959
        %v3058 = vpop.f32.mrb[0].mxu0
        %v3059 = vadd.f32 0.0, %v3058
        %v3060 = vpop.f32.mrb[0].mxu0
        %v3061 = vpop.f32.mrb[0].mxu0
        %v3062 = vadd.f32 0.0, %v3061
        %v3063 = vpop.f32.mrb[0].mxu0
        %3064 = vmatprep.mubr.bf16.mxu0 0
        %3065 = vmatmul.mubr.bf16.gmra.mrb[0].mxu0 %v2962
        %v3066 = vpop.f32.mrb[0].mxu0
        %v3067 = vadd.f32 0.0, %v3066
        %v3068 = vpop.f32.mrb[0].mxu0
        %v3069 = vpop.f32.mrb[0].mxu0
        %v3070 = vadd.f32 0.0, %v3069
        %v3071 = vpop.f32.mrb[0].mxu0
        %3072 = vmatprep.mubr.bf16.mxu0 0
        %3073 = vmatmul.mubr.bf16.gmra.mrb[0].mxu0 %v2965
        %v3074 = vpop.f32.mrb[0].mxu0
        %v3075 = vadd.f32 0.0, %v3074
        %v3076 = vpop.f32.mrb[0].mxu0
        %v3077 = vpop.f32.mrb[0].mxu0
        %v3078 = vadd.f32 0.0, %v3077
        %v3079 = vpop.f32.mrb[0].mxu0
        %3080 = vmatprep.mubr.bf16.mxu0 0
        %3081 = vmatmul.mubr.bf16.gmra.mrb[0].mxu0 %v2968
        %v3082 = vpop.f32.mrb[0].mxu0
        %v3083 = vadd.f32 0.0, %v3082
        %v3084 = vpop.f32.mrb[0].mxu0
        %v3085 = vpop.f32.mrb[0].mxu0
        %v3086 = vadd.f32 0.0, %v3085
        %v3087 = vpop.f32.mrb[0].mxu0
        %3088 = vmatprep.mubr.bf16.mxu0 0
        %3089 = vmatmul.mubr.bf16.gmra.mrb[0].mxu0 %v2971
        %v3090 = vpop.f32.mrb[0].mxu0
        %v3091 = vadd.f32 0.0, %v3090
        %v3092 = vpop.f32.mrb[0].mxu0
        %v3093 = vpop.f32.mrb[0].mxu0
        %v3094 = vadd.f32 0.0, %v3093
        %v3095 = vpop.f32.mrb[0].mxu0
        %3096 = vmatprep.mubr.bf16.mxu0 0
        %3097 = vmatmul.mubr.bf16.gmra.mrb[0].mxu0 %v2974
        %v3098 = vpop.f32.mrb[0].mxu0
        %v3099 = vadd.f32 0.0, %v3098
        %v3100 = vpop.f32.mrb[0].mxu0
        %v3101 = vpop.f32.mrb[0].mxu0
        %v3102 = vadd.f32 0.0, %v3101
        %v3103 = vpop.f32.mrb[0].mxu0
        %3104 = vmatprep.mubr.bf16.mxu0 0
        %3105 = vmatmul.mubr.bf16.gmra.mrb[0].mxu0 %v2977
        %v3106 = vpop.f32.mrb[0].mxu0
        %v3107 = vadd.f32 0.0, %v3106
        %v3108 = vpop.f32.mrb[0].mxu0
        %v3109 = vpop.f32.mrb[0].mxu0
        %v3110 = vadd.f32 0.0, %v3109
        %v3111 = vpop.f32.mrb[0].mxu0
        %3112 = vmatprep.mubr.bf16.mxu0 0
        %3113 = vmatmul.mubr.bf16.gmra.mrb[0].mxu0 %v2980
        %v3114 = vpop.f32.mrb[0].mxu0
        %v3115 = vadd.f32 0.0, %v3114
        %v3116 = vpop.f32.mrb[0].mxu0
        %v3117 = vpop.f32.mrb[0].mxu0
        %v3118 = vadd.f32 0.0, %v3117
        %v3119 = vpop.f32.mrb[0].mxu0
        %3120 = vmatprep.mubr.bf16.mxu0 0
        %3121 = vmatmul.mubr.bf16.gmra.mrb[0].mxu0 %v2983
        %v3122 = vpop.f32.mrb[0].mxu0
        %v3123 = vadd.f32 0.0, %v3122
        %v3124 = vpop.f32.mrb[0].mxu0
        %v3125 = vpop.f32.mrb[0].mxu0
        %v3126 = vadd.f32 0.0, %v3125
        %v3127 = vpop.f32.mrb[0].mxu0
        %3128 = vmatprep.mubr.bf16.mxu0 0
        %3129 = vmatmul.mubr.bf16.gmra.mrb[0].mxu0 %v2986
        %v3130 = vpop.f32.mrb[0].mxu0
        %v3131 = vadd.f32 0.0, %v3130
        %v3132 = vpop.f32.mrb[0].mxu0
        %v3133 = vpop.f32.mrb[0].mxu0
        %v3134 = vadd.f32 0.0, %v3133
        %v3135 = vpop.f32.mrb[0].mxu0
        %3136 = vmatprep.mubr.bf16.mxu0 0
        %3137 = vmatmul.mubr.bf16.gmra.mrb[0].mxu0 %v2989
        %v3138 = vpop.f32.mrb[0].mxu0
        %v3139 = vadd.f32 0.0, %v3138
        %v3140 = vpop.f32.mrb[0].mxu0
        %v3141 = vpop.f32.mrb[0].mxu0
        %v3142 = vadd.f32 0.0, %v3141
        %v3143 = vpop.f32.mrb[0].mxu0
        %3144 = vmatprep.mubr.bf16.mxu0 0
        %3145 = vmatmul.mubr.bf16.gmra.mrb[0].mxu0 %v2992
        %v3146 = vpop.f32.mrb[0].mxu0
        %v3147 = vadd.f32 0.0, %v3146
        %v3148 = vpop.f32.mrb[0].mxu0
        %v3149 = vpop.f32.mrb[0].mxu0
        %v3150 = vadd.f32 0.0, %v3149
        %v3151 = vpop.f32.mrb[0].mxu0
        %3152 = vmatprep.mubr.bf16.mxu0 0
        %3153 = vmatmul.mubr.bf16.gmra.mrb[0].mxu0 %v2995
        %v3154 = vpop.f32.mrb[0].mxu0
        %v3155 = vadd.f32 0.0, %v3154
        %v3156 = vpop.f32.mrb[0].mxu0
        %v3157 = vpop.f32.mrb[0].mxu0
        %v3158 = vadd.f32 0.0, %v3157
        %v3159 = vpop.f32.mrb[0].mxu0
        %3160 = vdwg.mxu0
        %v3161 = vadd.f32 %v2899, %v3035
        %v3162 = vadd.f32 %v2900, %v3038
        %v3163 = vadd.f32 %v2901, %v3043
        %v3164 = vadd.f32 %v2902, %v3046
        %v3165 = vadd.f32 %v2903, %v3051
        %v3166 = vadd.f32 %v2904, %v3054
        %v3167 = vadd.f32 %v2905, %v3059
        %v3168 = vadd.f32 %v2906, %v3062
        %v3169 = vadd.f32 %v2907, %v3067
        %v3170 = vadd.f32 %v2908, %v3070
        %v3171 = vadd.f32 %v2909, %v3075
        %v3172 = vadd.f32 %v2910, %v3078
        %v3173 = vadd.f32 %v2911, %v3083
        %v3174 = vadd.f32 %v2912, %v3086
        %v3175 = vadd.f32 %v2913, %v3091
        %v3176 = vadd.f32 %v2914, %v3094
        %v3177 = vadd.f32 %v2915, %v3099
        %v3178 = vadd.f32 %v2916, %v3102
        %v3179 = vadd.f32 %v2917, %v3107
        %v3180 = vadd.f32 %v2918, %v3110
        %v3181 = vadd.f32 %v2919, %v3115
        %v3182 = vadd.f32 %v2920, %v3118
        %v3183 = vadd.f32 %v2921, %v3123
        %v3184 = vadd.f32 %v2922, %v3126
        %v3185 = vadd.f32 %v2923, %v3131
        %v3186 = vadd.f32 %v2924, %v3134
        %v3187 = vadd.f32 %v2925, %v3139
        %v3188 = vadd.f32 %v2926, %v3142
        %v3189 = vadd.f32 %v2927, %v3147
        %v3190 = vadd.f32 %v2928, %v3150
        %v3191 = vadd.f32 %v2929, %v3155
        %v3192 = vadd.f32 %v2930, %v3158
        %v3193 = vsel %vm919, 1, 0
        %v3194 = vsel %vm920, 1, 0
        %v3195 = vsel %vm921, 1, 0
        %v3196 = vsel %vm922, 1, 0
        %v3197 = vsel %vm923, 1, 0
        %v3198 = vsel %vm924, 1, 0
        %v3199 = vsel %vm925, 1, 0
        %v3200 = vsel %vm926, 1, 0
        %v3201 = vsel %vm927, 1, 0
        %v3202 = vsel %vm928, 1, 0
        %v3203 = vsel %vm929, 1, 0
        %v3204 = vsel %vm930, 1, 0
        %v3205 = vsel %vm931, 1, 0
        %v3206 = vsel %vm932, 1, 0
        %v3207 = vsel %vm933, 1, 0
        %v3208 = vsel %vm934, 1, 0
        %v3209 = vsel %vm935, 1, 0
        %v3210 = vsel %vm936, 1, 0
        %v3211 = vsel %vm937, 1, 0
        %v3212 = vsel %vm938, 1, 0
        %v3213 = vsel %vm939, 1, 0
        %v3214 = vsel %vm940, 1, 0
        %v3215 = vsel %vm941, 1, 0
        %v3216 = vsel %vm942, 1, 0
        %v3217 = vsel %vm943, 1, 0
        %v3218 = vsel %vm944, 1, 0
        %v3219 = vsel %vm945, 1, 0
        %v3220 = vsel %vm946, 1, 0
        %v3221 = vsel %vm947, 1, 0
        %v3222 = vsel %vm948, 1, 0
        %v3223 = vsel %vm949, 1, 0
        %v3224 = vsel %vm950, 1, 0
        %vm3225 = vcmp.eq.s32.totalorder %v3193, 1
        %vm3226 = vcmp.eq.s32.totalorder %v3194, 1
        %vm3227 = vcmp.eq.s32.totalorder %v3195, 1
        %vm3228 = vcmp.eq.s32.totalorder %v3196, 1
        %vm3229 = vcmp.eq.s32.totalorder %v3197, 1
        %vm3230 = vcmp.eq.s32.totalorder %v3198, 1
        %vm3231 = vcmp.eq.s32.totalorder %v3199, 1
        %vm3232 = vcmp.eq.s32.totalorder %v3200, 1
        %vm3233 = vcmp.eq.s32.totalorder %v3201, 1
        %vm3234 = vcmp.eq.s32.totalorder %v3202, 1
        %vm3235 = vcmp.eq.s32.totalorder %v3203, 1
        %vm3236 = vcmp.eq.s32.totalorder %v3204, 1
        %vm3237 = vcmp.eq.s32.totalorder %v3205, 1
        %vm3238 = vcmp.eq.s32.totalorder %v3206, 1
        %vm3239 = vcmp.eq.s32.totalorder %v3207, 1
        %vm3240 = vcmp.eq.s32.totalorder %v3208, 1
        %vm3241 = vcmp.eq.s32.totalorder %v3209, 1
        %vm3242 = vcmp.eq.s32.totalorder %v3210, 1
        %vm3243 = vcmp.eq.s32.totalorder %v3211, 1
        %vm3244 = vcmp.eq.s32.totalorder %v3212, 1
        %vm3245 = vcmp.eq.s32.totalorder %v3213, 1
        %vm3246 = vcmp.eq.s32.totalorder %v3214, 1
        %vm3247 = vcmp.eq.s32.totalorder %v3215, 1
        %vm3248 = vcmp.eq.s32.totalorder %v3216, 1
        %vm3249 = vcmp.eq.s32.totalorder %v3217, 1
        %vm3250 = vcmp.eq.s32.totalorder %v3218, 1
        %vm3251 = vcmp.eq.s32.totalorder %v3219, 1
        %vm3252 = vcmp.eq.s32.totalorder %v3220, 1
        %vm3253 = vcmp.eq.s32.totalorder %v3221, 1
        %vm3254 = vcmp.eq.s32.totalorder %v3222, 1
        %vm3255 = vcmp.eq.s32.totalorder %v3223, 1
        %vm3256 = vcmp.eq.s32.totalorder %v3224, 1
        %v3257 = vsel %vm3225, %v2181, 0.0
        %v3258 = vsel %vm3226, %v2180, 0.0
        %v3259 = vsel %vm3227, %v2179, 0.0
        %v3260 = vsel %vm3228, %v2178, 0.0
        %v3261 = vsel %vm3229, %v2177, 0.0
        %v3262 = vsel %vm3230, %v2176, 0.0
        %v3263 = vsel %vm3231, %v2175, 0.0
        %v3264 = vsel %vm3232, %v2174, 0.0
        %v3265 = vsel %vm3233, %v2173, 0.0
        %v3266 = vsel %vm3234, %v2172, 0.0
        %v3267 = vsel %vm3235, %v2171, 0.0
        %v3268 = vsel %vm3236, %v2170, 0.0
        %v3269 = vsel %vm3237, %v2169, 0.0
        %v3270 = vsel %vm3238, %v2168, 0.0
        %v3271 = vsel %vm3239, %v2167, 0.0
        %v3272 = vsel %vm3240, %v2166, 0.0
        %v3273 = vsel %vm3241, %v2165, 0.0
        %v3274 = vsel %vm3242, %v2164, 0.0
        %v3275 = vsel %vm3243, %v2163, 0.0
        %v3276 = vsel %vm3244, %v2162, 0.0
        %v3277 = vsel %vm3245, %v2161, 0.0
        %v3278 = vsel %vm3246, %v2160, 0.0
        %v3279 = vsel %vm3247, %v2159, 0.0
        %v3280 = vsel %vm3248, %v2158, 0.0
        %v3281 = vsel %vm3249, %v2157, 0.0
        %v3282 = vsel %vm3250, %v2156, 0.0
        %v3283 = vsel %vm3251, %v2155, 0.0
        %v3284 = vsel %vm3252, %v2154, 0.0
        %v3285 = vsel %vm3253, %v2153, 0.0
        %v3286 = vsel %vm3254, %v2152, 0.0
        %v3287 = vsel %vm3255, %v2151, 0.0
        %v3288 = vsel %vm3256, %v2182, 0.0
        %v3289 = vpack.c.bf16 %v3258, %v3257
        %v3290 = vpack.c.bf16 %v3260, %v3259
        %v3291 = vpack.c.bf16 %v3262, %v3261
        %v3292 = vpack.c.bf16 %v3264, %v3263
        %v3293 = vpack.c.bf16 %v3266, %v3265
        %v3294 = vpack.c.bf16 %v3268, %v3267
        %v3295 = vpack.c.bf16 %v3270, %v3269
        %v3296 = vpack.c.bf16 %v3272, %v3271
        %v3297 = vpack.c.bf16 %v3274, %v3273
        %v3298 = vpack.c.bf16 %v3276, %v3275
        %v3299 = vpack.c.bf16 %v3278, %v3277
        %v3300 = vpack.c.bf16 %v3280, %v3279
        %v3301 = vpack.c.bf16 %v3282, %v3281
        %v3302 = vpack.c.bf16 %v3284, %v3283
        %v3303 = vpack.c.bf16 %v3286, %v3285
        %v3304 = vpack.c.bf16 %v3288, %v3287
        %s3305 = scalar_lea.vmem %s3, 10
        %v3306 = vld [vmem:[%s3305] sm:$0x3]
        %v3308 = vsel %vm1085, %v3289, 0
        %v3311 = vsel %vm1085, %v3290, 0
        %v3314 = vsel %vm1085, %v3291, 0
        %v3317 = vsel %vm1085, %v3292, 0
        %v3320 = vsel %vm1085, %v3293, 0
        %v3323 = vsel %vm1085, %v3294, 0
        %v3326 = vsel %vm1085, %v3295, 0
        %v3329 = vsel %vm1085, %v3296, 0
        %v3332 = vsel %vm1085, %v3297, 0
        %v3335 = vsel %vm1085, %v3298, 0
        %v3338 = vsel %vm1085, %v3299, 0
        %v3341 = vsel %vm1085, %v3300, 0
        %v3344 = vsel %vm1085, %v3301, 0
        %v3347 = vsel %vm1085, %v3302, 0
        %v3350 = vsel %vm1085, %v3303, 0
        %v3353 = vsel %vm1085, %v3304, 0
        %v3356 = vsel %vm1134, %v3306, 0
        %3358 = vmatprep.subr.bf16.mxu0 0
        %3359 = vmatpush1.bf16.msra.mxu0 %v3356
        %3360 = vmatprep.subr.bf16.mxu0 0
        %3361 = vmatpush1.bf16.msra.mxu0 0
        %3362 = vmatprep.subr.bf16.mxu0 0
        %3363 = vmatpush1.bf16.msra.mxu0 0
        %3364 = vmatprep.subr.bf16.mxu0 0
        %3365 = vmatpush1.bf16.msra.mxu0 0
        %3366 = vmatprep.subr.bf16.mxu0 0
        %3367 = vmatpush1.bf16.msra.mxu0 0
        %3368 = vmatprep.subr.bf16.mxu0 0
        %3369 = vmatpush1.bf16.msra.mxu0 0
        %3370 = vmatprep.subr.bf16.mxu0 0
        %3371 = vmatpush1.bf16.msra.mxu0 0
        %3372 = vmatprep.subr.bf16.mxu0 0
        %3373 = vmatpush1.bf16.msra.mxu0 0
        %3374 = vmatprep.subr.bf16.mxu0 0
        %3375 = vmatpush1.bf16.msra.mxu0 0
        %3376 = vmatprep.subr.bf16.mxu0 0
        %3377 = vmatpush1.bf16.msra.mxu0 0
        %3378 = vmatprep.subr.bf16.mxu0 0
        %3379 = vmatpush1.bf16.msra.mxu0 0
        %3380 = vmatprep.subr.bf16.mxu0 0
        %3381 = vmatpush1.bf16.msra.mxu0 0
        %3382 = vmatprep.subr.bf16.mxu0 0
        %3383 = vmatpush1.bf16.msra.mxu0 0
        %3384 = vmatprep.subr.bf16.mxu0 0
        %3385 = vmatpush1.bf16.msra.mxu0 0
        %3386 = vmatprep.subr.bf16.mxu0 0
        %3387 = vmatpush1.bf16.msra.mxu0 0
        %3388 = vmatprep.subr.bf16.mxu0 0
        %3389 = vmatpush1.bf16.msra.mxu0 0
        %3390 = vmatprep.mubr.bf16.mxu0 0
        %3391 = vmatmul.mubr.bf16.gmra.mrb[0].mxu0 %v3308
        %v3392 = vpop.f32.mrb[0].mxu0
        %v3393 = vadd.f32 0.0, %v3392
        %v3394 = vpop.f32.mrb[0].mxu0
        %v3395 = vpop.f32.mrb[0].mxu0
        %v3396 = vadd.f32 0.0, %v3395
        %v3397 = vpop.f32.mrb[0].mxu0
        %3398 = vmatprep.mubr.bf16.mxu0 0
        %3399 = vmatmul.mubr.bf16.gmra.mrb[0].mxu0 %v3311
        %v3400 = vpop.f32.mrb[0].mxu0
        %v3401 = vadd.f32 0.0, %v3400
        %v3402 = vpop.f32.mrb[0].mxu0
        %v3403 = vpop.f32.mrb[0].mxu0
        %v3404 = vadd.f32 0.0, %v3403
        %v3405 = vpop.f32.mrb[0].mxu0
        %3406 = vmatprep.mubr.bf16.mxu0 0
        %3407 = vmatmul.mubr.bf16.gmra.mrb[0].mxu0 %v3314
        %v3408 = vpop.f32.mrb[0].mxu0
        %v3409 = vadd.f32 0.0, %v3408
        %v3410 = vpop.f32.mrb[0].mxu0
        %v3411 = vpop.f32.mrb[0].mxu0
        %v3412 = vadd.f32 0.0, %v3411
        %v3413 = vpop.f32.mrb[0].mxu0
        %3414 = vmatprep.mubr.bf16.mxu0 0
        %3415 = vmatmul.mubr.bf16.gmra.mrb[0].mxu0 %v3317
        %v3416 = vpop.f32.mrb[0].mxu0
        %v3417 = vadd.f32 0.0, %v3416
        %v3418 = vpop.f32.mrb[0].mxu0
        %v3419 = vpop.f32.mrb[0].mxu0
        %v3420 = vadd.f32 0.0, %v3419
        %v3421 = vpop.f32.mrb[0].mxu0
        %3422 = vmatprep.mubr.bf16.mxu0 0
        %3423 = vmatmul.mubr.bf16.gmra.mrb[0].mxu0 %v3320
        %v3424 = vpop.f32.mrb[0].mxu0
        %v3425 = vadd.f32 0.0, %v3424
        %v3426 = vpop.f32.mrb[0].mxu0
        %v3427 = vpop.f32.mrb[0].mxu0
        %v3428 = vadd.f32 0.0, %v3427
        %v3429 = vpop.f32.mrb[0].mxu0
        %3430 = vmatprep.mubr.bf16.mxu0 0
        %3431 = vmatmul.mubr.bf16.gmra.mrb[0].mxu0 %v3323
        %v3432 = vpop.f32.mrb[0].mxu0
        %v3433 = vadd.f32 0.0, %v3432
        %v3434 = vpop.f32.mrb[0].mxu0
        %v3435 = vpop.f32.mrb[0].mxu0
        %v3436 = vadd.f32 0.0, %v3435
        %v3437 = vpop.f32.mrb[0].mxu0
        %3438 = vmatprep.mubr.bf16.mxu0 0
        %3439 = vmatmul.mubr.bf16.gmra.mrb[0].mxu0 %v3326
        %v3440 = vpop.f32.mrb[0].mxu0
        %v3441 = vadd.f32 0.0, %v3440
        %v3442 = vpop.f32.mrb[0].mxu0
        %v3443 = vpop.f32.mrb[0].mxu0
        %v3444 = vadd.f32 0.0, %v3443
        %v3445 = vpop.f32.mrb[0].mxu0
        %3446 = vmatprep.mubr.bf16.mxu0 0
        %3447 = vmatmul.mubr.bf16.gmra.mrb[0].mxu0 %v3329
        %v3448 = vpop.f32.mrb[0].mxu0
        %v3449 = vadd.f32 0.0, %v3448
        %v3450 = vpop.f32.mrb[0].mxu0
        %v3451 = vpop.f32.mrb[0].mxu0
        %v3452 = vadd.f32 0.0, %v3451
        %v3453 = vpop.f32.mrb[0].mxu0
        %3454 = vmatprep.mubr.bf16.mxu0 0
        %3455 = vmatmul.mubr.bf16.gmra.mrb[0].mxu0 %v3332
        %v3456 = vpop.f32.mrb[0].mxu0
        %v3457 = vadd.f32 0.0, %v3456
        %v3458 = vpop.f32.mrb[0].mxu0
        %v3459 = vpop.f32.mrb[0].mxu0
        %v3460 = vadd.f32 0.0, %v3459
        %v3461 = vpop.f32.mrb[0].mxu0
        %3462 = vmatprep.mubr.bf16.mxu0 0
        %3463 = vmatmul.mubr.bf16.gmra.mrb[0].mxu0 %v3335
        %v3464 = vpop.f32.mrb[0].mxu0
        %v3465 = vadd.f32 0.0, %v3464
        %v3466 = vpop.f32.mrb[0].mxu0
        %v3467 = vpop.f32.mrb[0].mxu0
        %v3468 = vadd.f32 0.0, %v3467
        %v3469 = vpop.f32.mrb[0].mxu0
        %3470 = vmatprep.mubr.bf16.mxu0 0
        %3471 = vmatmul.mubr.bf16.gmra.mrb[0].mxu0 %v3338
        %v3472 = vpop.f32.mrb[0].mxu0
        %v3473 = vadd.f32 0.0, %v3472
        %v3474 = vpop.f32.mrb[0].mxu0
        %v3475 = vpop.f32.mrb[0].mxu0
        %v3476 = vadd.f32 0.0, %v3475
        %v3477 = vpop.f32.mrb[0].mxu0
        %3478 = vmatprep.mubr.bf16.mxu0 0
        %3479 = vmatmul.mubr.bf16.gmra.mrb[0].mxu0 %v3341
        %v3480 = vpop.f32.mrb[0].mxu0
        %v3481 = vadd.f32 0.0, %v3480
        %v3482 = vpop.f32.mrb[0].mxu0
        %v3483 = vpop.f32.mrb[0].mxu0
        %v3484 = vadd.f32 0.0, %v3483
        %v3485 = vpop.f32.mrb[0].mxu0
        %3486 = vmatprep.mubr.bf16.mxu0 0
        %3487 = vmatmul.mubr.bf16.gmra.mrb[0].mxu0 %v3344
        %v3488 = vpop.f32.mrb[0].mxu0
        %v3489 = vadd.f32 0.0, %v3488
        %v3490 = vpop.f32.mrb[0].mxu0
        %v3491 = vpop.f32.mrb[0].mxu0
        %v3492 = vadd.f32 0.0, %v3491
        %v3493 = vpop.f32.mrb[0].mxu0
        %3494 = vmatprep.mubr.bf16.mxu0 0
        %3495 = vmatmul.mubr.bf16.gmra.mrb[0].mxu0 %v3347
        %v3496 = vpop.f32.mrb[0].mxu0
        %v3497 = vadd.f32 0.0, %v3496
        %v3498 = vpop.f32.mrb[0].mxu0
        %v3499 = vpop.f32.mrb[0].mxu0
        %v3500 = vadd.f32 0.0, %v3499
        %v3501 = vpop.f32.mrb[0].mxu0
        %3502 = vmatprep.mubr.bf16.mxu0 0
        %3503 = vmatmul.mubr.bf16.gmra.mrb[0].mxu0 %v3350
        %v3504 = vpop.f32.mrb[0].mxu0
        %v3505 = vadd.f32 0.0, %v3504
        %v3506 = vpop.f32.mrb[0].mxu0
        %v3507 = vpop.f32.mrb[0].mxu0
        %v3508 = vadd.f32 0.0, %v3507
        %v3509 = vpop.f32.mrb[0].mxu0
        %3510 = vmatprep.mubr.bf16.mxu0 0
        %3511 = vmatmul.mubr.bf16.gmra.mrb[0].mxu0 %v3353
        %v3512 = vpop.f32.mrb[0].mxu0
        %v3513 = vadd.f32 0.0, %v3512
        %v3514 = vpop.f32.mrb[0].mxu0
        %v3515 = vpop.f32.mrb[0].mxu0
        %v3516 = vadd.f32 0.0, %v3515
        %v3517 = vpop.f32.mrb[0].mxu0
        %3518 = vdwg.mxu0
        %v3519 = vadd.f32 %v3161, %v3393
        %v3520 = vadd.f32 %v3162, %v3396
        %v3521 = vadd.f32 %v3163, %v3401
        %v3522 = vadd.f32 %v3164, %v3404
        %v3523 = vadd.f32 %v3165, %v3409
        %v3524 = vadd.f32 %v3166, %v3412
        %v3525 = vadd.f32 %v3167, %v3417
        %v3526 = vadd.f32 %v3168, %v3420
        %v3527 = vadd.f32 %v3169, %v3425
        %v3528 = vadd.f32 %v3170, %v3428
        %v3529 = vadd.f32 %v3171, %v3433
        %v3530 = vadd.f32 %v3172, %v3436
        %v3531 = vadd.f32 %v3173, %v3441
        %v3532 = vadd.f32 %v3174, %v3444
        %v3533 = vadd.f32 %v3175, %v3449
        %v3534 = vadd.f32 %v3176, %v3452
        %v3535 = vadd.f32 %v3177, %v3457
        %v3536 = vadd.f32 %v3178, %v3460
        %v3537 = vadd.f32 %v3179, %v3465
        %v3538 = vadd.f32 %v3180, %v3468
        %v3539 = vadd.f32 %v3181, %v3473
        %v3540 = vadd.f32 %v3182, %v3476
        %v3541 = vadd.f32 %v3183, %v3481
        %v3542 = vadd.f32 %v3184, %v3484
        %v3543 = vadd.f32 %v3185, %v3489
        %v3544 = vadd.f32 %v3186, %v3492
        %v3545 = vadd.f32 %v3187, %v3497
        %v3546 = vadd.f32 %v3188, %v3500
        %v3547 = vadd.f32 %v3189, %v3505
        %v3548 = vadd.f32 %v3190, %v3508
        %v3549 = vadd.f32 %v3191, %v3513
        %v3550 = vadd.f32 %v3192, %v3516
        %vm3551 = vmand %vm855, %vm887
        %vm3552 = vmand %vm856, %vm888
        %vm3553 = vmand %vm857, %vm889
        %vm3554 = vmand %vm858, %vm890
        %vm3555 = vmand %vm859, %vm891
        %vm3556 = vmand %vm860, %vm892
        %vm3557 = vmand %vm861, %vm893
        %vm3558 = vmand %vm862, %vm894
        %vm3559 = vmand %vm863, %vm895
        %vm3560 = vmand %vm864, %vm896
        %vm3561 = vmand %vm865, %vm897
        %vm3562 = vmand %vm866, %vm898
        %vm3563 = vmand %vm867, %vm899
        %vm3564 = vmand %vm868, %vm900
        %vm3565 = vmand %vm869, %vm901
        %vm3566 = vmand %vm870, %vm902
        %vm3567 = vmand %vm871, %vm903
        %vm3568 = vmand %vm872, %vm904
        %vm3569 = vmand %vm873, %vm905
        %vm3570 = vmand %vm874, %vm906
        %vm3571 = vmand %vm875, %vm907
        %vm3572 = vmand %vm876, %vm908
        %vm3573 = vmand %vm877, %vm909
        %vm3574 = vmand %vm878, %vm910
        %vm3575 = vmand %vm879, %vm911
        %vm3576 = vmand %vm880, %vm912
        %vm3577 = vmand %vm881, %vm913
        %vm3578 = vmand %vm882, %vm914
        %vm3579 = vmand %vm883, %vm915
        %vm3580 = vmand %vm884, %vm916
        %vm3581 = vmand %vm885, %vm917
        %vm3582 = vmand %vm886, %vm918
        %v3583 = vsel %vm3551, 1, 0
        %v3584 = vsel %vm3552, 1, 0
        %v3585 = vsel %vm3553, 1, 0
        %v3586 = vsel %vm3554, 1, 0
        %v3587 = vsel %vm3555, 1, 0
        %v3588 = vsel %vm3556, 1, 0
        %v3589 = vsel %vm3557, 1, 0
        %v3590 = vsel %vm3558, 1, 0
        %v3591 = vsel %vm3559, 1, 0
        %v3592 = vsel %vm3560, 1, 0
        %v3593 = vsel %vm3561, 1, 0
        %v3594 = vsel %vm3562, 1, 0
        %v3595 = vsel %vm3563, 1, 0
        %v3596 = vsel %vm3564, 1, 0
        %v3597 = vsel %vm3565, 1, 0
        %v3598 = vsel %vm3566, 1, 0
        %v3599 = vsel %vm3567, 1, 0
        %v3600 = vsel %vm3568, 1, 0
        %v3601 = vsel %vm3569, 1, 0
        %v3602 = vsel %vm3570, 1, 0
        %v3603 = vsel %vm3571, 1, 0
        %v3604 = vsel %vm3572, 1, 0
        %v3605 = vsel %vm3573, 1, 0
        %v3606 = vsel %vm3574, 1, 0
        %v3607 = vsel %vm3575, 1, 0
        %v3608 = vsel %vm3576, 1, 0
        %v3609 = vsel %vm3577, 1, 0
        %v3610 = vsel %vm3578, 1, 0
        %v3611 = vsel %vm3579, 1, 0
        %v3612 = vsel %vm3580, 1, 0
        %v3613 = vsel %vm3581, 1, 0
        %v3614 = vsel %vm3582, 1, 0
        %vm3615 = vcmp.eq.s32.totalorder %v3583, 1
        %vm3616 = vcmp.eq.s32.totalorder %v3584, 1
        %vm3617 = vcmp.eq.s32.totalorder %v3585, 1
        %vm3618 = vcmp.eq.s32.totalorder %v3586, 1
        %vm3619 = vcmp.eq.s32.totalorder %v3587, 1
        %vm3620 = vcmp.eq.s32.totalorder %v3588, 1
        %vm3621 = vcmp.eq.s32.totalorder %v3589, 1
        %vm3622 = vcmp.eq.s32.totalorder %v3590, 1
        %vm3623 = vcmp.eq.s32.totalorder %v3591, 1
        %vm3624 = vcmp.eq.s32.totalorder %v3592, 1
        %vm3625 = vcmp.eq.s32.totalorder %v3593, 1
        %vm3626 = vcmp.eq.s32.totalorder %v3594, 1
        %vm3627 = vcmp.eq.s32.totalorder %v3595, 1
        %vm3628 = vcmp.eq.s32.totalorder %v3596, 1
        %vm3629 = vcmp.eq.s32.totalorder %v3597, 1
        %vm3630 = vcmp.eq.s32.totalorder %v3598, 1
        %vm3631 = vcmp.eq.s32.totalorder %v3599, 1
        %vm3632 = vcmp.eq.s32.totalorder %v3600, 1
        %vm3633 = vcmp.eq.s32.totalorder %v3601, 1
        %vm3634 = vcmp.eq.s32.totalorder %v3602, 1
        %vm3635 = vcmp.eq.s32.totalorder %v3603, 1
        %vm3636 = vcmp.eq.s32.totalorder %v3604, 1
        %vm3637 = vcmp.eq.s32.totalorder %v3605, 1
        %vm3638 = vcmp.eq.s32.totalorder %v3606, 1
        %vm3639 = vcmp.eq.s32.totalorder %v3607, 1
        %vm3640 = vcmp.eq.s32.totalorder %v3608, 1
        %vm3641 = vcmp.eq.s32.totalorder %v3609, 1
        %vm3642 = vcmp.eq.s32.totalorder %v3610, 1
        %vm3643 = vcmp.eq.s32.totalorder %v3611, 1
        %vm3644 = vcmp.eq.s32.totalorder %v3612, 1
        %vm3645 = vcmp.eq.s32.totalorder %v3613, 1
        %vm3646 = vcmp.eq.s32.totalorder %v3614, 1
        %v3647 = vsel %vm3615, %v1362, 0.0
        %v3648 = vsel %vm3616, %v1361, 0.0
        %v3649 = vsel %vm3617, %v1360, 0.0
        %v3650 = vsel %vm3618, %v1359, 0.0
        %v3651 = vsel %vm3619, %v1358, 0.0
        %v3652 = vsel %vm3620, %v1357, 0.0
        %v3653 = vsel %vm3621, %v1356, 0.0
        %v3654 = vsel %vm3622, %v1355, 0.0
        %v3655 = vsel %vm3623, %v1354, 0.0
        %v3656 = vsel %vm3624, %v1353, 0.0
        %v3657 = vsel %vm3625, %v1352, 0.0
        %v3658 = vsel %vm3626, %v1351, 0.0
        %v3659 = vsel %vm3627, %v1350, 0.0
        %v3660 = vsel %vm3628, %v1349, 0.0
        %v3661 = vsel %vm3629, %v1348, 0.0
        %v3662 = vsel %vm3630, %v1347, 0.0
        %v3663 = vsel %vm3631, %v1346, 0.0
        %v3664 = vsel %vm3632, %v1345, 0.0
        %v3665 = vsel %vm3633, %v1344, 0.0
        %v3666 = vsel %vm3634, %v1343, 0.0
        %v3667 = vsel %vm3635, %v1342, 0.0
        %v3668 = vsel %vm3636, %v1341, 0.0
        %v3669 = vsel %vm3637, %v1340, 0.0
        %v3670 = vsel %vm3638, %v1339, 0.0
        %v3671 = vsel %vm3639, %v1338, 0.0
        %v3672 = vsel %vm3640, %v1337, 0.0
        %v3673 = vsel %vm3641, %v1336, 0.0
        %v3674 = vsel %vm3642, %v1335, 0.0
        %v3675 = vsel %vm3643, %v1334, 0.0
        %v3676 = vsel %vm3644, %v1333, 0.0
        %v3677 = vsel %vm3645, %v1364, 0.0
        %v3678 = vsel %vm3646, %v1363, 0.0
        %v3679 = vpack.c.bf16 %v3648, %v3647
        %v3680 = vpack.c.bf16 %v3650, %v3649
        %v3681 = vpack.c.bf16 %v3652, %v3651
        %v3682 = vpack.c.bf16 %v3654, %v3653
        %v3683 = vpack.c.bf16 %v3656, %v3655
        %v3684 = vpack.c.bf16 %v3658, %v3657
        %v3685 = vpack.c.bf16 %v3660, %v3659
        %v3686 = vpack.c.bf16 %v3662, %v3661
        %v3687 = vpack.c.bf16 %v3664, %v3663
        %v3688 = vpack.c.bf16 %v3666, %v3665
        %v3689 = vpack.c.bf16 %v3668, %v3667
        %v3690 = vpack.c.bf16 %v3670, %v3669
        %v3691 = vpack.c.bf16 %v3672, %v3671
        %v3692 = vpack.c.bf16 %v3674, %v3673
        %v3693 = vpack.c.bf16 %v3676, %v3675
        %v3694 = vpack.c.bf16 %v3678, %v3677
        %s3695 = scalar_lea.vmem %s3, 12
        %v3696 = vld [vmem:[%s3695] sm:$0x3]
        %v3698 = vsel %vm1085, %v3679, 0
        %v3701 = vsel %vm1085, %v3680, 0
        %v3704 = vsel %vm1085, %v3681, 0
        %v3707 = vsel %vm1085, %v3682, 0
        %v3710 = vsel %vm1085, %v3683, 0
        %v3713 = vsel %vm1085, %v3684, 0
        %v3716 = vsel %vm1085, %v3685, 0
        %v3719 = vsel %vm1085, %v3686, 0
        %v3722 = vsel %vm1085, %v3687, 0
        %v3725 = vsel %vm1085, %v3688, 0
        %v3728 = vsel %vm1085, %v3689, 0
        %v3731 = vsel %vm1085, %v3690, 0
        %v3734 = vsel %vm1085, %v3691, 0
        %v3737 = vsel %vm1085, %v3692, 0
        %v3740 = vsel %vm1085, %v3693, 0
        %v3743 = vsel %vm1085, %v3694, 0
        %v3746 = vsel %vm1134, %v3696, 0
        %3748 = vmatprep.subr.bf16.mxu0 0
        %3749 = vmatpush1.bf16.msra.mxu0 %v3746
        %3750 = vmatprep.subr.bf16.mxu0 0
        %3751 = vmatpush1.bf16.msra.mxu0 0
        %3752 = vmatprep.subr.bf16.mxu0 0
        %3753 = vmatpush1.bf16.msra.mxu0 0
        %3754 = vmatprep.subr.bf16.mxu0 0
        %3755 = vmatpush1.bf16.msra.mxu0 0
        %3756 = vmatprep.subr.bf16.mxu0 0
        %3757 = vmatpush1.bf16.msra.mxu0 0
        %3758 = vmatprep.subr.bf16.mxu0 0
        %3759 = vmatpush1.bf16.msra.mxu0 0
        %3760 = vmatprep.subr.bf16.mxu0 0
        %3761 = vmatpush1.bf16.msra.mxu0 0
        %3762 = vmatprep.subr.bf16.mxu0 0
        %3763 = vmatpush1.bf16.msra.mxu0 0
        %3764 = vmatprep.subr.bf16.mxu0 0
        %3765 = vmatpush1.bf16.msra.mxu0 0
        %3766 = vmatprep.subr.bf16.mxu0 0
        %3767 = vmatpush1.bf16.msra.mxu0 0
        %3768 = vmatprep.subr.bf16.mxu0 0
        %3769 = vmatpush1.bf16.msra.mxu0 0
        %3770 = vmatprep.subr.bf16.mxu0 0
        %3771 = vmatpush1.bf16.msra.mxu0 0
        %3772 = vmatprep.subr.bf16.mxu0 0
        %3773 = vmatpush1.bf16.msra.mxu0 0
        %3774 = vmatprep.subr.bf16.mxu0 0
        %3775 = vmatpush1.bf16.msra.mxu0 0
        %3776 = vmatprep.subr.bf16.mxu0 0
        %3777 = vmatpush1.bf16.msra.mxu0 0
        %3778 = vmatprep.subr.bf16.mxu0 0
        %3779 = vmatpush1.bf16.msra.mxu0 0
        %3780 = vmatprep.mubr.bf16.mxu0 0
        %3781 = vmatmul.mubr.bf16.gmra.mrb[0].mxu0 %v3698
        %v3782 = vpop.f32.mrb[0].mxu0
        %v3783 = vadd.f32 0.0, %v3782
        %v3784 = vpop.f32.mrb[0].mxu0
        %v3785 = vpop.f32.mrb[0].mxu0
        %v3786 = vadd.f32 0.0, %v3785
        %v3787 = vpop.f32.mrb[0].mxu0
        %3788 = vmatprep.mubr.bf16.mxu0 0
        %3789 = vmatmul.mubr.bf16.gmra.mrb[0].mxu0 %v3701
        %v3790 = vpop.f32.mrb[0].mxu0
        %v3791 = vadd.f32 0.0, %v3790
        %v3792 = vpop.f32.mrb[0].mxu0
        %v3793 = vpop.f32.mrb[0].mxu0
        %v3794 = vadd.f32 0.0, %v3793
        %v3795 = vpop.f32.mrb[0].mxu0
        %3796 = vmatprep.mubr.bf16.mxu0 0
        %3797 = vmatmul.mubr.bf16.gmra.mrb[0].mxu0 %v3704
        %v3798 = vpop.f32.mrb[0].mxu0
        %v3799 = vadd.f32 0.0, %v3798
        %v3800 = vpop.f32.mrb[0].mxu0
        %v3801 = vpop.f32.mrb[0].mxu0
        %v3802 = vadd.f32 0.0, %v3801
        %v3803 = vpop.f32.mrb[0].mxu0
        %3804 = vmatprep.mubr.bf16.mxu0 0
        %3805 = vmatmul.mubr.bf16.gmra.mrb[0].mxu0 %v3707
        %v3806 = vpop.f32.mrb[0].mxu0
        %v3807 = vadd.f32 0.0, %v3806
        %v3808 = vpop.f32.mrb[0].mxu0
        %v3809 = vpop.f32.mrb[0].mxu0
        %v3810 = vadd.f32 0.0, %v3809
        %v3811 = vpop.f32.mrb[0].mxu0
        %3812 = vmatprep.mubr.bf16.mxu0 0
        %3813 = vmatmul.mubr.bf16.gmra.mrb[0].mxu0 %v3710
        %v3814 = vpop.f32.mrb[0].mxu0
        %v3815 = vadd.f32 0.0, %v3814
        %v3816 = vpop.f32.mrb[0].mxu0
        %v3817 = vpop.f32.mrb[0].mxu0
        %v3818 = vadd.f32 0.0, %v3817
        %v3819 = vpop.f32.mrb[0].mxu0
        %3820 = vmatprep.mubr.bf16.mxu0 0
        %3821 = vmatmul.mubr.bf16.gmra.mrb[0].mxu0 %v3713
        %v3822 = vpop.f32.mrb[0].mxu0
        %v3823 = vadd.f32 0.0, %v3822
        %v3824 = vpop.f32.mrb[0].mxu0
        %v3825 = vpop.f32.mrb[0].mxu0
        %v3826 = vadd.f32 0.0, %v3825
        %v3827 = vpop.f32.mrb[0].mxu0
        %3828 = vmatprep.mubr.bf16.mxu0 0
        %3829 = vmatmul.mubr.bf16.gmra.mrb[0].mxu0 %v3716
        %v3830 = vpop.f32.mrb[0].mxu0
        %v3831 = vadd.f32 0.0, %v3830
        %v3832 = vpop.f32.mrb[0].mxu0
        %v3833 = vpop.f32.mrb[0].mxu0
        %v3834 = vadd.f32 0.0, %v3833
        %v3835 = vpop.f32.mrb[0].mxu0
        %3836 = vmatprep.mubr.bf16.mxu0 0
        %3837 = vmatmul.mubr.bf16.gmra.mrb[0].mxu0 %v3719
        %v3838 = vpop.f32.mrb[0].mxu0
        %v3839 = vadd.f32 0.0, %v3838
        %v3840 = vpop.f32.mrb[0].mxu0
        %v3841 = vpop.f32.mrb[0].mxu0
        %v3842 = vadd.f32 0.0, %v3841
        %v3843 = vpop.f32.mrb[0].mxu0
        %3844 = vmatprep.mubr.bf16.mxu0 0
        %3845 = vmatmul.mubr.bf16.gmra.mrb[0].mxu0 %v3722
        %v3846 = vpop.f32.mrb[0].mxu0
        %v3847 = vadd.f32 0.0, %v3846
        %v3848 = vpop.f32.mrb[0].mxu0
        %v3849 = vpop.f32.mrb[0].mxu0
        %v3850 = vadd.f32 0.0, %v3849
        %v3851 = vpop.f32.mrb[0].mxu0
        %3852 = vmatprep.mubr.bf16.mxu0 0
        %3853 = vmatmul.mubr.bf16.gmra.mrb[0].mxu0 %v3725
        %v3854 = vpop.f32.mrb[0].mxu0
        %v3855 = vadd.f32 0.0, %v3854
        %v3856 = vpop.f32.mrb[0].mxu0
        %v3857 = vpop.f32.mrb[0].mxu0
        %v3858 = vadd.f32 0.0, %v3857
        %v3859 = vpop.f32.mrb[0].mxu0
        %3860 = vmatprep.mubr.bf16.mxu0 0
        %3861 = vmatmul.mubr.bf16.gmra.mrb[0].mxu0 %v3728
        %v3862 = vpop.f32.mrb[0].mxu0
        %v3863 = vadd.f32 0.0, %v3862
        %v3864 = vpop.f32.mrb[0].mxu0
        %v3865 = vpop.f32.mrb[0].mxu0
        %v3866 = vadd.f32 0.0, %v3865
        %v3867 = vpop.f32.mrb[0].mxu0
        %3868 = vmatprep.mubr.bf16.mxu0 0
        %3869 = vmatmul.mubr.bf16.gmra.mrb[0].mxu0 %v3731
        %v3870 = vpop.f32.mrb[0].mxu0
        %v3871 = vadd.f32 0.0, %v3870
        %v3872 = vpop.f32.mrb[0].mxu0
        %v3873 = vpop.f32.mrb[0].mxu0
        %v3874 = vadd.f32 0.0, %v3873
        %v3875 = vpop.f32.mrb[0].mxu0
        %3876 = vmatprep.mubr.bf16.mxu0 0
        %3877 = vmatmul.mubr.bf16.gmra.mrb[0].mxu0 %v3734
        %v3878 = vpop.f32.mrb[0].mxu0
        %v3879 = vadd.f32 0.0, %v3878
        %v3880 = vpop.f32.mrb[0].mxu0
        %v3881 = vpop.f32.mrb[0].mxu0
        %v3882 = vadd.f32 0.0, %v3881
        %v3883 = vpop.f32.mrb[0].mxu0
        %3884 = vmatprep.mubr.bf16.mxu0 0
        %3885 = vmatmul.mubr.bf16.gmra.mrb[0].mxu0 %v3737
        %v3886 = vpop.f32.mrb[0].mxu0
        %v3887 = vadd.f32 0.0, %v3886
        %v3888 = vpop.f32.mrb[0].mxu0
        %v3889 = vpop.f32.mrb[0].mxu0
        %v3890 = vadd.f32 0.0, %v3889
        %v3891 = vpop.f32.mrb[0].mxu0
        %3892 = vmatprep.mubr.bf16.mxu0 0
        %3893 = vmatmul.mubr.bf16.gmra.mrb[0].mxu0 %v3740
        %v3894 = vpop.f32.mrb[0].mxu0
        %v3895 = vadd.f32 0.0, %v3894
        %v3896 = vpop.f32.mrb[0].mxu0
        %v3897 = vpop.f32.mrb[0].mxu0
        %v3898 = vadd.f32 0.0, %v3897
        %v3899 = vpop.f32.mrb[0].mxu0
        %3900 = vmatprep.mubr.bf16.mxu0 0
        %3901 = vmatmul.mubr.bf16.gmra.mrb[0].mxu0 %v3743
        %v3902 = vpop.f32.mrb[0].mxu0
        %v3903 = vadd.f32 0.0, %v3902
        %v3904 = vpop.f32.mrb[0].mxu0
        %v3905 = vpop.f32.mrb[0].mxu0
        %v3906 = vadd.f32 0.0, %v3905
        %v3907 = vpop.f32.mrb[0].mxu0
        %3908 = vdwg.mxu0
        %v3909 = vadd.f32 %v3519, %v3783
        %v3910 = vadd.f32 %v3520, %v3786
        %v3911 = vadd.f32 %v3521, %v3791
        %v3912 = vadd.f32 %v3522, %v3794
        %v3913 = vadd.f32 %v3523, %v3799
        %v3914 = vadd.f32 %v3524, %v3802
        %v3915 = vadd.f32 %v3525, %v3807
        %v3916 = vadd.f32 %v3526, %v3810
        %v3917 = vadd.f32 %v3527, %v3815
        %v3918 = vadd.f32 %v3528, %v3818
        %v3919 = vadd.f32 %v3529, %v3823
        %v3920 = vadd.f32 %v3530, %v3826
        %v3921 = vadd.f32 %v3531, %v3831
        %v3922 = vadd.f32 %v3532, %v3834
        %v3923 = vadd.f32 %v3533, %v3839
        %v3924 = vadd.f32 %v3534, %v3842
        %v3925 = vadd.f32 %v3535, %v3847
        %v3926 = vadd.f32 %v3536, %v3850
        %v3927 = vadd.f32 %v3537, %v3855
        %v3928 = vadd.f32 %v3538, %v3858
        %v3929 = vadd.f32 %v3539, %v3863
        %v3930 = vadd.f32 %v3540, %v3866
        %v3931 = vadd.f32 %v3541, %v3871
        %v3932 = vadd.f32 %v3542, %v3874
        %v3933 = vadd.f32 %v3543, %v3879
        %v3934 = vadd.f32 %v3544, %v3882
        %v3935 = vadd.f32 %v3545, %v3887
        %v3936 = vadd.f32 %v3546, %v3890
        %v3937 = vadd.f32 %v3547, %v3895
        %v3938 = vadd.f32 %v3548, %v3898
        %v3939 = vadd.f32 %v3549, %v3903
        %v3940 = vadd.f32 %v3550, %v3906
        %v3941 = vsel %vm855, 1, 0
        %v3942 = vsel %vm856, 1, 0
        %v3943 = vsel %vm857, 1, 0
        %v3944 = vsel %vm858, 1, 0
        %v3945 = vsel %vm859, 1, 0
        %v3946 = vsel %vm860, 1, 0
        %v3947 = vsel %vm861, 1, 0
        %v3948 = vsel %vm862, 1, 0
        %v3949 = vsel %vm863, 1, 0
        %v3950 = vsel %vm864, 1, 0
        %v3951 = vsel %vm865, 1, 0
        %v3952 = vsel %vm866, 1, 0
        %v3953 = vsel %vm867, 1, 0
        %v3954 = vsel %vm868, 1, 0
        %v3955 = vsel %vm869, 1, 0
        %v3956 = vsel %vm870, 1, 0
        %v3957 = vsel %vm871, 1, 0
        %v3958 = vsel %vm872, 1, 0
        %v3959 = vsel %vm873, 1, 0
        %v3960 = vsel %vm874, 1, 0
        %v3961 = vsel %vm875, 1, 0
        %v3962 = vsel %vm876, 1, 0
        %v3963 = vsel %vm877, 1, 0
        %v3964 = vsel %vm878, 1, 0
        %v3965 = vsel %vm879, 1, 0
        %v3966 = vsel %vm880, 1, 0
        %v3967 = vsel %vm881, 1, 0
        %v3968 = vsel %vm882, 1, 0
        %v3969 = vsel %vm883, 1, 0
        %v3970 = vsel %vm884, 1, 0
        %v3971 = vsel %vm885, 1, 0
        %v3972 = vsel %vm886, 1, 0
        %vm3973 = vcmp.eq.s32.totalorder %v3941, 1
        %vm3974 = vcmp.eq.s32.totalorder %v3942, 1
        %vm3975 = vcmp.eq.s32.totalorder %v3943, 1
        %vm3976 = vcmp.eq.s32.totalorder %v3944, 1
        %vm3977 = vcmp.eq.s32.totalorder %v3945, 1
        %vm3978 = vcmp.eq.s32.totalorder %v3946, 1
        %vm3979 = vcmp.eq.s32.totalorder %v3947, 1
        %vm3980 = vcmp.eq.s32.totalorder %v3948, 1
        %vm3981 = vcmp.eq.s32.totalorder %v3949, 1
        %vm3982 = vcmp.eq.s32.totalorder %v3950, 1
        %vm3983 = vcmp.eq.s32.totalorder %v3951, 1
        %vm3984 = vcmp.eq.s32.totalorder %v3952, 1
        %vm3985 = vcmp.eq.s32.totalorder %v3953, 1
        %vm3986 = vcmp.eq.s32.totalorder %v3954, 1
        %vm3987 = vcmp.eq.s32.totalorder %v3955, 1
        %vm3988 = vcmp.eq.s32.totalorder %v3956, 1
        %vm3989 = vcmp.eq.s32.totalorder %v3957, 1
        %vm3990 = vcmp.eq.s32.totalorder %v3958, 1
        %vm3991 = vcmp.eq.s32.totalorder %v3959, 1
        %vm3992 = vcmp.eq.s32.totalorder %v3960, 1
        %vm3993 = vcmp.eq.s32.totalorder %v3961, 1
        %vm3994 = vcmp.eq.s32.totalorder %v3962, 1
        %vm3995 = vcmp.eq.s32.totalorder %v3963, 1
        %vm3996 = vcmp.eq.s32.totalorder %v3964, 1
        %vm3997 = vcmp.eq.s32.totalorder %v3965, 1
        %vm3998 = vcmp.eq.s32.totalorder %v3966, 1
        %vm3999 = vcmp.eq.s32.totalorder %v3967, 1
        %vm4000 = vcmp.eq.s32.totalorder %v3968, 1
        %vm4001 = vcmp.eq.s32.totalorder %v3969, 1
        %vm4002 = vcmp.eq.s32.totalorder %v3970, 1
        %vm4003 = vcmp.eq.s32.totalorder %v3971, 1
        %vm4004 = vcmp.eq.s32.totalorder %v3972, 1
        %v4005 = vsel %vm3973, %v1031, 0.0
        %v4006 = vsel %vm3974, %v1032, 0.0
        %v4007 = vsel %vm3975, %v1033, 0.0
        %v4008 = vsel %vm3976, %v1034, 0.0
        %v4009 = vsel %vm3977, %v1035, 0.0
        %v4010 = vsel %vm3978, %v1036, 0.0
        %v4011 = vsel %vm3979, %v1037, 0.0
        %v4012 = vsel %vm3980, %v1038, 0.0
        %v4013 = vsel %vm3981, %v1039, 0.0
        %v4014 = vsel %vm3982, %v1040, 0.0
        %v4015 = vsel %vm3983, %v1041, 0.0
        %v4016 = vsel %vm3984, %v1042, 0.0
        %v4017 = vsel %vm3985, %v1043, 0.0
        %v4018 = vsel %vm3986, %v1044, 0.0
        %v4019 = vsel %vm3987, %v1045, 0.0
        %v4020 = vsel %vm3988, %v1046, 0.0
        %v4021 = vsel %vm3989, %v1047, 0.0
        %v4022 = vsel %vm3990, %v1048, 0.0
        %v4023 = vsel %vm3991, %v1049, 0.0
        %v4024 = vsel %vm3992, %v1050, 0.0
        %v4025 = vsel %vm3993, %v1051, 0.0
        %v4026 = vsel %vm3994, %v1052, 0.0
        %v4027 = vsel %vm3995, %v1053, 0.0
        %v4028 = vsel %vm3996, %v1054, 0.0
        %v4029 = vsel %vm3997, %v1055, 0.0
        %v4030 = vsel %vm3998, %v1056, 0.0
        %v4031 = vsel %vm3999, %v1057, 0.0
        %v4032 = vsel %vm4000, %v1058, 0.0
        %v4033 = vsel %vm4001, %v1059, 0.0
        %v4034 = vsel %vm4002, %v1060, 0.0
        %v4035 = vsel %vm4003, %v1029, 0.0
        %v4036 = vsel %vm4004, %v1030, 0.0
        %v4037 = vpack.c.bf16 %v4006, %v4005
        %v4038 = vpack.c.bf16 %v4008, %v4007
        %v4039 = vpack.c.bf16 %v4010, %v4009
        %v4040 = vpack.c.bf16 %v4012, %v4011
        %v4041 = vpack.c.bf16 %v4014, %v4013
        %v4042 = vpack.c.bf16 %v4016, %v4015
        %v4043 = vpack.c.bf16 %v4018, %v4017
        %v4044 = vpack.c.bf16 %v4020, %v4019
        %v4045 = vpack.c.bf16 %v4022, %v4021
        %v4046 = vpack.c.bf16 %v4024, %v4023
        %v4047 = vpack.c.bf16 %v4026, %v4025
        %v4048 = vpack.c.bf16 %v4028, %v4027
        %v4049 = vpack.c.bf16 %v4030, %v4029
        %v4050 = vpack.c.bf16 %v4032, %v4031
        %v4051 = vpack.c.bf16 %v4034, %v4033
        %v4052 = vpack.c.bf16 %v4036, %v4035
        %s4053 = scalar_lea.vmem %s3, 14
        %v4054 = vld [vmem:[%s4053] sm:$0x3]
        %v4056 = vsel %vm1085, %v4037, 0
        %v4059 = vsel %vm1085, %v4038, 0
        %v4062 = vsel %vm1085, %v4039, 0
        %v4065 = vsel %vm1085, %v4040, 0
        %v4068 = vsel %vm1085, %v4041, 0
        %v4071 = vsel %vm1085, %v4042, 0
        %v4074 = vsel %vm1085, %v4043, 0
        %v4077 = vsel %vm1085, %v4044, 0
        %v4080 = vsel %vm1085, %v4045, 0
        %v4083 = vsel %vm1085, %v4046, 0
        %v4086 = vsel %vm1085, %v4047, 0
        %v4089 = vsel %vm1085, %v4048, 0
        %v4092 = vsel %vm1085, %v4049, 0
        %v4095 = vsel %vm1085, %v4050, 0
        %v4098 = vsel %vm1085, %v4051, 0
        %v4101 = vsel %vm1085, %v4052, 0
        %v4104 = vsel %vm1134, %v4054, 0
        %4106 = vmatprep.subr.bf16.mxu0 0
        %4107 = vmatpush1.bf16.msra.mxu0 %v4104
        %4108 = vmatprep.subr.bf16.mxu0 0
        %4109 = vmatpush1.bf16.msra.mxu0 0
        %4110 = vmatprep.subr.bf16.mxu0 0
        %4111 = vmatpush1.bf16.msra.mxu0 0
        %4112 = vmatprep.subr.bf16.mxu0 0
        %4113 = vmatpush1.bf16.msra.mxu0 0
        %4114 = vmatprep.subr.bf16.mxu0 0
        %4115 = vmatpush1.bf16.msra.mxu0 0
        %4116 = vmatprep.subr.bf16.mxu0 0
        %4117 = vmatpush1.bf16.msra.mxu0 0
        %4118 = vmatprep.subr.bf16.mxu0 0
        %4119 = vmatpush1.bf16.msra.mxu0 0
        %4120 = vmatprep.subr.bf16.mxu0 0
        %4121 = vmatpush1.bf16.msra.mxu0 0
        %4122 = vmatprep.subr.bf16.mxu0 0
        %4123 = vmatpush1.bf16.msra.mxu0 0
        %4124 = vmatprep.subr.bf16.mxu0 0
        %4125 = vmatpush1.bf16.msra.mxu0 0
        %4126 = vmatprep.subr.bf16.mxu0 0
        %4127 = vmatpush1.bf16.msra.mxu0 0
        %4128 = vmatprep.subr.bf16.mxu0 0
        %4129 = vmatpush1.bf16.msra.mxu0 0
        %4130 = vmatprep.subr.bf16.mxu0 0
        %4131 = vmatpush1.bf16.msra.mxu0 0
        %4132 = vmatprep.subr.bf16.mxu0 0
        %4133 = vmatpush1.bf16.msra.mxu0 0
        %4134 = vmatprep.subr.bf16.mxu0 0
        %4135 = vmatpush1.bf16.msra.mxu0 0
        %4136 = vmatprep.subr.bf16.mxu0 0
        %4137 = vmatpush1.bf16.msra.mxu0 0
        %4138 = vmatprep.mubr.bf16.mxu0 0
        %4139 = vmatmul.mubr.bf16.gmra.mrb[0].mxu0 %v4056
        %v4140 = vpop.f32.mrb[0].mxu0
        %v4141 = vadd.f32 0.0, %v4140
        %v4142 = vpop.f32.mrb[0].mxu0
        %v4143 = vpop.f32.mrb[0].mxu0
        %v4144 = vadd.f32 0.0, %v4143
        %v4145 = vpop.f32.mrb[0].mxu0
        %4146 = vmatprep.mubr.bf16.mxu0 0
        %4147 = vmatmul.mubr.bf16.gmra.mrb[0].mxu0 %v4059
        %v4148 = vpop.f32.mrb[0].mxu0
        %v4149 = vadd.f32 0.0, %v4148
        %v4150 = vpop.f32.mrb[0].mxu0
        %v4151 = vpop.f32.mrb[0].mxu0
        %v4152 = vadd.f32 0.0, %v4151
        %v4153 = vpop.f32.mrb[0].mxu0
        %4154 = vmatprep.mubr.bf16.mxu0 0
        %4155 = vmatmul.mubr.bf16.gmra.mrb[0].mxu0 %v4062
        %v4156 = vpop.f32.mrb[0].mxu0
        %v4157 = vadd.f32 0.0, %v4156
        %v4158 = vpop.f32.mrb[0].mxu0
        %v4159 = vpop.f32.mrb[0].mxu0
        %v4160 = vadd.f32 0.0, %v4159
        %v4161 = vpop.f32.mrb[0].mxu0
        %4162 = vmatprep.mubr.bf16.mxu0 0
        %4163 = vmatmul.mubr.bf16.gmra.mrb[0].mxu0 %v4065
        %v4164 = vpop.f32.mrb[0].mxu0
        %v4165 = vadd.f32 0.0, %v4164
        %v4166 = vpop.f32.mrb[0].mxu0
        %v4167 = vpop.f32.mrb[0].mxu0
        %v4168 = vadd.f32 0.0, %v4167
        %v4169 = vpop.f32.mrb[0].mxu0
        %4170 = vmatprep.mubr.bf16.mxu0 0
        %4171 = vmatmul.mubr.bf16.gmra.mrb[0].mxu0 %v4068
        %v4172 = vpop.f32.mrb[0].mxu0
        %v4173 = vadd.f32 0.0, %v4172
        %v4174 = vpop.f32.mrb[0].mxu0
        %v4175 = vpop.f32.mrb[0].mxu0
        %v4176 = vadd.f32 0.0, %v4175
        %v4177 = vpop.f32.mrb[0].mxu0
        %4178 = vmatprep.mubr.bf16.mxu0 0
        %4179 = vmatmul.mubr.bf16.gmra.mrb[0].mxu0 %v4071
        %v4180 = vpop.f32.mrb[0].mxu0
        %v4181 = vadd.f32 0.0, %v4180
        %v4182 = vpop.f32.mrb[0].mxu0
        %v4183 = vpop.f32.mrb[0].mxu0
        %v4184 = vadd.f32 0.0, %v4183
        %v4185 = vpop.f32.mrb[0].mxu0
        %4186 = vmatprep.mubr.bf16.mxu0 0
        %4187 = vmatmul.mubr.bf16.gmra.mrb[0].mxu0 %v4074
        %v4188 = vpop.f32.mrb[0].mxu0
        %v4189 = vadd.f32 0.0, %v4188
        %v4190 = vpop.f32.mrb[0].mxu0
        %v4191 = vpop.f32.mrb[0].mxu0
        %v4192 = vadd.f32 0.0, %v4191
        %v4193 = vpop.f32.mrb[0].mxu0
        %4194 = vmatprep.mubr.bf16.mxu0 0
        %4195 = vmatmul.mubr.bf16.gmra.mrb[0].mxu0 %v4077
        %v4196 = vpop.f32.mrb[0].mxu0
        %v4197 = vadd.f32 0.0, %v4196
        %v4198 = vpop.f32.mrb[0].mxu0
        %v4199 = vpop.f32.mrb[0].mxu0
        %v4200 = vadd.f32 0.0, %v4199
        %v4201 = vpop.f32.mrb[0].mxu0
        %4202 = vmatprep.mubr.bf16.mxu0 0
        %4203 = vmatmul.mubr.bf16.gmra.mrb[0].mxu0 %v4080
        %v4204 = vpop.f32.mrb[0].mxu0
        %v4205 = vadd.f32 0.0, %v4204
        %v4206 = vpop.f32.mrb[0].mxu0
        %v4207 = vpop.f32.mrb[0].mxu0
        %v4208 = vadd.f32 0.0, %v4207
        %v4209 = vpop.f32.mrb[0].mxu0
        %4210 = vmatprep.mubr.bf16.mxu0 0
        %4211 = vmatmul.mubr.bf16.gmra.mrb[0].mxu0 %v4083
        %v4212 = vpop.f32.mrb[0].mxu0
        %v4213 = vadd.f32 0.0, %v4212
        %v4214 = vpop.f32.mrb[0].mxu0
        %v4215 = vpop.f32.mrb[0].mxu0
        %v4216 = vadd.f32 0.0, %v4215
        %v4217 = vpop.f32.mrb[0].mxu0
        %4218 = vmatprep.mubr.bf16.mxu0 0
        %4219 = vmatmul.mubr.bf16.gmra.mrb[0].mxu0 %v4086
        %v4220 = vpop.f32.mrb[0].mxu0
        %v4221 = vadd.f32 0.0, %v4220
        %v4222 = vpop.f32.mrb[0].mxu0
        %v4223 = vpop.f32.mrb[0].mxu0
        %v4224 = vadd.f32 0.0, %v4223
        %v4225 = vpop.f32.mrb[0].mxu0
        %4226 = vmatprep.mubr.bf16.mxu0 0
        %4227 = vmatmul.mubr.bf16.gmra.mrb[0].mxu0 %v4089
        %v4228 = vpop.f32.mrb[0].mxu0
        %v4229 = vadd.f32 0.0, %v4228
        %v4230 = vpop.f32.mrb[0].mxu0
        %v4231 = vpop.f32.mrb[0].mxu0
        %v4232 = vadd.f32 0.0, %v4231
        %v4233 = vpop.f32.mrb[0].mxu0
        %4234 = vmatprep.mubr.bf16.mxu0 0
        %4235 = vmatmul.mubr.bf16.gmra.mrb[0].mxu0 %v4092
        %v4236 = vpop.f32.mrb[0].mxu0
        %v4237 = vadd.f32 0.0, %v4236
        %v4238 = vpop.f32.mrb[0].mxu0
        %v4239 = vpop.f32.mrb[0].mxu0
        %v4240 = vadd.f32 0.0, %v4239
        %v4241 = vpop.f32.mrb[0].mxu0
        %4242 = vmatprep.mubr.bf16.mxu0 0
        %4243 = vmatmul.mubr.bf16.gmra.mrb[0].mxu0 %v4095
        %v4244 = vpop.f32.mrb[0].mxu0
        %v4245 = vadd.f32 0.0, %v4244
        %v4246 = vpop.f32.mrb[0].mxu0
        %v4247 = vpop.f32.mrb[0].mxu0
        %v4248 = vadd.f32 0.0, %v4247
        %v4249 = vpop.f32.mrb[0].mxu0
        %4250 = vmatprep.mubr.bf16.mxu0 0
        %4251 = vmatmul.mubr.bf16.gmra.mrb[0].mxu0 %v4098
        %v4252 = vpop.f32.mrb[0].mxu0
        %v4253 = vadd.f32 0.0, %v4252
        %v4254 = vpop.f32.mrb[0].mxu0
        %v4255 = vpop.f32.mrb[0].mxu0
        %v4256 = vadd.f32 0.0, %v4255
        %v4257 = vpop.f32.mrb[0].mxu0
        %4258 = vmatprep.mubr.bf16.mxu0 0
        %4259 = vmatmul.mubr.bf16.gmra.mrb[0].mxu0 %v4101
        %v4260 = vpop.f32.mrb[0].mxu0
        %v4261 = vadd.f32 0.0, %v4260
        %v4262 = vpop.f32.mrb[0].mxu0
        %v4263 = vpop.f32.mrb[0].mxu0
        %v4264 = vadd.f32 0.0, %v4263
        %v4265 = vpop.f32.mrb[0].mxu0
        %4266 = vdwg.mxu0
        %v4267 = vadd.f32 %v3909, %v4141
        %v4268 = vadd.f32 %v3910, %v4144
        %v4269 = vadd.f32 %v3911, %v4149
        %v4270 = vadd.f32 %v3912, %v4152
        %v4271 = vadd.f32 %v3913, %v4157
        %v4272 = vadd.f32 %v3914, %v4160
        %v4273 = vadd.f32 %v3915, %v4165
        %v4274 = vadd.f32 %v3916, %v4168
        %v4275 = vadd.f32 %v3917, %v4173
        %v4276 = vadd.f32 %v3918, %v4176
        %v4277 = vadd.f32 %v3919, %v4181
        %v4278 = vadd.f32 %v3920, %v4184
        %v4279 = vadd.f32 %v3921, %v4189
        %v4280 = vadd.f32 %v3922, %v4192
        %v4281 = vadd.f32 %v3923, %v4197
        %v4282 = vadd.f32 %v3924, %v4200
        %v4283 = vadd.f32 %v3925, %v4205
        %v4284 = vadd.f32 %v3926, %v4208
        %v4285 = vadd.f32 %v3927, %v4213
        %v4286 = vadd.f32 %v3928, %v4216
        %v4287 = vadd.f32 %v3929, %v4221
        %v4288 = vadd.f32 %v3930, %v4224
        %v4289 = vadd.f32 %v3931, %v4229
        %v4290 = vadd.f32 %v3932, %v4232
        %v4291 = vadd.f32 %v3933, %v4237
        %v4292 = vadd.f32 %v3934, %v4240
        %v4293 = vadd.f32 %v3935, %v4245
        %v4294 = vadd.f32 %v3936, %v4248
        %v4295 = vadd.f32 %v3937, %v4253
        %v4296 = vadd.f32 %v3938, %v4256
        %v4297 = vadd.f32 %v3939, %v4261
        %v4298 = vadd.f32 %v3940, %v4264
        %vm4299 = vmand %vm855, %vm919
        %vm4300 = vmand %vm856, %vm920
        %vm4301 = vmand %vm857, %vm921
        %vm4302 = vmand %vm858, %vm922
        %vm4303 = vmand %vm859, %vm923
        %vm4304 = vmand %vm860, %vm924
        %vm4305 = vmand %vm861, %vm925
        %vm4306 = vmand %vm862, %vm926
        %vm4307 = vmand %vm863, %vm927
        %vm4308 = vmand %vm864, %vm928
        %vm4309 = vmand %vm865, %vm929
        %vm4310 = vmand %vm866, %vm930
        %vm4311 = vmand %vm867, %vm931
        %vm4312 = vmand %vm868, %vm932
        %vm4313 = vmand %vm869, %vm933
        %vm4314 = vmand %vm870, %vm934
        %vm4315 = vmand %vm871, %vm935
        %vm4316 = vmand %vm872, %vm936
        %vm4317 = vmand %vm873, %vm937
        %vm4318 = vmand %vm874, %vm938
        %vm4319 = vmand %vm875, %vm939
        %vm4320 = vmand %vm876, %vm940
        %vm4321 = vmand %vm877, %vm941
        %vm4322 = vmand %vm878, %vm942
        %vm4323 = vmand %vm879, %vm943
        %vm4324 = vmand %vm880, %vm944
        %vm4325 = vmand %vm881, %vm945
        %vm4326 = vmand %vm882, %vm946
        %vm4327 = vmand %vm883, %vm947
        %vm4328 = vmand %vm884, %vm948
        %vm4329 = vmand %vm885, %vm949
        %vm4330 = vmand %vm886, %vm950
        %v4331 = vsel %vm4299, 1, 0
        %v4332 = vsel %vm4300, 1, 0
        %v4333 = vsel %vm4301, 1, 0
        %v4334 = vsel %vm4302, 1, 0
        %v4335 = vsel %vm4303, 1, 0
        %v4336 = vsel %vm4304, 1, 0
        %v4337 = vsel %vm4305, 1, 0
        %v4338 = vsel %vm4306, 1, 0
        %v4339 = vsel %vm4307, 1, 0
        %v4340 = vsel %vm4308, 1, 0
        %v4341 = vsel %vm4309, 1, 0
        %v4342 = vsel %vm4310, 1, 0
        %v4343 = vsel %vm4311, 1, 0
        %v4344 = vsel %vm4312, 1, 0
        %v4345 = vsel %vm4313, 1, 0
        %v4346 = vsel %vm4314, 1, 0
        %v4347 = vsel %vm4315, 1, 0
        %v4348 = vsel %vm4316, 1, 0
        %v4349 = vsel %vm4317, 1, 0
        %v4350 = vsel %vm4318, 1, 0
        %v4351 = vsel %vm4319, 1, 0
        %v4352 = vsel %vm4320, 1, 0
        %v4353 = vsel %vm4321, 1, 0
        %v4354 = vsel %vm4322, 1, 0
        %v4355 = vsel %vm4323, 1, 0
        %v4356 = vsel %vm4324, 1, 0
        %v4357 = vsel %vm4325, 1, 0
        %v4358 = vsel %vm4326, 1, 0
        %v4359 = vsel %vm4327, 1, 0
        %v4360 = vsel %vm4328, 1, 0
        %v4361 = vsel %vm4329, 1, 0
        %v4362 = vsel %vm4330, 1, 0
        %vm4363 = vcmp.eq.s32.totalorder %v4331, 1
        %vm4364 = vcmp.eq.s32.totalorder %v4332, 1
        %vm4365 = vcmp.eq.s32.totalorder %v4333, 1
        %vm4366 = vcmp.eq.s32.totalorder %v4334, 1
        %vm4367 = vcmp.eq.s32.totalorder %v4335, 1
        %vm4368 = vcmp.eq.s32.totalorder %v4336, 1
        %vm4369 = vcmp.eq.s32.totalorder %v4337, 1
        %vm4370 = vcmp.eq.s32.totalorder %v4338, 1
        %vm4371 = vcmp.eq.s32.totalorder %v4339, 1
        %vm4372 = vcmp.eq.s32.totalorder %v4340, 1
        %vm4373 = vcmp.eq.s32.totalorder %v4341, 1
        %vm4374 = vcmp.eq.s32.totalorder %v4342, 1
        %vm4375 = vcmp.eq.s32.totalorder %v4343, 1
        %vm4376 = vcmp.eq.s32.totalorder %v4344, 1
        %vm4377 = vcmp.eq.s32.totalorder %v4345, 1
        %vm4378 = vcmp.eq.s32.totalorder %v4346, 1
        %vm4379 = vcmp.eq.s32.totalorder %v4347, 1
        %vm4380 = vcmp.eq.s32.totalorder %v4348, 1
        %vm4381 = vcmp.eq.s32.totalorder %v4349, 1
        %vm4382 = vcmp.eq.s32.totalorder %v4350, 1
        %vm4383 = vcmp.eq.s32.totalorder %v4351, 1
        %vm4384 = vcmp.eq.s32.totalorder %v4352, 1
        %vm4385 = vcmp.eq.s32.totalorder %v4353, 1
        %vm4386 = vcmp.eq.s32.totalorder %v4354, 1
        %vm4387 = vcmp.eq.s32.totalorder %v4355, 1
        %vm4388 = vcmp.eq.s32.totalorder %v4356, 1
        %vm4389 = vcmp.eq.s32.totalorder %v4357, 1
        %vm4390 = vcmp.eq.s32.totalorder %v4358, 1
        %vm4391 = vcmp.eq.s32.totalorder %v4359, 1
        %vm4392 = vcmp.eq.s32.totalorder %v4360, 1
        %vm4393 = vcmp.eq.s32.totalorder %v4361, 1
        %vm4394 = vcmp.eq.s32.totalorder %v4362, 1
        %v4395 = vsel %vm4363, %v2179, 0.0
        %v4396 = vsel %vm4364, %v2178, 0.0
        %v4397 = vsel %vm4365, %v2177, 0.0
        %v4398 = vsel %vm4366, %v2176, 0.0
        %v4399 = vsel %vm4367, %v2175, 0.0
        %v4400 = vsel %vm4368, %v2174, 0.0
        %v4401 = vsel %vm4369, %v2173, 0.0
        %v4402 = vsel %vm4370, %v2172, 0.0
        %v4403 = vsel %vm4371, %v2171, 0.0
        %v4404 = vsel %vm4372, %v2170, 0.0
        %v4405 = vsel %vm4373, %v2169, 0.0
        %v4406 = vsel %vm4374, %v2168, 0.0
        %v4407 = vsel %vm4375, %v2167, 0.0
        %v4408 = vsel %vm4376, %v2166, 0.0
        %v4409 = vsel %vm4377, %v2165, 0.0
        %v4410 = vsel %vm4378, %v2164, 0.0
        %v4411 = vsel %vm4379, %v2163, 0.0
        %v4412 = vsel %vm4380, %v2162, 0.0
        %v4413 = vsel %vm4381, %v2161, 0.0
        %v4414 = vsel %vm4382, %v2160, 0.0
        %v4415 = vsel %vm4383, %v2159, 0.0
        %v4416 = vsel %vm4384, %v2158, 0.0
        %v4417 = vsel %vm4385, %v2157, 0.0
        %v4418 = vsel %vm4386, %v2156, 0.0
        %v4419 = vsel %vm4387, %v2155, 0.0
        %v4420 = vsel %vm4388, %v2154, 0.0
        %v4421 = vsel %vm4389, %v2153, 0.0
        %v4422 = vsel %vm4390, %v2152, 0.0
        %v4423 = vsel %vm4391, %v2151, 0.0
        %v4424 = vsel %vm4392, %v2182, 0.0
        %v4425 = vsel %vm4393, %v2181, 0.0
        %v4426 = vsel %vm4394, %v2180, 0.0
        %v4427 = vpack.c.bf16 %v4396, %v4395
        %v4428 = vpack.c.bf16 %v4398, %v4397
        %v4429 = vpack.c.bf16 %v4400, %v4399
        %v4430 = vpack.c.bf16 %v4402, %v4401
        %v4431 = vpack.c.bf16 %v4404, %v4403
        %v4432 = vpack.c.bf16 %v4406, %v4405
        %v4433 = vpack.c.bf16 %v4408, %v4407
        %v4434 = vpack.c.bf16 %v4410, %v4409
        %v4435 = vpack.c.bf16 %v4412, %v4411
        %v4436 = vpack.c.bf16 %v4414, %v4413
        %v4437 = vpack.c.bf16 %v4416, %v4415
        %v4438 = vpack.c.bf16 %v4418, %v4417
        %v4439 = vpack.c.bf16 %v4420, %v4419
        %v4440 = vpack.c.bf16 %v4422, %v4421
        %v4441 = vpack.c.bf16 %v4424, %v4423
        %v4442 = vpack.c.bf16 %v4426, %v4425
        %s4443 = scalar_lea.vmem %s3, 16
        %v4444 = vld [vmem:[%s4443] sm:$0x3]
        %v4446 = vsel %vm1085, %v4427, 0
        %v4449 = vsel %vm1085, %v4428, 0
        %v4452 = vsel %vm1085, %v4429, 0
        %v4455 = vsel %vm1085, %v4430, 0
        %v4458 = vsel %vm1085, %v4431, 0
        %v4461 = vsel %vm1085, %v4432, 0
        %v4464 = vsel %vm1085, %v4433, 0
        %v4467 = vsel %vm1085, %v4434, 0
        %v4470 = vsel %vm1085, %v4435, 0
        %v4473 = vsel %vm1085, %v4436, 0
        %v4476 = vsel %vm1085, %v4437, 0
        %v4479 = vsel %vm1085, %v4438, 0
        %v4482 = vsel %vm1085, %v4439, 0
        %v4485 = vsel %vm1085, %v4440, 0
        %v4488 = vsel %vm1085, %v4441, 0
        %v4491 = vsel %vm1085, %v4442, 0
        %v4494 = vsel %vm1134, %v4444, 0
        %4496 = vmatprep.subr.bf16.mxu0 0
        %4497 = vmatpush1.bf16.msra.mxu0 %v4494
        %4498 = vmatprep.subr.bf16.mxu0 0
        %4499 = vmatpush1.bf16.msra.mxu0 0
        %4500 = vmatprep.subr.bf16.mxu0 0
        %4501 = vmatpush1.bf16.msra.mxu0 0
        %4502 = vmatprep.subr.bf16.mxu0 0
        %4503 = vmatpush1.bf16.msra.mxu0 0
        %4504 = vmatprep.subr.bf16.mxu0 0
        %4505 = vmatpush1.bf16.msra.mxu0 0
        %4506 = vmatprep.subr.bf16.mxu0 0
        %4507 = vmatpush1.bf16.msra.mxu0 0
        %4508 = vmatprep.subr.bf16.mxu0 0
        %4509 = vmatpush1.bf16.msra.mxu0 0
        %4510 = vmatprep.subr.bf16.mxu0 0
        %4511 = vmatpush1.bf16.msra.mxu0 0
        %4512 = vmatprep.subr.bf16.mxu0 0
        %4513 = vmatpush1.bf16.msra.mxu0 0
        %4514 = vmatprep.subr.bf16.mxu0 0
        %4515 = vmatpush1.bf16.msra.mxu0 0
        %4516 = vmatprep.subr.bf16.mxu0 0
        %4517 = vmatpush1.bf16.msra.mxu0 0
        %4518 = vmatprep.subr.bf16.mxu0 0
        %4519 = vmatpush1.bf16.msra.mxu0 0
        %4520 = vmatprep.subr.bf16.mxu0 0
        %4521 = vmatpush1.bf16.msra.mxu0 0
        %4522 = vmatprep.subr.bf16.mxu0 0
        %4523 = vmatpush1.bf16.msra.mxu0 0
        %4524 = vmatprep.subr.bf16.mxu0 0
        %4525 = vmatpush1.bf16.msra.mxu0 0
        %4526 = vmatprep.subr.bf16.mxu0 0
        %4527 = vmatpush1.bf16.msra.mxu0 0
        %4528 = vmatprep.mubr.bf16.mxu0 0
        %4529 = vmatmul.mubr.bf16.gmra.mrb[0].mxu0 %v4446
        %v4530 = vpop.f32.mrb[0].mxu0
        %v4531 = vadd.f32 0.0, %v4530
        %v4532 = vpop.f32.mrb[0].mxu0
        %v4533 = vpop.f32.mrb[0].mxu0
        %v4534 = vadd.f32 0.0, %v4533
        %v4535 = vpop.f32.mrb[0].mxu0
        %4536 = vmatprep.mubr.bf16.mxu0 0
        %4537 = vmatmul.mubr.bf16.gmra.mrb[0].mxu0 %v4449
        %v4538 = vpop.f32.mrb[0].mxu0
        %v4539 = vadd.f32 0.0, %v4538
        %v4540 = vpop.f32.mrb[0].mxu0
        %v4541 = vpop.f32.mrb[0].mxu0
        %v4542 = vadd.f32 0.0, %v4541
        %v4543 = vpop.f32.mrb[0].mxu0
        %4544 = vmatprep.mubr.bf16.mxu0 0
        %4545 = vmatmul.mubr.bf16.gmra.mrb[0].mxu0 %v4452
        %v4546 = vpop.f32.mrb[0].mxu0
        %v4547 = vadd.f32 0.0, %v4546
        %v4548 = vpop.f32.mrb[0].mxu0
        %v4549 = vpop.f32.mrb[0].mxu0
        %v4550 = vadd.f32 0.0, %v4549
        %v4551 = vpop.f32.mrb[0].mxu0
        %4552 = vmatprep.mubr.bf16.mxu0 0
        %4553 = vmatmul.mubr.bf16.gmra.mrb[0].mxu0 %v4455
        %v4554 = vpop.f32.mrb[0].mxu0
        %v4555 = vadd.f32 0.0, %v4554
        %v4556 = vpop.f32.mrb[0].mxu0
        %v4557 = vpop.f32.mrb[0].mxu0
        %v4558 = vadd.f32 0.0, %v4557
        %v4559 = vpop.f32.mrb[0].mxu0
        %4560 = vmatprep.mubr.bf16.mxu0 0
        %4561 = vmatmul.mubr.bf16.gmra.mrb[0].mxu0 %v4458
        %v4562 = vpop.f32.mrb[0].mxu0
        %v4563 = vadd.f32 0.0, %v4562
        %v4564 = vpop.f32.mrb[0].mxu0
        %v4565 = vpop.f32.mrb[0].mxu0
        %v4566 = vadd.f32 0.0, %v4565
        %v4567 = vpop.f32.mrb[0].mxu0
        %4568 = vmatprep.mubr.bf16.mxu0 0
        %4569 = vmatmul.mubr.bf16.gmra.mrb[0].mxu0 %v4461
        %v4570 = vpop.f32.mrb[0].mxu0
        %v4571 = vadd.f32 0.0, %v4570
        %v4572 = vpop.f32.mrb[0].mxu0
        %v4573 = vpop.f32.mrb[0].mxu0
        %v4574 = vadd.f32 0.0, %v4573
        %v4575 = vpop.f32.mrb[0].mxu0
        %4576 = vmatprep.mubr.bf16.mxu0 0
        %4577 = vmatmul.mubr.bf16.gmra.mrb[0].mxu0 %v4464
        %v4578 = vpop.f32.mrb[0].mxu0
        %v4579 = vadd.f32 0.0, %v4578
        %v4580 = vpop.f32.mrb[0].mxu0
        %v4581 = vpop.f32.mrb[0].mxu0
        %v4582 = vadd.f32 0.0, %v4581
        %v4583 = vpop.f32.mrb[0].mxu0
        %4584 = vmatprep.mubr.bf16.mxu0 0
        %4585 = vmatmul.mubr.bf16.gmra.mrb[0].mxu0 %v4467
        %v4586 = vpop.f32.mrb[0].mxu0
        %v4587 = vadd.f32 0.0, %v4586
        %v4588 = vpop.f32.mrb[0].mxu0
        %v4589 = vpop.f32.mrb[0].mxu0
        %v4590 = vadd.f32 0.0, %v4589
        %v4591 = vpop.f32.mrb[0].mxu0
        %4592 = vmatprep.mubr.bf16.mxu0 0
        %4593 = vmatmul.mubr.bf16.gmra.mrb[0].mxu0 %v4470
        %v4594 = vpop.f32.mrb[0].mxu0
        %v4595 = vadd.f32 0.0, %v4594
        %v4596 = vpop.f32.mrb[0].mxu0
        %v4597 = vpop.f32.mrb[0].mxu0
        %v4598 = vadd.f32 0.0, %v4597
        %v4599 = vpop.f32.mrb[0].mxu0
        %4600 = vmatprep.mubr.bf16.mxu0 0
        %4601 = vmatmul.mubr.bf16.gmra.mrb[0].mxu0 %v4473
        %v4602 = vpop.f32.mrb[0].mxu0
        %v4603 = vadd.f32 0.0, %v4602
        %v4604 = vpop.f32.mrb[0].mxu0
        %v4605 = vpop.f32.mrb[0].mxu0
        %v4606 = vadd.f32 0.0, %v4605
        %v4607 = vpop.f32.mrb[0].mxu0
        %4608 = vmatprep.mubr.bf16.mxu0 0
        %4609 = vmatmul.mubr.bf16.gmra.mrb[0].mxu0 %v4476
        %v4610 = vpop.f32.mrb[0].mxu0
        %v4611 = vadd.f32 0.0, %v4610
        %v4612 = vpop.f32.mrb[0].mxu0
        %v4613 = vpop.f32.mrb[0].mxu0
        %v4614 = vadd.f32 0.0, %v4613
        %v4615 = vpop.f32.mrb[0].mxu0
        %4616 = vmatprep.mubr.bf16.mxu0 0
        %4617 = vmatmul.mubr.bf16.gmra.mrb[0].mxu0 %v4479
        %v4618 = vpop.f32.mrb[0].mxu0
        %v4619 = vadd.f32 0.0, %v4618
        %v4620 = vpop.f32.mrb[0].mxu0
        %v4621 = vpop.f32.mrb[0].mxu0
        %v4622 = vadd.f32 0.0, %v4621
        %v4623 = vpop.f32.mrb[0].mxu0
        %4624 = vmatprep.mubr.bf16.mxu0 0
        %4625 = vmatmul.mubr.bf16.gmra.mrb[0].mxu0 %v4482
        %v4626 = vpop.f32.mrb[0].mxu0
        %v4627 = vadd.f32 0.0, %v4626
        %v4628 = vpop.f32.mrb[0].mxu0
        %v4629 = vpop.f32.mrb[0].mxu0
        %v4630 = vadd.f32 0.0, %v4629
        %v4631 = vpop.f32.mrb[0].mxu0
        %4632 = vmatprep.mubr.bf16.mxu0 0
        %4633 = vmatmul.mubr.bf16.gmra.mrb[0].mxu0 %v4485
        %v4634 = vpop.f32.mrb[0].mxu0
        %v4635 = vadd.f32 0.0, %v4634
        %v4636 = vpop.f32.mrb[0].mxu0
        %v4637 = vpop.f32.mrb[0].mxu0
        %v4638 = vadd.f32 0.0, %v4637
        %v4639 = vpop.f32.mrb[0].mxu0
        %4640 = vmatprep.mubr.bf16.mxu0 0
        %4641 = vmatmul.mubr.bf16.gmra.mrb[0].mxu0 %v4488
        %v4642 = vpop.f32.mrb[0].mxu0
        %v4643 = vadd.f32 0.0, %v4642
        %v4644 = vpop.f32.mrb[0].mxu0
        %v4645 = vpop.f32.mrb[0].mxu0
        %v4646 = vadd.f32 0.0, %v4645
        %v4647 = vpop.f32.mrb[0].mxu0
        %4648 = vmatprep.mubr.bf16.mxu0 0
        %4649 = vmatmul.mubr.bf16.gmra.mrb[0].mxu0 %v4491
        %v4650 = vpop.f32.mrb[0].mxu0
        %v4651 = vadd.f32 0.0, %v4650
        %v4652 = vpop.f32.mrb[0].mxu0
        %v4653 = vpop.f32.mrb[0].mxu0
        %v4654 = vadd.f32 0.0, %v4653
        %v4655 = vpop.f32.mrb[0].mxu0
        %4656 = vdwg.mxu0
        %v4657 = vadd.f32 %v4267, %v4531
        %v4658 = vadd.f32 %v4268, %v4534
        %v4659 = vadd.f32 %v4269, %v4539
        %v4660 = vadd.f32 %v4270, %v4542
        %v4661 = vadd.f32 %v4271, %v4547
        %v4662 = vadd.f32 %v4272, %v4550
        %v4663 = vadd.f32 %v4273, %v4555
        %v4664 = vadd.f32 %v4274, %v4558
        %v4665 = vadd.f32 %v4275, %v4563
        %v4666 = vadd.f32 %v4276, %v4566
        %v4667 = vadd.f32 %v4277, %v4571
        %v4668 = vadd.f32 %v4278, %v4574
        %v4669 = vadd.f32 %v4279, %v4579
        %v4670 = vadd.f32 %v4280, %v4582
        %v4671 = vadd.f32 %v4281, %v4587
        %v4672 = vadd.f32 %v4282, %v4590
        %v4673 = vadd.f32 %v4283, %v4595
        %v4674 = vadd.f32 %v4284, %v4598
        %v4675 = vadd.f32 %v4285, %v4603
        %v4676 = vadd.f32 %v4286, %v4606
        %v4677 = vadd.f32 %v4287, %v4611
        %v4678 = vadd.f32 %v4288, %v4614
        %v4679 = vadd.f32 %v4289, %v4619
        %v4680 = vadd.f32 %v4290, %v4622
        %v4681 = vadd.f32 %v4291, %v4627
        %v4682 = vadd.f32 %v4292, %v4630
        %v4683 = vadd.f32 %v4293, %v4635
        %v4684 = vadd.f32 %v4294, %v4638
        %v4685 = vadd.f32 %v4295, %v4643
        %v4686 = vadd.f32 %v4296, %v4646
        %v4687 = vadd.f32 %v4297, %v4651
        %v4688 = vadd.f32 %v4298, %v4654
        %v4689 = vld [vmem:[%s5] sm:$0x1]
        %v4691 = vlaneseq
        %v4692 = vshrl.u32 %v4691, 7
        %v4693 = vsub.s32 0, %v4692
        %v4694 = vrot.slane %v4689, %v4693
        %v4696 = vmul.f32 %v4657, %v4694
        %v4697 = vmul.f32 %v4658, %v4694
        %v4698 = vmul.f32 %v4659, %v4694
        %v4699 = vmul.f32 %v4660, %v4694
        %v4700 = vmul.f32 %v4661, %v4694
        %v4701 = vmul.f32 %v4662, %v4694
        %v4702 = vmul.f32 %v4663, %v4694
        %v4703 = vmul.f32 %v4664, %v4694
        %v4704 = vmul.f32 %v4665, %v4694
        %v4705 = vmul.f32 %v4666, %v4694
        %v4706 = vmul.f32 %v4667, %v4694
        %v4707 = vmul.f32 %v4668, %v4694
        %v4708 = vmul.f32 %v4669, %v4694
        %v4709 = vmul.f32 %v4670, %v4694
        %v4710 = vmul.f32 %v4671, %v4694
        %v4711 = vmul.f32 %v4672, %v4694
        %v4712 = vmul.f32 %v4673, %v4694
        %v4713 = vmul.f32 %v4674, %v4694
        %v4714 = vmul.f32 %v4675, %v4694
        %v4715 = vmul.f32 %v4676, %v4694
        %v4716 = vmul.f32 %v4677, %v4694
        %v4717 = vmul.f32 %v4678, %v4694
        %v4718 = vmul.f32 %v4679, %v4694
        %v4719 = vmul.f32 %v4680, %v4694
        %v4720 = vmul.f32 %v4681, %v4694
        %v4721 = vmul.f32 %v4682, %v4694
        %v4722 = vmul.f32 %v4683, %v4694
        %v4723 = vmul.f32 %v4684, %v4694
        %v4724 = vmul.f32 %v4685, %v4694
        %v4725 = vmul.f32 %v4686, %v4694
        %v4726 = vmul.f32 %v4687, %v4694
        %v4727 = vmul.f32 %v4688, %v4694
        %v4728 = vld [vmem:[%s6] sm:$0x1]
        %v4730 = vlaneseq
        %v4731 = vshrl.u32 %v4730, 7
        %v4732 = vsub.s32 0, %v4731
        %v4733 = vrot.slane %v4728, %v4732
        %v4735 = vadd.f32 %v4696, %v4733
        %v4736 = vadd.f32 %v4697, %v4733
        %v4737 = vadd.f32 %v4698, %v4733
        %v4738 = vadd.f32 %v4699, %v4733
        %v4739 = vadd.f32 %v4700, %v4733
        %v4740 = vadd.f32 %v4701, %v4733
        %v4741 = vadd.f32 %v4702, %v4733
        %v4742 = vadd.f32 %v4703, %v4733
        %v4743 = vadd.f32 %v4704, %v4733
        %v4744 = vadd.f32 %v4705, %v4733
        %v4745 = vadd.f32 %v4706, %v4733
        %v4746 = vadd.f32 %v4707, %v4733
        %v4747 = vadd.f32 %v4708, %v4733
        %v4748 = vadd.f32 %v4709, %v4733
        %v4749 = vadd.f32 %v4710, %v4733
        %v4750 = vadd.f32 %v4711, %v4733
        %v4751 = vadd.f32 %v4712, %v4733
        %v4752 = vadd.f32 %v4713, %v4733
        %v4753 = vadd.f32 %v4714, %v4733
        %v4754 = vadd.f32 %v4715, %v4733
        %v4755 = vadd.f32 %v4716, %v4733
        %v4756 = vadd.f32 %v4717, %v4733
        %v4757 = vadd.f32 %v4718, %v4733
        %v4758 = vadd.f32 %v4719, %v4733
        %v4759 = vadd.f32 %v4720, %v4733
        %v4760 = vadd.f32 %v4721, %v4733
        %v4761 = vadd.f32 %v4722, %v4733
        %v4762 = vadd.f32 %v4723, %v4733
        %v4763 = vadd.f32 %v4724, %v4733
        %v4764 = vadd.f32 %v4725, %v4733
        %v4765 = vadd.f32 %v4726, %v4733
        %v4766 = vadd.f32 %v4727, %v4733
        %v4767 = vmax.f32 %v4735, 0.0
        %v4768 = vmax.f32 %v4736, 0.0
        %v4769 = vmax.f32 %v4737, 0.0
        %v4770 = vmax.f32 %v4738, 0.0
        %v4771 = vmax.f32 %v4739, 0.0
        %v4772 = vmax.f32 %v4740, 0.0
        %v4773 = vmax.f32 %v4741, 0.0
        %v4774 = vmax.f32 %v4742, 0.0
        %v4775 = vmax.f32 %v4743, 0.0
        %v4776 = vmax.f32 %v4744, 0.0
        %v4777 = vmax.f32 %v4745, 0.0
        %v4778 = vmax.f32 %v4746, 0.0
        %v4779 = vmax.f32 %v4747, 0.0
        %v4780 = vmax.f32 %v4748, 0.0
        %v4781 = vmax.f32 %v4749, 0.0
        %v4782 = vmax.f32 %v4750, 0.0
        %v4783 = vmax.f32 %v4751, 0.0
        %v4784 = vmax.f32 %v4752, 0.0
        %v4785 = vmax.f32 %v4753, 0.0
        %v4786 = vmax.f32 %v4754, 0.0
        %v4787 = vmax.f32 %v4755, 0.0
        %v4788 = vmax.f32 %v4756, 0.0
        %v4789 = vmax.f32 %v4757, 0.0
        %v4790 = vmax.f32 %v4758, 0.0
        %v4791 = vmax.f32 %v4759, 0.0
        %v4792 = vmax.f32 %v4760, 0.0
        %v4793 = vmax.f32 %v4761, 0.0
        %v4794 = vmax.f32 %v4762, 0.0
        %v4795 = vmax.f32 %v4763, 0.0
        %v4796 = vmax.f32 %v4764, 0.0
        %v4797 = vmax.f32 %v4765, 0.0
        %v4798 = vmax.f32 %v4766, 0.0
        %v4799 = vrot.slane %v4767, 7
        %v4800 = vrot.slane %v4768, 7
        %v4801 = vrot.slane %v4769, 7
        %v4802 = vrot.slane %v4770, 7
        %v4803 = vrot.slane %v4771, 7
        %v4804 = vrot.slane %v4772, 7
        %v4805 = vrot.slane %v4773, 7
        %v4806 = vrot.slane %v4774, 7
        %v4807 = vrot.slane %v4775, 7
        %v4808 = vrot.slane %v4776, 7
        %v4809 = vrot.slane %v4777, 7
        %v4810 = vrot.slane %v4778, 7
        %v4811 = vrot.slane %v4779, 7
        %v4812 = vrot.slane %v4780, 7
        %v4813 = vrot.slane %v4781, 7
        %v4814 = vrot.slane %v4782, 7
        %v4815 = vrot.slane %v4783, 7
        %v4816 = vrot.slane %v4784, 7
        %v4817 = vrot.slane %v4785, 7
        %v4818 = vrot.slane %v4786, 7
        %v4819 = vrot.slane %v4787, 7
        %v4820 = vrot.slane %v4788, 7
        %v4821 = vrot.slane %v4789, 7
        %v4822 = vrot.slane %v4790, 7
        %v4823 = vrot.slane %v4791, 7
        %v4824 = vrot.slane %v4792, 7
        %v4825 = vrot.slane %v4793, 7
        %v4826 = vrot.slane %v4794, 7
        %v4827 = vrot.slane %v4795, 7
        %v4828 = vrot.slane %v4796, 7
        %v4829 = vrot.slane %v4797, 7
        %v4830 = vrot.slane %v4798, 7
        %v4831 = vsel %vm1332, %v4829, %v4830
        %v4832 = vsel %vm1332, %v4828, %v4829
        %v4833 = vsel %vm1332, %v4827, %v4828
        %v4834 = vsel %vm1332, %v4826, %v4827
        %v4835 = vsel %vm1332, %v4825, %v4826
        %v4836 = vsel %vm1332, %v4824, %v4825
        %v4837 = vsel %vm1332, %v4823, %v4824
        %v4838 = vsel %vm1332, %v4822, %v4823
        %v4839 = vsel %vm1332, %v4821, %v4822
        %v4840 = vsel %vm1332, %v4820, %v4821
        %v4841 = vsel %vm1332, %v4819, %v4820
        %v4842 = vsel %vm1332, %v4818, %v4819
        %v4843 = vsel %vm1332, %v4817, %v4818
        %v4844 = vsel %vm1332, %v4816, %v4817
        %v4845 = vsel %vm1332, %v4815, %v4816
        %v4846 = vsel %vm1332, %v4814, %v4815
        %v4847 = vsel %vm1332, %v4813, %v4814
        %v4848 = vsel %vm1332, %v4812, %v4813
        %v4849 = vsel %vm1332, %v4811, %v4812
        %v4850 = vsel %vm1332, %v4810, %v4811
        %v4851 = vsel %vm1332, %v4809, %v4810
        %v4852 = vsel %vm1332, %v4808, %v4809
        %v4853 = vsel %vm1332, %v4807, %v4808
        %v4854 = vsel %vm1332, %v4806, %v4807
        %v4855 = vsel %vm1332, %v4805, %v4806
        %v4856 = vsel %vm1332, %v4804, %v4805
        %v4857 = vsel %vm1332, %v4803, %v4804
        %v4858 = vsel %vm1332, %v4802, %v4803
        %v4859 = vsel %vm1332, %v4801, %v4802
        %v4860 = vsel %vm1332, %v4800, %v4801
        %v4861 = vsel %vm1332, %v4799, %v4800
        %v4862 = vsel %vm1332, %v4830, %v4799
        %v4863 = vsel %vm1429, %v4832, 0.0
        %v4864 = vsel %vm1430, %v4831, 0.0
        %v4865 = vsel %vm1431, %v4862, 0.0
        %v4866 = vsel %vm1432, %v4861, 0.0
        %v4867 = vsel %vm1433, %v4860, 0.0
        %v4868 = vsel %vm1434, %v4859, 0.0
        %v4869 = vsel %vm1435, %v4858, 0.0
        %v4870 = vsel %vm1436, %v4857, 0.0
        %v4871 = vsel %vm1437, %v4856, 0.0
        %v4872 = vsel %vm1438, %v4855, 0.0
        %v4873 = vsel %vm1439, %v4854, 0.0
        %v4874 = vsel %vm1440, %v4853, 0.0
        %v4875 = vsel %vm1441, %v4852, 0.0
        %v4876 = vsel %vm1442, %v4851, 0.0
        %v4877 = vsel %vm1443, %v4850, 0.0
        %v4878 = vsel %vm1444, %v4849, 0.0
        %v4879 = vsel %vm1445, %v4848, 0.0
        %v4880 = vsel %vm1446, %v4847, 0.0
        %v4881 = vsel %vm1447, %v4846, 0.0
        %v4882 = vsel %vm1448, %v4845, 0.0
        %v4883 = vsel %vm1449, %v4844, 0.0
        %v4884 = vsel %vm1450, %v4843, 0.0
        %v4885 = vsel %vm1451, %v4842, 0.0
        %v4886 = vsel %vm1452, %v4841, 0.0
        %v4887 = vsel %vm1453, %v4840, 0.0
        %v4888 = vsel %vm1454, %v4839, 0.0
        %v4889 = vsel %vm1455, %v4838, 0.0
        %v4890 = vsel %vm1456, %v4837, 0.0
        %v4891 = vsel %vm1457, %v4836, 0.0
        %v4892 = vsel %vm1458, %v4835, 0.0
        %v4893 = vsel %vm1459, %v4834, 0.0
        %v4894 = vsel %vm1460, %v4833, 0.0
        %v4895 = vpack.c.bf16 %v4864, %v4863
        %v4896 = vpack.c.bf16 %v4866, %v4865
        %v4897 = vpack.c.bf16 %v4868, %v4867
        %v4898 = vpack.c.bf16 %v4870, %v4869
        %v4899 = vpack.c.bf16 %v4872, %v4871
        %v4900 = vpack.c.bf16 %v4874, %v4873
        %v4901 = vpack.c.bf16 %v4876, %v4875
        %v4902 = vpack.c.bf16 %v4878, %v4877
        %v4903 = vpack.c.bf16 %v4880, %v4879
        %v4904 = vpack.c.bf16 %v4882, %v4881
        %v4905 = vpack.c.bf16 %v4884, %v4883
        %v4906 = vpack.c.bf16 %v4886, %v4885
        %v4907 = vpack.c.bf16 %v4888, %v4887
        %v4908 = vpack.c.bf16 %v4890, %v4889
        %v4909 = vpack.c.bf16 %v4892, %v4891
        %v4910 = vpack.c.bf16 %v4894, %v4893
        %v4911 = vld [vmem:[#allocation2] sm:$0xf]
        %v4912 = vld [vmem:[#allocation2 + $0x4] sm:$0xf]
        %v4913 = vld [vmem:[#allocation2 + $0x8] sm:$0xf]
        %v4914 = vld [vmem:[#allocation2 + $0xc] sm:$0xf]
        %v4915 = vld [vmem:[#allocation2 + $0x10] sm:$0xf]
        %v4916 = vld [vmem:[#allocation2 + $0x14] sm:$0xf]
        %v4917 = vld [vmem:[#allocation2 + $0x18] sm:$0xf]
        %v4918 = vld [vmem:[#allocation2 + $0x1c] sm:$0xf]
        %v4919 = vld [vmem:[#allocation2 + $0x20] sm:$0xf]
        %v4920 = vld [vmem:[#allocation2 + $0x24] sm:$0xf]
        %v4921 = vld [vmem:[#allocation2 + $0x28] sm:$0xf]
        %v4922 = vld [vmem:[#allocation2 + $0x2c] sm:$0xf]
        %v4923 = vld [vmem:[#allocation2 + $0x30] sm:$0xf]
        %v4924 = vld [vmem:[#allocation2 + $0x34] sm:$0xf]
        %v4925 = vld [vmem:[#allocation2 + $0x38] sm:$0xf]
        %v4926 = vld [vmem:[#allocation2 + $0x3c] sm:$0xf]
        %v4943 = vunpack.c.l.b16 %v4911
        %v4944 = vunpack.c.l.b16 %v4912
        %v4945 = vunpack.c.l.b16 %v4913
        %v4946 = vunpack.c.l.b16 %v4914
        %v4947 = vunpack.c.l.b16 %v4915
        %v4948 = vunpack.c.l.b16 %v4916
        %v4949 = vunpack.c.l.b16 %v4917
        %v4950 = vunpack.c.l.b16 %v4918
        %v4951 = vunpack.c.l.b16 %v4919
        %v4952 = vunpack.c.l.b16 %v4920
        %v4953 = vunpack.c.l.b16 %v4921
        %v4954 = vunpack.c.l.b16 %v4922
        %v4955 = vunpack.c.l.b16 %v4923
        %v4956 = vunpack.c.l.b16 %v4924
        %v4957 = vunpack.c.l.b16 %v4925
        %v4958 = vunpack.c.l.b16 %v4926
        %v4959 = vpack.c.b16 %v4944, %v4943
        %v4960 = vpack.c.b16 %v4946, %v4945
        %v4961 = vpack.c.b16 %v4948, %v4947
        %v4962 = vpack.c.b16 %v4950, %v4949
        %v4963 = vpack.c.b16 %v4952, %v4951
        %v4964 = vpack.c.b16 %v4954, %v4953
        %v4965 = vpack.c.b16 %v4956, %v4955
        %v4966 = vpack.c.b16 %v4958, %v4957
        %4975 = vmatprep.subr.bf16.mxu0 0
        %4976 = vmatpush1.bf16.msra.mxu0 %v4959
        %4977 = vmatprep.subr.bf16.mxu0 0
        %4978 = vmatpush1.bf16.msra.mxu0 %v4960
        %4979 = vmatprep.subr.bf16.mxu0 0
        %4980 = vmatpush1.bf16.msra.mxu0 %v4961
        %4981 = vmatprep.subr.bf16.mxu0 0
        %4982 = vmatpush1.bf16.msra.mxu0 %v4962
        %4983 = vmatprep.subr.bf16.mxu0 0
        %4984 = vmatpush1.bf16.msra.mxu0 %v4963
        %4985 = vmatprep.subr.bf16.mxu0 0
        %4986 = vmatpush1.bf16.msra.mxu0 %v4964
        %4987 = vmatprep.subr.bf16.mxu0 0
        %4988 = vmatpush1.bf16.msra.mxu0 %v4965
        %4989 = vmatprep.subr.bf16.mxu0 0
        %4990 = vmatpush1.bf16.msra.mxu0 %v4966
        %4991 = vmatprep.subr.bf16.mxu0 0
        %4992 = vmatpush1.bf16.msra.mxu0 0
        %4993 = vmatprep.subr.bf16.mxu0 0
        %4994 = vmatpush1.bf16.msra.mxu0 0
        %4995 = vmatprep.subr.bf16.mxu0 0
        %4996 = vmatpush1.bf16.msra.mxu0 0
        %4997 = vmatprep.subr.bf16.mxu0 0
        %4998 = vmatpush1.bf16.msra.mxu0 0
        %4999 = vmatprep.subr.bf16.mxu0 0
        %5000 = vmatpush1.bf16.msra.mxu0 0
        %5001 = vmatprep.subr.bf16.mxu0 0
        %5002 = vmatpush1.bf16.msra.mxu0 0
        %5003 = vmatprep.subr.bf16.mxu0 0
        %5004 = vmatpush1.bf16.msra.mxu0 0
        %5005 = vmatprep.subr.bf16.mxu0 0
        %5006 = vmatpush1.bf16.msra.mxu0 0
        %5007 = vmatprep.mubr.bf16.mxu0 0
        %5008 = vmatmul.mubr.bf16.gmra.mrb[0].mxu0 %v4895
        %v5009 = vpop.f32.mrb[0].mxu0
        %v5010 = vadd.f32 0.0, %v5009
        %v5011 = vpop.f32.mrb[0].mxu0
        %v5012 = vpop.f32.mrb[0].mxu0
        %v5013 = vadd.f32 0.0, %v5012
        %v5014 = vpop.f32.mrb[0].mxu0
        %5015 = vmatprep.mubr.bf16.mxu0 0
        %5016 = vmatmul.mubr.bf16.gmra.mrb[0].mxu0 %v4896
        %v5017 = vpop.f32.mrb[0].mxu0
        %v5018 = vadd.f32 0.0, %v5017
        %v5019 = vpop.f32.mrb[0].mxu0
        %v5020 = vpop.f32.mrb[0].mxu0
        %v5021 = vadd.f32 0.0, %v5020
        %v5022 = vpop.f32.mrb[0].mxu0
        %5023 = vmatprep.mubr.bf16.mxu0 0
        %5024 = vmatmul.mubr.bf16.gmra.mrb[0].mxu0 %v4897
        %v5025 = vpop.f32.mrb[0].mxu0
        %v5026 = vadd.f32 0.0, %v5025
        %v5027 = vpop.f32.mrb[0].mxu0
        %v5028 = vpop.f32.mrb[0].mxu0
        %v5029 = vadd.f32 0.0, %v5028
        %v5030 = vpop.f32.mrb[0].mxu0
        %5031 = vmatprep.mubr.bf16.mxu0 0
        %5032 = vmatmul.mubr.bf16.gmra.mrb[0].mxu0 %v4898
        %v5033 = vpop.f32.mrb[0].mxu0
        %v5034 = vadd.f32 0.0, %v5033
        %v5035 = vpop.f32.mrb[0].mxu0
        %v5036 = vpop.f32.mrb[0].mxu0
        %v5037 = vadd.f32 0.0, %v5036
        %v5038 = vpop.f32.mrb[0].mxu0
        %5039 = vmatprep.mubr.bf16.mxu0 0
        %5040 = vmatmul.mubr.bf16.gmra.mrb[0].mxu0 %v4899
        %v5041 = vpop.f32.mrb[0].mxu0
        %v5042 = vadd.f32 0.0, %v5041
        %v5043 = vpop.f32.mrb[0].mxu0
        %v5044 = vpop.f32.mrb[0].mxu0
        %v5045 = vadd.f32 0.0, %v5044
        %v5046 = vpop.f32.mrb[0].mxu0
        %5047 = vmatprep.mubr.bf16.mxu0 0
        %5048 = vmatmul.mubr.bf16.gmra.mrb[0].mxu0 %v4900
        %v5049 = vpop.f32.mrb[0].mxu0
        %v5050 = vadd.f32 0.0, %v5049
        %v5051 = vpop.f32.mrb[0].mxu0
        %v5052 = vpop.f32.mrb[0].mxu0
        %v5053 = vadd.f32 0.0, %v5052
        %v5054 = vpop.f32.mrb[0].mxu0
        %5055 = vmatprep.mubr.bf16.mxu0 0
        %5056 = vmatmul.mubr.bf16.gmra.mrb[0].mxu0 %v4901
        %v5057 = vpop.f32.mrb[0].mxu0
        %v5058 = vadd.f32 0.0, %v5057
        %v5059 = vpop.f32.mrb[0].mxu0
        %v5060 = vpop.f32.mrb[0].mxu0
        %v5061 = vadd.f32 0.0, %v5060
        %v5062 = vpop.f32.mrb[0].mxu0
        %5063 = vmatprep.mubr.bf16.mxu0 0
        %5064 = vmatmul.mubr.bf16.gmra.mrb[0].mxu0 %v4902
        %v5065 = vpop.f32.mrb[0].mxu0
        %v5066 = vadd.f32 0.0, %v5065
        %v5067 = vpop.f32.mrb[0].mxu0
        %v5068 = vpop.f32.mrb[0].mxu0
        %v5069 = vadd.f32 0.0, %v5068
        %v5070 = vpop.f32.mrb[0].mxu0
        %5071 = vmatprep.mubr.bf16.mxu0 0
        %5072 = vmatmul.mubr.bf16.gmra.mrb[0].mxu0 %v4903
        %v5073 = vpop.f32.mrb[0].mxu0
        %v5074 = vadd.f32 0.0, %v5073
        %v5075 = vpop.f32.mrb[0].mxu0
        %v5076 = vpop.f32.mrb[0].mxu0
        %v5077 = vadd.f32 0.0, %v5076
        %v5078 = vpop.f32.mrb[0].mxu0
        %5079 = vmatprep.mubr.bf16.mxu0 0
        %5080 = vmatmul.mubr.bf16.gmra.mrb[0].mxu0 %v4904
        %v5081 = vpop.f32.mrb[0].mxu0
        %v5082 = vadd.f32 0.0, %v5081
        %v5083 = vpop.f32.mrb[0].mxu0
        %v5084 = vpop.f32.mrb[0].mxu0
        %v5085 = vadd.f32 0.0, %v5084
        %v5086 = vpop.f32.mrb[0].mxu0
        %5087 = vmatprep.mubr.bf16.mxu0 0
        %5088 = vmatmul.mubr.bf16.gmra.mrb[0].mxu0 %v4905
        %v5089 = vpop.f32.mrb[0].mxu0
        %v5090 = vadd.f32 0.0, %v5089
        %v5091 = vpop.f32.mrb[0].mxu0
        %v5092 = vpop.f32.mrb[0].mxu0
        %v5093 = vadd.f32 0.0, %v5092
        %v5094 = vpop.f32.mrb[0].mxu0
        %5095 = vmatprep.mubr.bf16.mxu0 0
        %5096 = vmatmul.mubr.bf16.gmra.mrb[0].mxu0 %v4906
        %v5097 = vpop.f32.mrb[0].mxu0
        %v5098 = vadd.f32 0.0, %v5097
        %v5099 = vpop.f32.mrb[0].mxu0
        %v5100 = vpop.f32.mrb[0].mxu0
        %v5101 = vadd.f32 0.0, %v5100
        %v5102 = vpop.f32.mrb[0].mxu0
        %5103 = vmatprep.mubr.bf16.mxu0 0
        %5104 = vmatmul.mubr.bf16.gmra.mrb[0].mxu0 %v4907
        %v5105 = vpop.f32.mrb[0].mxu0
        %v5106 = vadd.f32 0.0, %v5105
        %v5107 = vpop.f32.mrb[0].mxu0
        %v5108 = vpop.f32.mrb[0].mxu0
        %v5109 = vadd.f32 0.0, %v5108
        %v5110 = vpop.f32.mrb[0].mxu0
        %5111 = vmatprep.mubr.bf16.mxu0 0
        %5112 = vmatmul.mubr.bf16.gmra.mrb[0].mxu0 %v4908
        %v5113 = vpop.f32.mrb[0].mxu0
        %v5114 = vadd.f32 0.0, %v5113
        %v5115 = vpop.f32.mrb[0].mxu0
        %v5116 = vpop.f32.mrb[0].mxu0
        %v5117 = vadd.f32 0.0, %v5116
        %v5118 = vpop.f32.mrb[0].mxu0
        %5119 = vmatprep.mubr.bf16.mxu0 0
        %5120 = vmatmul.mubr.bf16.gmra.mrb[0].mxu0 %v4909
        %v5121 = vpop.f32.mrb[0].mxu0
        %v5122 = vadd.f32 0.0, %v5121
        %v5123 = vpop.f32.mrb[0].mxu0
        %v5124 = vpop.f32.mrb[0].mxu0
        %v5125 = vadd.f32 0.0, %v5124
        %v5126 = vpop.f32.mrb[0].mxu0
        %5127 = vmatprep.mubr.bf16.mxu0 0
        %5128 = vmatmul.mubr.bf16.gmra.mrb[0].mxu0 %v4910
        %v5129 = vpop.f32.mrb[0].mxu0
        %v5130 = vadd.f32 0.0, %v5129
        %v5131 = vpop.f32.mrb[0].mxu0
        %v5132 = vpop.f32.mrb[0].mxu0
        %v5133 = vadd.f32 0.0, %v5132
        %v5134 = vpop.f32.mrb[0].mxu0
        %5135 = vdwg.mxu0
        %v5136 = vadd.f32 %v1173, %v5010
        %v5137 = vadd.f32 %v1176, %v5013
        %v5138 = vadd.f32 %v1181, %v5018
        %v5139 = vadd.f32 %v1184, %v5021
        %v5140 = vadd.f32 %v1189, %v5026
        %v5141 = vadd.f32 %v1192, %v5029
        %v5142 = vadd.f32 %v1197, %v5034
        %v5143 = vadd.f32 %v1200, %v5037
        %v5144 = vadd.f32 %v1205, %v5042
        %v5145 = vadd.f32 %v1208, %v5045
        %v5146 = vadd.f32 %v1213, %v5050
        %v5147 = vadd.f32 %v1216, %v5053
        %v5148 = vadd.f32 %v1221, %v5058
        %v5149 = vadd.f32 %v1224, %v5061
        %v5150 = vadd.f32 %v1229, %v5066
        %v5151 = vadd.f32 %v1232, %v5069
        %v5152 = vadd.f32 %v1237, %v5074
        %v5153 = vadd.f32 %v1240, %v5077
        %v5154 = vadd.f32 %v1245, %v5082
        %v5155 = vadd.f32 %v1248, %v5085
        %v5156 = vadd.f32 %v1253, %v5090
        %v5157 = vadd.f32 %v1256, %v5093
        %v5158 = vadd.f32 %v1261, %v5098
        %v5159 = vadd.f32 %v1264, %v5101
        %v5160 = vadd.f32 %v1269, %v5106
        %v5161 = vadd.f32 %v1272, %v5109
        %v5162 = vadd.f32 %v1277, %v5114
        %v5163 = vadd.f32 %v1280, %v5117
        %v5164 = vadd.f32 %v1285, %v5122
        %v5165 = vadd.f32 %v1288, %v5125
        %v5166 = vadd.f32 %v1293, %v5130
        %v5167 = vadd.f32 %v1296, %v5133
        %v5168 = vsel %vm1792, %v4797, 0.0
        %v5169 = vsel %vm1793, %v4798, 0.0
        %v5170 = vsel %vm1794, %v4767, 0.0
        %v5171 = vsel %vm1795, %v4768, 0.0
        %v5172 = vsel %vm1796, %v4769, 0.0
        %v5173 = vsel %vm1797, %v4770, 0.0
        %v5174 = vsel %vm1798, %v4771, 0.0
        %v5175 = vsel %vm1799, %v4772, 0.0
        %v5176 = vsel %vm1800, %v4773, 0.0
        %v5177 = vsel %vm1801, %v4774, 0.0
        %v5178 = vsel %vm1802, %v4775, 0.0
        %v5179 = vsel %vm1803, %v4776, 0.0
        %v5180 = vsel %vm1804, %v4777, 0.0
        %v5181 = vsel %vm1805, %v4778, 0.0
        %v5182 = vsel %vm1806, %v4779, 0.0
        %v5183 = vsel %vm1807, %v4780, 0.0
        %v5184 = vsel %vm1808, %v4781, 0.0
        %v5185 = vsel %vm1809, %v4782, 0.0
        %v5186 = vsel %vm1810, %v4783, 0.0
        %v5187 = vsel %vm1811, %v4784, 0.0
        %v5188 = vsel %vm1812, %v4785, 0.0
        %v5189 = vsel %vm1813, %v4786, 0.0
        %v5190 = vsel %vm1814, %v4787, 0.0
        %v5191 = vsel %vm1815, %v4788, 0.0
        %v5192 = vsel %vm1816, %v4789, 0.0
        %v5193 = vsel %vm1817, %v4790, 0.0
        %v5194 = vsel %vm1818, %v4791, 0.0
        %v5195 = vsel %vm1819, %v4792, 0.0
        %v5196 = vsel %vm1820, %v4793, 0.0
        %v5197 = vsel %vm1821, %v4794, 0.0
        %v5198 = vsel %vm1822, %v4795, 0.0
        %v5199 = vsel %vm1823, %v4796, 0.0
        %v5200 = vpack.c.bf16 %v5169, %v5168
        %v5201 = vpack.c.bf16 %v5171, %v5170
        %v5202 = vpack.c.bf16 %v5173, %v5172
        %v5203 = vpack.c.bf16 %v5175, %v5174
        %v5204 = vpack.c.bf16 %v5177, %v5176
        %v5205 = vpack.c.bf16 %v5179, %v5178
        %v5206 = vpack.c.bf16 %v5181, %v5180
        %v5207 = vpack.c.bf16 %v5183, %v5182
        %v5208 = vpack.c.bf16 %v5185, %v5184
        %v5209 = vpack.c.bf16 %v5187, %v5186
        %v5210 = vpack.c.bf16 %v5189, %v5188
        %v5211 = vpack.c.bf16 %v5191, %v5190
        %v5212 = vpack.c.bf16 %v5193, %v5192
        %v5213 = vpack.c.bf16 %v5195, %v5194
        %v5214 = vpack.c.bf16 %v5197, %v5196
        %v5215 = vpack.c.bf16 %v5199, %v5198
        %s5216 = scalar_lea.vmem [#allocation2], 64
        %v5217 = vld [vmem:[%s5216] sm:$0xf]
        %v5218 = vld [vmem:[%s5216 + $0x4] sm:$0xf]
        %v5219 = vld [vmem:[%s5216 + $0x8] sm:$0xf]
        %v5220 = vld [vmem:[%s5216 + $0xc] sm:$0xf]
        %v5221 = vld [vmem:[%s5216 + $0x10] sm:$0xf]
        %v5222 = vld [vmem:[%s5216 + $0x14] sm:$0xf]
        %v5223 = vld [vmem:[%s5216 + $0x18] sm:$0xf]
        %v5224 = vld [vmem:[%s5216 + $0x1c] sm:$0xf]
        %v5225 = vld [vmem:[%s5216 + $0x20] sm:$0xf]
        %v5226 = vld [vmem:[%s5216 + $0x24] sm:$0xf]
        %v5227 = vld [vmem:[%s5216 + $0x28] sm:$0xf]
        %v5228 = vld [vmem:[%s5216 + $0x2c] sm:$0xf]
        %v5229 = vld [vmem:[%s5216 + $0x30] sm:$0xf]
        %v5230 = vld [vmem:[%s5216 + $0x34] sm:$0xf]
        %v5231 = vld [vmem:[%s5216 + $0x38] sm:$0xf]
        %v5232 = vld [vmem:[%s5216 + $0x3c] sm:$0xf]
        %v5249 = vunpack.c.l.b16 %v5217
        %v5250 = vunpack.c.l.b16 %v5218
        %v5251 = vunpack.c.l.b16 %v5219
        %v5252 = vunpack.c.l.b16 %v5220
        %v5253 = vunpack.c.l.b16 %v5221
        %v5254 = vunpack.c.l.b16 %v5222
        %v5255 = vunpack.c.l.b16 %v5223
        %v5256 = vunpack.c.l.b16 %v5224
        %v5257 = vunpack.c.l.b16 %v5225
        %v5258 = vunpack.c.l.b16 %v5226
        %v5259 = vunpack.c.l.b16 %v5227
        %v5260 = vunpack.c.l.b16 %v5228
        %v5261 = vunpack.c.l.b16 %v5229
        %v5262 = vunpack.c.l.b16 %v5230
        %v5263 = vunpack.c.l.b16 %v5231
        %v5264 = vunpack.c.l.b16 %v5232
        %v5265 = vpack.c.b16 %v5250, %v5249
        %v5266 = vpack.c.b16 %v5252, %v5251
        %v5267 = vpack.c.b16 %v5254, %v5253
        %v5268 = vpack.c.b16 %v5256, %v5255
        %v5269 = vpack.c.b16 %v5258, %v5257
        %v5270 = vpack.c.b16 %v5260, %v5259
        %v5271 = vpack.c.b16 %v5262, %v5261
        %v5272 = vpack.c.b16 %v5264, %v5263
        %5281 = vmatprep.subr.bf16.mxu0 0
        %5282 = vmatpush1.bf16.msra.mxu0 %v5265
        %5283 = vmatprep.subr.bf16.mxu0 0
        %5284 = vmatpush1.bf16.msra.mxu0 %v5266
        %5285 = vmatprep.subr.bf16.mxu0 0
        %5286 = vmatpush1.bf16.msra.mxu0 %v5267
        %5287 = vmatprep.subr.bf16.mxu0 0
        %5288 = vmatpush1.bf16.msra.mxu0 %v5268
        %5289 = vmatprep.subr.bf16.mxu0 0
        %5290 = vmatpush1.bf16.msra.mxu0 %v5269
        %5291 = vmatprep.subr.bf16.mxu0 0
        %5292 = vmatpush1.bf16.msra.mxu0 %v5270
        %5293 = vmatprep.subr.bf16.mxu0 0
        %5294 = vmatpush1.bf16.msra.mxu0 %v5271
        %5295 = vmatprep.subr.bf16.mxu0 0
        %5296 = vmatpush1.bf16.msra.mxu0 %v5272
        %5297 = vmatprep.subr.bf16.mxu0 0
        %5298 = vmatpush1.bf16.msra.mxu0 0
        %5299 = vmatprep.subr.bf16.mxu0 0
        %5300 = vmatpush1.bf16.msra.mxu0 0
        %5301 = vmatprep.subr.bf16.mxu0 0
        %5302 = vmatpush1.bf16.msra.mxu0 0
        %5303 = vmatprep.subr.bf16.mxu0 0
        %5304 = vmatpush1.bf16.msra.mxu0 0
        %5305 = vmatprep.subr.bf16.mxu0 0
        %5306 = vmatpush1.bf16.msra.mxu0 0
        %5307 = vmatprep.subr.bf16.mxu0 0
        %5308 = vmatpush1.bf16.msra.mxu0 0
        %5309 = vmatprep.subr.bf16.mxu0 0
        %5310 = vmatpush1.bf16.msra.mxu0 0
        %5311 = vmatprep.subr.bf16.mxu0 0
        %5312 = vmatpush1.bf16.msra.mxu0 0
        %5313 = vmatprep.mubr.bf16.mxu0 0
        %5314 = vmatmul.mubr.bf16.gmra.mrb[0].mxu0 %v5200
        %v5315 = vpop.f32.mrb[0].mxu0
        %v5316 = vadd.f32 0.0, %v5315
        %v5317 = vpop.f32.mrb[0].mxu0
        %v5318 = vpop.f32.mrb[0].mxu0
        %v5319 = vadd.f32 0.0, %v5318
        %v5320 = vpop.f32.mrb[0].mxu0
        %5321 = vmatprep.mubr.bf16.mxu0 0
        %5322 = vmatmul.mubr.bf16.gmra.mrb[0].mxu0 %v5201
        %v5323 = vpop.f32.mrb[0].mxu0
        %v5324 = vadd.f32 0.0, %v5323
        %v5325 = vpop.f32.mrb[0].mxu0
        %v5326 = vpop.f32.mrb[0].mxu0
        %v5327 = vadd.f32 0.0, %v5326
        %v5328 = vpop.f32.mrb[0].mxu0
        %5329 = vmatprep.mubr.bf16.mxu0 0
        %5330 = vmatmul.mubr.bf16.gmra.mrb[0].mxu0 %v5202
        %v5331 = vpop.f32.mrb[0].mxu0
        %v5332 = vadd.f32 0.0, %v5331
        %v5333 = vpop.f32.mrb[0].mxu0
        %v5334 = vpop.f32.mrb[0].mxu0
        %v5335 = vadd.f32 0.0, %v5334
        %v5336 = vpop.f32.mrb[0].mxu0
        %5337 = vmatprep.mubr.bf16.mxu0 0
        %5338 = vmatmul.mubr.bf16.gmra.mrb[0].mxu0 %v5203
        %v5339 = vpop.f32.mrb[0].mxu0
        %v5340 = vadd.f32 0.0, %v5339
        %v5341 = vpop.f32.mrb[0].mxu0
        %v5342 = vpop.f32.mrb[0].mxu0
        %v5343 = vadd.f32 0.0, %v5342
        %v5344 = vpop.f32.mrb[0].mxu0
        %5345 = vmatprep.mubr.bf16.mxu0 0
        %5346 = vmatmul.mubr.bf16.gmra.mrb[0].mxu0 %v5204
        %v5347 = vpop.f32.mrb[0].mxu0
        %v5348 = vadd.f32 0.0, %v5347
        %v5349 = vpop.f32.mrb[0].mxu0
        %v5350 = vpop.f32.mrb[0].mxu0
        %v5351 = vadd.f32 0.0, %v5350
        %v5352 = vpop.f32.mrb[0].mxu0
        %5353 = vmatprep.mubr.bf16.mxu0 0
        %5354 = vmatmul.mubr.bf16.gmra.mrb[0].mxu0 %v5205
        %v5355 = vpop.f32.mrb[0].mxu0
        %v5356 = vadd.f32 0.0, %v5355
        %v5357 = vpop.f32.mrb[0].mxu0
        %v5358 = vpop.f32.mrb[0].mxu0
        %v5359 = vadd.f32 0.0, %v5358
        %v5360 = vpop.f32.mrb[0].mxu0
        %5361 = vmatprep.mubr.bf16.mxu0 0
        %5362 = vmatmul.mubr.bf16.gmra.mrb[0].mxu0 %v5206
        %v5363 = vpop.f32.mrb[0].mxu0
        %v5364 = vadd.f32 0.0, %v5363
        %v5365 = vpop.f32.mrb[0].mxu0
        %v5366 = vpop.f32.mrb[0].mxu0
        %v5367 = vadd.f32 0.0, %v5366
        %v5368 = vpop.f32.mrb[0].mxu0
        %5369 = vmatprep.mubr.bf16.mxu0 0
        %5370 = vmatmul.mubr.bf16.gmra.mrb[0].mxu0 %v5207
        %v5371 = vpop.f32.mrb[0].mxu0
        %v5372 = vadd.f32 0.0, %v5371
        %v5373 = vpop.f32.mrb[0].mxu0
        %v5374 = vpop.f32.mrb[0].mxu0
        %v5375 = vadd.f32 0.0, %v5374
        %v5376 = vpop.f32.mrb[0].mxu0
        %5377 = vmatprep.mubr.bf16.mxu0 0
        %5378 = vmatmul.mubr.bf16.gmra.mrb[0].mxu0 %v5208
        %v5379 = vpop.f32.mrb[0].mxu0
        %v5380 = vadd.f32 0.0, %v5379
        %v5381 = vpop.f32.mrb[0].mxu0
        %v5382 = vpop.f32.mrb[0].mxu0
        %v5383 = vadd.f32 0.0, %v5382
        %v5384 = vpop.f32.mrb[0].mxu0
        %5385 = vmatprep.mubr.bf16.mxu0 0
        %5386 = vmatmul.mubr.bf16.gmra.mrb[0].mxu0 %v5209
        %v5387 = vpop.f32.mrb[0].mxu0
        %v5388 = vadd.f32 0.0, %v5387
        %v5389 = vpop.f32.mrb[0].mxu0
        %v5390 = vpop.f32.mrb[0].mxu0
        %v5391 = vadd.f32 0.0, %v5390
        %v5392 = vpop.f32.mrb[0].mxu0
        %5393 = vmatprep.mubr.bf16.mxu0 0
        %5394 = vmatmul.mubr.bf16.gmra.mrb[0].mxu0 %v5210
        %v5395 = vpop.f32.mrb[0].mxu0
        %v5396 = vadd.f32 0.0, %v5395
        %v5397 = vpop.f32.mrb[0].mxu0
        %v5398 = vpop.f32.mrb[0].mxu0
        %v5399 = vadd.f32 0.0, %v5398
        %v5400 = vpop.f32.mrb[0].mxu0
        %5401 = vmatprep.mubr.bf16.mxu0 0
        %5402 = vmatmul.mubr.bf16.gmra.mrb[0].mxu0 %v5211
        %v5403 = vpop.f32.mrb[0].mxu0
        %v5404 = vadd.f32 0.0, %v5403
        %v5405 = vpop.f32.mrb[0].mxu0
        %v5406 = vpop.f32.mrb[0].mxu0
        %v5407 = vadd.f32 0.0, %v5406
        %v5408 = vpop.f32.mrb[0].mxu0
        %5409 = vmatprep.mubr.bf16.mxu0 0
        %5410 = vmatmul.mubr.bf16.gmra.mrb[0].mxu0 %v5212
        %v5411 = vpop.f32.mrb[0].mxu0
        %v5412 = vadd.f32 0.0, %v5411
        %v5413 = vpop.f32.mrb[0].mxu0
        %v5414 = vpop.f32.mrb[0].mxu0
        %v5415 = vadd.f32 0.0, %v5414
        %v5416 = vpop.f32.mrb[0].mxu0
        %5417 = vmatprep.mubr.bf16.mxu0 0
        %5418 = vmatmul.mubr.bf16.gmra.mrb[0].mxu0 %v5213
        %v5419 = vpop.f32.mrb[0].mxu0
        %v5420 = vadd.f32 0.0, %v5419
        %v5421 = vpop.f32.mrb[0].mxu0
        %v5422 = vpop.f32.mrb[0].mxu0
        %v5423 = vadd.f32 0.0, %v5422
        %v5424 = vpop.f32.mrb[0].mxu0
        %5425 = vmatprep.mubr.bf16.mxu0 0
        %5426 = vmatmul.mubr.bf16.gmra.mrb[0].mxu0 %v5214
        %v5427 = vpop.f32.mrb[0].mxu0
        %v5428 = vadd.f32 0.0, %v5427
        %v5429 = vpop.f32.mrb[0].mxu0
        %v5430 = vpop.f32.mrb[0].mxu0
        %v5431 = vadd.f32 0.0, %v5430
        %v5432 = vpop.f32.mrb[0].mxu0
        %5433 = vmatprep.mubr.bf16.mxu0 0
        %5434 = vmatmul.mubr.bf16.gmra.mrb[0].mxu0 %v5215
        %v5435 = vpop.f32.mrb[0].mxu0
        %v5436 = vadd.f32 0.0, %v5435
        %v5437 = vpop.f32.mrb[0].mxu0
        %v5438 = vpop.f32.mrb[0].mxu0
        %v5439 = vadd.f32 0.0, %v5438
        %v5440 = vpop.f32.mrb[0].mxu0
        %5441 = vdwg.mxu0
        %v5442 = vadd.f32 %v5136, %v5316
        %v5443 = vadd.f32 %v5137, %v5319
        %v5444 = vadd.f32 %v5138, %v5324
        %v5445 = vadd.f32 %v5139, %v5327
        %v5446 = vadd.f32 %v5140, %v5332
        %v5447 = vadd.f32 %v5141, %v5335
        %v5448 = vadd.f32 %v5142, %v5340
        %v5449 = vadd.f32 %v5143, %v5343
        %v5450 = vadd.f32 %v5144, %v5348
        %v5451 = vadd.f32 %v5145, %v5351
        %v5452 = vadd.f32 %v5146, %v5356
        %v5453 = vadd.f32 %v5147, %v5359
        %v5454 = vadd.f32 %v5148, %v5364
        %v5455 = vadd.f32 %v5149, %v5367
        %v5456 = vadd.f32 %v5150, %v5372
        %v5457 = vadd.f32 %v5151, %v5375
        %v5458 = vadd.f32 %v5152, %v5380
        %v5459 = vadd.f32 %v5153, %v5383
        %v5460 = vadd.f32 %v5154, %v5388
        %v5461 = vadd.f32 %v5155, %v5391
        %v5462 = vadd.f32 %v5156, %v5396
        %v5463 = vadd.f32 %v5157, %v5399
        %v5464 = vadd.f32 %v5158, %v5404
        %v5465 = vadd.f32 %v5159, %v5407
        %v5466 = vadd.f32 %v5160, %v5412
        %v5467 = vadd.f32 %v5161, %v5415
        %v5468 = vadd.f32 %v5162, %v5420
        %v5469 = vadd.f32 %v5163, %v5423
        %v5470 = vadd.f32 %v5164, %v5428
        %v5471 = vadd.f32 %v5165, %v5431
        %v5472 = vadd.f32 %v5166, %v5436
        %v5473 = vadd.f32 %v5167, %v5439
        %v5474 = vrot.slane %v4767, 1
        %v5475 = vrot.slane %v4768, 1
        %v5476 = vrot.slane %v4769, 1
        %v5477 = vrot.slane %v4770, 1
        %v5478 = vrot.slane %v4771, 1
        %v5479 = vrot.slane %v4772, 1
        %v5480 = vrot.slane %v4773, 1
        %v5481 = vrot.slane %v4774, 1
        %v5482 = vrot.slane %v4775, 1
        %v5483 = vrot.slane %v4776, 1
        %v5484 = vrot.slane %v4777, 1
        %v5485 = vrot.slane %v4778, 1
        %v5486 = vrot.slane %v4779, 1
        %v5487 = vrot.slane %v4780, 1
        %v5488 = vrot.slane %v4781, 1
        %v5489 = vrot.slane %v4782, 1
        %v5490 = vrot.slane %v4783, 1
        %v5491 = vrot.slane %v4784, 1
        %v5492 = vrot.slane %v4785, 1
        %v5493 = vrot.slane %v4786, 1
        %v5494 = vrot.slane %v4787, 1
        %v5495 = vrot.slane %v4788, 1
        %v5496 = vrot.slane %v4789, 1
        %v5497 = vrot.slane %v4790, 1
        %v5498 = vrot.slane %v4791, 1
        %v5499 = vrot.slane %v4792, 1
        %v5500 = vrot.slane %v4793, 1
        %v5501 = vrot.slane %v4794, 1
        %v5502 = vrot.slane %v4795, 1
        %v5503 = vrot.slane %v4796, 1
        %v5504 = vrot.slane %v4797, 1
        %v5505 = vrot.slane %v4798, 1
        %v5506 = vsel %vm2150, %v5504, %v5505
        %v5507 = vsel %vm2150, %v5503, %v5504
        %v5508 = vsel %vm2150, %v5502, %v5503
        %v5509 = vsel %vm2150, %v5501, %v5502
        %v5510 = vsel %vm2150, %v5500, %v5501
        %v5511 = vsel %vm2150, %v5499, %v5500
        %v5512 = vsel %vm2150, %v5498, %v5499
        %v5513 = vsel %vm2150, %v5497, %v5498
        %v5514 = vsel %vm2150, %v5496, %v5497
        %v5515 = vsel %vm2150, %v5495, %v5496
        %v5516 = vsel %vm2150, %v5494, %v5495
        %v5517 = vsel %vm2150, %v5493, %v5494
        %v5518 = vsel %vm2150, %v5492, %v5493
        %v5519 = vsel %vm2150, %v5491, %v5492
        %v5520 = vsel %vm2150, %v5490, %v5491
        %v5521 = vsel %vm2150, %v5489, %v5490
        %v5522 = vsel %vm2150, %v5488, %v5489
        %v5523 = vsel %vm2150, %v5487, %v5488
        %v5524 = vsel %vm2150, %v5486, %v5487
        %v5525 = vsel %vm2150, %v5485, %v5486
        %v5526 = vsel %vm2150, %v5484, %v5485
        %v5527 = vsel %vm2150, %v5483, %v5484
        %v5528 = vsel %vm2150, %v5482, %v5483
        %v5529 = vsel %vm2150, %v5481, %v5482
        %v5530 = vsel %vm2150, %v5480, %v5481
        %v5531 = vsel %vm2150, %v5479, %v5480
        %v5532 = vsel %vm2150, %v5478, %v5479
        %v5533 = vsel %vm2150, %v5477, %v5478
        %v5534 = vsel %vm2150, %v5476, %v5477
        %v5535 = vsel %vm2150, %v5475, %v5476
        %v5536 = vsel %vm2150, %v5474, %v5475
        %v5537 = vsel %vm2150, %v5505, %v5474
        %v5538 = vsel %vm2247, %v5506, 0.0
        %v5539 = vsel %vm2248, %v5537, 0.0
        %v5540 = vsel %vm2249, %v5536, 0.0
        %v5541 = vsel %vm2250, %v5535, 0.0
        %v5542 = vsel %vm2251, %v5534, 0.0
        %v5543 = vsel %vm2252, %v5533, 0.0
        %v5544 = vsel %vm2253, %v5532, 0.0
        %v5545 = vsel %vm2254, %v5531, 0.0
        %v5546 = vsel %vm2255, %v5530, 0.0
        %v5547 = vsel %vm2256, %v5529, 0.0
        %v5548 = vsel %vm2257, %v5528, 0.0
        %v5549 = vsel %vm2258, %v5527, 0.0
        %v5550 = vsel %vm2259, %v5526, 0.0
        %v5551 = vsel %vm2260, %v5525, 0.0
        %v5552 = vsel %vm2261, %v5524, 0.0
        %v5553 = vsel %vm2262, %v5523, 0.0
        %v5554 = vsel %vm2263, %v5522, 0.0
        %v5555 = vsel %vm2264, %v5521, 0.0
        %v5556 = vsel %vm2265, %v5520, 0.0
        %v5557 = vsel %vm2266, %v5519, 0.0
        %v5558 = vsel %vm2267, %v5518, 0.0
        %v5559 = vsel %vm2268, %v5517, 0.0
        %v5560 = vsel %vm2269, %v5516, 0.0
        %v5561 = vsel %vm2270, %v5515, 0.0
        %v5562 = vsel %vm2271, %v5514, 0.0
        %v5563 = vsel %vm2272, %v5513, 0.0
        %v5564 = vsel %vm2273, %v5512, 0.0
        %v5565 = vsel %vm2274, %v5511, 0.0
        %v5566 = vsel %vm2275, %v5510, 0.0
        %v5567 = vsel %vm2276, %v5509, 0.0
        %v5568 = vsel %vm2277, %v5508, 0.0
        %v5569 = vsel %vm2278, %v5507, 0.0
        %v5570 = vpack.c.bf16 %v5539, %v5538
        %v5571 = vpack.c.bf16 %v5541, %v5540
        %v5572 = vpack.c.bf16 %v5543, %v5542
        %v5573 = vpack.c.bf16 %v5545, %v5544
        %v5574 = vpack.c.bf16 %v5547, %v5546
        %v5575 = vpack.c.bf16 %v5549, %v5548
        %v5576 = vpack.c.bf16 %v5551, %v5550
        %v5577 = vpack.c.bf16 %v5553, %v5552
        %v5578 = vpack.c.bf16 %v5555, %v5554
        %v5579 = vpack.c.bf16 %v5557, %v5556
        %v5580 = vpack.c.bf16 %v5559, %v5558
        %v5581 = vpack.c.bf16 %v5561, %v5560
        %v5582 = vpack.c.bf16 %v5563, %v5562
        %v5583 = vpack.c.bf16 %v5565, %v5564
        %v5584 = vpack.c.bf16 %v5567, %v5566
        %v5585 = vpack.c.bf16 %v5569, %v5568
        %s5586 = scalar_lea.vmem [#allocation2], 128
        %v5587 = vld [vmem:[%s5586] sm:$0xf]
        %v5588 = vld [vmem:[%s5586 + $0x4] sm:$0xf]
        %v5589 = vld [vmem:[%s5586 + $0x8] sm:$0xf]
        %v5590 = vld [vmem:[%s5586 + $0xc] sm:$0xf]
        %v5591 = vld [vmem:[%s5586 + $0x10] sm:$0xf]
        %v5592 = vld [vmem:[%s5586 + $0x14] sm:$0xf]
        %v5593 = vld [vmem:[%s5586 + $0x18] sm:$0xf]
        %v5594 = vld [vmem:[%s5586 + $0x1c] sm:$0xf]
        %v5595 = vld [vmem:[%s5586 + $0x20] sm:$0xf]
        %v5596 = vld [vmem:[%s5586 + $0x24] sm:$0xf]
        %v5597 = vld [vmem:[%s5586 + $0x28] sm:$0xf]
        %v5598 = vld [vmem:[%s5586 + $0x2c] sm:$0xf]
        %v5599 = vld [vmem:[%s5586 + $0x30] sm:$0xf]
        %v5600 = vld [vmem:[%s5586 + $0x34] sm:$0xf]
        %v5601 = vld [vmem:[%s5586 + $0x38] sm:$0xf]
        %v5602 = vld [vmem:[%s5586 + $0x3c] sm:$0xf]
        %v5619 = vunpack.c.l.b16 %v5587
        %v5620 = vunpack.c.l.b16 %v5588
        %v5621 = vunpack.c.l.b16 %v5589
        %v5622 = vunpack.c.l.b16 %v5590
        %v5623 = vunpack.c.l.b16 %v5591
        %v5624 = vunpack.c.l.b16 %v5592
        %v5625 = vunpack.c.l.b16 %v5593
        %v5626 = vunpack.c.l.b16 %v5594
        %v5627 = vunpack.c.l.b16 %v5595
        %v5628 = vunpack.c.l.b16 %v5596
        %v5629 = vunpack.c.l.b16 %v5597
        %v5630 = vunpack.c.l.b16 %v5598
        %v5631 = vunpack.c.l.b16 %v5599
        %v5632 = vunpack.c.l.b16 %v5600
        %v5633 = vunpack.c.l.b16 %v5601
        %v5634 = vunpack.c.l.b16 %v5602
        %v5635 = vpack.c.b16 %v5620, %v5619
        %v5636 = vpack.c.b16 %v5622, %v5621
        %v5637 = vpack.c.b16 %v5624, %v5623
        %v5638 = vpack.c.b16 %v5626, %v5625
        %v5639 = vpack.c.b16 %v5628, %v5627
        %v5640 = vpack.c.b16 %v5630, %v5629
        %v5641 = vpack.c.b16 %v5632, %v5631
        %v5642 = vpack.c.b16 %v5634, %v5633
        %5651 = vmatprep.subr.bf16.mxu0 0
        %5652 = vmatpush1.bf16.msra.mxu0 %v5635
        %5653 = vmatprep.subr.bf16.mxu0 0
        %5654 = vmatpush1.bf16.msra.mxu0 %v5636
        %5655 = vmatprep.subr.bf16.mxu0 0
        %5656 = vmatpush1.bf16.msra.mxu0 %v5637
        %5657 = vmatprep.subr.bf16.mxu0 0
        %5658 = vmatpush1.bf16.msra.mxu0 %v5638
        %5659 = vmatprep.subr.bf16.mxu0 0
        %5660 = vmatpush1.bf16.msra.mxu0 %v5639
        %5661 = vmatprep.subr.bf16.mxu0 0
        %5662 = vmatpush1.bf16.msra.mxu0 %v5640
        %5663 = vmatprep.subr.bf16.mxu0 0
        %5664 = vmatpush1.bf16.msra.mxu0 %v5641
        %5665 = vmatprep.subr.bf16.mxu0 0
        %5666 = vmatpush1.bf16.msra.mxu0 %v5642
        %5667 = vmatprep.subr.bf16.mxu0 0
        %5668 = vmatpush1.bf16.msra.mxu0 0
        %5669 = vmatprep.subr.bf16.mxu0 0
        %5670 = vmatpush1.bf16.msra.mxu0 0
        %5671 = vmatprep.subr.bf16.mxu0 0
        %5672 = vmatpush1.bf16.msra.mxu0 0
        %5673 = vmatprep.subr.bf16.mxu0 0
        %5674 = vmatpush1.bf16.msra.mxu0 0
        %5675 = vmatprep.subr.bf16.mxu0 0
        %5676 = vmatpush1.bf16.msra.mxu0 0
        %5677 = vmatprep.subr.bf16.mxu0 0
        %5678 = vmatpush1.bf16.msra.mxu0 0
        %5679 = vmatprep.subr.bf16.mxu0 0
        %5680 = vmatpush1.bf16.msra.mxu0 0
        %5681 = vmatprep.subr.bf16.mxu0 0
        %5682 = vmatpush1.bf16.msra.mxu0 0
        %5683 = vmatprep.mubr.bf16.mxu0 0
        %5684 = vmatmul.mubr.bf16.gmra.mrb[0].mxu0 %v5570
        %v5685 = vpop.f32.mrb[0].mxu0
        %v5686 = vadd.f32 0.0, %v5685
        %v5687 = vpop.f32.mrb[0].mxu0
        %v5688 = vpop.f32.mrb[0].mxu0
        %v5689 = vadd.f32 0.0, %v5688
        %v5690 = vpop.f32.mrb[0].mxu0
        %5691 = vmatprep.mubr.bf16.mxu0 0
        %5692 = vmatmul.mubr.bf16.gmra.mrb[0].mxu0 %v5571
        %v5693 = vpop.f32.mrb[0].mxu0
        %v5694 = vadd.f32 0.0, %v5693
        %v5695 = vpop.f32.mrb[0].mxu0
        %v5696 = vpop.f32.mrb[0].mxu0
        %v5697 = vadd.f32 0.0, %v5696
        %v5698 = vpop.f32.mrb[0].mxu0
        %5699 = vmatprep.mubr.bf16.mxu0 0
        %5700 = vmatmul.mubr.bf16.gmra.mrb[0].mxu0 %v5572
        %v5701 = vpop.f32.mrb[0].mxu0
        %v5702 = vadd.f32 0.0, %v5701
        %v5703 = vpop.f32.mrb[0].mxu0
        %v5704 = vpop.f32.mrb[0].mxu0
        %v5705 = vadd.f32 0.0, %v5704
        %v5706 = vpop.f32.mrb[0].mxu0
        %5707 = vmatprep.mubr.bf16.mxu0 0
        %5708 = vmatmul.mubr.bf16.gmra.mrb[0].mxu0 %v5573
        %v5709 = vpop.f32.mrb[0].mxu0
        %v5710 = vadd.f32 0.0, %v5709
        %v5711 = vpop.f32.mrb[0].mxu0
        %v5712 = vpop.f32.mrb[0].mxu0
        %v5713 = vadd.f32 0.0, %v5712
        %v5714 = vpop.f32.mrb[0].mxu0
        %5715 = vmatprep.mubr.bf16.mxu0 0
        %5716 = vmatmul.mubr.bf16.gmra.mrb[0].mxu0 %v5574
        %v5717 = vpop.f32.mrb[0].mxu0
        %v5718 = vadd.f32 0.0, %v5717
        %v5719 = vpop.f32.mrb[0].mxu0
        %v5720 = vpop.f32.mrb[0].mxu0
        %v5721 = vadd.f32 0.0, %v5720
        %v5722 = vpop.f32.mrb[0].mxu0
        %5723 = vmatprep.mubr.bf16.mxu0 0
        %5724 = vmatmul.mubr.bf16.gmra.mrb[0].mxu0 %v5575
        %v5725 = vpop.f32.mrb[0].mxu0
        %v5726 = vadd.f32 0.0, %v5725
        %v5727 = vpop.f32.mrb[0].mxu0
        %v5728 = vpop.f32.mrb[0].mxu0
        %v5729 = vadd.f32 0.0, %v5728
        %v5730 = vpop.f32.mrb[0].mxu0
        %5731 = vmatprep.mubr.bf16.mxu0 0
        %5732 = vmatmul.mubr.bf16.gmra.mrb[0].mxu0 %v5576
        %v5733 = vpop.f32.mrb[0].mxu0
        %v5734 = vadd.f32 0.0, %v5733
        %v5735 = vpop.f32.mrb[0].mxu0
        %v5736 = vpop.f32.mrb[0].mxu0
        %v5737 = vadd.f32 0.0, %v5736
        %v5738 = vpop.f32.mrb[0].mxu0
        %5739 = vmatprep.mubr.bf16.mxu0 0
        %5740 = vmatmul.mubr.bf16.gmra.mrb[0].mxu0 %v5577
        %v5741 = vpop.f32.mrb[0].mxu0
        %v5742 = vadd.f32 0.0, %v5741
        %v5743 = vpop.f32.mrb[0].mxu0
        %v5744 = vpop.f32.mrb[0].mxu0
        %v5745 = vadd.f32 0.0, %v5744
        %v5746 = vpop.f32.mrb[0].mxu0
        %5747 = vmatprep.mubr.bf16.mxu0 0
        %5748 = vmatmul.mubr.bf16.gmra.mrb[0].mxu0 %v5578
        %v5749 = vpop.f32.mrb[0].mxu0
        %v5750 = vadd.f32 0.0, %v5749
        %v5751 = vpop.f32.mrb[0].mxu0
        %v5752 = vpop.f32.mrb[0].mxu0
        %v5753 = vadd.f32 0.0, %v5752
        %v5754 = vpop.f32.mrb[0].mxu0
        %5755 = vmatprep.mubr.bf16.mxu0 0
        %5756 = vmatmul.mubr.bf16.gmra.mrb[0].mxu0 %v5579
        %v5757 = vpop.f32.mrb[0].mxu0
        %v5758 = vadd.f32 0.0, %v5757
        %v5759 = vpop.f32.mrb[0].mxu0
        %v5760 = vpop.f32.mrb[0].mxu0
        %v5761 = vadd.f32 0.0, %v5760
        %v5762 = vpop.f32.mrb[0].mxu0
        %5763 = vmatprep.mubr.bf16.mxu0 0
        %5764 = vmatmul.mubr.bf16.gmra.mrb[0].mxu0 %v5580
        %v5765 = vpop.f32.mrb[0].mxu0
        %v5766 = vadd.f32 0.0, %v5765
        %v5767 = vpop.f32.mrb[0].mxu0
        %v5768 = vpop.f32.mrb[0].mxu0
        %v5769 = vadd.f32 0.0, %v5768
        %v5770 = vpop.f32.mrb[0].mxu0
        %5771 = vmatprep.mubr.bf16.mxu0 0
        %5772 = vmatmul.mubr.bf16.gmra.mrb[0].mxu0 %v5581
        %v5773 = vpop.f32.mrb[0].mxu0
        %v5774 = vadd.f32 0.0, %v5773
        %v5775 = vpop.f32.mrb[0].mxu0
        %v5776 = vpop.f32.mrb[0].mxu0
        %v5777 = vadd.f32 0.0, %v5776
        %v5778 = vpop.f32.mrb[0].mxu0
        %5779 = vmatprep.mubr.bf16.mxu0 0
        %5780 = vmatmul.mubr.bf16.gmra.mrb[0].mxu0 %v5582
        %v5781 = vpop.f32.mrb[0].mxu0
        %v5782 = vadd.f32 0.0, %v5781
        %v5783 = vpop.f32.mrb[0].mxu0
        %v5784 = vpop.f32.mrb[0].mxu0
        %v5785 = vadd.f32 0.0, %v5784
        %v5786 = vpop.f32.mrb[0].mxu0
        %5787 = vmatprep.mubr.bf16.mxu0 0
        %5788 = vmatmul.mubr.bf16.gmra.mrb[0].mxu0 %v5583
        %v5789 = vpop.f32.mrb[0].mxu0
        %v5790 = vadd.f32 0.0, %v5789
        %v5791 = vpop.f32.mrb[0].mxu0
        %v5792 = vpop.f32.mrb[0].mxu0
        %v5793 = vadd.f32 0.0, %v5792
        %v5794 = vpop.f32.mrb[0].mxu0
        %5795 = vmatprep.mubr.bf16.mxu0 0
        %5796 = vmatmul.mubr.bf16.gmra.mrb[0].mxu0 %v5584
        %v5797 = vpop.f32.mrb[0].mxu0
        %v5798 = vadd.f32 0.0, %v5797
        %v5799 = vpop.f32.mrb[0].mxu0
        %v5800 = vpop.f32.mrb[0].mxu0
        %v5801 = vadd.f32 0.0, %v5800
        %v5802 = vpop.f32.mrb[0].mxu0
        %5803 = vmatprep.mubr.bf16.mxu0 0
        %5804 = vmatmul.mubr.bf16.gmra.mrb[0].mxu0 %v5585
        %v5805 = vpop.f32.mrb[0].mxu0
        %v5806 = vadd.f32 0.0, %v5805
        %v5807 = vpop.f32.mrb[0].mxu0
        %v5808 = vpop.f32.mrb[0].mxu0
        %v5809 = vadd.f32 0.0, %v5808
        %v5810 = vpop.f32.mrb[0].mxu0
        %5811 = vdwg.mxu0
        %v5812 = vadd.f32 %v5442, %v5686
        %v5813 = vadd.f32 %v5443, %v5689
        %v5814 = vadd.f32 %v5444, %v5694
        %v5815 = vadd.f32 %v5445, %v5697
        %v5816 = vadd.f32 %v5446, %v5702
        %v5817 = vadd.f32 %v5447, %v5705
        %v5818 = vadd.f32 %v5448, %v5710
        %v5819 = vadd.f32 %v5449, %v5713
        %v5820 = vadd.f32 %v5450, %v5718
        %v5821 = vadd.f32 %v5451, %v5721
        %v5822 = vadd.f32 %v5452, %v5726
        %v5823 = vadd.f32 %v5453, %v5729
        %v5824 = vadd.f32 %v5454, %v5734
        %v5825 = vadd.f32 %v5455, %v5737
        %v5826 = vadd.f32 %v5456, %v5742
        %v5827 = vadd.f32 %v5457, %v5745
        %v5828 = vadd.f32 %v5458, %v5750
        %v5829 = vadd.f32 %v5459, %v5753
        %v5830 = vadd.f32 %v5460, %v5758
        %v5831 = vadd.f32 %v5461, %v5761
        %v5832 = vadd.f32 %v5462, %v5766
        %v5833 = vadd.f32 %v5463, %v5769
        %v5834 = vadd.f32 %v5464, %v5774
        %v5835 = vadd.f32 %v5465, %v5777
        %v5836 = vadd.f32 %v5466, %v5782
        %v5837 = vadd.f32 %v5467, %v5785
        %v5838 = vadd.f32 %v5468, %v5790
        %v5839 = vadd.f32 %v5469, %v5793
        %v5840 = vadd.f32 %v5470, %v5798
        %v5841 = vadd.f32 %v5471, %v5801
        %v5842 = vadd.f32 %v5472, %v5806
        %v5843 = vadd.f32 %v5473, %v5809
        %v5844 = vsel %vm2605, %v4862, 0.0
        %v5845 = vsel %vm2606, %v4861, 0.0
        %v5846 = vsel %vm2607, %v4860, 0.0
        %v5847 = vsel %vm2608, %v4859, 0.0
        %v5848 = vsel %vm2609, %v4858, 0.0
        %v5849 = vsel %vm2610, %v4857, 0.0
        %v5850 = vsel %vm2611, %v4856, 0.0
        %v5851 = vsel %vm2612, %v4855, 0.0
        %v5852 = vsel %vm2613, %v4854, 0.0
        %v5853 = vsel %vm2614, %v4853, 0.0
        %v5854 = vsel %vm2615, %v4852, 0.0
        %v5855 = vsel %vm2616, %v4851, 0.0
        %v5856 = vsel %vm2617, %v4850, 0.0
        %v5857 = vsel %vm2618, %v4849, 0.0
        %v5858 = vsel %vm2619, %v4848, 0.0
        %v5859 = vsel %vm2620, %v4847, 0.0
        %v5860 = vsel %vm2621, %v4846, 0.0
        %v5861 = vsel %vm2622, %v4845, 0.0
        %v5862 = vsel %vm2623, %v4844, 0.0
        %v5863 = vsel %vm2624, %v4843, 0.0
        %v5864 = vsel %vm2625, %v4842, 0.0
        %v5865 = vsel %vm2626, %v4841, 0.0
        %v5866 = vsel %vm2627, %v4840, 0.0
        %v5867 = vsel %vm2628, %v4839, 0.0
        %v5868 = vsel %vm2629, %v4838, 0.0
        %v5869 = vsel %vm2630, %v4837, 0.0
        %v5870 = vsel %vm2631, %v4836, 0.0
        %v5871 = vsel %vm2632, %v4835, 0.0
        %v5872 = vsel %vm2633, %v4834, 0.0
        %v5873 = vsel %vm2634, %v4833, 0.0
        %v5874 = vsel %vm2635, %v4832, 0.0
        %v5875 = vsel %vm2636, %v4831, 0.0
        %v5876 = vpack.c.bf16 %v5845, %v5844
        %v5877 = vpack.c.bf16 %v5847, %v5846
        %v5878 = vpack.c.bf16 %v5849, %v5848
        %v5879 = vpack.c.bf16 %v5851, %v5850
        %v5880 = vpack.c.bf16 %v5853, %v5852
        %v5881 = vpack.c.bf16 %v5855, %v5854
        %v5882 = vpack.c.bf16 %v5857, %v5856
        %v5883 = vpack.c.bf16 %v5859, %v5858
        %v5884 = vpack.c.bf16 %v5861, %v5860
        %v5885 = vpack.c.bf16 %v5863, %v5862
        %v5886 = vpack.c.bf16 %v5865, %v5864
        %v5887 = vpack.c.bf16 %v5867, %v5866
        %v5888 = vpack.c.bf16 %v5869, %v5868
        %v5889 = vpack.c.bf16 %v5871, %v5870
        %v5890 = vpack.c.bf16 %v5873, %v5872
        %v5891 = vpack.c.bf16 %v5875, %v5874
        %s5892 = scalar_lea.vmem [#allocation2], 192
        %v5893 = vld [vmem:[%s5892] sm:$0xf]
        %v5894 = vld [vmem:[%s5892 + $0x4] sm:$0xf]
        %v5895 = vld [vmem:[%s5892 + $0x8] sm:$0xf]
        %v5896 = vld [vmem:[%s5892 + $0xc] sm:$0xf]
        %v5897 = vld [vmem:[%s5892 + $0x10] sm:$0xf]
        %v5898 = vld [vmem:[%s5892 + $0x14] sm:$0xf]
        %v5899 = vld [vmem:[%s5892 + $0x18] sm:$0xf]
        %v5900 = vld [vmem:[%s5892 + $0x1c] sm:$0xf]
        %v5901 = vld [vmem:[%s5892 + $0x20] sm:$0xf]
        %v5902 = vld [vmem:[%s5892 + $0x24] sm:$0xf]
        %v5903 = vld [vmem:[%s5892 + $0x28] sm:$0xf]
        %v5904 = vld [vmem:[%s5892 + $0x2c] sm:$0xf]
        %v5905 = vld [vmem:[%s5892 + $0x30] sm:$0xf]
        %v5906 = vld [vmem:[%s5892 + $0x34] sm:$0xf]
        %v5907 = vld [vmem:[%s5892 + $0x38] sm:$0xf]
        %v5908 = vld [vmem:[%s5892 + $0x3c] sm:$0xf]
        %v5925 = vunpack.c.l.b16 %v5893
        %v5926 = vunpack.c.l.b16 %v5894
        %v5927 = vunpack.c.l.b16 %v5895
        %v5928 = vunpack.c.l.b16 %v5896
        %v5929 = vunpack.c.l.b16 %v5897
        %v5930 = vunpack.c.l.b16 %v5898
        %v5931 = vunpack.c.l.b16 %v5899
        %v5932 = vunpack.c.l.b16 %v5900
        %v5933 = vunpack.c.l.b16 %v5901
        %v5934 = vunpack.c.l.b16 %v5902
        %v5935 = vunpack.c.l.b16 %v5903
        %v5936 = vunpack.c.l.b16 %v5904
        %v5937 = vunpack.c.l.b16 %v5905
        %v5938 = vunpack.c.l.b16 %v5906
        %v5939 = vunpack.c.l.b16 %v5907
        %v5940 = vunpack.c.l.b16 %v5908
        %v5941 = vpack.c.b16 %v5926, %v5925
        %v5942 = vpack.c.b16 %v5928, %v5927
        %v5943 = vpack.c.b16 %v5930, %v5929
        %v5944 = vpack.c.b16 %v5932, %v5931
        %v5945 = vpack.c.b16 %v5934, %v5933
        %v5946 = vpack.c.b16 %v5936, %v5935
        %v5947 = vpack.c.b16 %v5938, %v5937
        %v5948 = vpack.c.b16 %v5940, %v5939
        %5957 = vmatprep.subr.bf16.mxu0 0
        %5958 = vmatpush1.bf16.msra.mxu0 %v5941
        %5959 = vmatprep.subr.bf16.mxu0 0
        %5960 = vmatpush1.bf16.msra.mxu0 %v5942
        %5961 = vmatprep.subr.bf16.mxu0 0
        %5962 = vmatpush1.bf16.msra.mxu0 %v5943
        %5963 = vmatprep.subr.bf16.mxu0 0
        %5964 = vmatpush1.bf16.msra.mxu0 %v5944
        %5965 = vmatprep.subr.bf16.mxu0 0
        %5966 = vmatpush1.bf16.msra.mxu0 %v5945
        %5967 = vmatprep.subr.bf16.mxu0 0
        %5968 = vmatpush1.bf16.msra.mxu0 %v5946
        %5969 = vmatprep.subr.bf16.mxu0 0
        %5970 = vmatpush1.bf16.msra.mxu0 %v5947
        %5971 = vmatprep.subr.bf16.mxu0 0
        %5972 = vmatpush1.bf16.msra.mxu0 %v5948
        %5973 = vmatprep.subr.bf16.mxu0 0
        %5974 = vmatpush1.bf16.msra.mxu0 0
        %5975 = vmatprep.subr.bf16.mxu0 0
        %5976 = vmatpush1.bf16.msra.mxu0 0
        %5977 = vmatprep.subr.bf16.mxu0 0
        %5978 = vmatpush1.bf16.msra.mxu0 0
        %5979 = vmatprep.subr.bf16.mxu0 0
        %5980 = vmatpush1.bf16.msra.mxu0 0
        %5981 = vmatprep.subr.bf16.mxu0 0
        %5982 = vmatpush1.bf16.msra.mxu0 0
        %5983 = vmatprep.subr.bf16.mxu0 0
        %5984 = vmatpush1.bf16.msra.mxu0 0
        %5985 = vmatprep.subr.bf16.mxu0 0
        %5986 = vmatpush1.bf16.msra.mxu0 0
        %5987 = vmatprep.subr.bf16.mxu0 0
        %5988 = vmatpush1.bf16.msra.mxu0 0
        %5989 = vmatprep.mubr.bf16.mxu0 0
        %5990 = vmatmul.mubr.bf16.gmra.mrb[0].mxu0 %v5876
        %v5991 = vpop.f32.mrb[0].mxu0
        %v5992 = vadd.f32 0.0, %v5991
        %v5993 = vpop.f32.mrb[0].mxu0
        %v5994 = vpop.f32.mrb[0].mxu0
        %v5995 = vadd.f32 0.0, %v5994
        %v5996 = vpop.f32.mrb[0].mxu0
        %5997 = vmatprep.mubr.bf16.mxu0 0
        %5998 = vmatmul.mubr.bf16.gmra.mrb[0].mxu0 %v5877
        %v5999 = vpop.f32.mrb[0].mxu0
        %v6000 = vadd.f32 0.0, %v5999
        %v6001 = vpop.f32.mrb[0].mxu0
        %v6002 = vpop.f32.mrb[0].mxu0
        %v6003 = vadd.f32 0.0, %v6002
        %v6004 = vpop.f32.mrb[0].mxu0
        %6005 = vmatprep.mubr.bf16.mxu0 0
        %6006 = vmatmul.mubr.bf16.gmra.mrb[0].mxu0 %v5878
        %v6007 = vpop.f32.mrb[0].mxu0
        %v6008 = vadd.f32 0.0, %v6007
        %v6009 = vpop.f32.mrb[0].mxu0
        %v6010 = vpop.f32.mrb[0].mxu0
        %v6011 = vadd.f32 0.0, %v6010
        %v6012 = vpop.f32.mrb[0].mxu0
        %6013 = vmatprep.mubr.bf16.mxu0 0
        %6014 = vmatmul.mubr.bf16.gmra.mrb[0].mxu0 %v5879
        %v6015 = vpop.f32.mrb[0].mxu0
        %v6016 = vadd.f32 0.0, %v6015
        %v6017 = vpop.f32.mrb[0].mxu0
        %v6018 = vpop.f32.mrb[0].mxu0
        %v6019 = vadd.f32 0.0, %v6018
        %v6020 = vpop.f32.mrb[0].mxu0
        %6021 = vmatprep.mubr.bf16.mxu0 0
        %6022 = vmatmul.mubr.bf16.gmra.mrb[0].mxu0 %v5880
        %v6023 = vpop.f32.mrb[0].mxu0
        %v6024 = vadd.f32 0.0, %v6023
        %v6025 = vpop.f32.mrb[0].mxu0
        %v6026 = vpop.f32.mrb[0].mxu0
        %v6027 = vadd.f32 0.0, %v6026
        %v6028 = vpop.f32.mrb[0].mxu0
        %6029 = vmatprep.mubr.bf16.mxu0 0
        %6030 = vmatmul.mubr.bf16.gmra.mrb[0].mxu0 %v5881
        %v6031 = vpop.f32.mrb[0].mxu0
        %v6032 = vadd.f32 0.0, %v6031
        %v6033 = vpop.f32.mrb[0].mxu0
        %v6034 = vpop.f32.mrb[0].mxu0
        %v6035 = vadd.f32 0.0, %v6034
        %v6036 = vpop.f32.mrb[0].mxu0
        %6037 = vmatprep.mubr.bf16.mxu0 0
        %6038 = vmatmul.mubr.bf16.gmra.mrb[0].mxu0 %v5882
        %v6039 = vpop.f32.mrb[0].mxu0
        %v6040 = vadd.f32 0.0, %v6039
        %v6041 = vpop.f32.mrb[0].mxu0
        %v6042 = vpop.f32.mrb[0].mxu0
        %v6043 = vadd.f32 0.0, %v6042
        %v6044 = vpop.f32.mrb[0].mxu0
        %6045 = vmatprep.mubr.bf16.mxu0 0
        %6046 = vmatmul.mubr.bf16.gmra.mrb[0].mxu0 %v5883
        %v6047 = vpop.f32.mrb[0].mxu0
        %v6048 = vadd.f32 0.0, %v6047
        %v6049 = vpop.f32.mrb[0].mxu0
        %v6050 = vpop.f32.mrb[0].mxu0
        %v6051 = vadd.f32 0.0, %v6050
        %v6052 = vpop.f32.mrb[0].mxu0
        %6053 = vmatprep.mubr.bf16.mxu0 0
        %6054 = vmatmul.mubr.bf16.gmra.mrb[0].mxu0 %v5884
        %v6055 = vpop.f32.mrb[0].mxu0
        %v6056 = vadd.f32 0.0, %v6055
        %v6057 = vpop.f32.mrb[0].mxu0
        %v6058 = vpop.f32.mrb[0].mxu0
        %v6059 = vadd.f32 0.0, %v6058
        %v6060 = vpop.f32.mrb[0].mxu0
        %6061 = vmatprep.mubr.bf16.mxu0 0
        %6062 = vmatmul.mubr.bf16.gmra.mrb[0].mxu0 %v5885
        %v6063 = vpop.f32.mrb[0].mxu0
        %v6064 = vadd.f32 0.0, %v6063
        %v6065 = vpop.f32.mrb[0].mxu0
        %v6066 = vpop.f32.mrb[0].mxu0
        %v6067 = vadd.f32 0.0, %v6066
        %v6068 = vpop.f32.mrb[0].mxu0
        %6069 = vmatprep.mubr.bf16.mxu0 0
        %6070 = vmatmul.mubr.bf16.gmra.mrb[0].mxu0 %v5886
        %v6071 = vpop.f32.mrb[0].mxu0
        %v6072 = vadd.f32 0.0, %v6071
        %v6073 = vpop.f32.mrb[0].mxu0
        %v6074 = vpop.f32.mrb[0].mxu0
        %v6075 = vadd.f32 0.0, %v6074
        %v6076 = vpop.f32.mrb[0].mxu0
        %6077 = vmatprep.mubr.bf16.mxu0 0
        %6078 = vmatmul.mubr.bf16.gmra.mrb[0].mxu0 %v5887
        %v6079 = vpop.f32.mrb[0].mxu0
        %v6080 = vadd.f32 0.0, %v6079
        %v6081 = vpop.f32.mrb[0].mxu0
        %v6082 = vpop.f32.mrb[0].mxu0
        %v6083 = vadd.f32 0.0, %v6082
        %v6084 = vpop.f32.mrb[0].mxu0
        %6085 = vmatprep.mubr.bf16.mxu0 0
        %6086 = vmatmul.mubr.bf16.gmra.mrb[0].mxu0 %v5888
        %v6087 = vpop.f32.mrb[0].mxu0
        %v6088 = vadd.f32 0.0, %v6087
        %v6089 = vpop.f32.mrb[0].mxu0
        %v6090 = vpop.f32.mrb[0].mxu0
        %v6091 = vadd.f32 0.0, %v6090
        %v6092 = vpop.f32.mrb[0].mxu0
        %6093 = vmatprep.mubr.bf16.mxu0 0
        %6094 = vmatmul.mubr.bf16.gmra.mrb[0].mxu0 %v5889
        %v6095 = vpop.f32.mrb[0].mxu0
        %v6096 = vadd.f32 0.0, %v6095
        %v6097 = vpop.f32.mrb[0].mxu0
        %v6098 = vpop.f32.mrb[0].mxu0
        %v6099 = vadd.f32 0.0, %v6098
        %v6100 = vpop.f32.mrb[0].mxu0
        %6101 = vmatprep.mubr.bf16.mxu0 0
        %6102 = vmatmul.mubr.bf16.gmra.mrb[0].mxu0 %v5890
        %v6103 = vpop.f32.mrb[0].mxu0
        %v6104 = vadd.f32 0.0, %v6103
        %v6105 = vpop.f32.mrb[0].mxu0
        %v6106 = vpop.f32.mrb[0].mxu0
        %v6107 = vadd.f32 0.0, %v6106
        %v6108 = vpop.f32.mrb[0].mxu0
        %6109 = vmatprep.mubr.bf16.mxu0 0
        %6110 = vmatmul.mubr.bf16.gmra.mrb[0].mxu0 %v5891
        %v6111 = vpop.f32.mrb[0].mxu0
        %v6112 = vadd.f32 0.0, %v6111
        %v6113 = vpop.f32.mrb[0].mxu0
        %v6114 = vpop.f32.mrb[0].mxu0
        %v6115 = vadd.f32 0.0, %v6114
        %v6116 = vpop.f32.mrb[0].mxu0
        %6117 = vdwg.mxu0
        %v6118 = vadd.f32 %v5812, %v5992
        %v6119 = vadd.f32 %v5813, %v5995
        %v6120 = vadd.f32 %v5814, %v6000
        %v6121 = vadd.f32 %v5815, %v6003
        %v6122 = vadd.f32 %v5816, %v6008
        %v6123 = vadd.f32 %v5817, %v6011
        %v6124 = vadd.f32 %v5818, %v6016
        %v6125 = vadd.f32 %v5819, %v6019
        %v6126 = vadd.f32 %v5820, %v6024
        %v6127 = vadd.f32 %v5821, %v6027
        %v6128 = vadd.f32 %v5822, %v6032
        %v6129 = vadd.f32 %v5823, %v6035
        %v6130 = vadd.f32 %v5824, %v6040
        %v6131 = vadd.f32 %v5825, %v6043
        %v6132 = vadd.f32 %v5826, %v6048
        %v6133 = vadd.f32 %v5827, %v6051
        %v6134 = vadd.f32 %v5828, %v6056
        %v6135 = vadd.f32 %v5829, %v6059
        %v6136 = vadd.f32 %v5830, %v6064
        %v6137 = vadd.f32 %v5831, %v6067
        %v6138 = vadd.f32 %v5832, %v6072
        %v6139 = vadd.f32 %v5833, %v6075
        %v6140 = vadd.f32 %v5834, %v6080
        %v6141 = vadd.f32 %v5835, %v6083
        %v6142 = vadd.f32 %v5836, %v6088
        %v6143 = vadd.f32 %v5837, %v6091
        %v6144 = vadd.f32 %v5838, %v6096
        %v6145 = vadd.f32 %v5839, %v6099
        %v6146 = vadd.f32 %v5840, %v6104
        %v6147 = vadd.f32 %v5841, %v6107
        %v6148 = vadd.f32 %v5842, %v6112
        %v6149 = vadd.f32 %v5843, %v6115
        %v6150 = vpack.c.bf16 %v4768, %v4767
        %v6151 = vpack.c.bf16 %v4770, %v4769
        %v6152 = vpack.c.bf16 %v4772, %v4771
        %v6153 = vpack.c.bf16 %v4774, %v4773
        %v6154 = vpack.c.bf16 %v4776, %v4775
        %v6155 = vpack.c.bf16 %v4778, %v4777
        %v6156 = vpack.c.bf16 %v4780, %v4779
        %v6157 = vpack.c.bf16 %v4782, %v4781
        %v6158 = vpack.c.bf16 %v4784, %v4783
        %v6159 = vpack.c.bf16 %v4786, %v4785
        %v6160 = vpack.c.bf16 %v4788, %v4787
        %v6161 = vpack.c.bf16 %v4790, %v4789
        %v6162 = vpack.c.bf16 %v4792, %v4791
        %v6163 = vpack.c.bf16 %v4794, %v4793
        %v6164 = vpack.c.bf16 %v4796, %v4795
        %v6165 = vpack.c.bf16 %v4798, %v4797
        %s6166 = scalar_lea.vmem [#allocation2], 256
        %v6167 = vld [vmem:[%s6166] sm:$0xf]
        %v6168 = vld [vmem:[%s6166 + $0x4] sm:$0xf]
        %v6169 = vld [vmem:[%s6166 + $0x8] sm:$0xf]
        %v6170 = vld [vmem:[%s6166 + $0xc] sm:$0xf]
        %v6171 = vld [vmem:[%s6166 + $0x10] sm:$0xf]
        %v6172 = vld [vmem:[%s6166 + $0x14] sm:$0xf]
        %v6173 = vld [vmem:[%s6166 + $0x18] sm:$0xf]
        %v6174 = vld [vmem:[%s6166 + $0x1c] sm:$0xf]
        %v6175 = vld [vmem:[%s6166 + $0x20] sm:$0xf]
        %v6176 = vld [vmem:[%s6166 + $0x24] sm:$0xf]
        %v6177 = vld [vmem:[%s6166 + $0x28] sm:$0xf]
        %v6178 = vld [vmem:[%s6166 + $0x2c] sm:$0xf]
        %v6179 = vld [vmem:[%s6166 + $0x30] sm:$0xf]
        %v6180 = vld [vmem:[%s6166 + $0x34] sm:$0xf]
        %v6181 = vld [vmem:[%s6166 + $0x38] sm:$0xf]
        %v6182 = vld [vmem:[%s6166 + $0x3c] sm:$0xf]
        %v6199 = vunpack.c.l.b16 %v6167
        %v6200 = vunpack.c.l.b16 %v6168
        %v6201 = vunpack.c.l.b16 %v6169
        %v6202 = vunpack.c.l.b16 %v6170
        %v6203 = vunpack.c.l.b16 %v6171
        %v6204 = vunpack.c.l.b16 %v6172
        %v6205 = vunpack.c.l.b16 %v6173
        %v6206 = vunpack.c.l.b16 %v6174
        %v6207 = vunpack.c.l.b16 %v6175
        %v6208 = vunpack.c.l.b16 %v6176
        %v6209 = vunpack.c.l.b16 %v6177
        %v6210 = vunpack.c.l.b16 %v6178
        %v6211 = vunpack.c.l.b16 %v6179
        %v6212 = vunpack.c.l.b16 %v6180
        %v6213 = vunpack.c.l.b16 %v6181
        %v6214 = vunpack.c.l.b16 %v6182
        %v6215 = vpack.c.b16 %v6200, %v6199
        %v6216 = vpack.c.b16 %v6202, %v6201
        %v6217 = vpack.c.b16 %v6204, %v6203
        %v6218 = vpack.c.b16 %v6206, %v6205
        %v6219 = vpack.c.b16 %v6208, %v6207
        %v6220 = vpack.c.b16 %v6210, %v6209
        %v6221 = vpack.c.b16 %v6212, %v6211
        %v6222 = vpack.c.b16 %v6214, %v6213
        %6231 = vmatprep.subr.bf16.mxu0 0
        %6232 = vmatpush1.bf16.msra.mxu0 %v6215
        %6233 = vmatprep.subr.bf16.mxu0 0
        %6234 = vmatpush1.bf16.msra.mxu0 %v6216
        %6235 = vmatprep.subr.bf16.mxu0 0
        %6236 = vmatpush1.bf16.msra.mxu0 %v6217
        %6237 = vmatprep.subr.bf16.mxu0 0
        %6238 = vmatpush1.bf16.msra.mxu0 %v6218
        %6239 = vmatprep.subr.bf16.mxu0 0
        %6240 = vmatpush1.bf16.msra.mxu0 %v6219
        %6241 = vmatprep.subr.bf16.mxu0 0
        %6242 = vmatpush1.bf16.msra.mxu0 %v6220
        %6243 = vmatprep.subr.bf16.mxu0 0
        %6244 = vmatpush1.bf16.msra.mxu0 %v6221
        %6245 = vmatprep.subr.bf16.mxu0 0
        %6246 = vmatpush1.bf16.msra.mxu0 %v6222
        %6247 = vmatprep.subr.bf16.mxu0 0
        %6248 = vmatpush1.bf16.msra.mxu0 0
        %6249 = vmatprep.subr.bf16.mxu0 0
        %6250 = vmatpush1.bf16.msra.mxu0 0
        %6251 = vmatprep.subr.bf16.mxu0 0
        %6252 = vmatpush1.bf16.msra.mxu0 0
        %6253 = vmatprep.subr.bf16.mxu0 0
        %6254 = vmatpush1.bf16.msra.mxu0 0
        %6255 = vmatprep.subr.bf16.mxu0 0
        %6256 = vmatpush1.bf16.msra.mxu0 0
        %6257 = vmatprep.subr.bf16.mxu0 0
        %6258 = vmatpush1.bf16.msra.mxu0 0
        %6259 = vmatprep.subr.bf16.mxu0 0
        %6260 = vmatpush1.bf16.msra.mxu0 0
        %6261 = vmatprep.subr.bf16.mxu0 0
        %6262 = vmatpush1.bf16.msra.mxu0 0
        %6263 = vmatprep.mubr.bf16.mxu0 0
        %6264 = vmatmul.mubr.bf16.gmra.mrb[0].mxu0 %v6150
        %v6265 = vpop.f32.mrb[0].mxu0
        %v6266 = vadd.f32 0.0, %v6265
        %v6267 = vpop.f32.mrb[0].mxu0
        %v6268 = vpop.f32.mrb[0].mxu0
        %v6269 = vadd.f32 0.0, %v6268
        %v6270 = vpop.f32.mrb[0].mxu0
        %6271 = vmatprep.mubr.bf16.mxu0 0
        %6272 = vmatmul.mubr.bf16.gmra.mrb[0].mxu0 %v6151
        %v6273 = vpop.f32.mrb[0].mxu0
        %v6274 = vadd.f32 0.0, %v6273
        %v6275 = vpop.f32.mrb[0].mxu0
        %v6276 = vpop.f32.mrb[0].mxu0
        %v6277 = vadd.f32 0.0, %v6276
        %v6278 = vpop.f32.mrb[0].mxu0
        %6279 = vmatprep.mubr.bf16.mxu0 0
        %6280 = vmatmul.mubr.bf16.gmra.mrb[0].mxu0 %v6152
        %v6281 = vpop.f32.mrb[0].mxu0
        %v6282 = vadd.f32 0.0, %v6281
        %v6283 = vpop.f32.mrb[0].mxu0
        %v6284 = vpop.f32.mrb[0].mxu0
        %v6285 = vadd.f32 0.0, %v6284
        %v6286 = vpop.f32.mrb[0].mxu0
        %6287 = vmatprep.mubr.bf16.mxu0 0
        %6288 = vmatmul.mubr.bf16.gmra.mrb[0].mxu0 %v6153
        %v6289 = vpop.f32.mrb[0].mxu0
        %v6290 = vadd.f32 0.0, %v6289
        %v6291 = vpop.f32.mrb[0].mxu0
        %v6292 = vpop.f32.mrb[0].mxu0
        %v6293 = vadd.f32 0.0, %v6292
        %v6294 = vpop.f32.mrb[0].mxu0
        %6295 = vmatprep.mubr.bf16.mxu0 0
        %6296 = vmatmul.mubr.bf16.gmra.mrb[0].mxu0 %v6154
        %v6297 = vpop.f32.mrb[0].mxu0
        %v6298 = vadd.f32 0.0, %v6297
        %v6299 = vpop.f32.mrb[0].mxu0
        %v6300 = vpop.f32.mrb[0].mxu0
        %v6301 = vadd.f32 0.0, %v6300
        %v6302 = vpop.f32.mrb[0].mxu0
        %6303 = vmatprep.mubr.bf16.mxu0 0
        %6304 = vmatmul.mubr.bf16.gmra.mrb[0].mxu0 %v6155
        %v6305 = vpop.f32.mrb[0].mxu0
        %v6306 = vadd.f32 0.0, %v6305
        %v6307 = vpop.f32.mrb[0].mxu0
        %v6308 = vpop.f32.mrb[0].mxu0
        %v6309 = vadd.f32 0.0, %v6308
        %v6310 = vpop.f32.mrb[0].mxu0
        %6311 = vmatprep.mubr.bf16.mxu0 0
        %6312 = vmatmul.mubr.bf16.gmra.mrb[0].mxu0 %v6156
        %v6313 = vpop.f32.mrb[0].mxu0
        %v6314 = vadd.f32 0.0, %v6313
        %v6315 = vpop.f32.mrb[0].mxu0
        %v6316 = vpop.f32.mrb[0].mxu0
        %v6317 = vadd.f32 0.0, %v6316
        %v6318 = vpop.f32.mrb[0].mxu0
        %6319 = vmatprep.mubr.bf16.mxu0 0
        %6320 = vmatmul.mubr.bf16.gmra.mrb[0].mxu0 %v6157
        %v6321 = vpop.f32.mrb[0].mxu0
        %v6322 = vadd.f32 0.0, %v6321
        %v6323 = vpop.f32.mrb[0].mxu0
        %v6324 = vpop.f32.mrb[0].mxu0
        %v6325 = vadd.f32 0.0, %v6324
        %v6326 = vpop.f32.mrb[0].mxu0
        %6327 = vmatprep.mubr.bf16.mxu0 0
        %6328 = vmatmul.mubr.bf16.gmra.mrb[0].mxu0 %v6158
        %v6329 = vpop.f32.mrb[0].mxu0
        %v6330 = vadd.f32 0.0, %v6329
        %v6331 = vpop.f32.mrb[0].mxu0
        %v6332 = vpop.f32.mrb[0].mxu0
        %v6333 = vadd.f32 0.0, %v6332
        %v6334 = vpop.f32.mrb[0].mxu0
        %6335 = vmatprep.mubr.bf16.mxu0 0
        %6336 = vmatmul.mubr.bf16.gmra.mrb[0].mxu0 %v6159
        %v6337 = vpop.f32.mrb[0].mxu0
        %v6338 = vadd.f32 0.0, %v6337
        %v6339 = vpop.f32.mrb[0].mxu0
        %v6340 = vpop.f32.mrb[0].mxu0
        %v6341 = vadd.f32 0.0, %v6340
        %v6342 = vpop.f32.mrb[0].mxu0
        %6343 = vmatprep.mubr.bf16.mxu0 0
        %6344 = vmatmul.mubr.bf16.gmra.mrb[0].mxu0 %v6160
        %v6345 = vpop.f32.mrb[0].mxu0
        %v6346 = vadd.f32 0.0, %v6345
        %v6347 = vpop.f32.mrb[0].mxu0
        %v6348 = vpop.f32.mrb[0].mxu0
        %v6349 = vadd.f32 0.0, %v6348
        %v6350 = vpop.f32.mrb[0].mxu0
        %6351 = vmatprep.mubr.bf16.mxu0 0
        %6352 = vmatmul.mubr.bf16.gmra.mrb[0].mxu0 %v6161
        %v6353 = vpop.f32.mrb[0].mxu0
        %v6354 = vadd.f32 0.0, %v6353
        %v6355 = vpop.f32.mrb[0].mxu0
        %v6356 = vpop.f32.mrb[0].mxu0
        %v6357 = vadd.f32 0.0, %v6356
        %v6358 = vpop.f32.mrb[0].mxu0
        %6359 = vmatprep.mubr.bf16.mxu0 0
        %6360 = vmatmul.mubr.bf16.gmra.mrb[0].mxu0 %v6162
        %v6361 = vpop.f32.mrb[0].mxu0
        %v6362 = vadd.f32 0.0, %v6361
        %v6363 = vpop.f32.mrb[0].mxu0
        %v6364 = vpop.f32.mrb[0].mxu0
        %v6365 = vadd.f32 0.0, %v6364
        %v6366 = vpop.f32.mrb[0].mxu0
        %6367 = vmatprep.mubr.bf16.mxu0 0
        %6368 = vmatmul.mubr.bf16.gmra.mrb[0].mxu0 %v6163
        %v6369 = vpop.f32.mrb[0].mxu0
        %v6370 = vadd.f32 0.0, %v6369
        %v6371 = vpop.f32.mrb[0].mxu0
        %v6372 = vpop.f32.mrb[0].mxu0
        %v6373 = vadd.f32 0.0, %v6372
        %v6374 = vpop.f32.mrb[0].mxu0
        %6375 = vmatprep.mubr.bf16.mxu0 0
        %6376 = vmatmul.mubr.bf16.gmra.mrb[0].mxu0 %v6164
        %v6377 = vpop.f32.mrb[0].mxu0
        %v6378 = vadd.f32 0.0, %v6377
        %v6379 = vpop.f32.mrb[0].mxu0
        %v6380 = vpop.f32.mrb[0].mxu0
        %v6381 = vadd.f32 0.0, %v6380
        %v6382 = vpop.f32.mrb[0].mxu0
        %6383 = vmatprep.mubr.bf16.mxu0 0
        %6384 = vmatmul.mubr.bf16.gmra.mrb[0].mxu0 %v6165
        %v6385 = vpop.f32.mrb[0].mxu0
        %v6386 = vadd.f32 0.0, %v6385
        %v6387 = vpop.f32.mrb[0].mxu0
        %v6388 = vpop.f32.mrb[0].mxu0
        %v6389 = vadd.f32 0.0, %v6388
        %v6390 = vpop.f32.mrb[0].mxu0
        %6391 = vdwg.mxu0
        %v6392 = vadd.f32 %v6118, %v6266
        %v6393 = vadd.f32 %v6119, %v6269
        %v6394 = vadd.f32 %v6120, %v6274
        %v6395 = vadd.f32 %v6121, %v6277
        %v6396 = vadd.f32 %v6122, %v6282
        %v6397 = vadd.f32 %v6123, %v6285
        %v6398 = vadd.f32 %v6124, %v6290
        %v6399 = vadd.f32 %v6125, %v6293
        %v6400 = vadd.f32 %v6126, %v6298
        %v6401 = vadd.f32 %v6127, %v6301
        %v6402 = vadd.f32 %v6128, %v6306
        %v6403 = vadd.f32 %v6129, %v6309
        %v6404 = vadd.f32 %v6130, %v6314
        %v6405 = vadd.f32 %v6131, %v6317
        %v6406 = vadd.f32 %v6132, %v6322
        %v6407 = vadd.f32 %v6133, %v6325
        %v6408 = vadd.f32 %v6134, %v6330
        %v6409 = vadd.f32 %v6135, %v6333
        %v6410 = vadd.f32 %v6136, %v6338
        %v6411 = vadd.f32 %v6137, %v6341
        %v6412 = vadd.f32 %v6138, %v6346
        %v6413 = vadd.f32 %v6139, %v6349
        %v6414 = vadd.f32 %v6140, %v6354
        %v6415 = vadd.f32 %v6141, %v6357
        %v6416 = vadd.f32 %v6142, %v6362
        %v6417 = vadd.f32 %v6143, %v6365
        %v6418 = vadd.f32 %v6144, %v6370
        %v6419 = vadd.f32 %v6145, %v6373
        %v6420 = vadd.f32 %v6146, %v6378
        %v6421 = vadd.f32 %v6147, %v6381
        %v6422 = vadd.f32 %v6148, %v6386
        %v6423 = vadd.f32 %v6149, %v6389
        %v6424 = vsel %vm3225, %v5536, 0.0
        %v6425 = vsel %vm3226, %v5535, 0.0
        %v6426 = vsel %vm3227, %v5534, 0.0
        %v6427 = vsel %vm3228, %v5533, 0.0
        %v6428 = vsel %vm3229, %v5532, 0.0
        %v6429 = vsel %vm3230, %v5531, 0.0
        %v6430 = vsel %vm3231, %v5530, 0.0
        %v6431 = vsel %vm3232, %v5529, 0.0
        %v6432 = vsel %vm3233, %v5528, 0.0
        %v6433 = vsel %vm3234, %v5527, 0.0
        %v6434 = vsel %vm3235, %v5526, 0.0
        %v6435 = vsel %vm3236, %v5525, 0.0
        %v6436 = vsel %vm3237, %v5524, 0.0
        %v6437 = vsel %vm3238, %v5523, 0.0
        %v6438 = vsel %vm3239, %v5522, 0.0
        %v6439 = vsel %vm3240, %v5521, 0.0
        %v6440 = vsel %vm3241, %v5520, 0.0
        %v6441 = vsel %vm3242, %v5519, 0.0
        %v6442 = vsel %vm3243, %v5518, 0.0
        %v6443 = vsel %vm3244, %v5517, 0.0
        %v6444 = vsel %vm3245, %v5516, 0.0
        %v6445 = vsel %vm3246, %v5515, 0.0
        %v6446 = vsel %vm3247, %v5514, 0.0
        %v6447 = vsel %vm3248, %v5513, 0.0
        %v6448 = vsel %vm3249, %v5512, 0.0
        %v6449 = vsel %vm3250, %v5511, 0.0
        %v6450 = vsel %vm3251, %v5510, 0.0
        %v6451 = vsel %vm3252, %v5509, 0.0
        %v6452 = vsel %vm3253, %v5508, 0.0
        %v6453 = vsel %vm3254, %v5507, 0.0
        %v6454 = vsel %vm3255, %v5506, 0.0
        %v6455 = vsel %vm3256, %v5537, 0.0
        %v6456 = vpack.c.bf16 %v6425, %v6424
        %v6457 = vpack.c.bf16 %v6427, %v6426
        %v6458 = vpack.c.bf16 %v6429, %v6428
        %v6459 = vpack.c.bf16 %v6431, %v6430
        %v6460 = vpack.c.bf16 %v6433, %v6432
        %v6461 = vpack.c.bf16 %v6435, %v6434
        %v6462 = vpack.c.bf16 %v6437, %v6436
        %v6463 = vpack.c.bf16 %v6439, %v6438
        %v6464 = vpack.c.bf16 %v6441, %v6440
        %v6465 = vpack.c.bf16 %v6443, %v6442
        %v6466 = vpack.c.bf16 %v6445, %v6444
        %v6467 = vpack.c.bf16 %v6447, %v6446
        %v6468 = vpack.c.bf16 %v6449, %v6448
        %v6469 = vpack.c.bf16 %v6451, %v6450
        %v6470 = vpack.c.bf16 %v6453, %v6452
        %v6471 = vpack.c.bf16 %v6455, %v6454
        %s6472 = scalar_lea.vmem [#allocation2], 320
        %v6473 = vld [vmem:[%s6472] sm:$0xf]
        %v6474 = vld [vmem:[%s6472 + $0x4] sm:$0xf]
        %v6475 = vld [vmem:[%s6472 + $0x8] sm:$0xf]
        %v6476 = vld [vmem:[%s6472 + $0xc] sm:$0xf]
        %v6477 = vld [vmem:[%s6472 + $0x10] sm:$0xf]
        %v6478 = vld [vmem:[%s6472 + $0x14] sm:$0xf]
        %v6479 = vld [vmem:[%s6472 + $0x18] sm:$0xf]
        %v6480 = vld [vmem:[%s6472 + $0x1c] sm:$0xf]
        %v6481 = vld [vmem:[%s6472 + $0x20] sm:$0xf]
        %v6482 = vld [vmem:[%s6472 + $0x24] sm:$0xf]
        %v6483 = vld [vmem:[%s6472 + $0x28] sm:$0xf]
        %v6484 = vld [vmem:[%s6472 + $0x2c] sm:$0xf]
        %v6485 = vld [vmem:[%s6472 + $0x30] sm:$0xf]
        %v6486 = vld [vmem:[%s6472 + $0x34] sm:$0xf]
        %v6487 = vld [vmem:[%s6472 + $0x38] sm:$0xf]
        %v6488 = vld [vmem:[%s6472 + $0x3c] sm:$0xf]
        %v6505 = vunpack.c.l.b16 %v6473
        %v6506 = vunpack.c.l.b16 %v6474
        %v6507 = vunpack.c.l.b16 %v6475
        %v6508 = vunpack.c.l.b16 %v6476
        %v6509 = vunpack.c.l.b16 %v6477
        %v6510 = vunpack.c.l.b16 %v6478
        %v6511 = vunpack.c.l.b16 %v6479
        %v6512 = vunpack.c.l.b16 %v6480
        %v6513 = vunpack.c.l.b16 %v6481
        %v6514 = vunpack.c.l.b16 %v6482
        %v6515 = vunpack.c.l.b16 %v6483
        %v6516 = vunpack.c.l.b16 %v6484
        %v6517 = vunpack.c.l.b16 %v6485
        %v6518 = vunpack.c.l.b16 %v6486
        %v6519 = vunpack.c.l.b16 %v6487
        %v6520 = vunpack.c.l.b16 %v6488
        %v6521 = vpack.c.b16 %v6506, %v6505
        %v6522 = vpack.c.b16 %v6508, %v6507
        %v6523 = vpack.c.b16 %v6510, %v6509
        %v6524 = vpack.c.b16 %v6512, %v6511
        %v6525 = vpack.c.b16 %v6514, %v6513
        %v6526 = vpack.c.b16 %v6516, %v6515
        %v6527 = vpack.c.b16 %v6518, %v6517
        %v6528 = vpack.c.b16 %v6520, %v6519
        %6537 = vmatprep.subr.bf16.mxu0 0
        %6538 = vmatpush1.bf16.msra.mxu0 %v6521
        %6539 = vmatprep.subr.bf16.mxu0 0
        %6540 = vmatpush1.bf16.msra.mxu0 %v6522
        %6541 = vmatprep.subr.bf16.mxu0 0
        %6542 = vmatpush1.bf16.msra.mxu0 %v6523
        %6543 = vmatprep.subr.bf16.mxu0 0
        %6544 = vmatpush1.bf16.msra.mxu0 %v6524
        %6545 = vmatprep.subr.bf16.mxu0 0
        %6546 = vmatpush1.bf16.msra.mxu0 %v6525
        %6547 = vmatprep.subr.bf16.mxu0 0
        %6548 = vmatpush1.bf16.msra.mxu0 %v6526
        %6549 = vmatprep.subr.bf16.mxu0 0
        %6550 = vmatpush1.bf16.msra.mxu0 %v6527
        %6551 = vmatprep.subr.bf16.mxu0 0
        %6552 = vmatpush1.bf16.msra.mxu0 %v6528
        %6553 = vmatprep.subr.bf16.mxu0 0
        %6554 = vmatpush1.bf16.msra.mxu0 0
        %6555 = vmatprep.subr.bf16.mxu0 0
        %6556 = vmatpush1.bf16.msra.mxu0 0
        %6557 = vmatprep.subr.bf16.mxu0 0
        %6558 = vmatpush1.bf16.msra.mxu0 0
        %6559 = vmatprep.subr.bf16.mxu0 0
        %6560 = vmatpush1.bf16.msra.mxu0 0
        %6561 = vmatprep.subr.bf16.mxu0 0
        %6562 = vmatpush1.bf16.msra.mxu0 0
        %6563 = vmatprep.subr.bf16.mxu0 0
        %6564 = vmatpush1.bf16.msra.mxu0 0
        %6565 = vmatprep.subr.bf16.mxu0 0
        %6566 = vmatpush1.bf16.msra.mxu0 0
        %6567 = vmatprep.subr.bf16.mxu0 0
        %6568 = vmatpush1.bf16.msra.mxu0 0
        %6569 = vmatprep.mubr.bf16.mxu0 0
        %6570 = vmatmul.mubr.bf16.gmra.mrb[0].mxu0 %v6456
        %v6571 = vpop.f32.mrb[0].mxu0
        %v6572 = vadd.f32 0.0, %v6571
        %v6573 = vpop.f32.mrb[0].mxu0
        %v6574 = vpop.f32.mrb[0].mxu0
        %v6575 = vadd.f32 0.0, %v6574
        %v6576 = vpop.f32.mrb[0].mxu0
        %6577 = vmatprep.mubr.bf16.mxu0 0
        %6578 = vmatmul.mubr.bf16.gmra.mrb[0].mxu0 %v6457
        %v6579 = vpop.f32.mrb[0].mxu0
        %v6580 = vadd.f32 0.0, %v6579
        %v6581 = vpop.f32.mrb[0].mxu0
        %v6582 = vpop.f32.mrb[0].mxu0
        %v6583 = vadd.f32 0.0, %v6582
        %v6584 = vpop.f32.mrb[0].mxu0
        %6585 = vmatprep.mubr.bf16.mxu0 0
        %6586 = vmatmul.mubr.bf16.gmra.mrb[0].mxu0 %v6458
        %v6587 = vpop.f32.mrb[0].mxu0
        %v6588 = vadd.f32 0.0, %v6587
        %v6589 = vpop.f32.mrb[0].mxu0
        %v6590 = vpop.f32.mrb[0].mxu0
        %v6591 = vadd.f32 0.0, %v6590
        %v6592 = vpop.f32.mrb[0].mxu0
        %6593 = vmatprep.mubr.bf16.mxu0 0
        %6594 = vmatmul.mubr.bf16.gmra.mrb[0].mxu0 %v6459
        %v6595 = vpop.f32.mrb[0].mxu0
        %v6596 = vadd.f32 0.0, %v6595
        %v6597 = vpop.f32.mrb[0].mxu0
        %v6598 = vpop.f32.mrb[0].mxu0
        %v6599 = vadd.f32 0.0, %v6598
        %v6600 = vpop.f32.mrb[0].mxu0
        %6601 = vmatprep.mubr.bf16.mxu0 0
        %6602 = vmatmul.mubr.bf16.gmra.mrb[0].mxu0 %v6460
        %v6603 = vpop.f32.mrb[0].mxu0
        %v6604 = vadd.f32 0.0, %v6603
        %v6605 = vpop.f32.mrb[0].mxu0
        %v6606 = vpop.f32.mrb[0].mxu0
        %v6607 = vadd.f32 0.0, %v6606
        %v6608 = vpop.f32.mrb[0].mxu0
        %6609 = vmatprep.mubr.bf16.mxu0 0
        %6610 = vmatmul.mubr.bf16.gmra.mrb[0].mxu0 %v6461
        %v6611 = vpop.f32.mrb[0].mxu0
        %v6612 = vadd.f32 0.0, %v6611
        %v6613 = vpop.f32.mrb[0].mxu0
        %v6614 = vpop.f32.mrb[0].mxu0
        %v6615 = vadd.f32 0.0, %v6614
        %v6616 = vpop.f32.mrb[0].mxu0
        %6617 = vmatprep.mubr.bf16.mxu0 0
        %6618 = vmatmul.mubr.bf16.gmra.mrb[0].mxu0 %v6462
        %v6619 = vpop.f32.mrb[0].mxu0
        %v6620 = vadd.f32 0.0, %v6619
        %v6621 = vpop.f32.mrb[0].mxu0
        %v6622 = vpop.f32.mrb[0].mxu0
        %v6623 = vadd.f32 0.0, %v6622
        %v6624 = vpop.f32.mrb[0].mxu0
        %6625 = vmatprep.mubr.bf16.mxu0 0
        %6626 = vmatmul.mubr.bf16.gmra.mrb[0].mxu0 %v6463
        %v6627 = vpop.f32.mrb[0].mxu0
        %v6628 = vadd.f32 0.0, %v6627
        %v6629 = vpop.f32.mrb[0].mxu0
        %v6630 = vpop.f32.mrb[0].mxu0
        %v6631 = vadd.f32 0.0, %v6630
        %v6632 = vpop.f32.mrb[0].mxu0
        %6633 = vmatprep.mubr.bf16.mxu0 0
        %6634 = vmatmul.mubr.bf16.gmra.mrb[0].mxu0 %v6464
        %v6635 = vpop.f32.mrb[0].mxu0
        %v6636 = vadd.f32 0.0, %v6635
        %v6637 = vpop.f32.mrb[0].mxu0
        %v6638 = vpop.f32.mrb[0].mxu0
        %v6639 = vadd.f32 0.0, %v6638
        %v6640 = vpop.f32.mrb[0].mxu0
        %6641 = vmatprep.mubr.bf16.mxu0 0
        %6642 = vmatmul.mubr.bf16.gmra.mrb[0].mxu0 %v6465
        %v6643 = vpop.f32.mrb[0].mxu0
        %v6644 = vadd.f32 0.0, %v6643
        %v6645 = vpop.f32.mrb[0].mxu0
        %v6646 = vpop.f32.mrb[0].mxu0
        %v6647 = vadd.f32 0.0, %v6646
        %v6648 = vpop.f32.mrb[0].mxu0
        %6649 = vmatprep.mubr.bf16.mxu0 0
        %6650 = vmatmul.mubr.bf16.gmra.mrb[0].mxu0 %v6466
        %v6651 = vpop.f32.mrb[0].mxu0
        %v6652 = vadd.f32 0.0, %v6651
        %v6653 = vpop.f32.mrb[0].mxu0
        %v6654 = vpop.f32.mrb[0].mxu0
        %v6655 = vadd.f32 0.0, %v6654
        %v6656 = vpop.f32.mrb[0].mxu0
        %6657 = vmatprep.mubr.bf16.mxu0 0
        %6658 = vmatmul.mubr.bf16.gmra.mrb[0].mxu0 %v6467
        %v6659 = vpop.f32.mrb[0].mxu0
        %v6660 = vadd.f32 0.0, %v6659
        %v6661 = vpop.f32.mrb[0].mxu0
        %v6662 = vpop.f32.mrb[0].mxu0
        %v6663 = vadd.f32 0.0, %v6662
        %v6664 = vpop.f32.mrb[0].mxu0
        %6665 = vmatprep.mubr.bf16.mxu0 0
        %6666 = vmatmul.mubr.bf16.gmra.mrb[0].mxu0 %v6468
        %v6667 = vpop.f32.mrb[0].mxu0
        %v6668 = vadd.f32 0.0, %v6667
        %v6669 = vpop.f32.mrb[0].mxu0
        %v6670 = vpop.f32.mrb[0].mxu0
        %v6671 = vadd.f32 0.0, %v6670
        %v6672 = vpop.f32.mrb[0].mxu0
        %6673 = vmatprep.mubr.bf16.mxu0 0
        %6674 = vmatmul.mubr.bf16.gmra.mrb[0].mxu0 %v6469
        %v6675 = vpop.f32.mrb[0].mxu0
        %v6676 = vadd.f32 0.0, %v6675
        %v6677 = vpop.f32.mrb[0].mxu0
        %v6678 = vpop.f32.mrb[0].mxu0
        %v6679 = vadd.f32 0.0, %v6678
        %v6680 = vpop.f32.mrb[0].mxu0
        %6681 = vmatprep.mubr.bf16.mxu0 0
        %6682 = vmatmul.mubr.bf16.gmra.mrb[0].mxu0 %v6470
        %v6683 = vpop.f32.mrb[0].mxu0
        %v6684 = vadd.f32 0.0, %v6683
        %v6685 = vpop.f32.mrb[0].mxu0
        %v6686 = vpop.f32.mrb[0].mxu0
        %v6687 = vadd.f32 0.0, %v6686
        %v6688 = vpop.f32.mrb[0].mxu0
        %6689 = vmatprep.mubr.bf16.mxu0 0
        %6690 = vmatmul.mubr.bf16.gmra.mrb[0].mxu0 %v6471
        %v6691 = vpop.f32.mrb[0].mxu0
        %v6692 = vadd.f32 0.0, %v6691
        %v6693 = vpop.f32.mrb[0].mxu0
        %v6694 = vpop.f32.mrb[0].mxu0
        %v6695 = vadd.f32 0.0, %v6694
        %v6696 = vpop.f32.mrb[0].mxu0
        %6697 = vdwg.mxu0
        %v6698 = vadd.f32 %v6392, %v6572
        %v6699 = vadd.f32 %v6393, %v6575
        %v6700 = vadd.f32 %v6394, %v6580
        %v6701 = vadd.f32 %v6395, %v6583
        %v6702 = vadd.f32 %v6396, %v6588
        %v6703 = vadd.f32 %v6397, %v6591
        %v6704 = vadd.f32 %v6398, %v6596
        %v6705 = vadd.f32 %v6399, %v6599
        %v6706 = vadd.f32 %v6400, %v6604
        %v6707 = vadd.f32 %v6401, %v6607
        %v6708 = vadd.f32 %v6402, %v6612
        %v6709 = vadd.f32 %v6403, %v6615
        %v6710 = vadd.f32 %v6404, %v6620
        %v6711 = vadd.f32 %v6405, %v6623
        %v6712 = vadd.f32 %v6406, %v6628
        %v6713 = vadd.f32 %v6407, %v6631
        %v6714 = vadd.f32 %v6408, %v6636
        %v6715 = vadd.f32 %v6409, %v6639
        %v6716 = vadd.f32 %v6410, %v6644
        %v6717 = vadd.f32 %v6411, %v6647
        %v6718 = vadd.f32 %v6412, %v6652
        %v6719 = vadd.f32 %v6413, %v6655
        %v6720 = vadd.f32 %v6414, %v6660
        %v6721 = vadd.f32 %v6415, %v6663
        %v6722 = vadd.f32 %v6416, %v6668
        %v6723 = vadd.f32 %v6417, %v6671
        %v6724 = vadd.f32 %v6418, %v6676
        %v6725 = vadd.f32 %v6419, %v6679
        %v6726 = vadd.f32 %v6420, %v6684
        %v6727 = vadd.f32 %v6421, %v6687
        %v6728 = vadd.f32 %v6422, %v6692
        %v6729 = vadd.f32 %v6423, %v6695
        %v6730 = vsel %vm3615, %v4860, 0.0
        %v6731 = vsel %vm3616, %v4859, 0.0
        %v6732 = vsel %vm3617, %v4858, 0.0
        %v6733 = vsel %vm3618, %v4857, 0.0
        %v6734 = vsel %vm3619, %v4856, 0.0
        %v6735 = vsel %vm3620, %v4855, 0.0
        %v6736 = vsel %vm3621, %v4854, 0.0
        %v6737 = vsel %vm3622, %v4853, 0.0
        %v6738 = vsel %vm3623, %v4852, 0.0
        %v6739 = vsel %vm3624, %v4851, 0.0
        %v6740 = vsel %vm3625, %v4850, 0.0
        %v6741 = vsel %vm3626, %v4849, 0.0
        %v6742 = vsel %vm3627, %v4848, 0.0
        %v6743 = vsel %vm3628, %v4847, 0.0
        %v6744 = vsel %vm3629, %v4846, 0.0
        %v6745 = vsel %vm3630, %v4845, 0.0
        %v6746 = vsel %vm3631, %v4844, 0.0
        %v6747 = vsel %vm3632, %v4843, 0.0
        %v6748 = vsel %vm3633, %v4842, 0.0
        %v6749 = vsel %vm3634, %v4841, 0.0
        %v6750 = vsel %vm3635, %v4840, 0.0
        %v6751 = vsel %vm3636, %v4839, 0.0
        %v6752 = vsel %vm3637, %v4838, 0.0
        %v6753 = vsel %vm3638, %v4837, 0.0
        %v6754 = vsel %vm3639, %v4836, 0.0
        %v6755 = vsel %vm3640, %v4835, 0.0
        %v6756 = vsel %vm3641, %v4834, 0.0
        %v6757 = vsel %vm3642, %v4833, 0.0
        %v6758 = vsel %vm3643, %v4832, 0.0
        %v6759 = vsel %vm3644, %v4831, 0.0
        %v6760 = vsel %vm3645, %v4862, 0.0
        %v6761 = vsel %vm3646, %v4861, 0.0
        %v6762 = vpack.c.bf16 %v6731, %v6730
        %v6763 = vpack.c.bf16 %v6733, %v6732
        %v6764 = vpack.c.bf16 %v6735, %v6734
        %v6765 = vpack.c.bf16 %v6737, %v6736
        %v6766 = vpack.c.bf16 %v6739, %v6738
        %v6767 = vpack.c.bf16 %v6741, %v6740
        %v6768 = vpack.c.bf16 %v6743, %v6742
        %v6769 = vpack.c.bf16 %v6745, %v6744
        %v6770 = vpack.c.bf16 %v6747, %v6746
        %v6771 = vpack.c.bf16 %v6749, %v6748
        %v6772 = vpack.c.bf16 %v6751, %v6750
        %v6773 = vpack.c.bf16 %v6753, %v6752
        %v6774 = vpack.c.bf16 %v6755, %v6754
        %v6775 = vpack.c.bf16 %v6757, %v6756
        %v6776 = vpack.c.bf16 %v6759, %v6758
        %v6777 = vpack.c.bf16 %v6761, %v6760
        %s6778 = scalar_lea.vmem [#allocation2], 384
        %v6779 = vld [vmem:[%s6778] sm:$0xf]
        %v6780 = vld [vmem:[%s6778 + $0x4] sm:$0xf]
        %v6781 = vld [vmem:[%s6778 + $0x8] sm:$0xf]
        %v6782 = vld [vmem:[%s6778 + $0xc] sm:$0xf]
        %v6783 = vld [vmem:[%s6778 + $0x10] sm:$0xf]
        %v6784 = vld [vmem:[%s6778 + $0x14] sm:$0xf]
        %v6785 = vld [vmem:[%s6778 + $0x18] sm:$0xf]
        %v6786 = vld [vmem:[%s6778 + $0x1c] sm:$0xf]
        %v6787 = vld [vmem:[%s6778 + $0x20] sm:$0xf]
        %v6788 = vld [vmem:[%s6778 + $0x24] sm:$0xf]
        %v6789 = vld [vmem:[%s6778 + $0x28] sm:$0xf]
        %v6790 = vld [vmem:[%s6778 + $0x2c] sm:$0xf]
        %v6791 = vld [vmem:[%s6778 + $0x30] sm:$0xf]
        %v6792 = vld [vmem:[%s6778 + $0x34] sm:$0xf]
        %v6793 = vld [vmem:[%s6778 + $0x38] sm:$0xf]
        %v6794 = vld [vmem:[%s6778 + $0x3c] sm:$0xf]
        %v6811 = vunpack.c.l.b16 %v6779
        %v6812 = vunpack.c.l.b16 %v6780
        %v6813 = vunpack.c.l.b16 %v6781
        %v6814 = vunpack.c.l.b16 %v6782
        %v6815 = vunpack.c.l.b16 %v6783
        %v6816 = vunpack.c.l.b16 %v6784
        %v6817 = vunpack.c.l.b16 %v6785
        %v6818 = vunpack.c.l.b16 %v6786
        %v6819 = vunpack.c.l.b16 %v6787
        %v6820 = vunpack.c.l.b16 %v6788
        %v6821 = vunpack.c.l.b16 %v6789
        %v6822 = vunpack.c.l.b16 %v6790
        %v6823 = vunpack.c.l.b16 %v6791
        %v6824 = vunpack.c.l.b16 %v6792
        %v6825 = vunpack.c.l.b16 %v6793
        %v6826 = vunpack.c.l.b16 %v6794
        %v6827 = vpack.c.b16 %v6812, %v6811
        %v6828 = vpack.c.b16 %v6814, %v6813
        %v6829 = vpack.c.b16 %v6816, %v6815
        %v6830 = vpack.c.b16 %v6818, %v6817
        %v6831 = vpack.c.b16 %v6820, %v6819
        %v6832 = vpack.c.b16 %v6822, %v6821
        %v6833 = vpack.c.b16 %v6824, %v6823
        %v6834 = vpack.c.b16 %v6826, %v6825
        %6843 = vmatprep.subr.bf16.mxu0 0
        %6844 = vmatpush1.bf16.msra.mxu0 %v6827
        %6845 = vmatprep.subr.bf16.mxu0 0
        %6846 = vmatpush1.bf16.msra.mxu0 %v6828
        %6847 = vmatprep.subr.bf16.mxu0 0
        %6848 = vmatpush1.bf16.msra.mxu0 %v6829
        %6849 = vmatprep.subr.bf16.mxu0 0
        %6850 = vmatpush1.bf16.msra.mxu0 %v6830
        %6851 = vmatprep.subr.bf16.mxu0 0
        %6852 = vmatpush1.bf16.msra.mxu0 %v6831
        %6853 = vmatprep.subr.bf16.mxu0 0
        %6854 = vmatpush1.bf16.msra.mxu0 %v6832
        %6855 = vmatprep.subr.bf16.mxu0 0
        %6856 = vmatpush1.bf16.msra.mxu0 %v6833
        %6857 = vmatprep.subr.bf16.mxu0 0
        %6858 = vmatpush1.bf16.msra.mxu0 %v6834
        %6859 = vmatprep.subr.bf16.mxu0 0
        %6860 = vmatpush1.bf16.msra.mxu0 0
        %6861 = vmatprep.subr.bf16.mxu0 0
        %6862 = vmatpush1.bf16.msra.mxu0 0
        %6863 = vmatprep.subr.bf16.mxu0 0
        %6864 = vmatpush1.bf16.msra.mxu0 0
        %6865 = vmatprep.subr.bf16.mxu0 0
        %6866 = vmatpush1.bf16.msra.mxu0 0
        %6867 = vmatprep.subr.bf16.mxu0 0
        %6868 = vmatpush1.bf16.msra.mxu0 0
        %6869 = vmatprep.subr.bf16.mxu0 0
        %6870 = vmatpush1.bf16.msra.mxu0 0
        %6871 = vmatprep.subr.bf16.mxu0 0
        %6872 = vmatpush1.bf16.msra.mxu0 0
        %6873 = vmatprep.subr.bf16.mxu0 0
        %6874 = vmatpush1.bf16.msra.mxu0 0
        %6875 = vmatprep.mubr.bf16.mxu0 0
        %6876 = vmatmul.mubr.bf16.gmra.mrb[0].mxu0 %v6762
        %v6877 = vpop.f32.mrb[0].mxu0
        %v6878 = vadd.f32 0.0, %v6877
        %v6879 = vpop.f32.mrb[0].mxu0
        %v6880 = vpop.f32.mrb[0].mxu0
        %v6881 = vadd.f32 0.0, %v6880
        %v6882 = vpop.f32.mrb[0].mxu0
        %6883 = vmatprep.mubr.bf16.mxu0 0
        %6884 = vmatmul.mubr.bf16.gmra.mrb[0].mxu0 %v6763
        %v6885 = vpop.f32.mrb[0].mxu0
        %v6886 = vadd.f32 0.0, %v6885
        %v6887 = vpop.f32.mrb[0].mxu0
        %v6888 = vpop.f32.mrb[0].mxu0
        %v6889 = vadd.f32 0.0, %v6888
        %v6890 = vpop.f32.mrb[0].mxu0
        %6891 = vmatprep.mubr.bf16.mxu0 0
        %6892 = vmatmul.mubr.bf16.gmra.mrb[0].mxu0 %v6764
        %v6893 = vpop.f32.mrb[0].mxu0
        %v6894 = vadd.f32 0.0, %v6893
        %v6895 = vpop.f32.mrb[0].mxu0
        %v6896 = vpop.f32.mrb[0].mxu0
        %v6897 = vadd.f32 0.0, %v6896
        %v6898 = vpop.f32.mrb[0].mxu0
        %6899 = vmatprep.mubr.bf16.mxu0 0
        %6900 = vmatmul.mubr.bf16.gmra.mrb[0].mxu0 %v6765
        %v6901 = vpop.f32.mrb[0].mxu0
        %v6902 = vadd.f32 0.0, %v6901
        %v6903 = vpop.f32.mrb[0].mxu0
        %v6904 = vpop.f32.mrb[0].mxu0
        %v6905 = vadd.f32 0.0, %v6904
        %v6906 = vpop.f32.mrb[0].mxu0
        %6907 = vmatprep.mubr.bf16.mxu0 0
        %6908 = vmatmul.mubr.bf16.gmra.mrb[0].mxu0 %v6766
        %v6909 = vpop.f32.mrb[0].mxu0
        %v6910 = vadd.f32 0.0, %v6909
        %v6911 = vpop.f32.mrb[0].mxu0
        %v6912 = vpop.f32.mrb[0].mxu0
        %v6913 = vadd.f32 0.0, %v6912
        %v6914 = vpop.f32.mrb[0].mxu0
        %6915 = vmatprep.mubr.bf16.mxu0 0
        %6916 = vmatmul.mubr.bf16.gmra.mrb[0].mxu0 %v6767
        %v6917 = vpop.f32.mrb[0].mxu0
        %v6918 = vadd.f32 0.0, %v6917
        %v6919 = vpop.f32.mrb[0].mxu0
        %v6920 = vpop.f32.mrb[0].mxu0
        %v6921 = vadd.f32 0.0, %v6920
        %v6922 = vpop.f32.mrb[0].mxu0
        %6923 = vmatprep.mubr.bf16.mxu0 0
        %6924 = vmatmul.mubr.bf16.gmra.mrb[0].mxu0 %v6768
        %v6925 = vpop.f32.mrb[0].mxu0
        %v6926 = vadd.f32 0.0, %v6925
        %v6927 = vpop.f32.mrb[0].mxu0
        %v6928 = vpop.f32.mrb[0].mxu0
        %v6929 = vadd.f32 0.0, %v6928
        %v6930 = vpop.f32.mrb[0].mxu0
        %6931 = vmatprep.mubr.bf16.mxu0 0
        %6932 = vmatmul.mubr.bf16.gmra.mrb[0].mxu0 %v6769
        %v6933 = vpop.f32.mrb[0].mxu0
        %v6934 = vadd.f32 0.0, %v6933
        %v6935 = vpop.f32.mrb[0].mxu0
        %v6936 = vpop.f32.mrb[0].mxu0
        %v6937 = vadd.f32 0.0, %v6936
        %v6938 = vpop.f32.mrb[0].mxu0
        %6939 = vmatprep.mubr.bf16.mxu0 0
        %6940 = vmatmul.mubr.bf16.gmra.mrb[0].mxu0 %v6770
        %v6941 = vpop.f32.mrb[0].mxu0
        %v6942 = vadd.f32 0.0, %v6941
        %v6943 = vpop.f32.mrb[0].mxu0
        %v6944 = vpop.f32.mrb[0].mxu0
        %v6945 = vadd.f32 0.0, %v6944
        %v6946 = vpop.f32.mrb[0].mxu0
        %6947 = vmatprep.mubr.bf16.mxu0 0
        %6948 = vmatmul.mubr.bf16.gmra.mrb[0].mxu0 %v6771
        %v6949 = vpop.f32.mrb[0].mxu0
        %v6950 = vadd.f32 0.0, %v6949
        %v6951 = vpop.f32.mrb[0].mxu0
        %v6952 = vpop.f32.mrb[0].mxu0
        %v6953 = vadd.f32 0.0, %v6952
        %v6954 = vpop.f32.mrb[0].mxu0
        %6955 = vmatprep.mubr.bf16.mxu0 0
        %6956 = vmatmul.mubr.bf16.gmra.mrb[0].mxu0 %v6772
        %v6957 = vpop.f32.mrb[0].mxu0
        %v6958 = vadd.f32 0.0, %v6957
        %v6959 = vpop.f32.mrb[0].mxu0
        %v6960 = vpop.f32.mrb[0].mxu0
        %v6961 = vadd.f32 0.0, %v6960
        %v6962 = vpop.f32.mrb[0].mxu0
        %6963 = vmatprep.mubr.bf16.mxu0 0
        %6964 = vmatmul.mubr.bf16.gmra.mrb[0].mxu0 %v6773
        %v6965 = vpop.f32.mrb[0].mxu0
        %v6966 = vadd.f32 0.0, %v6965
        %v6967 = vpop.f32.mrb[0].mxu0
        %v6968 = vpop.f32.mrb[0].mxu0
        %v6969 = vadd.f32 0.0, %v6968
        %v6970 = vpop.f32.mrb[0].mxu0
        %6971 = vmatprep.mubr.bf16.mxu0 0
        %6972 = vmatmul.mubr.bf16.gmra.mrb[0].mxu0 %v6774
        %v6973 = vpop.f32.mrb[0].mxu0
        %v6974 = vadd.f32 0.0, %v6973
        %v6975 = vpop.f32.mrb[0].mxu0
        %v6976 = vpop.f32.mrb[0].mxu0
        %v6977 = vadd.f32 0.0, %v6976
        %v6978 = vpop.f32.mrb[0].mxu0
        %6979 = vmatprep.mubr.bf16.mxu0 0
        %6980 = vmatmul.mubr.bf16.gmra.mrb[0].mxu0 %v6775
        %v6981 = vpop.f32.mrb[0].mxu0
        %v6982 = vadd.f32 0.0, %v6981
        %v6983 = vpop.f32.mrb[0].mxu0
        %v6984 = vpop.f32.mrb[0].mxu0
        %v6985 = vadd.f32 0.0, %v6984
        %v6986 = vpop.f32.mrb[0].mxu0
        %6987 = vmatprep.mubr.bf16.mxu0 0
        %6988 = vmatmul.mubr.bf16.gmra.mrb[0].mxu0 %v6776
        %v6989 = vpop.f32.mrb[0].mxu0
        %v6990 = vadd.f32 0.0, %v6989
        %v6991 = vpop.f32.mrb[0].mxu0
        %v6992 = vpop.f32.mrb[0].mxu0
        %v6993 = vadd.f32 0.0, %v6992
        %v6994 = vpop.f32.mrb[0].mxu0
        %6995 = vmatprep.mubr.bf16.mxu0 0
        %6996 = vmatmul.mubr.bf16.gmra.mrb[0].mxu0 %v6777
        %v6997 = vpop.f32.mrb[0].mxu0
        %v6998 = vadd.f32 0.0, %v6997
        %v6999 = vpop.f32.mrb[0].mxu0
        %v7000 = vpop.f32.mrb[0].mxu0
        %v7001 = vadd.f32 0.0, %v7000
        %v7002 = vpop.f32.mrb[0].mxu0
        %7003 = vdwg.mxu0
        %v7004 = vadd.f32 %v6698, %v6878
        %v7005 = vadd.f32 %v6699, %v6881
        %v7006 = vadd.f32 %v6700, %v6886
        %v7007 = vadd.f32 %v6701, %v6889
        %v7008 = vadd.f32 %v6702, %v6894
        %v7009 = vadd.f32 %v6703, %v6897
        %v7010 = vadd.f32 %v6704, %v6902
        %v7011 = vadd.f32 %v6705, %v6905
        %v7012 = vadd.f32 %v6706, %v6910
        %v7013 = vadd.f32 %v6707, %v6913
        %v7014 = vadd.f32 %v6708, %v6918
        %v7015 = vadd.f32 %v6709, %v6921
        %v7016 = vadd.f32 %v6710, %v6926
        %v7017 = vadd.f32 %v6711, %v6929
        %v7018 = vadd.f32 %v6712, %v6934
        %v7019 = vadd.f32 %v6713, %v6937
        %v7020 = vadd.f32 %v6714, %v6942
        %v7021 = vadd.f32 %v6715, %v6945
        %v7022 = vadd.f32 %v6716, %v6950
        %v7023 = vadd.f32 %v6717, %v6953
        %v7024 = vadd.f32 %v6718, %v6958
        %v7025 = vadd.f32 %v6719, %v6961
        %v7026 = vadd.f32 %v6720, %v6966
        %v7027 = vadd.f32 %v6721, %v6969
        %v7028 = vadd.f32 %v6722, %v6974
        %v7029 = vadd.f32 %v6723, %v6977
        %v7030 = vadd.f32 %v6724, %v6982
        %v7031 = vadd.f32 %v6725, %v6985
        %v7032 = vadd.f32 %v6726, %v6990
        %v7033 = vadd.f32 %v6727, %v6993
        %v7034 = vadd.f32 %v6728, %v6998
        %v7035 = vadd.f32 %v6729, %v7001
        %v7036 = vsel %vm3973, %v4769, 0.0
        %v7037 = vsel %vm3974, %v4770, 0.0
        %v7038 = vsel %vm3975, %v4771, 0.0
        %v7039 = vsel %vm3976, %v4772, 0.0
        %v7040 = vsel %vm3977, %v4773, 0.0
        %v7041 = vsel %vm3978, %v4774, 0.0
        %v7042 = vsel %vm3979, %v4775, 0.0
        %v7043 = vsel %vm3980, %v4776, 0.0
        %v7044 = vsel %vm3981, %v4777, 0.0
        %v7045 = vsel %vm3982, %v4778, 0.0
        %v7046 = vsel %vm3983, %v4779, 0.0
        %v7047 = vsel %vm3984, %v4780, 0.0
        %v7048 = vsel %vm3985, %v4781, 0.0
        %v7049 = vsel %vm3986, %v4782, 0.0
        %v7050 = vsel %vm3987, %v4783, 0.0
        %v7051 = vsel %vm3988, %v4784, 0.0
        %v7052 = vsel %vm3989, %v4785, 0.0
        %v7053 = vsel %vm3990, %v4786, 0.0
        %v7054 = vsel %vm3991, %v4787, 0.0
        %v7055 = vsel %vm3992, %v4788, 0.0
        %v7056 = vsel %vm3993, %v4789, 0.0
        %v7057 = vsel %vm3994, %v4790, 0.0
        %v7058 = vsel %vm3995, %v4791, 0.0
        %v7059 = vsel %vm3996, %v4792, 0.0
        %v7060 = vsel %vm3997, %v4793, 0.0
        %v7061 = vsel %vm3998, %v4794, 0.0
        %v7062 = vsel %vm3999, %v4795, 0.0
        %v7063 = vsel %vm4000, %v4796, 0.0
        %v7064 = vsel %vm4001, %v4797, 0.0
        %v7065 = vsel %vm4002, %v4798, 0.0
        %v7066 = vsel %vm4003, %v4767, 0.0
        %v7067 = vsel %vm4004, %v4768, 0.0
        %v7068 = vpack.c.bf16 %v7037, %v7036
        %v7069 = vpack.c.bf16 %v7039, %v7038
        %v7070 = vpack.c.bf16 %v7041, %v7040
        %v7071 = vpack.c.bf16 %v7043, %v7042
        %v7072 = vpack.c.bf16 %v7045, %v7044
        %v7073 = vpack.c.bf16 %v7047, %v7046
        %v7074 = vpack.c.bf16 %v7049, %v7048
        %v7075 = vpack.c.bf16 %v7051, %v7050
        %v7076 = vpack.c.bf16 %v7053, %v7052
        %v7077 = vpack.c.bf16 %v7055, %v7054
        %v7078 = vpack.c.bf16 %v7057, %v7056
        %v7079 = vpack.c.bf16 %v7059, %v7058
        %v7080 = vpack.c.bf16 %v7061, %v7060
        %v7081 = vpack.c.bf16 %v7063, %v7062
        %v7082 = vpack.c.bf16 %v7065, %v7064
        %v7083 = vpack.c.bf16 %v7067, %v7066
        %s7084 = scalar_lea.vmem [#allocation2], 448
        %v7085 = vld [vmem:[%s7084] sm:$0xf]
        %v7086 = vld [vmem:[%s7084 + $0x4] sm:$0xf]
        %v7087 = vld [vmem:[%s7084 + $0x8] sm:$0xf]
        %v7088 = vld [vmem:[%s7084 + $0xc] sm:$0xf]
        %v7089 = vld [vmem:[%s7084 + $0x10] sm:$0xf]
        %v7090 = vld [vmem:[%s7084 + $0x14] sm:$0xf]
        %v7091 = vld [vmem:[%s7084 + $0x18] sm:$0xf]
        %v7092 = vld [vmem:[%s7084 + $0x1c] sm:$0xf]
        %v7093 = vld [vmem:[%s7084 + $0x20] sm:$0xf]
        %v7094 = vld [vmem:[%s7084 + $0x24] sm:$0xf]
        %v7095 = vld [vmem:[%s7084 + $0x28] sm:$0xf]
        %v7096 = vld [vmem:[%s7084 + $0x2c] sm:$0xf]
        %v7097 = vld [vmem:[%s7084 + $0x30] sm:$0xf]
        %v7098 = vld [vmem:[%s7084 + $0x34] sm:$0xf]
        %v7099 = vld [vmem:[%s7084 + $0x38] sm:$0xf]
        %v7100 = vld [vmem:[%s7084 + $0x3c] sm:$0xf]
        %v7117 = vunpack.c.l.b16 %v7085
        %v7118 = vunpack.c.l.b16 %v7086
        %v7119 = vunpack.c.l.b16 %v7087
        %v7120 = vunpack.c.l.b16 %v7088
        %v7121 = vunpack.c.l.b16 %v7089
        %v7122 = vunpack.c.l.b16 %v7090
        %v7123 = vunpack.c.l.b16 %v7091
        %v7124 = vunpack.c.l.b16 %v7092
        %v7125 = vunpack.c.l.b16 %v7093
        %v7126 = vunpack.c.l.b16 %v7094
        %v7127 = vunpack.c.l.b16 %v7095
        %v7128 = vunpack.c.l.b16 %v7096
        %v7129 = vunpack.c.l.b16 %v7097
        %v7130 = vunpack.c.l.b16 %v7098
        %v7131 = vunpack.c.l.b16 %v7099
        %v7132 = vunpack.c.l.b16 %v7100
        %v7133 = vpack.c.b16 %v7118, %v7117
        %v7134 = vpack.c.b16 %v7120, %v7119
        %v7135 = vpack.c.b16 %v7122, %v7121
        %v7136 = vpack.c.b16 %v7124, %v7123
        %v7137 = vpack.c.b16 %v7126, %v7125
        %v7138 = vpack.c.b16 %v7128, %v7127
        %v7139 = vpack.c.b16 %v7130, %v7129
        %v7140 = vpack.c.b16 %v7132, %v7131
        %7149 = vmatprep.subr.bf16.mxu0 0
        %7150 = vmatpush1.bf16.msra.mxu0 %v7133
        %7151 = vmatprep.subr.bf16.mxu0 0
        %7152 = vmatpush1.bf16.msra.mxu0 %v7134
        %7153 = vmatprep.subr.bf16.mxu0 0
        %7154 = vmatpush1.bf16.msra.mxu0 %v7135
        %7155 = vmatprep.subr.bf16.mxu0 0
        %7156 = vmatpush1.bf16.msra.mxu0 %v7136
        %7157 = vmatprep.subr.bf16.mxu0 0
        %7158 = vmatpush1.bf16.msra.mxu0 %v7137
        %7159 = vmatprep.subr.bf16.mxu0 0
        %7160 = vmatpush1.bf16.msra.mxu0 %v7138
        %7161 = vmatprep.subr.bf16.mxu0 0
        %7162 = vmatpush1.bf16.msra.mxu0 %v7139
        %7163 = vmatprep.subr.bf16.mxu0 0
        %7164 = vmatpush1.bf16.msra.mxu0 %v7140
        %7165 = vmatprep.subr.bf16.mxu0 0
        %7166 = vmatpush1.bf16.msra.mxu0 0
        %7167 = vmatprep.subr.bf16.mxu0 0
        %7168 = vmatpush1.bf16.msra.mxu0 0
        %7169 = vmatprep.subr.bf16.mxu0 0
        %7170 = vmatpush1.bf16.msra.mxu0 0
        %7171 = vmatprep.subr.bf16.mxu0 0
        %7172 = vmatpush1.bf16.msra.mxu0 0
        %7173 = vmatprep.subr.bf16.mxu0 0
        %7174 = vmatpush1.bf16.msra.mxu0 0
        %7175 = vmatprep.subr.bf16.mxu0 0
        %7176 = vmatpush1.bf16.msra.mxu0 0
        %7177 = vmatprep.subr.bf16.mxu0 0
        %7178 = vmatpush1.bf16.msra.mxu0 0
        %7179 = vmatprep.subr.bf16.mxu0 0
        %7180 = vmatpush1.bf16.msra.mxu0 0
        %7181 = vmatprep.mubr.bf16.mxu0 0
        %7182 = vmatmul.mubr.bf16.gmra.mrb[0].mxu0 %v7068
        %v7183 = vpop.f32.mrb[0].mxu0
        %v7184 = vadd.f32 0.0, %v7183
        %v7185 = vpop.f32.mrb[0].mxu0
        %v7186 = vpop.f32.mrb[0].mxu0
        %v7187 = vadd.f32 0.0, %v7186
        %v7188 = vpop.f32.mrb[0].mxu0
        %7189 = vmatprep.mubr.bf16.mxu0 0
        %7190 = vmatmul.mubr.bf16.gmra.mrb[0].mxu0 %v7069
        %v7191 = vpop.f32.mrb[0].mxu0
        %v7192 = vadd.f32 0.0, %v7191
        %v7193 = vpop.f32.mrb[0].mxu0
        %v7194 = vpop.f32.mrb[0].mxu0
        %v7195 = vadd.f32 0.0, %v7194
        %v7196 = vpop.f32.mrb[0].mxu0
        %7197 = vmatprep.mubr.bf16.mxu0 0
        %7198 = vmatmul.mubr.bf16.gmra.mrb[0].mxu0 %v7070
        %v7199 = vpop.f32.mrb[0].mxu0
        %v7200 = vadd.f32 0.0, %v7199
        %v7201 = vpop.f32.mrb[0].mxu0
        %v7202 = vpop.f32.mrb[0].mxu0
        %v7203 = vadd.f32 0.0, %v7202
        %v7204 = vpop.f32.mrb[0].mxu0
        %7205 = vmatprep.mubr.bf16.mxu0 0
        %7206 = vmatmul.mubr.bf16.gmra.mrb[0].mxu0 %v7071
        %v7207 = vpop.f32.mrb[0].mxu0
        %v7208 = vadd.f32 0.0, %v7207
        %v7209 = vpop.f32.mrb[0].mxu0
        %v7210 = vpop.f32.mrb[0].mxu0
        %v7211 = vadd.f32 0.0, %v7210
        %v7212 = vpop.f32.mrb[0].mxu0
        %7213 = vmatprep.mubr.bf16.mxu0 0
        %7214 = vmatmul.mubr.bf16.gmra.mrb[0].mxu0 %v7072
        %v7215 = vpop.f32.mrb[0].mxu0
        %v7216 = vadd.f32 0.0, %v7215
        %v7217 = vpop.f32.mrb[0].mxu0
        %v7218 = vpop.f32.mrb[0].mxu0
        %v7219 = vadd.f32 0.0, %v7218
        %v7220 = vpop.f32.mrb[0].mxu0
        %7221 = vmatprep.mubr.bf16.mxu0 0
        %7222 = vmatmul.mubr.bf16.gmra.mrb[0].mxu0 %v7073
        %v7223 = vpop.f32.mrb[0].mxu0
        %v7224 = vadd.f32 0.0, %v7223
        %v7225 = vpop.f32.mrb[0].mxu0
        %v7226 = vpop.f32.mrb[0].mxu0
        %v7227 = vadd.f32 0.0, %v7226
        %v7228 = vpop.f32.mrb[0].mxu0
        %7229 = vmatprep.mubr.bf16.mxu0 0
        %7230 = vmatmul.mubr.bf16.gmra.mrb[0].mxu0 %v7074
        %v7231 = vpop.f32.mrb[0].mxu0
        %v7232 = vadd.f32 0.0, %v7231
        %v7233 = vpop.f32.mrb[0].mxu0
        %v7234 = vpop.f32.mrb[0].mxu0
        %v7235 = vadd.f32 0.0, %v7234
        %v7236 = vpop.f32.mrb[0].mxu0
        %7237 = vmatprep.mubr.bf16.mxu0 0
        %7238 = vmatmul.mubr.bf16.gmra.mrb[0].mxu0 %v7075
        %v7239 = vpop.f32.mrb[0].mxu0
        %v7240 = vadd.f32 0.0, %v7239
        %v7241 = vpop.f32.mrb[0].mxu0
        %v7242 = vpop.f32.mrb[0].mxu0
        %v7243 = vadd.f32 0.0, %v7242
        %v7244 = vpop.f32.mrb[0].mxu0
        %7245 = vmatprep.mubr.bf16.mxu0 0
        %7246 = vmatmul.mubr.bf16.gmra.mrb[0].mxu0 %v7076
        %v7247 = vpop.f32.mrb[0].mxu0
        %v7248 = vadd.f32 0.0, %v7247
        %v7249 = vpop.f32.mrb[0].mxu0
        %v7250 = vpop.f32.mrb[0].mxu0
        %v7251 = vadd.f32 0.0, %v7250
        %v7252 = vpop.f32.mrb[0].mxu0
        %7253 = vmatprep.mubr.bf16.mxu0 0
        %7254 = vmatmul.mubr.bf16.gmra.mrb[0].mxu0 %v7077
        %v7255 = vpop.f32.mrb[0].mxu0
        %v7256 = vadd.f32 0.0, %v7255
        %v7257 = vpop.f32.mrb[0].mxu0
        %v7258 = vpop.f32.mrb[0].mxu0
        %v7259 = vadd.f32 0.0, %v7258
        %v7260 = vpop.f32.mrb[0].mxu0
        %7261 = vmatprep.mubr.bf16.mxu0 0
        %7262 = vmatmul.mubr.bf16.gmra.mrb[0].mxu0 %v7078
        %v7263 = vpop.f32.mrb[0].mxu0
        %v7264 = vadd.f32 0.0, %v7263
        %v7265 = vpop.f32.mrb[0].mxu0
        %v7266 = vpop.f32.mrb[0].mxu0
        %v7267 = vadd.f32 0.0, %v7266
        %v7268 = vpop.f32.mrb[0].mxu0
        %7269 = vmatprep.mubr.bf16.mxu0 0
        %7270 = vmatmul.mubr.bf16.gmra.mrb[0].mxu0 %v7079
        %v7271 = vpop.f32.mrb[0].mxu0
        %v7272 = vadd.f32 0.0, %v7271
        %v7273 = vpop.f32.mrb[0].mxu0
        %v7274 = vpop.f32.mrb[0].mxu0
        %v7275 = vadd.f32 0.0, %v7274
        %v7276 = vpop.f32.mrb[0].mxu0
        %7277 = vmatprep.mubr.bf16.mxu0 0
        %7278 = vmatmul.mubr.bf16.gmra.mrb[0].mxu0 %v7080
        %v7279 = vpop.f32.mrb[0].mxu0
        %v7280 = vadd.f32 0.0, %v7279
        %v7281 = vpop.f32.mrb[0].mxu0
        %v7282 = vpop.f32.mrb[0].mxu0
        %v7283 = vadd.f32 0.0, %v7282
        %v7284 = vpop.f32.mrb[0].mxu0
        %7285 = vmatprep.mubr.bf16.mxu0 0
        %7286 = vmatmul.mubr.bf16.gmra.mrb[0].mxu0 %v7081
        %v7287 = vpop.f32.mrb[0].mxu0
        %v7288 = vadd.f32 0.0, %v7287
        %v7289 = vpop.f32.mrb[0].mxu0
        %v7290 = vpop.f32.mrb[0].mxu0
        %v7291 = vadd.f32 0.0, %v7290
        %v7292 = vpop.f32.mrb[0].mxu0
        %7293 = vmatprep.mubr.bf16.mxu0 0
        %7294 = vmatmul.mubr.bf16.gmra.mrb[0].mxu0 %v7082
        %v7295 = vpop.f32.mrb[0].mxu0
        %v7296 = vadd.f32 0.0, %v7295
        %v7297 = vpop.f32.mrb[0].mxu0
        %v7298 = vpop.f32.mrb[0].mxu0
        %v7299 = vadd.f32 0.0, %v7298
        %v7300 = vpop.f32.mrb[0].mxu0
        %7301 = vmatprep.mubr.bf16.mxu0 0
        %7302 = vmatmul.mubr.bf16.gmra.mrb[0].mxu0 %v7083
        %v7303 = vpop.f32.mrb[0].mxu0
        %v7304 = vadd.f32 0.0, %v7303
        %v7305 = vpop.f32.mrb[0].mxu0
        %v7306 = vpop.f32.mrb[0].mxu0
        %v7307 = vadd.f32 0.0, %v7306
        %v7308 = vpop.f32.mrb[0].mxu0
        %7309 = vdwg.mxu0
        %v7310 = vadd.f32 %v7004, %v7184
        %v7311 = vadd.f32 %v7005, %v7187
        %v7312 = vadd.f32 %v7006, %v7192
        %v7313 = vadd.f32 %v7007, %v7195
        %v7314 = vadd.f32 %v7008, %v7200
        %v7315 = vadd.f32 %v7009, %v7203
        %v7316 = vadd.f32 %v7010, %v7208
        %v7317 = vadd.f32 %v7011, %v7211
        %v7318 = vadd.f32 %v7012, %v7216
        %v7319 = vadd.f32 %v7013, %v7219
        %v7320 = vadd.f32 %v7014, %v7224
        %v7321 = vadd.f32 %v7015, %v7227
        %v7322 = vadd.f32 %v7016, %v7232
        %v7323 = vadd.f32 %v7017, %v7235
        %v7324 = vadd.f32 %v7018, %v7240
        %v7325 = vadd.f32 %v7019, %v7243
        %v7326 = vadd.f32 %v7020, %v7248
        %v7327 = vadd.f32 %v7021, %v7251
        %v7328 = vadd.f32 %v7022, %v7256
        %v7329 = vadd.f32 %v7023, %v7259
        %v7330 = vadd.f32 %v7024, %v7264
        %v7331 = vadd.f32 %v7025, %v7267
        %v7332 = vadd.f32 %v7026, %v7272
        %v7333 = vadd.f32 %v7027, %v7275
        %v7334 = vadd.f32 %v7028, %v7280
        %v7335 = vadd.f32 %v7029, %v7283
        %v7336 = vadd.f32 %v7030, %v7288
        %v7337 = vadd.f32 %v7031, %v7291
        %v7338 = vadd.f32 %v7032, %v7296
        %v7339 = vadd.f32 %v7033, %v7299
        %v7340 = vadd.f32 %v7034, %v7304
        %v7341 = vadd.f32 %v7035, %v7307
        %v7342 = vsel %vm4363, %v5534, 0.0
        %v7343 = vsel %vm4364, %v5533, 0.0
        %v7344 = vsel %vm4365, %v5532, 0.0
        %v7345 = vsel %vm4366, %v5531, 0.0
        %v7346 = vsel %vm4367, %v5530, 0.0
        %v7347 = vsel %vm4368, %v5529, 0.0
        %v7348 = vsel %vm4369, %v5528, 0.0
        %v7349 = vsel %vm4370, %v5527, 0.0
        %v7350 = vsel %vm4371, %v5526, 0.0
        %v7351 = vsel %vm4372, %v5525, 0.0
        %v7352 = vsel %vm4373, %v5524, 0.0
        %v7353 = vsel %vm4374, %v5523, 0.0
        %v7354 = vsel %vm4375, %v5522, 0.0
        %v7355 = vsel %vm4376, %v5521, 0.0
        %v7356 = vsel %vm4377, %v5520, 0.0
        %v7357 = vsel %vm4378, %v5519, 0.0
        %v7358 = vsel %vm4379, %v5518, 0.0
        %v7359 = vsel %vm4380, %v5517, 0.0
        %v7360 = vsel %vm4381, %v5516, 0.0
        %v7361 = vsel %vm4382, %v5515, 0.0
        %v7362 = vsel %vm4383, %v5514, 0.0
        %v7363 = vsel %vm4384, %v5513, 0.0
        %v7364 = vsel %vm4385, %v5512, 0.0
        %v7365 = vsel %vm4386, %v5511, 0.0
        %v7366 = vsel %vm4387, %v5510, 0.0
        %v7367 = vsel %vm4388, %v5509, 0.0
        %v7368 = vsel %vm4389, %v5508, 0.0
        %v7369 = vsel %vm4390, %v5507, 0.0
        %v7370 = vsel %vm4391, %v5506, 0.0
        %v7371 = vsel %vm4392, %v5537, 0.0
        %v7372 = vsel %vm4393, %v5536, 0.0
        %v7373 = vsel %vm4394, %v5535, 0.0
        %v7374 = vpack.c.bf16 %v7343, %v7342
        %v7375 = vpack.c.bf16 %v7345, %v7344
        %v7376 = vpack.c.bf16 %v7347, %v7346
        %v7377 = vpack.c.bf16 %v7349, %v7348
        %v7378 = vpack.c.bf16 %v7351, %v7350
        %v7379 = vpack.c.bf16 %v7353, %v7352
        %v7380 = vpack.c.bf16 %v7355, %v7354
        %v7381 = vpack.c.bf16 %v7357, %v7356
        %v7382 = vpack.c.bf16 %v7359, %v7358
        %v7383 = vpack.c.bf16 %v7361, %v7360
        %v7384 = vpack.c.bf16 %v7363, %v7362
        %v7385 = vpack.c.bf16 %v7365, %v7364
        %v7386 = vpack.c.bf16 %v7367, %v7366
        %v7387 = vpack.c.bf16 %v7369, %v7368
        %v7388 = vpack.c.bf16 %v7371, %v7370
        %v7389 = vpack.c.bf16 %v7373, %v7372
        %s7390 = scalar_lea.vmem [#allocation2], 512
        %v7391 = vld [vmem:[%s7390] sm:$0xf]
        %v7392 = vld [vmem:[%s7390 + $0x4] sm:$0xf]
        %v7393 = vld [vmem:[%s7390 + $0x8] sm:$0xf]
        %v7394 = vld [vmem:[%s7390 + $0xc] sm:$0xf]
        %v7395 = vld [vmem:[%s7390 + $0x10] sm:$0xf]
        %v7396 = vld [vmem:[%s7390 + $0x14] sm:$0xf]
        %v7397 = vld [vmem:[%s7390 + $0x18] sm:$0xf]
        %v7398 = vld [vmem:[%s7390 + $0x1c] sm:$0xf]
        %v7399 = vld [vmem:[%s7390 + $0x20] sm:$0xf]
        %v7400 = vld [vmem:[%s7390 + $0x24] sm:$0xf]
        %v7401 = vld [vmem:[%s7390 + $0x28] sm:$0xf]
        %v7402 = vld [vmem:[%s7390 + $0x2c] sm:$0xf]
        %v7403 = vld [vmem:[%s7390 + $0x30] sm:$0xf]
        %v7404 = vld [vmem:[%s7390 + $0x34] sm:$0xf]
        %v7405 = vld [vmem:[%s7390 + $0x38] sm:$0xf]
        %v7406 = vld [vmem:[%s7390 + $0x3c] sm:$0xf]
        %v7423 = vunpack.c.l.b16 %v7391
        %v7424 = vunpack.c.l.b16 %v7392
        %v7425 = vunpack.c.l.b16 %v7393
        %v7426 = vunpack.c.l.b16 %v7394
        %v7427 = vunpack.c.l.b16 %v7395
        %v7428 = vunpack.c.l.b16 %v7396
        %v7429 = vunpack.c.l.b16 %v7397
        %v7430 = vunpack.c.l.b16 %v7398
        %v7431 = vunpack.c.l.b16 %v7399
        %v7432 = vunpack.c.l.b16 %v7400
        %v7433 = vunpack.c.l.b16 %v7401
        %v7434 = vunpack.c.l.b16 %v7402
        %v7435 = vunpack.c.l.b16 %v7403
        %v7436 = vunpack.c.l.b16 %v7404
        %v7437 = vunpack.c.l.b16 %v7405
        %v7438 = vunpack.c.l.b16 %v7406
        %v7439 = vpack.c.b16 %v7424, %v7423
        %v7440 = vpack.c.b16 %v7426, %v7425
        %v7441 = vpack.c.b16 %v7428, %v7427
        %v7442 = vpack.c.b16 %v7430, %v7429
        %v7443 = vpack.c.b16 %v7432, %v7431
        %v7444 = vpack.c.b16 %v7434, %v7433
        %v7445 = vpack.c.b16 %v7436, %v7435
        %v7446 = vpack.c.b16 %v7438, %v7437
        %7455 = vmatprep.subr.bf16.mxu0 0
        %7456 = vmatpush1.bf16.msra.mxu0 %v7439
        %7457 = vmatprep.subr.bf16.mxu0 0
        %7458 = vmatpush1.bf16.msra.mxu0 %v7440
        %7459 = vmatprep.subr.bf16.mxu0 0
        %7460 = vmatpush1.bf16.msra.mxu0 %v7441
        %7461 = vmatprep.subr.bf16.mxu0 0
        %7462 = vmatpush1.bf16.msra.mxu0 %v7442
        %7463 = vmatprep.subr.bf16.mxu0 0
        %7464 = vmatpush1.bf16.msra.mxu0 %v7443
        %7465 = vmatprep.subr.bf16.mxu0 0
        %7466 = vmatpush1.bf16.msra.mxu0 %v7444
        %7467 = vmatprep.subr.bf16.mxu0 0
        %7468 = vmatpush1.bf16.msra.mxu0 %v7445
        %7469 = vmatprep.subr.bf16.mxu0 0
        %7470 = vmatpush1.bf16.msra.mxu0 %v7446
        %7471 = vmatprep.subr.bf16.mxu0 0
        %7472 = vmatpush1.bf16.msra.mxu0 0
        %7473 = vmatprep.subr.bf16.mxu0 0
        %7474 = vmatpush1.bf16.msra.mxu0 0
        %7475 = vmatprep.subr.bf16.mxu0 0
        %7476 = vmatpush1.bf16.msra.mxu0 0
        %7477 = vmatprep.subr.bf16.mxu0 0
        %7478 = vmatpush1.bf16.msra.mxu0 0
        %7479 = vmatprep.subr.bf16.mxu0 0
        %7480 = vmatpush1.bf16.msra.mxu0 0
        %7481 = vmatprep.subr.bf16.mxu0 0
        %7482 = vmatpush1.bf16.msra.mxu0 0
        %7483 = vmatprep.subr.bf16.mxu0 0
        %7484 = vmatpush1.bf16.msra.mxu0 0
        %7485 = vmatprep.subr.bf16.mxu0 0
        %7486 = vmatpush1.bf16.msra.mxu0 0
        %7487 = vmatprep.mubr.bf16.mxu0 0
        %7488 = vmatmul.mubr.bf16.gmra.mrb[0].mxu0 %v7374
        %v7489 = vpop.f32.mrb[0].mxu0
        %v7490 = vadd.f32 0.0, %v7489
        %v7491 = vpop.f32.mrb[0].mxu0
        %v7492 = vpop.f32.mrb[0].mxu0
        %v7493 = vadd.f32 0.0, %v7492
        %v7494 = vpop.f32.mrb[0].mxu0
        %7495 = vmatprep.mubr.bf16.mxu0 0
        %7496 = vmatmul.mubr.bf16.gmra.mrb[0].mxu0 %v7375
        %v7497 = vpop.f32.mrb[0].mxu0
        %v7498 = vadd.f32 0.0, %v7497
        %v7499 = vpop.f32.mrb[0].mxu0
        %v7500 = vpop.f32.mrb[0].mxu0
        %v7501 = vadd.f32 0.0, %v7500
        %v7502 = vpop.f32.mrb[0].mxu0
        %7503 = vmatprep.mubr.bf16.mxu0 0
        %7504 = vmatmul.mubr.bf16.gmra.mrb[0].mxu0 %v7376
        %v7505 = vpop.f32.mrb[0].mxu0
        %v7506 = vadd.f32 0.0, %v7505
        %v7507 = vpop.f32.mrb[0].mxu0
        %v7508 = vpop.f32.mrb[0].mxu0
        %v7509 = vadd.f32 0.0, %v7508
        %v7510 = vpop.f32.mrb[0].mxu0
        %7511 = vmatprep.mubr.bf16.mxu0 0
        %7512 = vmatmul.mubr.bf16.gmra.mrb[0].mxu0 %v7377
        %v7513 = vpop.f32.mrb[0].mxu0
        %v7514 = vadd.f32 0.0, %v7513
        %v7515 = vpop.f32.mrb[0].mxu0
        %v7516 = vpop.f32.mrb[0].mxu0
        %v7517 = vadd.f32 0.0, %v7516
        %v7518 = vpop.f32.mrb[0].mxu0
        %7519 = vmatprep.mubr.bf16.mxu0 0
        %7520 = vmatmul.mubr.bf16.gmra.mrb[0].mxu0 %v7378
        %v7521 = vpop.f32.mrb[0].mxu0
        %v7522 = vadd.f32 0.0, %v7521
        %v7523 = vpop.f32.mrb[0].mxu0
        %v7524 = vpop.f32.mrb[0].mxu0
        %v7525 = vadd.f32 0.0, %v7524
        %v7526 = vpop.f32.mrb[0].mxu0
        %7527 = vmatprep.mubr.bf16.mxu0 0
        %7528 = vmatmul.mubr.bf16.gmra.mrb[0].mxu0 %v7379
        %v7529 = vpop.f32.mrb[0].mxu0
        %v7530 = vadd.f32 0.0, %v7529
        %v7531 = vpop.f32.mrb[0].mxu0
        %v7532 = vpop.f32.mrb[0].mxu0
        %v7533 = vadd.f32 0.0, %v7532
        %v7534 = vpop.f32.mrb[0].mxu0
        %7535 = vmatprep.mubr.bf16.mxu0 0
        %7536 = vmatmul.mubr.bf16.gmra.mrb[0].mxu0 %v7380
        %v7537 = vpop.f32.mrb[0].mxu0
        %v7538 = vadd.f32 0.0, %v7537
        %v7539 = vpop.f32.mrb[0].mxu0
        %v7540 = vpop.f32.mrb[0].mxu0
        %v7541 = vadd.f32 0.0, %v7540
        %v7542 = vpop.f32.mrb[0].mxu0
        %7543 = vmatprep.mubr.bf16.mxu0 0
        %7544 = vmatmul.mubr.bf16.gmra.mrb[0].mxu0 %v7381
        %v7545 = vpop.f32.mrb[0].mxu0
        %v7546 = vadd.f32 0.0, %v7545
        %v7547 = vpop.f32.mrb[0].mxu0
        %v7548 = vpop.f32.mrb[0].mxu0
        %v7549 = vadd.f32 0.0, %v7548
        %v7550 = vpop.f32.mrb[0].mxu0
        %7551 = vmatprep.mubr.bf16.mxu0 0
        %7552 = vmatmul.mubr.bf16.gmra.mrb[0].mxu0 %v7382
        %v7553 = vpop.f32.mrb[0].mxu0
        %v7554 = vadd.f32 0.0, %v7553
        %v7555 = vpop.f32.mrb[0].mxu0
        %v7556 = vpop.f32.mrb[0].mxu0
        %v7557 = vadd.f32 0.0, %v7556
        %v7558 = vpop.f32.mrb[0].mxu0
        %7559 = vmatprep.mubr.bf16.mxu0 0
        %7560 = vmatmul.mubr.bf16.gmra.mrb[0].mxu0 %v7383
        %v7561 = vpop.f32.mrb[0].mxu0
        %v7562 = vadd.f32 0.0, %v7561
        %v7563 = vpop.f32.mrb[0].mxu0
        %v7564 = vpop.f32.mrb[0].mxu0
        %v7565 = vadd.f32 0.0, %v7564
        %v7566 = vpop.f32.mrb[0].mxu0
        %7567 = vmatprep.mubr.bf16.mxu0 0
        %7568 = vmatmul.mubr.bf16.gmra.mrb[0].mxu0 %v7384
        %v7569 = vpop.f32.mrb[0].mxu0
        %v7570 = vadd.f32 0.0, %v7569
        %v7571 = vpop.f32.mrb[0].mxu0
        %v7572 = vpop.f32.mrb[0].mxu0
        %v7573 = vadd.f32 0.0, %v7572
        %v7574 = vpop.f32.mrb[0].mxu0
        %7575 = vmatprep.mubr.bf16.mxu0 0
        %7576 = vmatmul.mubr.bf16.gmra.mrb[0].mxu0 %v7385
        %v7577 = vpop.f32.mrb[0].mxu0
        %v7578 = vadd.f32 0.0, %v7577
        %v7579 = vpop.f32.mrb[0].mxu0
        %v7580 = vpop.f32.mrb[0].mxu0
        %v7581 = vadd.f32 0.0, %v7580
        %v7582 = vpop.f32.mrb[0].mxu0
        %7583 = vmatprep.mubr.bf16.mxu0 0
        %7584 = vmatmul.mubr.bf16.gmra.mrb[0].mxu0 %v7386
        %v7585 = vpop.f32.mrb[0].mxu0
        %v7586 = vadd.f32 0.0, %v7585
        %v7587 = vpop.f32.mrb[0].mxu0
        %v7588 = vpop.f32.mrb[0].mxu0
        %v7589 = vadd.f32 0.0, %v7588
        %v7590 = vpop.f32.mrb[0].mxu0
        %7591 = vmatprep.mubr.bf16.mxu0 0
        %7592 = vmatmul.mubr.bf16.gmra.mrb[0].mxu0 %v7387
        %v7593 = vpop.f32.mrb[0].mxu0
        %v7594 = vadd.f32 0.0, %v7593
        %v7595 = vpop.f32.mrb[0].mxu0
        %v7596 = vpop.f32.mrb[0].mxu0
        %v7597 = vadd.f32 0.0, %v7596
        %v7598 = vpop.f32.mrb[0].mxu0
        %7599 = vmatprep.mubr.bf16.mxu0 0
        %7600 = vmatmul.mubr.bf16.gmra.mrb[0].mxu0 %v7388
        %v7601 = vpop.f32.mrb[0].mxu0
        %v7602 = vadd.f32 0.0, %v7601
        %v7603 = vpop.f32.mrb[0].mxu0
        %v7604 = vpop.f32.mrb[0].mxu0
        %v7605 = vadd.f32 0.0, %v7604
        %v7606 = vpop.f32.mrb[0].mxu0
        %7607 = vmatprep.mubr.bf16.mxu0 0
        %7608 = vmatmul.mubr.bf16.gmra.mrb[0].mxu0 %v7389
        %v7609 = vpop.f32.mrb[0].mxu0
        %v7610 = vadd.f32 0.0, %v7609
        %v7611 = vpop.f32.mrb[0].mxu0
        %v7612 = vpop.f32.mrb[0].mxu0
        %v7613 = vadd.f32 0.0, %v7612
        %v7614 = vpop.f32.mrb[0].mxu0
        %7615 = vdwg.mxu0
        %v7616 = vadd.f32 %v7310, %v7490
        %v7617 = vadd.f32 %v7311, %v7493
        %v7618 = vadd.f32 %v7312, %v7498
        %v7619 = vadd.f32 %v7313, %v7501
        %v7620 = vadd.f32 %v7314, %v7506
        %v7621 = vadd.f32 %v7315, %v7509
        %v7622 = vadd.f32 %v7316, %v7514
        %v7623 = vadd.f32 %v7317, %v7517
        %v7624 = vadd.f32 %v7318, %v7522
        %v7625 = vadd.f32 %v7319, %v7525
        %v7626 = vadd.f32 %v7320, %v7530
        %v7627 = vadd.f32 %v7321, %v7533
        %v7628 = vadd.f32 %v7322, %v7538
        %v7629 = vadd.f32 %v7323, %v7541
        %v7630 = vadd.f32 %v7324, %v7546
        %v7631 = vadd.f32 %v7325, %v7549
        %v7632 = vadd.f32 %v7326, %v7554
        %v7633 = vadd.f32 %v7327, %v7557
        %v7634 = vadd.f32 %v7328, %v7562
        %v7635 = vadd.f32 %v7329, %v7565
        %v7636 = vadd.f32 %v7330, %v7570
        %v7637 = vadd.f32 %v7331, %v7573
        %v7638 = vadd.f32 %v7332, %v7578
        %v7639 = vadd.f32 %v7333, %v7581
        %v7640 = vadd.f32 %v7334, %v7586
        %v7641 = vadd.f32 %v7335, %v7589
        %v7642 = vadd.f32 %v7336, %v7594
        %v7643 = vadd.f32 %v7337, %v7597
        %v7644 = vadd.f32 %v7338, %v7602
        %v7645 = vadd.f32 %v7339, %v7605
        %v7646 = vadd.f32 %v7340, %v7610
        %v7647 = vadd.f32 %v7341, %v7613
        %7648 = vst [vmem:[%s367] sm:$0xff] %v7616
        %7649 = vst [vmem:[%s367 + $0x8] sm:$0xff] %v7617
        %7650 = vst [vmem:[%s367 + $0x10] sm:$0xff] %v7618
        %7651 = vst [vmem:[%s367 + $0x18] sm:$0xff] %v7619
        %7652 = vst [vmem:[%s367 + $0x20] sm:$0xff] %v7620
        %7653 = vst [vmem:[%s367 + $0x28] sm:$0xff] %v7621
        %7654 = vst [vmem:[%s367 + $0x30] sm:$0xff] %v7622
        %7655 = vst [vmem:[%s367 + $0x38] sm:$0xff] %v7623
        %7656 = vst [vmem:[%s367 + $0x40] sm:$0xff] %v7624
        %7657 = vst [vmem:[%s367 + $0x48] sm:$0xff] %v7625
        %7658 = vst [vmem:[%s367 + $0x50] sm:$0xff] %v7626
        %7659 = vst [vmem:[%s367 + $0x58] sm:$0xff] %v7627
        %7660 = vst [vmem:[%s367 + $0x60] sm:$0xff] %v7628
        %7661 = vst [vmem:[%s367 + $0x68] sm:$0xff] %v7629
        %7662 = vst [vmem:[%s367 + $0x70] sm:$0xff] %v7630
        %7663 = vst [vmem:[%s367 + $0x78] sm:$0xff] %v7631
        %7664 = vst [vmem:[%s367 + $0x80] sm:$0xff] %v7632
        %7665 = vst [vmem:[%s367 + $0x88] sm:$0xff] %v7633
        %7666 = vst [vmem:[%s367 + $0x90] sm:$0xff] %v7634
        %7667 = vst [vmem:[%s367 + $0x98] sm:$0xff] %v7635
        %7668 = vst [vmem:[%s367 + $0xa0] sm:$0xff] %v7636
        %7669 = vst [vmem:[%s367 + $0xa8] sm:$0xff] %v7637
        %7670 = vst [vmem:[%s367 + $0xb0] sm:$0xff] %v7638
        %7671 = vst [vmem:[%s367 + $0xb8] sm:$0xff] %v7639
        %7672 = vst [vmem:[%s367 + $0xc0] sm:$0xff] %v7640
        %7673 = vst [vmem:[%s367 + $0xc8] sm:$0xff] %v7641
        %7674 = vst [vmem:[%s367 + $0xd0] sm:$0xff] %v7642
        %7675 = vst [vmem:[%s367 + $0xd8] sm:$0xff] %v7643
        %7676 = vst [vmem:[%s367 + $0xe0] sm:$0xff] %v7644
        %7677 = vst [vmem:[%s367 + $0xe8] sm:$0xff] %v7645
        %7678 = vst [vmem:[%s367 + $0xf0] sm:$0xff] %v7646
        %7679 = vst [vmem:[%s367 + $0xf8] sm:$0xff] %v7647
        %s7680 = sand.u32 %s248, 1
        %s7681 = scalar_lea.sflag [#allocation4], %s7680
        %s7682 = sand.u32 %s248, 1
        %s7683 = smul.addr %s7682, 256
        %s7684 = scalar_lea.vmem [#allocation5], %s7683
        // Predicated region
        $region65: #{tpu_custom_call.1} parent=59 // pred_check
          %p7685 = pneg %p258
        $region66: #{tpu_custom_call.1} parent=59 // pred_check_branch
          %7687 = sbr.rel (%p7685) target = $region68
        $region67: #{tpu_custom_call.1} parent=59 // pred_region
          %s7689 = ssub.s32 4096, 4096
          %7690 = vsyncadd %s7681, %s7689
          %s7691 = smul.addr %s25, 32
          %s7692 = smul.addr %s7691, 128
          %s7693 = scalar_lea.hbm %s10, %s7692
          %s7694 = sshll.u32 %s7684, 4
          %s7695 = int_to_ptr.vmem [resolvable:$true] %s7694
          %7700 = dma.vmem_to_hbm [thread:$0]  %s7695, 4096, %s7693, %s7681, 128, 128, 8
        $region68: #{tpu_custom_call.1} parent=59 // pred_fallthru
          _
      $region60: #{tpu_custom_call.1} parent=5 // pred_fallthru
        _
      %p7701 = scmp.le.s32.totalorder 2, %s20
      // Predicated region
      $region69: #{tpu_custom_call.1} parent=5 // pred_check
        %p7702 = pneg %p7701
      $region70: #{tpu_custom_call.1} parent=5 // pred_check_branch
        %7704 = sbr.rel (%p7702) target = $region72
      $region71: #{tpu_custom_call.1} parent=5 // pred_region
        %s7705 = ssub.s32 %s20, 2
        // Predicated region
        $region73: #{tpu_custom_call.1} parent=71 // pred_check
          %p7706 = pneg %p264
        $region74: #{tpu_custom_call.1} parent=71 // pred_check_branch
          %7708 = sbr.rel (%p7706) target = $region76
        $region75: #{tpu_custom_call.1} parent=71 // pred_region
          %s7709 = sand.u32 %s249, 1
          %s7710 = scalar_lea.sflag [#allocation4], %s7709
          %s7711 = sand.u32 %s249, 1
          %s7712 = smul.addr %s7711, 256
          %s7713 = scalar_lea.vmem [#allocation5], %s7712
          %7714 = dma.done %s7710, 4096
        $region76: #{tpu_custom_call.1} parent=71 // pred_fallthru
          _
      $region72: #{tpu_custom_call.1} parent=5 // pred_fallthru
        _
    $region6: #{tpu_custom_call.1} parent=1 // loop_footer
      %s24 = sadd.s32 1, %s20
    $region7: #{tpu_custom_call.1} parent=1 // loop_footer_branch
      %19 = sbr.rel target = $region3
    $region8: #{tpu_custom_call.1} parent=1 // loop_exit
      _
    %7715 = vsyncpa [#allocation3], 1
    %s7716 = scalar_lea.sflag [#allocation3], 1
    %7717 = vsyncpa %s7716, 1
    %7718 = vsyncpa [#allocation4], 1
    %s7719 = scalar_lea.sflag [#allocation4], 1
    %7720 = vsyncpa %s7719, 1

</llo_original>
